<compile_context>
chip_gen: v6e
topology: v6e:2x2x1
jax: 0.10.0
libtpu: 0.0.40
codegen_flags: <defaults>
</compile_context>

<pallas_src>
import jax
import jax.numpy as jnp
from jax.experimental import pallas as pl
from jax.experimental.pallas import tpu as pltpu

BN_EPS = 0.2
DROPOUT_P = 0.3
FEAT_DIM = 512          # resnet_model output width implied by x1 = Linear(512, 256)
N_DROP_SITES = 12       # 8 branch outputs + 4 x*c outputs, each 256 wide


# ---------------------------------------------------------------------------
# Single fused kernel: the entire head network after the backbone features.
# ---------------------------------------------------------------------------
def _fused_head_kernel(
    f1_ref, f2_ref, drop_ref,
    w_x1, b_x1, w_x2, b_x2,
    w_xb, b_xb, w_xc, b_xc,
    w_k1, b_k1, w_k2, b_k2, w_k3, b_k3, w_k4, b_k4,
    w_y1, b_y1, w_y2, b_y2, w_y3, b_y3, w_y4, b_y4,
    y1_ref, y2_ref, y3_ref, y4_ref,
):
    def bn(y):
        # BatchNorm1d, training mode: per-call batch stats, biased variance,
        # gamma=1 / beta=0 (fresh-init affine params).
        mean = jnp.mean(y, axis=0, keepdims=True)
        var = jnp.mean((y - mean) ** 2, axis=0, keepdims=True)
        return (y - mean) * jax.lax.rsqrt(var + BN_EPS)

    def lin_relu_bn(x, w, b):
        y = jnp.dot(x, w, preferred_element_type=jnp.float32) + b
        return bn(jnp.maximum(y, 0.0))

    def softmax_head(x, w, b, out_ref):
        logits = jnp.dot(x, w, preferred_element_type=jnp.float32) + b
        m = jnp.max(logits, axis=-1, keepdims=True)
        e = jnp.exp(logits - m)
        out_ref[...] = (e / jnp.sum(e, axis=-1, keepdims=True)).astype(out_ref.dtype)

    # --- stem: shared x1 / x2 Linears, one bn1 call per input batch ---------
    x1o = lin_relu_bn(f1_ref[...], w_x1[...], b_x1[...])   # bn1(relu(x1(.)))
    x1o = lin_relu_bn(x1o, w_x2[...], b_x2[...])           # bn1(relu(x2(.)))
    x2o = lin_relu_bn(f2_ref[...], w_x1[...], b_x1[...])
    x2o = lin_relu_bn(x2o, w_x2[...], b_x2[...])

    # --- four distinct branches per input (x11..x14 / x21..x24) + dropout ---
    a1 = [lin_relu_bn(x1o, w_xb[g], b_xb[g]) * drop_ref[g] for g in range(4)]
    a2 = [lin_relu_bn(x2o, w_xb[4 + g], b_xb[4 + g]) * drop_ref[4 + g]
          for g in range(4)]

    # --- concat(x1i, x2i) then per-branch x*c Linear(512 -> 256) + dropout --
    hs = []
    for g in range(4):
        cat_g = jnp.concatenate([a1[g], a2[g]], axis=1)          # (B, 512)
        hs.append(lin_relu_bn(cat_g, w_xc[g], b_xc[g]) * drop_ref[8 + g])

    # --- shared brk1..brk4 chain, separate bn2..bn5 call per branch ---------
    for w, b in ((w_k1, b_k1), (w_k2, b_k2), (w_k3, b_k3), (w_k4, b_k4)):
        wv, bv = w[...], b[...]
        hs = [lin_relu_bn(h, wv, bv) for h in hs]

    # --- per-branch softmax heads -------------------------------------------
    softmax_head(hs[0], w_y1[...], b_y1[...], y1_ref)
    softmax_head(hs[1], w_y2[...], b_y2[...], y2_ref)
    softmax_head(hs[2], w_y3[...], b_y3[...], y3_ref)
    softmax_head(hs[3], w_y4[...], b_y4[...], y4_ref)


def _full_block(shape):
    """Whole-array BlockSpec for a grid=(1,) call."""
    zeros = (0,) * len(shape)
    return pl.BlockSpec(shape, lambda i: zeros)


def fused_head(f1, f2, drop, p):
    B = f1.shape[0]
    operands = (
        f1, f2, drop,
        p["x1"][0], p["x1"][1], p["x2"][0], p["x2"][1],
        p["xb_w"], p["xb_b"], p["xc_w"], p["xc_b"],
        p["brk1"][0], p["brk1"][1], p["brk2"][0], p["brk2"][1],
        p["brk3"][0], p["brk3"][1], p["brk4"][0], p["brk4"][1],
        p["y1o"][0], p["y1o"][1], p["y2o"][0], p["y2o"][1],
        p["y3o"][0], p["y3o"][1], p["y4o"][0], p["y4o"][1],
    )
    out_shape = (
        jax.ShapeDtypeStruct((B, 3), jnp.float32),
        jax.ShapeDtypeStruct((B, 3), jnp.float32),
        jax.ShapeDtypeStruct((B, 6), jnp.float32),
        jax.ShapeDtypeStruct((B, 4), jnp.float32),
    )
    return pl.pallas_call(
        _fused_head_kernel,
        out_shape=out_shape,
        grid=(1,),
        in_specs=[_full_block(a.shape) for a in operands],
        out_specs=tuple(_full_block(s.shape) for s in out_shape),
        compiler_params=pltpu.CompilerParams(
            dimension_semantics=("arbitrary",),
            # ~5 MB of resident weights (+double-buffering) — explicit limit
            # keeps us well inside every generation's budget (incl. v7x 64 MiB).
            vmem_limit_bytes=48 * 1024 * 1024,
        ),
    )(*operands)


# ---------------------------------------------------------------------------
# Deterministic parameter construction (xavier_normal_ weights, torch-style bias)
# ---------------------------------------------------------------------------
def _linear_params(key, in_f, out_f):
    kw, kb = jax.random.split(key)
    std = (2.0 / (in_f + out_f)) ** 0.5
    w = std * jax.random.normal(kw, (in_f, out_f), jnp.float32)   # (in, out)
    bound = 1.0 / (in_f ** 0.5)
    b = jax.random.uniform(kb, (1, out_f), jnp.float32, -bound, bound)
    return w, b


def init_params(key, in_channels=4):
    keys = jax.random.split(key, 23)
    p = {}
    p["backbone"] = _linear_params(keys[0], in_channels, FEAT_DIM)   # stub
    p["x1"] = _linear_params(keys[1], 512, 256)
    p["x2"] = _linear_params(keys[2], 256, 256)
    # x11..x14 (on input 1) and x21..x24 (on input 2): 8 distinct (256->256).
    xb = [_linear_params(keys[3 + i], 256, 256) for i in range(8)]
    p["xb_w"] = jnp.stack([w for w, _ in xb])        # (8, 256, 256)
    p["xb_b"] = jnp.stack([b for _, b in xb])        # (8, 1, 256)
    # x1c..x4c: 4 distinct (512 -> 256).
    xc = [_linear_params(keys[11 + i], 512, 256) for i in range(4)]
    p["xc_w"] = jnp.stack([w for w, _ in xc])        # (4, 512, 256)
    p["xc_b"] = jnp.stack([b for _, b in xc])        # (4, 1, 256)
    p["brk1"] = _linear_params(keys[15], 256, 128)
    p["brk2"] = _linear_params(keys[16], 128, 64)
    p["brk3"] = _linear_params(keys[17], 64, 32)
    p["brk4"] = _linear_params(keys[18], 32, 16)
    p["y1o"] = _linear_params(keys[19], 16, 3)
    p["y2o"] = _linear_params(keys[20], 16, 3)
    p["y3o"] = _linear_params(keys[21], 16, 6)
    p["y4o"] = _linear_params(keys[22], 16, 4)
    return p


def backbone_stub(params, x_nchw):
    # TODO(synk): resnet_model is an external module; stand-in is
    # GAP over (H, W) + Linear(C -> 512) + ReLU (plain-JAX glue).
    w, b = params
    feat = jnp.mean(x_nchw, axis=(2, 3))              # (B, C)
    return jnp.maximum(feat @ w + b, 0.0)             # (B, 512)


# ---------------------------------------------------------------------------
# Forward pass
# ---------------------------------------------------------------------------
@jax.jit
def forward(params, x1_input, x2_input, dropout_key):
    f1 = backbone_stub(params["backbone"], x1_input)
    f2 = backbone_stub(params["backbone"], x2_input)
    B = f1.shape[0]
    # Train-mode dropout masks (scaled by 1/(1-p)); applied inside the kernel.
    keep = 1.0 - DROPOUT_P
    drop = (jax.random.bernoulli(dropout_key, keep, (N_DROP_SITES, B, 256))
            .astype(jnp.float32) * (1.0 / keep))
    return fused_head(f1, f2, drop, params)


if __name__ == "__main__":
    key = jax.random.PRNGKey(0)
    kp, k1, k2, kd = jax.random.split(key, 4)
    params = init_params(kp, in_channels=4)

    # Small NCHW inputs consistent with the module: batch=2, C=4, 16x16 spatial.
    x1_input = jax.random.normal(k1, (2, 4, 16, 16), jnp.float32)
    x2_input = jax.random.normal(k2, (2, 4, 16, 16), jnp.float32)

    outs = forward(params, x1_input, x2_input, kd)
    outs = jax.block_until_ready(outs)

    expected_cols = (3, 3, 6, 4)
    for o, n in zip(outs, expected_cols):
        assert o.shape == (2, n), o.shape
        assert bool(jnp.all(jnp.isfinite(o)))
        assert bool(jnp.allclose(jnp.sum(o, axis=1), 1.0, atol=1e-5))

    print("KERNEL_OK")
</pallas_src>

<mosaic_0001>
module attributes {stable_mosaic.version = 11 : i64} {
  func.func @_fused_head_kernel(%arg0: i32, %arg1: memref<2x512xf32, #tpu.memory_space<vmem>>, %arg2: memref<2x512xf32, #tpu.memory_space<vmem>>, %arg3: memref<12x2x256xf32, #tpu.memory_space<vmem>>, %arg4: memref<512x256xf32, #tpu.memory_space<vmem>>, %arg5: memref<1x256xf32, #tpu.memory_space<vmem>>, %arg6: memref<256x256xf32, #tpu.memory_space<vmem>>, %arg7: memref<1x256xf32, #tpu.memory_space<vmem>>, %arg8: memref<8x256x256xf32, #tpu.memory_space<vmem>>, %arg9: memref<8x1x256xf32, #tpu.memory_space<vmem>>, %arg10: memref<4x512x256xf32, #tpu.memory_space<vmem>>, %arg11: memref<4x1x256xf32, #tpu.memory_space<vmem>>, %arg12: memref<256x128xf32, #tpu.memory_space<vmem>>, %arg13: memref<1x128xf32, #tpu.memory_space<vmem>>, %arg14: memref<128x64xf32, #tpu.memory_space<vmem>>, %arg15: memref<1x64xf32, #tpu.memory_space<vmem>>, %arg16: memref<64x32xf32, #tpu.memory_space<vmem>>, %arg17: memref<1x32xf32, #tpu.memory_space<vmem>>, %arg18: memref<32x16xf32, #tpu.memory_space<vmem>>, %arg19: memref<1x16xf32, #tpu.memory_space<vmem>>, %arg20: memref<16x3xf32, #tpu.memory_space<vmem>>, %arg21: memref<1x3xf32, #tpu.memory_space<vmem>>, %arg22: memref<16x3xf32, #tpu.memory_space<vmem>>, %arg23: memref<1x3xf32, #tpu.memory_space<vmem>>, %arg24: memref<16x6xf32, #tpu.memory_space<vmem>>, %arg25: memref<1x6xf32, #tpu.memory_space<vmem>>, %arg26: memref<16x4xf32, #tpu.memory_space<vmem>>, %arg27: memref<1x4xf32, #tpu.memory_space<vmem>>, %arg28: memref<2x3xf32, #tpu.memory_space<vmem>>, %arg29: memref<2x3xf32, #tpu.memory_space<vmem>>, %arg30: memref<2x6xf32, #tpu.memory_space<vmem>>, %arg31: memref<2x4xf32, #tpu.memory_space<vmem>>) attributes {dimension_semantics = [#tpu.dimension_semantics<arbitrary>], iteration_bounds = array<i64: 1>, scalar_prefetch = 0 : i64, scratch_operands = 0 : i64, tpu.core_type = #tpu.core_type<tc>, window_params = [{pipeline_mode = #tpu.pipeline_mode<synchronous>, transform_indices = @transform_0, window_bounds = array<i64: 2, 512>}, {pipeline_mode = #tpu.pipeline_mode<synchronous>, transform_indices = @transform_1, window_bounds = array<i64: 2, 512>}, {pipeline_mode = #tpu.pipeline_mode<synchronous>, transform_indices = @transform_2, window_bounds = array<i64: 12, 2, 256>}, {pipeline_mode = #tpu.pipeline_mode<synchronous>, transform_indices = @transform_3, window_bounds = array<i64: 512, 256>}, {pipeline_mode = #tpu.pipeline_mode<synchronous>, transform_indices = @transform_4, window_bounds = array<i64: 1, 256>}, {pipeline_mode = #tpu.pipeline_mode<synchronous>, transform_indices = @transform_5, window_bounds = array<i64: 256, 256>}, {pipeline_mode = #tpu.pipeline_mode<synchronous>, transform_indices = @transform_6, window_bounds = array<i64: 1, 256>}, {pipeline_mode = #tpu.pipeline_mode<synchronous>, transform_indices = @transform_7, window_bounds = array<i64: 8, 256, 256>}, {pipeline_mode = #tpu.pipeline_mode<synchronous>, transform_indices = @transform_8, window_bounds = array<i64: 8, 1, 256>}, {pipeline_mode = #tpu.pipeline_mode<synchronous>, transform_indices = @transform_9, window_bounds = array<i64: 4, 512, 256>}, {pipeline_mode = #tpu.pipeline_mode<synchronous>, transform_indices = @transform_10, window_bounds = array<i64: 4, 1, 256>}, {pipeline_mode = #tpu.pipeline_mode<synchronous>, transform_indices = @transform_11, window_bounds = array<i64: 256, 128>}, {pipeline_mode = #tpu.pipeline_mode<synchronous>, transform_indices = @transform_12, window_bounds = array<i64: 1, 128>}, {pipeline_mode = #tpu.pipeline_mode<synchronous>, transform_indices = @transform_13, window_bounds = array<i64: 128, 64>}, {pipeline_mode = #tpu.pipeline_mode<synchronous>, transform_indices = @transform_14, window_bounds = array<i64: 1, 64>}, {pipeline_mode = #tpu.pipeline_mode<synchronous>, transform_indices = @transform_15, window_bounds = array<i64: 64, 32>}, {pipeline_mode = #tpu.pipeline_mode<synchronous>, transform_indices = @transform_16, window_bounds = array<i64: 1, 32>}, {pipeline_mode = #tpu.pipeline_mode<synchronous>, transform_indices = @transform_17, window_bounds = array<i64: 32, 16>}, {pipeline_mode = #tpu.pipeline_mode<synchronous>, transform_indices = @transform_18, window_bounds = array<i64: 1, 16>}, {pipeline_mode = #tpu.pipeline_mode<synchronous>, transform_indices = @transform_19, window_bounds = array<i64: 16, 3>}, {pipeline_mode = #tpu.pipeline_mode<synchronous>, transform_indices = @transform_20, window_bounds = array<i64: 1, 3>}, {pipeline_mode = #tpu.pipeline_mode<synchronous>, transform_indices = @transform_21, window_bounds = array<i64: 16, 3>}, {pipeline_mode = #tpu.pipeline_mode<synchronous>, transform_indices = @transform_22, window_bounds = array<i64: 1, 3>}, {pipeline_mode = #tpu.pipeline_mode<synchronous>, transform_indices = @transform_23, window_bounds = array<i64: 16, 6>}, {pipeline_mode = #tpu.pipeline_mode<synchronous>, transform_indices = @transform_24, window_bounds = array<i64: 1, 6>}, {pipeline_mode = #tpu.pipeline_mode<synchronous>, transform_indices = @transform_25, window_bounds = array<i64: 16, 4>}, {pipeline_mode = #tpu.pipeline_mode<synchronous>, transform_indices = @transform_26, window_bounds = array<i64: 1, 4>}, {pipeline_mode = #tpu.pipeline_mode<synchronous>, transform_indices = @transform_27, window_bounds = array<i64: 2, 3>}, {pipeline_mode = #tpu.pipeline_mode<synchronous>, transform_indices = @transform_28, window_bounds = array<i64: 2, 3>}, {pipeline_mode = #tpu.pipeline_mode<synchronous>, transform_indices = @transform_29, window_bounds = array<i64: 2, 6>}, {pipeline_mode = #tpu.pipeline_mode<synchronous>, transform_indices = @transform_30, window_bounds = array<i64: 2, 4>}]} {
    %c0 = arith.constant 0 : index
    %c0_0 = arith.constant 0 : index
    %0 = vector.load %arg1[%c0, %c0_0] : memref<2x512xf32, #tpu.memory_space<vmem>>, vector<2x512xf32>
    %c0_1 = arith.constant 0 : index
    %c0_2 = arith.constant 0 : index
    %1 = vector.load %arg4[%c0_1, %c0_2] : memref<512x256xf32, #tpu.memory_space<vmem>>, vector<512x256xf32>
    %c0_3 = arith.constant 0 : index
    %c0_4 = arith.constant 0 : index
    %2 = vector.load %arg5[%c0_3, %c0_4] : memref<1x256xf32, #tpu.memory_space<vmem>>, vector<1x256xf32>
    %cst = arith.constant dense<0.000000e+00> : vector<2x256xf32>
    %3 = tpu.matmul %0, %1, %cst {dimension_numbers = #tpu.dot_dimension_numbers<[1], [0], [0], [1], [0, 0, 1, 1], [], []>} : vector<2x512xf32>, vector<512x256xf32>, vector<2x256xf32> -> vector<2x256xf32>
    %4 = vector.broadcast %2 : vector<1x256xf32> to vector<2x256xf32>
    %5 = arith.addf %3, %4 : vector<2x256xf32>
    %cst_5 = arith.constant 0.000000e+00 : f32
    %6 = vector.broadcast %cst_5 : f32 to vector<2x256xf32>
    %7 = arith.maximumf %5, %6 : vector<2x256xf32>
    %cst_6 = arith.constant dense<0.000000e+00> : vector<256xf32>
    %8 = vector.multi_reduction <add>, %7, %cst_6 [0] : vector<2x256xf32> to vector<256xf32>
    %9 = vector.shape_cast %8 : vector<256xf32> to vector<1x256xf32>
    %cst_7 = arith.constant 2.000000e+00 : f32
    %10 = vector.broadcast %cst_7 : f32 to vector<1x256xf32>
    %11 = arith.divf %9, %10 : vector<1x256xf32>
    %12 = vector.broadcast %11 : vector<1x256xf32> to vector<2x256xf32>
    %13 = arith.subf %7, %12 : vector<2x256xf32>
    %14 = arith.mulf %13, %13 : vector<2x256xf32>
    %cst_8 = arith.constant dense<0.000000e+00> : vector<256xf32>
    %15 = vector.multi_reduction <add>, %14, %cst_8 [0] : vector<2x256xf32> to vector<256xf32>
    %16 = vector.shape_cast %15 : vector<256xf32> to vector<1x256xf32>
    %cst_9 = arith.constant 2.000000e+00 : f32
    %17 = vector.broadcast %cst_9 : f32 to vector<1x256xf32>
    %18 = arith.divf %16, %17 : vector<1x256xf32>
    %19 = vector.broadcast %11 : vector<1x256xf32> to vector<2x256xf32>
    %20 = arith.subf %7, %19 : vector<2x256xf32>
    %cst_10 = arith.constant 2.000000e-01 : f32
    %21 = vector.broadcast %cst_10 : f32 to vector<1x256xf32>
    %22 = arith.addf %18, %21 : vector<1x256xf32>
    %23 = math.rsqrt %22 : vector<1x256xf32>
    %24 = vector.broadcast %23 : vector<1x256xf32> to vector<2x256xf32>
    %25 = arith.mulf %20, %24 : vector<2x256xf32>
    %c0_11 = arith.constant 0 : index
    %c0_12 = arith.constant 0 : index
    %26 = vector.load %arg6[%c0_11, %c0_12] : memref<256x256xf32, #tpu.memory_space<vmem>>, vector<256x256xf32>
    %c0_13 = arith.constant 0 : index
    %c0_14 = arith.constant 0 : index
    %27 = vector.load %arg7[%c0_13, %c0_14] : memref<1x256xf32, #tpu.memory_space<vmem>>, vector<1x256xf32>
    %cst_15 = arith.constant dense<0.000000e+00> : vector<2x256xf32>
    %28 = tpu.matmul %25, %26, %cst_15 {dimension_numbers = #tpu.dot_dimension_numbers<[1], [0], [0], [1], [0, 0, 1, 1], [], []>} : vector<2x256xf32>, vector<256x256xf32>, vector<2x256xf32> -> vector<2x256xf32>
    %29 = vector.broadcast %27 : vector<1x256xf32> to vector<2x256xf32>
    %30 = arith.addf %28, %29 : vector<2x256xf32>
    %cst_16 = arith.constant 0.000000e+00 : f32
    %31 = vector.broadcast %cst_16 : f32 to vector<2x256xf32>
    %32 = arith.maximumf %30, %31 : vector<2x256xf32>
    %cst_17 = arith.constant dense<0.000000e+00> : vector<256xf32>
    %33 = vector.multi_reduction <add>, %32, %cst_17 [0] : vector<2x256xf32> to vector<256xf32>
    %34 = vector.shape_cast %33 : vector<256xf32> to vector<1x256xf32>
    %cst_18 = arith.constant 2.000000e+00 : f32
    %35 = vector.broadcast %cst_18 : f32 to vector<1x256xf32>
    %36 = arith.divf %34, %35 : vector<1x256xf32>
    %37 = vector.broadcast %36 : vector<1x256xf32> to vector<2x256xf32>
    %38 = arith.subf %32, %37 : vector<2x256xf32>
    %39 = arith.mulf %38, %38 : vector<2x256xf32>
    %cst_19 = arith.constant dense<0.000000e+00> : vector<256xf32>
    %40 = vector.multi_reduction <add>, %39, %cst_19 [0] : vector<2x256xf32> to vector<256xf32>
    %41 = vector.shape_cast %40 : vector<256xf32> to vector<1x256xf32>
    %cst_20 = arith.constant 2.000000e+00 : f32
    %42 = vector.broadcast %cst_20 : f32 to vector<1x256xf32>
    %43 = arith.divf %41, %42 : vector<1x256xf32>
    %44 = vector.broadcast %36 : vector<1x256xf32> to vector<2x256xf32>
    %45 = arith.subf %32, %44 : vector<2x256xf32>
    %cst_21 = arith.constant 2.000000e-01 : f32
    %46 = vector.broadcast %cst_21 : f32 to vector<1x256xf32>
    %47 = arith.addf %43, %46 : vector<1x256xf32>
    %48 = math.rsqrt %47 : vector<1x256xf32>
    %49 = vector.broadcast %48 : vector<1x256xf32> to vector<2x256xf32>
    %50 = arith.mulf %45, %49 : vector<2x256xf32>
    %c0_22 = arith.constant 0 : index
    %c0_23 = arith.constant 0 : index
    %51 = vector.load %arg2[%c0_22, %c0_23] : memref<2x512xf32, #tpu.memory_space<vmem>>, vector<2x512xf32>
    %c0_24 = arith.constant 0 : index
    %c0_25 = arith.constant 0 : index
    %52 = vector.load %arg4[%c0_24, %c0_25] : memref<512x256xf32, #tpu.memory_space<vmem>>, vector<512x256xf32>
    %c0_26 = arith.constant 0 : index
    %c0_27 = arith.constant 0 : index
    %53 = vector.load %arg5[%c0_26, %c0_27] : memref<1x256xf32, #tpu.memory_space<vmem>>, vector<1x256xf32>
    %cst_28 = arith.constant dense<0.000000e+00> : vector<2x256xf32>
    %54 = tpu.matmul %51, %52, %cst_28 {dimension_numbers = #tpu.dot_dimension_numbers<[1], [0], [0], [1], [0, 0, 1, 1], [], []>} : vector<2x512xf32>, vector<512x256xf32>, vector<2x256xf32> -> vector<2x256xf32>
    %55 = vector.broadcast %53 : vector<1x256xf32> to vector<2x256xf32>
    %56 = arith.addf %54, %55 : vector<2x256xf32>
    %cst_29 = arith.constant 0.000000e+00 : f32
    %57 = vector.broadcast %cst_29 : f32 to vector<2x256xf32>
    %58 = arith.maximumf %56, %57 : vector<2x256xf32>
    %cst_30 = arith.constant dense<0.000000e+00> : vector<256xf32>
    %59 = vector.multi_reduction <add>, %58, %cst_30 [0] : vector<2x256xf32> to vector<256xf32>
    %60 = vector.shape_cast %59 : vector<256xf32> to vector<1x256xf32>
    %cst_31 = arith.constant 2.000000e+00 : f32
    %61 = vector.broadcast %cst_31 : f32 to vector<1x256xf32>
    %62 = arith.divf %60, %61 : vector<1x256xf32>
    %63 = vector.broadcast %62 : vector<1x256xf32> to vector<2x256xf32>
    %64 = arith.subf %58, %63 : vector<2x256xf32>
    %65 = arith.mulf %64, %64 : vector<2x256xf32>
    %cst_32 = arith.constant dense<0.000000e+00> : vector<256xf32>
    %66 = vector.multi_reduction <add>, %65, %cst_32 [0] : vector<2x256xf32> to vector<256xf32>
    %67 = vector.shape_cast %66 : vector<256xf32> to vector<1x256xf32>
    %cst_33 = arith.constant 2.000000e+00 : f32
    %68 = vector.broadcast %cst_33 : f32 to vector<1x256xf32>
    %69 = arith.divf %67, %68 : vector<1x256xf32>
    %70 = vector.broadcast %62 : vector<1x256xf32> to vector<2x256xf32>
    %71 = arith.subf %58, %70 : vector<2x256xf32>
    %cst_34 = arith.constant 2.000000e-01 : f32
    %72 = vector.broadcast %cst_34 : f32 to vector<1x256xf32>
    %73 = arith.addf %69, %72 : vector<1x256xf32>
    %74 = math.rsqrt %73 : vector<1x256xf32>
    %75 = vector.broadcast %74 : vector<1x256xf32> to vector<2x256xf32>
    %76 = arith.mulf %71, %75 : vector<2x256xf32>
    %c0_35 = arith.constant 0 : index
    %c0_36 = arith.constant 0 : index
    %77 = vector.load %arg6[%c0_35, %c0_36] : memref<256x256xf32, #tpu.memory_space<vmem>>, vector<256x256xf32>
    %c0_37 = arith.constant 0 : index
    %c0_38 = arith.constant 0 : index
    %78 = vector.load %arg7[%c0_37, %c0_38] : memref<1x256xf32, #tpu.memory_space<vmem>>, vector<1x256xf32>
    %cst_39 = arith.constant dense<0.000000e+00> : vector<2x256xf32>
    %79 = tpu.matmul %76, %77, %cst_39 {dimension_numbers = #tpu.dot_dimension_numbers<[1], [0], [0], [1], [0, 0, 1, 1], [], []>} : vector<2x256xf32>, vector<256x256xf32>, vector<2x256xf32> -> vector<2x256xf32>
    %80 = vector.broadcast %78 : vector<1x256xf32> to vector<2x256xf32>
    %81 = arith.addf %79, %80 : vector<2x256xf32>
    %cst_40 = arith.constant 0.000000e+00 : f32
    %82 = vector.broadcast %cst_40 : f32 to vector<2x256xf32>
    %83 = arith.maximumf %81, %82 : vector<2x256xf32>
    %cst_41 = arith.constant dense<0.000000e+00> : vector<256xf32>
    %84 = vector.multi_reduction <add>, %83, %cst_41 [0] : vector<2x256xf32> to vector<256xf32>
    %85 = vector.shape_cast %84 : vector<256xf32> to vector<1x256xf32>
    %cst_42 = arith.constant 2.000000e+00 : f32
    %86 = vector.broadcast %cst_42 : f32 to vector<1x256xf32>
    %87 = arith.divf %85, %86 : vector<1x256xf32>
    %88 = vector.broadcast %87 : vector<1x256xf32> to vector<2x256xf32>
    %89 = arith.subf %83, %88 : vector<2x256xf32>
    %90 = arith.mulf %89, %89 : vector<2x256xf32>
    %cst_43 = arith.constant dense<0.000000e+00> : vector<256xf32>
    %91 = vector.multi_reduction <add>, %90, %cst_43 [0] : vector<2x256xf32> to vector<256xf32>
    %92 = vector.shape_cast %91 : vector<256xf32> to vector<1x256xf32>
    %cst_44 = arith.constant 2.000000e+00 : f32
    %93 = vector.broadcast %cst_44 : f32 to vector<1x256xf32>
    %94 = arith.divf %92, %93 : vector<1x256xf32>
    %95 = vector.broadcast %87 : vector<1x256xf32> to vector<2x256xf32>
    %96 = arith.subf %83, %95 : vector<2x256xf32>
    %cst_45 = arith.constant 2.000000e-01 : f32
    %97 = vector.broadcast %cst_45 : f32 to vector<1x256xf32>
    %98 = arith.addf %94, %97 : vector<1x256xf32>
    %99 = math.rsqrt %98 : vector<1x256xf32>
    %100 = vector.broadcast %99 : vector<1x256xf32> to vector<2x256xf32>
    %101 = arith.mulf %96, %100 : vector<2x256xf32>
    %c0_46 = arith.constant 0 : index
    %c0_47 = arith.constant 0 : index
    %c0_48 = arith.constant 0 : index
    %102 = vector.load %arg8[%c0_46, %c0_47, %c0_48] : memref<8x256x256xf32, #tpu.memory_space<vmem>>, vector<1x256x256xf32>
    %103 = vector.shape_cast %102 : vector<1x256x256xf32> to vector<256x256xf32>
    %c0_49 = arith.constant 0 : index
    %c0_50 = arith.constant 0 : index
    %c0_51 = arith.constant 0 : index
    %104 = vector.load %arg9[%c0_49, %c0_50, %c0_51] : memref<8x1x256xf32, #tpu.memory_space<vmem>>, vector<1x1x256xf32>
    %105 = vector.shape_cast %104 : vector<1x1x256xf32> to vector<1x256xf32>
    %cst_52 = arith.constant dense<0.000000e+00> : vector<2x256xf32>
    %106 = tpu.matmul %50, %103, %cst_52 {dimension_numbers = #tpu.dot_dimension_numbers<[1], [0], [0], [1], [0, 0, 1, 1], [], []>} : vector<2x256xf32>, vector<256x256xf32>, vector<2x256xf32> -> vector<2x256xf32>
    %107 = vector.broadcast %105 : vector<1x256xf32> to vector<2x256xf32>
    %108 = arith.addf %106, %107 : vector<2x256xf32>
    %cst_53 = arith.constant 0.000000e+00 : f32
    %109 = vector.broadcast %cst_53 : f32 to vector<2x256xf32>
    %110 = arith.maximumf %108, %109 : vector<2x256xf32>
    %cst_54 = arith.constant dense<0.000000e+00> : vector<256xf32>
    %111 = vector.multi_reduction <add>, %110, %cst_54 [0] : vector<2x256xf32> to vector<256xf32>
    %112 = vector.shape_cast %111 : vector<256xf32> to vector<1x256xf32>
    %cst_55 = arith.constant 2.000000e+00 : f32
    %113 = vector.broadcast %cst_55 : f32 to vector<1x256xf32>
    %114 = arith.divf %112, %113 : vector<1x256xf32>
    %115 = vector.broadcast %114 : vector<1x256xf32> to vector<2x256xf32>
    %116 = arith.subf %110, %115 : vector<2x256xf32>
    %117 = arith.mulf %116, %116 : vector<2x256xf32>
    %cst_56 = arith.constant dense<0.000000e+00> : vector<256xf32>
    %118 = vector.multi_reduction <add>, %117, %cst_56 [0] : vector<2x256xf32> to vector<256xf32>
    %119 = vector.shape_cast %118 : vector<256xf32> to vector<1x256xf32>
    %cst_57 = arith.constant 2.000000e+00 : f32
    %120 = vector.broadcast %cst_57 : f32 to vector<1x256xf32>
    %121 = arith.divf %119, %120 : vector<1x256xf32>
    %122 = vector.broadcast %114 : vector<1x256xf32> to vector<2x256xf32>
    %123 = arith.subf %110, %122 : vector<2x256xf32>
    %cst_58 = arith.constant 2.000000e-01 : f32
    %124 = vector.broadcast %cst_58 : f32 to vector<1x256xf32>
    %125 = arith.addf %121, %124 : vector<1x256xf32>
    %126 = math.rsqrt %125 : vector<1x256xf32>
    %127 = vector.broadcast %126 : vector<1x256xf32> to vector<2x256xf32>
    %128 = arith.mulf %123, %127 : vector<2x256xf32>
    %c0_59 = arith.constant 0 : index
    %c0_60 = arith.constant 0 : index
    %c0_61 = arith.constant 0 : index
    %129 = vector.load %arg3[%c0_59, %c0_60, %c0_61] : memref<12x2x256xf32, #tpu.memory_space<vmem>>, vector<1x2x256xf32>
    %130 = vector.shape_cast %129 : vector<1x2x256xf32> to vector<2x256xf32>
    %131 = arith.mulf %128, %130 : vector<2x256xf32>
    %c1 = arith.constant 1 : index
    %c0_62 = arith.constant 0 : index
    %c0_63 = arith.constant 0 : index
    %132 = vector.load %arg8[%c1, %c0_62, %c0_63] : memref<8x256x256xf32, #tpu.memory_space<vmem>>, vector<1x256x256xf32>
    %133 = vector.shape_cast %132 : vector<1x256x256xf32> to vector<256x256xf32>
    %c1_64 = arith.constant 1 : index
    %c0_65 = arith.constant 0 : index
    %c0_66 = arith.constant 0 : index
    %134 = vector.load %arg9[%c1_64, %c0_65, %c0_66] : memref<8x1x256xf32, #tpu.memory_space<vmem>>, vector<1x1x256xf32>
    %135 = vector.shape_cast %134 : vector<1x1x256xf32> to vector<1x256xf32>
    %cst_67 = arith.constant dense<0.000000e+00> : vector<2x256xf32>
    %136 = tpu.matmul %50, %133, %cst_67 {dimension_numbers = #tpu.dot_dimension_numbers<[1], [0], [0], [1], [0, 0, 1, 1], [], []>} : vector<2x256xf32>, vector<256x256xf32>, vector<2x256xf32> -> vector<2x256xf32>
    %137 = vector.broadcast %135 : vector<1x256xf32> to vector<2x256xf32>
    %138 = arith.addf %136, %137 : vector<2x256xf32>
    %cst_68 = arith.constant 0.000000e+00 : f32
    %139 = vector.broadcast %cst_68 : f32 to vector<2x256xf32>
    %140 = arith.maximumf %138, %139 : vector<2x256xf32>
    %cst_69 = arith.constant dense<0.000000e+00> : vector<256xf32>
    %141 = vector.multi_reduction <add>, %140, %cst_69 [0] : vector<2x256xf32> to vector<256xf32>
    %142 = vector.shape_cast %141 : vector<256xf32> to vector<1x256xf32>
    %cst_70 = arith.constant 2.000000e+00 : f32
    %143 = vector.broadcast %cst_70 : f32 to vector<1x256xf32>
    %144 = arith.divf %142, %143 : vector<1x256xf32>
    %145 = vector.broadcast %144 : vector<1x256xf32> to vector<2x256xf32>
    %146 = arith.subf %140, %145 : vector<2x256xf32>
    %147 = arith.mulf %146, %146 : vector<2x256xf32>
    %cst_71 = arith.constant dense<0.000000e+00> : vector<256xf32>
    %148 = vector.multi_reduction <add>, %147, %cst_71 [0] : vector<2x256xf32> to vector<256xf32>
    %149 = vector.shape_cast %148 : vector<256xf32> to vector<1x256xf32>
    %cst_72 = arith.constant 2.000000e+00 : f32
    %150 = vector.broadcast %cst_72 : f32 to vector<1x256xf32>
    %151 = arith.divf %149, %150 : vector<1x256xf32>
    %152 = vector.broadcast %144 : vector<1x256xf32> to vector<2x256xf32>
    %153 = arith.subf %140, %152 : vector<2x256xf32>
    %cst_73 = arith.constant 2.000000e-01 : f32
    %154 = vector.broadcast %cst_73 : f32 to vector<1x256xf32>
    %155 = arith.addf %151, %154 : vector<1x256xf32>
    %156 = math.rsqrt %155 : vector<1x256xf32>
    %157 = vector.broadcast %156 : vector<1x256xf32> to vector<2x256xf32>
    %158 = arith.mulf %153, %157 : vector<2x256xf32>
    %c1_74 = arith.constant 1 : index
    %c0_75 = arith.constant 0 : index
    %c0_76 = arith.constant 0 : index
    %159 = vector.load %arg3[%c1_74, %c0_75, %c0_76] : memref<12x2x256xf32, #tpu.memory_space<vmem>>, vector<1x2x256xf32>
    %160 = vector.shape_cast %159 : vector<1x2x256xf32> to vector<2x256xf32>
    %161 = arith.mulf %158, %160 : vector<2x256xf32>
    %c2 = arith.constant 2 : index
    %c0_77 = arith.constant 0 : index
    %c0_78 = arith.constant 0 : index
    %162 = vector.load %arg8[%c2, %c0_77, %c0_78] : memref<8x256x256xf32, #tpu.memory_space<vmem>>, vector<1x256x256xf32>
    %163 = vector.shape_cast %162 : vector<1x256x256xf32> to vector<256x256xf32>
    %c2_79 = arith.constant 2 : index
    %c0_80 = arith.constant 0 : index
    %c0_81 = arith.constant 0 : index
    %164 = vector.load %arg9[%c2_79, %c0_80, %c0_81] : memref<8x1x256xf32, #tpu.memory_space<vmem>>, vector<1x1x256xf32>
    %165 = vector.shape_cast %164 : vector<1x1x256xf32> to vector<1x256xf32>
    %cst_82 = arith.constant dense<0.000000e+00> : vector<2x256xf32>
    %166 = tpu.matmul %50, %163, %cst_82 {dimension_numbers = #tpu.dot_dimension_numbers<[1], [0], [0], [1], [0, 0, 1, 1], [], []>} : vector<2x256xf32>, vector<256x256xf32>, vector<2x256xf32> -> vector<2x256xf32>
    %167 = vector.broadcast %165 : vector<1x256xf32> to vector<2x256xf32>
    %168 = arith.addf %166, %167 : vector<2x256xf32>
    %cst_83 = arith.constant 0.000000e+00 : f32
    %169 = vector.broadcast %cst_83 : f32 to vector<2x256xf32>
    %170 = arith.maximumf %168, %169 : vector<2x256xf32>
    %cst_84 = arith.constant dense<0.000000e+00> : vector<256xf32>
    %171 = vector.multi_reduction <add>, %170, %cst_84 [0] : vector<2x256xf32> to vector<256xf32>
    %172 = vector.shape_cast %171 : vector<256xf32> to vector<1x256xf32>
    %cst_85 = arith.constant 2.000000e+00 : f32
    %173 = vector.broadcast %cst_85 : f32 to vector<1x256xf32>
    %174 = arith.divf %172, %173 : vector<1x256xf32>
    %175 = vector.broadcast %174 : vector<1x256xf32> to vector<2x256xf32>
    %176 = arith.subf %170, %175 : vector<2x256xf32>
    %177 = arith.mulf %176, %176 : vector<2x256xf32>
    %cst_86 = arith.constant dense<0.000000e+00> : vector<256xf32>
    %178 = vector.multi_reduction <add>, %177, %cst_86 [0] : vector<2x256xf32> to vector<256xf32>
    %179 = vector.shape_cast %178 : vector<256xf32> to vector<1x256xf32>
    %cst_87 = arith.constant 2.000000e+00 : f32
    %180 = vector.broadcast %cst_87 : f32 to vector<1x256xf32>
    %181 = arith.divf %179, %180 : vector<1x256xf32>
    %182 = vector.broadcast %174 : vector<1x256xf32> to vector<2x256xf32>
    %183 = arith.subf %170, %182 : vector<2x256xf32>
    %cst_88 = arith.constant 2.000000e-01 : f32
    %184 = vector.broadcast %cst_88 : f32 to vector<1x256xf32>
    %185 = arith.addf %181, %184 : vector<1x256xf32>
    %186 = math.rsqrt %185 : vector<1x256xf32>
    %187 = vector.broadcast %186 : vector<1x256xf32> to vector<2x256xf32>
    %188 = arith.mulf %183, %187 : vector<2x256xf32>
    %c2_89 = arith.constant 2 : index
    %c0_90 = arith.constant 0 : index
    %c0_91 = arith.constant 0 : index
    %189 = vector.load %arg3[%c2_89, %c0_90, %c0_91] : memref<12x2x256xf32, #tpu.memory_space<vmem>>, vector<1x2x256xf32>
    %190 = vector.shape_cast %189 : vector<1x2x256xf32> to vector<2x256xf32>
    %191 = arith.mulf %188, %190 : vector<2x256xf32>
    %c3 = arith.constant 3 : index
    %c0_92 = arith.constant 0 : index
    %c0_93 = arith.constant 0 : index
    %192 = vector.load %arg8[%c3, %c0_92, %c0_93] : memref<8x256x256xf32, #tpu.memory_space<vmem>>, vector<1x256x256xf32>
    %193 = vector.shape_cast %192 : vector<1x256x256xf32> to vector<256x256xf32>
    %c3_94 = arith.constant 3 : index
    %c0_95 = arith.constant 0 : index
    %c0_96 = arith.constant 0 : index
    %194 = vector.load %arg9[%c3_94, %c0_95, %c0_96] : memref<8x1x256xf32, #tpu.memory_space<vmem>>, vector<1x1x256xf32>
    %195 = vector.shape_cast %194 : vector<1x1x256xf32> to vector<1x256xf32>
    %cst_97 = arith.constant dense<0.000000e+00> : vector<2x256xf32>
    %196 = tpu.matmul %50, %193, %cst_97 {dimension_numbers = #tpu.dot_dimension_numbers<[1], [0], [0], [1], [0, 0, 1, 1], [], []>} : vector<2x256xf32>, vector<256x256xf32>, vector<2x256xf32> -> vector<2x256xf32>
    %197 = vector.broadcast %195 : vector<1x256xf32> to vector<2x256xf32>
    %198 = arith.addf %196, %197 : vector<2x256xf32>
    %cst_98 = arith.constant 0.000000e+00 : f32
    %199 = vector.broadcast %cst_98 : f32 to vector<2x256xf32>
    %200 = arith.maximumf %198, %199 : vector<2x256xf32>
    %cst_99 = arith.constant dense<0.000000e+00> : vector<256xf32>
    %201 = vector.multi_reduction <add>, %200, %cst_99 [0] : vector<2x256xf32> to vector<256xf32>
    %202 = vector.shape_cast %201 : vector<256xf32> to vector<1x256xf32>
    %cst_100 = arith.constant 2.000000e+00 : f32
    %203 = vector.broadcast %cst_100 : f32 to vector<1x256xf32>
    %204 = arith.divf %202, %203 : vector<1x256xf32>
    %205 = vector.broadcast %204 : vector<1x256xf32> to vector<2x256xf32>
    %206 = arith.subf %200, %205 : vector<2x256xf32>
    %207 = arith.mulf %206, %206 : vector<2x256xf32>
    %cst_101 = arith.constant dense<0.000000e+00> : vector<256xf32>
    %208 = vector.multi_reduction <add>, %207, %cst_101 [0] : vector<2x256xf32> to vector<256xf32>
    %209 = vector.shape_cast %208 : vector<256xf32> to vector<1x256xf32>
    %cst_102 = arith.constant 2.000000e+00 : f32
    %210 = vector.broadcast %cst_102 : f32 to vector<1x256xf32>
    %211 = arith.divf %209, %210 : vector<1x256xf32>
    %212 = vector.broadcast %204 : vector<1x256xf32> to vector<2x256xf32>
    %213 = arith.subf %200, %212 : vector<2x256xf32>
    %cst_103 = arith.constant 2.000000e-01 : f32
    %214 = vector.broadcast %cst_103 : f32 to vector<1x256xf32>
    %215 = arith.addf %211, %214 : vector<1x256xf32>
    %216 = math.rsqrt %215 : vector<1x256xf32>
    %217 = vector.broadcast %216 : vector<1x256xf32> to vector<2x256xf32>
    %218 = arith.mulf %213, %217 : vector<2x256xf32>
    %c3_104 = arith.constant 3 : index
    %c0_105 = arith.constant 0 : index
    %c0_106 = arith.constant 0 : index
    %219 = vector.load %arg3[%c3_104, %c0_105, %c0_106] : memref<12x2x256xf32, #tpu.memory_space<vmem>>, vector<1x2x256xf32>
    %220 = vector.shape_cast %219 : vector<1x2x256xf32> to vector<2x256xf32>
    %221 = arith.mulf %218, %220 : vector<2x256xf32>
    %c4 = arith.constant 4 : index
    %c0_107 = arith.constant 0 : index
    %c0_108 = arith.constant 0 : index
    %222 = vector.load %arg8[%c4, %c0_107, %c0_108] : memref<8x256x256xf32, #tpu.memory_space<vmem>>, vector<1x256x256xf32>
    %223 = vector.shape_cast %222 : vector<1x256x256xf32> to vector<256x256xf32>
    %c4_109 = arith.constant 4 : index
    %c0_110 = arith.constant 0 : index
    %c0_111 = arith.constant 0 : index
    %224 = vector.load %arg9[%c4_109, %c0_110, %c0_111] : memref<8x1x256xf32, #tpu.memory_space<vmem>>, vector<1x1x256xf32>
    %225 = vector.shape_cast %224 : vector<1x1x256xf32> to vector<1x256xf32>
    %cst_112 = arith.constant dense<0.000000e+00> : vector<2x256xf32>
    %226 = tpu.matmul %101, %223, %cst_112 {dimension_numbers = #tpu.dot_dimension_numbers<[1], [0], [0], [1], [0, 0, 1, 1], [], []>} : vector<2x256xf32>, vector<256x256xf32>, vector<2x256xf32> -> vector<2x256xf32>
    %227 = vector.broadcast %225 : vector<1x256xf32> to vector<2x256xf32>
    %228 = arith.addf %226, %227 : vector<2x256xf32>
    %cst_113 = arith.constant 0.000000e+00 : f32
    %229 = vector.broadcast %cst_113 : f32 to vector<2x256xf32>
    %230 = arith.maximumf %228, %229 : vector<2x256xf32>
    %cst_114 = arith.constant dense<0.000000e+00> : vector<256xf32>
    %231 = vector.multi_reduction <add>, %230, %cst_114 [0] : vector<2x256xf32> to vector<256xf32>
    %232 = vector.shape_cast %231 : vector<256xf32> to vector<1x256xf32>
    %cst_115 = arith.constant 2.000000e+00 : f32
    %233 = vector.broadcast %cst_115 : f32 to vector<1x256xf32>
    %234 = arith.divf %232, %233 : vector<1x256xf32>
    %235 = vector.broadcast %234 : vector<1x256xf32> to vector<2x256xf32>
    %236 = arith.subf %230, %235 : vector<2x256xf32>
    %237 = arith.mulf %236, %236 : vector<2x256xf32>
    %cst_116 = arith.constant dense<0.000000e+00> : vector<256xf32>
    %238 = vector.multi_reduction <add>, %237, %cst_116 [0] : vector<2x256xf32> to vector<256xf32>
    %239 = vector.shape_cast %238 : vector<256xf32> to vector<1x256xf32>
    %cst_117 = arith.constant 2.000000e+00 : f32
    %240 = vector.broadcast %cst_117 : f32 to vector<1x256xf32>
    %241 = arith.divf %239, %240 : vector<1x256xf32>
    %242 = vector.broadcast %234 : vector<1x256xf32> to vector<2x256xf32>
    %243 = arith.subf %230, %242 : vector<2x256xf32>
    %cst_118 = arith.constant 2.000000e-01 : f32
    %244 = vector.broadcast %cst_118 : f32 to vector<1x256xf32>
    %245 = arith.addf %241, %244 : vector<1x256xf32>
    %246 = math.rsqrt %245 : vector<1x256xf32>
    %247 = vector.broadcast %246 : vector<1x256xf32> to vector<2x256xf32>
    %248 = arith.mulf %243, %247 : vector<2x256xf32>
    %c4_119 = arith.constant 4 : index
    %c0_120 = arith.constant 0 : index
    %c0_121 = arith.constant 0 : index
    %249 = vector.load %arg3[%c4_119, %c0_120, %c0_121] : memref<12x2x256xf32, #tpu.memory_space<vmem>>, vector<1x2x256xf32>
    %250 = vector.shape_cast %249 : vector<1x2x256xf32> to vector<2x256xf32>
    %251 = arith.mulf %248, %250 : vector<2x256xf32>
    %c5 = arith.constant 5 : index
    %c0_122 = arith.constant 0 : index
    %c0_123 = arith.constant 0 : index
    %252 = vector.load %arg8[%c5, %c0_122, %c0_123] : memref<8x256x256xf32, #tpu.memory_space<vmem>>, vector<1x256x256xf32>
    %253 = vector.shape_cast %252 : vector<1x256x256xf32> to vector<256x256xf32>
    %c5_124 = arith.constant 5 : index
    %c0_125 = arith.constant 0 : index
    %c0_126 = arith.constant 0 : index
    %254 = vector.load %arg9[%c5_124, %c0_125, %c0_126] : memref<8x1x256xf32, #tpu.memory_space<vmem>>, vector<1x1x256xf32>
    %255 = vector.shape_cast %254 : vector<1x1x256xf32> to vector<1x256xf32>
    %cst_127 = arith.constant dense<0.000000e+00> : vector<2x256xf32>
    %256 = tpu.matmul %101, %253, %cst_127 {dimension_numbers = #tpu.dot_dimension_numbers<[1], [0], [0], [1], [0, 0, 1, 1], [], []>} : vector<2x256xf32>, vector<256x256xf32>, vector<2x256xf32> -> vector<2x256xf32>
    %257 = vector.broadcast %255 : vector<1x256xf32> to vector<2x256xf32>
    %258 = arith.addf %256, %257 : vector<2x256xf32>
    %cst_128 = arith.constant 0.000000e+00 : f32
    %259 = vector.broadcast %cst_128 : f32 to vector<2x256xf32>
    %260 = arith.maximumf %258, %259 : vector<2x256xf32>
    %cst_129 = arith.constant dense<0.000000e+00> : vector<256xf32>
    %261 = vector.multi_reduction <add>, %260, %cst_129 [0] : vector<2x256xf32> to vector<256xf32>
    %262 = vector.shape_cast %261 : vector<256xf32> to vector<1x256xf32>
    %cst_130 = arith.constant 2.000000e+00 : f32
    %263 = vector.broadcast %cst_130 : f32 to vector<1x256xf32>
    %264 = arith.divf %262, %263 : vector<1x256xf32>
    %265 = vector.broadcast %264 : vector<1x256xf32> to vector<2x256xf32>
    %266 = arith.subf %260, %265 : vector<2x256xf32>
    %267 = arith.mulf %266, %266 : vector<2x256xf32>
    %cst_131 = arith.constant dense<0.000000e+00> : vector<256xf32>
    %268 = vector.multi_reduction <add>, %267, %cst_131 [0] : vector<2x256xf32> to vector<256xf32>
    %269 = vector.shape_cast %268 : vector<256xf32> to vector<1x256xf32>
    %cst_132 = arith.constant 2.000000e+00 : f32
    %270 = vector.broadcast %cst_132 : f32 to vector<1x256xf32>
    %271 = arith.divf %269, %270 : vector<1x256xf32>
    %272 = vector.broadcast %264 : vector<1x256xf32> to vector<2x256xf32>
    %273 = arith.subf %260, %272 : vector<2x256xf32>
    %cst_133 = arith.constant 2.000000e-01 : f32
    %274 = vector.broadcast %cst_133 : f32 to vector<1x256xf32>
    %275 = arith.addf %271, %274 : vector<1x256xf32>
    %276 = math.rsqrt %275 : vector<1x256xf32>
    %277 = vector.broadcast %276 : vector<1x256xf32> to vector<2x256xf32>
    %278 = arith.mulf %273, %277 : vector<2x256xf32>
    %c5_134 = arith.constant 5 : index
    %c0_135 = arith.constant 0 : index
    %c0_136 = arith.constant 0 : index
    %279 = vector.load %arg3[%c5_134, %c0_135, %c0_136] : memref<12x2x256xf32, #tpu.memory_space<vmem>>, vector<1x2x256xf32>
    %280 = vector.shape_cast %279 : vector<1x2x256xf32> to vector<2x256xf32>
    %281 = arith.mulf %278, %280 : vector<2x256xf32>
    %c6 = arith.constant 6 : index
    %c0_137 = arith.constant 0 : index
    %c0_138 = arith.constant 0 : index
    %282 = vector.load %arg8[%c6, %c0_137, %c0_138] : memref<8x256x256xf32, #tpu.memory_space<vmem>>, vector<1x256x256xf32>
    %283 = vector.shape_cast %282 : vector<1x256x256xf32> to vector<256x256xf32>
    %c6_139 = arith.constant 6 : index
    %c0_140 = arith.constant 0 : index
    %c0_141 = arith.constant 0 : index
    %284 = vector.load %arg9[%c6_139, %c0_140, %c0_141] : memref<8x1x256xf32, #tpu.memory_space<vmem>>, vector<1x1x256xf32>
    %285 = vector.shape_cast %284 : vector<1x1x256xf32> to vector<1x256xf32>
    %cst_142 = arith.constant dense<0.000000e+00> : vector<2x256xf32>
    %286 = tpu.matmul %101, %283, %cst_142 {dimension_numbers = #tpu.dot_dimension_numbers<[1], [0], [0], [1], [0, 0, 1, 1], [], []>} : vector<2x256xf32>, vector<256x256xf32>, vector<2x256xf32> -> vector<2x256xf32>
    %287 = vector.broadcast %285 : vector<1x256xf32> to vector<2x256xf32>
    %288 = arith.addf %286, %287 : vector<2x256xf32>
    %cst_143 = arith.constant 0.000000e+00 : f32
    %289 = vector.broadcast %cst_143 : f32 to vector<2x256xf32>
    %290 = arith.maximumf %288, %289 : vector<2x256xf32>
    %cst_144 = arith.constant dense<0.000000e+00> : vector<256xf32>
    %291 = vector.multi_reduction <add>, %290, %cst_144 [0] : vector<2x256xf32> to vector<256xf32>
    %292 = vector.shape_cast %291 : vector<256xf32> to vector<1x256xf32>
    %cst_145 = arith.constant 2.000000e+00 : f32
    %293 = vector.broadcast %cst_145 : f32 to vector<1x256xf32>
    %294 = arith.divf %292, %293 : vector<1x256xf32>
    %295 = vector.broadcast %294 : vector<1x256xf32> to vector<2x256xf32>
    %296 = arith.subf %290, %295 : vector<2x256xf32>
    %297 = arith.mulf %296, %296 : vector<2x256xf32>
    %cst_146 = arith.constant dense<0.000000e+00> : vector<256xf32>
    %298 = vector.multi_reduction <add>, %297, %cst_146 [0] : vector<2x256xf32> to vector<256xf32>
    %299 = vector.shape_cast %298 : vector<256xf32> to vector<1x256xf32>
    %cst_147 = arith.constant 2.000000e+00 : f32
    %300 = vector.broadcast %cst_147 : f32 to vector<1x256xf32>
    %301 = arith.divf %299, %300 : vector<1x256xf32>
    %302 = vector.broadcast %294 : vector<1x256xf32> to vector<2x256xf32>
    %303 = arith.subf %290, %302 : vector<2x256xf32>
    %cst_148 = arith.constant 2.000000e-01 : f32
    %304 = vector.broadcast %cst_148 : f32 to vector<1x256xf32>
    %305 = arith.addf %301, %304 : vector<1x256xf32>
    %306 = math.rsqrt %305 : vector<1x256xf32>
    %307 = vector.broadcast %306 : vector<1x256xf32> to vector<2x256xf32>
    %308 = arith.mulf %303, %307 : vector<2x256xf32>
    %c6_149 = arith.constant 6 : index
    %c0_150 = arith.constant 0 : index
    %c0_151 = arith.constant 0 : index
    %309 = vector.load %arg3[%c6_149, %c0_150, %c0_151] : memref<12x2x256xf32, #tpu.memory_space<vmem>>, vector<1x2x256xf32>
    %310 = vector.shape_cast %309 : vector<1x2x256xf32> to vector<2x256xf32>
    %311 = arith.mulf %308, %310 : vector<2x256xf32>
    %c7 = arith.constant 7 : index
    %c0_152 = arith.constant 0 : index
    %c0_153 = arith.constant 0 : index
    %312 = vector.load %arg8[%c7, %c0_152, %c0_153] : memref<8x256x256xf32, #tpu.memory_space<vmem>>, vector<1x256x256xf32>
    %313 = vector.shape_cast %312 : vector<1x256x256xf32> to vector<256x256xf32>
    %c7_154 = arith.constant 7 : index
    %c0_155 = arith.constant 0 : index
    %c0_156 = arith.constant 0 : index
    %314 = vector.load %arg9[%c7_154, %c0_155, %c0_156] : memref<8x1x256xf32, #tpu.memory_space<vmem>>, vector<1x1x256xf32>
    %315 = vector.shape_cast %314 : vector<1x1x256xf32> to vector<1x256xf32>
    %cst_157 = arith.constant dense<0.000000e+00> : vector<2x256xf32>
    %316 = tpu.matmul %101, %313, %cst_157 {dimension_numbers = #tpu.dot_dimension_numbers<[1], [0], [0], [1], [0, 0, 1, 1], [], []>} : vector<2x256xf32>, vector<256x256xf32>, vector<2x256xf32> -> vector<2x256xf32>
    %317 = vector.broadcast %315 : vector<1x256xf32> to vector<2x256xf32>
    %318 = arith.addf %316, %317 : vector<2x256xf32>
    %cst_158 = arith.constant 0.000000e+00 : f32
    %319 = vector.broadcast %cst_158 : f32 to vector<2x256xf32>
    %320 = arith.maximumf %318, %319 : vector<2x256xf32>
    %cst_159 = arith.constant dense<0.000000e+00> : vector<256xf32>
    %321 = vector.multi_reduction <add>, %320, %cst_159 [0] : vector<2x256xf32> to vector<256xf32>
    %322 = vector.shape_cast %321 : vector<256xf32> to vector<1x256xf32>
    %cst_160 = arith.constant 2.000000e+00 : f32
    %323 = vector.broadcast %cst_160 : f32 to vector<1x256xf32>
    %324 = arith.divf %322, %323 : vector<1x256xf32>
    %325 = vector.broadcast %324 : vector<1x256xf32> to vector<2x256xf32>
    %326 = arith.subf %320, %325 : vector<2x256xf32>
    %327 = arith.mulf %326, %326 : vector<2x256xf32>
    %cst_161 = arith.constant dense<0.000000e+00> : vector<256xf32>
    %328 = vector.multi_reduction <add>, %327, %cst_161 [0] : vector<2x256xf32> to vector<256xf32>
    %329 = vector.shape_cast %328 : vector<256xf32> to vector<1x256xf32>
    %cst_162 = arith.constant 2.000000e+00 : f32
    %330 = vector.broadcast %cst_162 : f32 to vector<1x256xf32>
    %331 = arith.divf %329, %330 : vector<1x256xf32>
    %332 = vector.broadcast %324 : vector<1x256xf32> to vector<2x256xf32>
    %333 = arith.subf %320, %332 : vector<2x256xf32>
    %cst_163 = arith.constant 2.000000e-01 : f32
    %334 = vector.broadcast %cst_163 : f32 to vector<1x256xf32>
    %335 = arith.addf %331, %334 : vector<1x256xf32>
    %336 = math.rsqrt %335 : vector<1x256xf32>
    %337 = vector.broadcast %336 : vector<1x256xf32> to vector<2x256xf32>
    %338 = arith.mulf %333, %337 : vector<2x256xf32>
    %c7_164 = arith.constant 7 : index
    %c0_165 = arith.constant 0 : index
    %c0_166 = arith.constant 0 : index
    %339 = vector.load %arg3[%c7_164, %c0_165, %c0_166] : memref<12x2x256xf32, #tpu.memory_space<vmem>>, vector<1x2x256xf32>
    %340 = vector.shape_cast %339 : vector<1x2x256xf32> to vector<2x256xf32>
    %341 = arith.mulf %338, %340 : vector<2x256xf32>
    %342 = tpu.concatenate %131, %251 in 1 : vector<2x256xf32>, vector<2x256xf32> -> vector<2x512xf32>
    %c0_167 = arith.constant 0 : index
    %c0_168 = arith.constant 0 : index
    %c0_169 = arith.constant 0 : index
    %343 = vector.load %arg10[%c0_167, %c0_168, %c0_169] : memref<4x512x256xf32, #tpu.memory_space<vmem>>, vector<1x512x256xf32>
    %344 = vector.shape_cast %343 : vector<1x512x256xf32> to vector<512x256xf32>
    %c0_170 = arith.constant 0 : index
    %c0_171 = arith.constant 0 : index
    %c0_172 = arith.constant 0 : index
    %345 = vector.load %arg11[%c0_170, %c0_171, %c0_172] : memref<4x1x256xf32, #tpu.memory_space<vmem>>, vector<1x1x256xf32>
    %346 = vector.shape_cast %345 : vector<1x1x256xf32> to vector<1x256xf32>
    %cst_173 = arith.constant dense<0.000000e+00> : vector<2x256xf32>
    %347 = tpu.matmul %342, %344, %cst_173 {dimension_numbers = #tpu.dot_dimension_numbers<[1], [0], [0], [1], [0, 0, 1, 1], [], []>} : vector<2x512xf32>, vector<512x256xf32>, vector<2x256xf32> -> vector<2x256xf32>
    %348 = vector.broadcast %346 : vector<1x256xf32> to vector<2x256xf32>
    %349 = arith.addf %347, %348 : vector<2x256xf32>
    %cst_174 = arith.constant 0.000000e+00 : f32
    %350 = vector.broadcast %cst_174 : f32 to vector<2x256xf32>
    %351 = arith.maximumf %349, %350 : vector<2x256xf32>
    %cst_175 = arith.constant dense<0.000000e+00> : vector<256xf32>
    %352 = vector.multi_reduction <add>, %351, %cst_175 [0] : vector<2x256xf32> to vector<256xf32>
    %353 = vector.shape_cast %352 : vector<256xf32> to vector<1x256xf32>
    %cst_176 = arith.constant 2.000000e+00 : f32
    %354 = vector.broadcast %cst_176 : f32 to vector<1x256xf32>
    %355 = arith.divf %353, %354 : vector<1x256xf32>
    %356 = vector.broadcast %355 : vector<1x256xf32> to vector<2x256xf32>
    %357 = arith.subf %351, %356 : vector<2x256xf32>
    %358 = arith.mulf %357, %357 : vector<2x256xf32>
    %cst_177 = arith.constant dense<0.000000e+00> : vector<256xf32>
    %359 = vector.multi_reduction <add>, %358, %cst_177 [0] : vector<2x256xf32> to vector<256xf32>
    %360 = vector.shape_cast %359 : vector<256xf32> to vector<1x256xf32>
    %cst_178 = arith.constant 2.000000e+00 : f32
    %361 = vector.broadcast %cst_178 : f32 to vector<1x256xf32>
    %362 = arith.divf %360, %361 : vector<1x256xf32>
    %363 = vector.broadcast %355 : vector<1x256xf32> to vector<2x256xf32>
    %364 = arith.subf %351, %363 : vector<2x256xf32>
    %cst_179 = arith.constant 2.000000e-01 : f32
    %365 = vector.broadcast %cst_179 : f32 to vector<1x256xf32>
    %366 = arith.addf %362, %365 : vector<1x256xf32>
    %367 = math.rsqrt %366 : vector<1x256xf32>
    %368 = vector.broadcast %367 : vector<1x256xf32> to vector<2x256xf32>
    %369 = arith.mulf %364, %368 : vector<2x256xf32>
    %c8 = arith.constant 8 : index
    %c0_180 = arith.constant 0 : index
    %c0_181 = arith.constant 0 : index
    %370 = vector.load %arg3[%c8, %c0_180, %c0_181] : memref<12x2x256xf32, #tpu.memory_space<vmem>>, vector<1x2x256xf32>
    %371 = vector.shape_cast %370 : vector<1x2x256xf32> to vector<2x256xf32>
    %372 = arith.mulf %369, %371 : vector<2x256xf32>
    %373 = tpu.concatenate %161, %281 in 1 : vector<2x256xf32>, vector<2x256xf32> -> vector<2x512xf32>
    %c1_182 = arith.constant 1 : index
    %c0_183 = arith.constant 0 : index
    %c0_184 = arith.constant 0 : index
    %374 = vector.load %arg10[%c1_182, %c0_183, %c0_184] : memref<4x512x256xf32, #tpu.memory_space<vmem>>, vector<1x512x256xf32>
    %375 = vector.shape_cast %374 : vector<1x512x256xf32> to vector<512x256xf32>
    %c1_185 = arith.constant 1 : index
    %c0_186 = arith.constant 0 : index
    %c0_187 = arith.constant 0 : index
    %376 = vector.load %arg11[%c1_185, %c0_186, %c0_187] : memref<4x1x256xf32, #tpu.memory_space<vmem>>, vector<1x1x256xf32>
    %377 = vector.shape_cast %376 : vector<1x1x256xf32> to vector<1x256xf32>
    %cst_188 = arith.constant dense<0.000000e+00> : vector<2x256xf32>
    %378 = tpu.matmul %373, %375, %cst_188 {dimension_numbers = #tpu.dot_dimension_numbers<[1], [0], [0], [1], [0, 0, 1, 1], [], []>} : vector<2x512xf32>, vector<512x256xf32>, vector<2x256xf32> -> vector<2x256xf32>
    %379 = vector.broadcast %377 : vector<1x256xf32> to vector<2x256xf32>
    %380 = arith.addf %378, %379 : vector<2x256xf32>
    %cst_189 = arith.constant 0.000000e+00 : f32
    %381 = vector.broadcast %cst_189 : f32 to vector<2x256xf32>
    %382 = arith.maximumf %380, %381 : vector<2x256xf32>
    %cst_190 = arith.constant dense<0.000000e+00> : vector<256xf32>
    %383 = vector.multi_reduction <add>, %382, %cst_190 [0] : vector<2x256xf32> to vector<256xf32>
    %384 = vector.shape_cast %383 : vector<256xf32> to vector<1x256xf32>
    %cst_191 = arith.constant 2.000000e+00 : f32
    %385 = vector.broadcast %cst_191 : f32 to vector<1x256xf32>
    %386 = arith.divf %384, %385 : vector<1x256xf32>
    %387 = vector.broadcast %386 : vector<1x256xf32> to vector<2x256xf32>
    %388 = arith.subf %382, %387 : vector<2x256xf32>
    %389 = arith.mulf %388, %388 : vector<2x256xf32>
    %cst_192 = arith.constant dense<0.000000e+00> : vector<256xf32>
    %390 = vector.multi_reduction <add>, %389, %cst_192 [0] : vector<2x256xf32> to vector<256xf32>
    %391 = vector.shape_cast %390 : vector<256xf32> to vector<1x256xf32>
    %cst_193 = arith.constant 2.000000e+00 : f32
    %392 = vector.broadcast %cst_193 : f32 to vector<1x256xf32>
    %393 = arith.divf %391, %392 : vector<1x256xf32>
    %394 = vector.broadcast %386 : vector<1x256xf32> to vector<2x256xf32>
    %395 = arith.subf %382, %394 : vector<2x256xf32>
    %cst_194 = arith.constant 2.000000e-01 : f32
    %396 = vector.broadcast %cst_194 : f32 to vector<1x256xf32>
    %397 = arith.addf %393, %396 : vector<1x256xf32>
    %398 = math.rsqrt %397 : vector<1x256xf32>
    %399 = vector.broadcast %398 : vector<1x256xf32> to vector<2x256xf32>
    %400 = arith.mulf %395, %399 : vector<2x256xf32>
    %c9 = arith.constant 9 : index
    %c0_195 = arith.constant 0 : index
    %c0_196 = arith.constant 0 : index
    %401 = vector.load %arg3[%c9, %c0_195, %c0_196] : memref<12x2x256xf32, #tpu.memory_space<vmem>>, vector<1x2x256xf32>
    %402 = vector.shape_cast %401 : vector<1x2x256xf32> to vector<2x256xf32>
    %403 = arith.mulf %400, %402 : vector<2x256xf32>
    %404 = tpu.concatenate %191, %311 in 1 : vector<2x256xf32>, vector<2x256xf32> -> vector<2x512xf32>
    %c2_197 = arith.constant 2 : index
    %c0_198 = arith.constant 0 : index
    %c0_199 = arith.constant 0 : index
    %405 = vector.load %arg10[%c2_197, %c0_198, %c0_199] : memref<4x512x256xf32, #tpu.memory_space<vmem>>, vector<1x512x256xf32>
    %406 = vector.shape_cast %405 : vector<1x512x256xf32> to vector<512x256xf32>
    %c2_200 = arith.constant 2 : index
    %c0_201 = arith.constant 0 : index
    %c0_202 = arith.constant 0 : index
    %407 = vector.load %arg11[%c2_200, %c0_201, %c0_202] : memref<4x1x256xf32, #tpu.memory_space<vmem>>, vector<1x1x256xf32>
    %408 = vector.shape_cast %407 : vector<1x1x256xf32> to vector<1x256xf32>
    %cst_203 = arith.constant dense<0.000000e+00> : vector<2x256xf32>
    %409 = tpu.matmul %404, %406, %cst_203 {dimension_numbers = #tpu.dot_dimension_numbers<[1], [0], [0], [1], [0, 0, 1, 1], [], []>} : vector<2x512xf32>, vector<512x256xf32>, vector<2x256xf32> -> vector<2x256xf32>
    %410 = vector.broadcast %408 : vector<1x256xf32> to vector<2x256xf32>
    %411 = arith.addf %409, %410 : vector<2x256xf32>
    %cst_204 = arith.constant 0.000000e+00 : f32
    %412 = vector.broadcast %cst_204 : f32 to vector<2x256xf32>
    %413 = arith.maximumf %411, %412 : vector<2x256xf32>
    %cst_205 = arith.constant dense<0.000000e+00> : vector<256xf32>
    %414 = vector.multi_reduction <add>, %413, %cst_205 [0] : vector<2x256xf32> to vector<256xf32>
    %415 = vector.shape_cast %414 : vector<256xf32> to vector<1x256xf32>
    %cst_206 = arith.constant 2.000000e+00 : f32
    %416 = vector.broadcast %cst_206 : f32 to vector<1x256xf32>
    %417 = arith.divf %415, %416 : vector<1x256xf32>
    %418 = vector.broadcast %417 : vector<1x256xf32> to vector<2x256xf32>
    %419 = arith.subf %413, %418 : vector<2x256xf32>
    %420 = arith.mulf %419, %419 : vector<2x256xf32>
    %cst_207 = arith.constant dense<0.000000e+00> : vector<256xf32>
    %421 = vector.multi_reduction <add>, %420, %cst_207 [0] : vector<2x256xf32> to vector<256xf32>
    %422 = vector.shape_cast %421 : vector<256xf32> to vector<1x256xf32>
    %cst_208 = arith.constant 2.000000e+00 : f32
    %423 = vector.broadcast %cst_208 : f32 to vector<1x256xf32>
    %424 = arith.divf %422, %423 : vector<1x256xf32>
    %425 = vector.broadcast %417 : vector<1x256xf32> to vector<2x256xf32>
    %426 = arith.subf %413, %425 : vector<2x256xf32>
    %cst_209 = arith.constant 2.000000e-01 : f32
    %427 = vector.broadcast %cst_209 : f32 to vector<1x256xf32>
    %428 = arith.addf %424, %427 : vector<1x256xf32>
    %429 = math.rsqrt %428 : vector<1x256xf32>
    %430 = vector.broadcast %429 : vector<1x256xf32> to vector<2x256xf32>
    %431 = arith.mulf %426, %430 : vector<2x256xf32>
    %c10 = arith.constant 10 : index
    %c0_210 = arith.constant 0 : index
    %c0_211 = arith.constant 0 : index
    %432 = vector.load %arg3[%c10, %c0_210, %c0_211] : memref<12x2x256xf32, #tpu.memory_space<vmem>>, vector<1x2x256xf32>
    %433 = vector.shape_cast %432 : vector<1x2x256xf32> to vector<2x256xf32>
    %434 = arith.mulf %431, %433 : vector<2x256xf32>
    %435 = tpu.concatenate %221, %341 in 1 : vector<2x256xf32>, vector<2x256xf32> -> vector<2x512xf32>
    %c3_212 = arith.constant 3 : index
    %c0_213 = arith.constant 0 : index
    %c0_214 = arith.constant 0 : index
    %436 = vector.load %arg10[%c3_212, %c0_213, %c0_214] : memref<4x512x256xf32, #tpu.memory_space<vmem>>, vector<1x512x256xf32>
    %437 = vector.shape_cast %436 : vector<1x512x256xf32> to vector<512x256xf32>
    %c3_215 = arith.constant 3 : index
    %c0_216 = arith.constant 0 : index
    %c0_217 = arith.constant 0 : index
    %438 = vector.load %arg11[%c3_215, %c0_216, %c0_217] : memref<4x1x256xf32, #tpu.memory_space<vmem>>, vector<1x1x256xf32>
    %439 = vector.shape_cast %438 : vector<1x1x256xf32> to vector<1x256xf32>
    %cst_218 = arith.constant dense<0.000000e+00> : vector<2x256xf32>
    %440 = tpu.matmul %435, %437, %cst_218 {dimension_numbers = #tpu.dot_dimension_numbers<[1], [0], [0], [1], [0, 0, 1, 1], [], []>} : vector<2x512xf32>, vector<512x256xf32>, vector<2x256xf32> -> vector<2x256xf32>
    %441 = vector.broadcast %439 : vector<1x256xf32> to vector<2x256xf32>
    %442 = arith.addf %440, %441 : vector<2x256xf32>
    %cst_219 = arith.constant 0.000000e+00 : f32
    %443 = vector.broadcast %cst_219 : f32 to vector<2x256xf32>
    %444 = arith.maximumf %442, %443 : vector<2x256xf32>
    %cst_220 = arith.constant dense<0.000000e+00> : vector<256xf32>
    %445 = vector.multi_reduction <add>, %444, %cst_220 [0] : vector<2x256xf32> to vector<256xf32>
    %446 = vector.shape_cast %445 : vector<256xf32> to vector<1x256xf32>
    %cst_221 = arith.constant 2.000000e+00 : f32
    %447 = vector.broadcast %cst_221 : f32 to vector<1x256xf32>
    %448 = arith.divf %446, %447 : vector<1x256xf32>
    %449 = vector.broadcast %448 : vector<1x256xf32> to vector<2x256xf32>
    %450 = arith.subf %444, %449 : vector<2x256xf32>
    %451 = arith.mulf %450, %450 : vector<2x256xf32>
    %cst_222 = arith.constant dense<0.000000e+00> : vector<256xf32>
    %452 = vector.multi_reduction <add>, %451, %cst_222 [0] : vector<2x256xf32> to vector<256xf32>
    %453 = vector.shape_cast %452 : vector<256xf32> to vector<1x256xf32>
    %cst_223 = arith.constant 2.000000e+00 : f32
    %454 = vector.broadcast %cst_223 : f32 to vector<1x256xf32>
    %455 = arith.divf %453, %454 : vector<1x256xf32>
    %456 = vector.broadcast %448 : vector<1x256xf32> to vector<2x256xf32>
    %457 = arith.subf %444, %456 : vector<2x256xf32>
    %cst_224 = arith.constant 2.000000e-01 : f32
    %458 = vector.broadcast %cst_224 : f32 to vector<1x256xf32>
    %459 = arith.addf %455, %458 : vector<1x256xf32>
    %460 = math.rsqrt %459 : vector<1x256xf32>
    %461 = vector.broadcast %460 : vector<1x256xf32> to vector<2x256xf32>
    %462 = arith.mulf %457, %461 : vector<2x256xf32>
    %c11 = arith.constant 11 : index
    %c0_225 = arith.constant 0 : index
    %c0_226 = arith.constant 0 : index
    %463 = vector.load %arg3[%c11, %c0_225, %c0_226] : memref<12x2x256xf32, #tpu.memory_space<vmem>>, vector<1x2x256xf32>
    %464 = vector.shape_cast %463 : vector<1x2x256xf32> to vector<2x256xf32>
    %465 = arith.mulf %462, %464 : vector<2x256xf32>
    %c0_227 = arith.constant 0 : index
    %c0_228 = arith.constant 0 : index
    %466 = vector.load %arg12[%c0_227, %c0_228] : memref<256x128xf32, #tpu.memory_space<vmem>>, vector<256x128xf32>
    %c0_229 = arith.constant 0 : index
    %c0_230 = arith.constant 0 : index
    %467 = vector.load %arg13[%c0_229, %c0_230] : memref<1x128xf32, #tpu.memory_space<vmem>>, vector<1x128xf32>
    %cst_231 = arith.constant dense<0.000000e+00> : vector<2x128xf32>
    %468 = tpu.matmul %372, %466, %cst_231 {dimension_numbers = #tpu.dot_dimension_numbers<[1], [0], [0], [1], [0, 0, 1, 1], [], []>} : vector<2x256xf32>, vector<256x128xf32>, vector<2x128xf32> -> vector<2x128xf32>
    %469 = vector.broadcast %467 : vector<1x128xf32> to vector<2x128xf32>
    %470 = arith.addf %468, %469 : vector<2x128xf32>
    %cst_232 = arith.constant 0.000000e+00 : f32
    %471 = vector.broadcast %cst_232 : f32 to vector<2x128xf32>
    %472 = arith.maximumf %470, %471 : vector<2x128xf32>
    %cst_233 = arith.constant dense<0.000000e+00> : vector<128xf32>
    %473 = vector.multi_reduction <add>, %472, %cst_233 [0] : vector<2x128xf32> to vector<128xf32>
    %474 = vector.shape_cast %473 : vector<128xf32> to vector<1x128xf32>
    %cst_234 = arith.constant 2.000000e+00 : f32
    %475 = vector.broadcast %cst_234 : f32 to vector<1x128xf32>
    %476 = arith.divf %474, %475 : vector<1x128xf32>
    %477 = vector.broadcast %476 : vector<1x128xf32> to vector<2x128xf32>
    %478 = arith.subf %472, %477 : vector<2x128xf32>
    %479 = arith.mulf %478, %478 : vector<2x128xf32>
    %cst_235 = arith.constant dense<0.000000e+00> : vector<128xf32>
    %480 = vector.multi_reduction <add>, %479, %cst_235 [0] : vector<2x128xf32> to vector<128xf32>
    %481 = vector.shape_cast %480 : vector<128xf32> to vector<1x128xf32>
    %cst_236 = arith.constant 2.000000e+00 : f32
    %482 = vector.broadcast %cst_236 : f32 to vector<1x128xf32>
    %483 = arith.divf %481, %482 : vector<1x128xf32>
    %484 = vector.broadcast %476 : vector<1x128xf32> to vector<2x128xf32>
    %485 = arith.subf %472, %484 : vector<2x128xf32>
    %cst_237 = arith.constant 2.000000e-01 : f32
    %486 = vector.broadcast %cst_237 : f32 to vector<1x128xf32>
    %487 = arith.addf %483, %486 : vector<1x128xf32>
    %488 = math.rsqrt %487 : vector<1x128xf32>
    %489 = vector.broadcast %488 : vector<1x128xf32> to vector<2x128xf32>
    %490 = arith.mulf %485, %489 : vector<2x128xf32>
    %cst_238 = arith.constant dense<0.000000e+00> : vector<2x128xf32>
    %491 = tpu.matmul %403, %466, %cst_238 {dimension_numbers = #tpu.dot_dimension_numbers<[1], [0], [0], [1], [0, 0, 1, 1], [], []>} : vector<2x256xf32>, vector<256x128xf32>, vector<2x128xf32> -> vector<2x128xf32>
    %492 = vector.broadcast %467 : vector<1x128xf32> to vector<2x128xf32>
    %493 = arith.addf %491, %492 : vector<2x128xf32>
    %cst_239 = arith.constant 0.000000e+00 : f32
    %494 = vector.broadcast %cst_239 : f32 to vector<2x128xf32>
    %495 = arith.maximumf %493, %494 : vector<2x128xf32>
    %cst_240 = arith.constant dense<0.000000e+00> : vector<128xf32>
    %496 = vector.multi_reduction <add>, %495, %cst_240 [0] : vector<2x128xf32> to vector<128xf32>
    %497 = vector.shape_cast %496 : vector<128xf32> to vector<1x128xf32>
    %cst_241 = arith.constant 2.000000e+00 : f32
    %498 = vector.broadcast %cst_241 : f32 to vector<1x128xf32>
    %499 = arith.divf %497, %498 : vector<1x128xf32>
    %500 = vector.broadcast %499 : vector<1x128xf32> to vector<2x128xf32>
    %501 = arith.subf %495, %500 : vector<2x128xf32>
    %502 = arith.mulf %501, %501 : vector<2x128xf32>
    %cst_242 = arith.constant dense<0.000000e+00> : vector<128xf32>
    %503 = vector.multi_reduction <add>, %502, %cst_242 [0] : vector<2x128xf32> to vector<128xf32>
    %504 = vector.shape_cast %503 : vector<128xf32> to vector<1x128xf32>
    %cst_243 = arith.constant 2.000000e+00 : f32
    %505 = vector.broadcast %cst_243 : f32 to vector<1x128xf32>
    %506 = arith.divf %504, %505 : vector<1x128xf32>
    %507 = vector.broadcast %499 : vector<1x128xf32> to vector<2x128xf32>
    %508 = arith.subf %495, %507 : vector<2x128xf32>
    %cst_244 = arith.constant 2.000000e-01 : f32
    %509 = vector.broadcast %cst_244 : f32 to vector<1x128xf32>
    %510 = arith.addf %506, %509 : vector<1x128xf32>
    %511 = math.rsqrt %510 : vector<1x128xf32>
    %512 = vector.broadcast %511 : vector<1x128xf32> to vector<2x128xf32>
    %513 = arith.mulf %508, %512 : vector<2x128xf32>
    %cst_245 = arith.constant dense<0.000000e+00> : vector<2x128xf32>
    %514 = tpu.matmul %434, %466, %cst_245 {dimension_numbers = #tpu.dot_dimension_numbers<[1], [0], [0], [1], [0, 0, 1, 1], [], []>} : vector<2x256xf32>, vector<256x128xf32>, vector<2x128xf32> -> vector<2x128xf32>
    %515 = vector.broadcast %467 : vector<1x128xf32> to vector<2x128xf32>
    %516 = arith.addf %514, %515 : vector<2x128xf32>
    %cst_246 = arith.constant 0.000000e+00 : f32
    %517 = vector.broadcast %cst_246 : f32 to vector<2x128xf32>
    %518 = arith.maximumf %516, %517 : vector<2x128xf32>
    %cst_247 = arith.constant dense<0.000000e+00> : vector<128xf32>
    %519 = vector.multi_reduction <add>, %518, %cst_247 [0] : vector<2x128xf32> to vector<128xf32>
    %520 = vector.shape_cast %519 : vector<128xf32> to vector<1x128xf32>
    %cst_248 = arith.constant 2.000000e+00 : f32
    %521 = vector.broadcast %cst_248 : f32 to vector<1x128xf32>
    %522 = arith.divf %520, %521 : vector<1x128xf32>
    %523 = vector.broadcast %522 : vector<1x128xf32> to vector<2x128xf32>
    %524 = arith.subf %518, %523 : vector<2x128xf32>
    %525 = arith.mulf %524, %524 : vector<2x128xf32>
    %cst_249 = arith.constant dense<0.000000e+00> : vector<128xf32>
    %526 = vector.multi_reduction <add>, %525, %cst_249 [0] : vector<2x128xf32> to vector<128xf32>
    %527 = vector.shape_cast %526 : vector<128xf32> to vector<1x128xf32>
    %cst_250 = arith.constant 2.000000e+00 : f32
    %528 = vector.broadcast %cst_250 : f32 to vector<1x128xf32>
    %529 = arith.divf %527, %528 : vector<1x128xf32>
    %530 = vector.broadcast %522 : vector<1x128xf32> to vector<2x128xf32>
    %531 = arith.subf %518, %530 : vector<2x128xf32>
    %cst_251 = arith.constant 2.000000e-01 : f32
    %532 = vector.broadcast %cst_251 : f32 to vector<1x128xf32>
    %533 = arith.addf %529, %532 : vector<1x128xf32>
    %534 = math.rsqrt %533 : vector<1x128xf32>
    %535 = vector.broadcast %534 : vector<1x128xf32> to vector<2x128xf32>
    %536 = arith.mulf %531, %535 : vector<2x128xf32>
    %cst_252 = arith.constant dense<0.000000e+00> : vector<2x128xf32>
    %537 = tpu.matmul %465, %466, %cst_252 {dimension_numbers = #tpu.dot_dimension_numbers<[1], [0], [0], [1], [0, 0, 1, 1], [], []>} : vector<2x256xf32>, vector<256x128xf32>, vector<2x128xf32> -> vector<2x128xf32>
    %538 = vector.broadcast %467 : vector<1x128xf32> to vector<2x128xf32>
    %539 = arith.addf %537, %538 : vector<2x128xf32>
    %cst_253 = arith.constant 0.000000e+00 : f32
    %540 = vector.broadcast %cst_253 : f32 to vector<2x128xf32>
    %541 = arith.maximumf %539, %540 : vector<2x128xf32>
    %cst_254 = arith.constant dense<0.000000e+00> : vector<128xf32>
    %542 = vector.multi_reduction <add>, %541, %cst_254 [0] : vector<2x128xf32> to vector<128xf32>
    %543 = vector.shape_cast %542 : vector<128xf32> to vector<1x128xf32>
    %cst_255 = arith.constant 2.000000e+00 : f32
    %544 = vector.broadcast %cst_255 : f32 to vector<1x128xf32>
    %545 = arith.divf %543, %544 : vector<1x128xf32>
    %546 = vector.broadcast %545 : vector<1x128xf32> to vector<2x128xf32>
    %547 = arith.subf %541, %546 : vector<2x128xf32>
    %548 = arith.mulf %547, %547 : vector<2x128xf32>
    %cst_256 = arith.constant dense<0.000000e+00> : vector<128xf32>
    %549 = vector.multi_reduction <add>, %548, %cst_256 [0] : vector<2x128xf32> to vector<128xf32>
    %550 = vector.shape_cast %549 : vector<128xf32> to vector<1x128xf32>
    %cst_257 = arith.constant 2.000000e+00 : f32
    %551 = vector.broadcast %cst_257 : f32 to vector<1x128xf32>
    %552 = arith.divf %550, %551 : vector<1x128xf32>
    %553 = vector.broadcast %545 : vector<1x128xf32> to vector<2x128xf32>
    %554 = arith.subf %541, %553 : vector<2x128xf32>
    %cst_258 = arith.constant 2.000000e-01 : f32
    %555 = vector.broadcast %cst_258 : f32 to vector<1x128xf32>
    %556 = arith.addf %552, %555 : vector<1x128xf32>
    %557 = math.rsqrt %556 : vector<1x128xf32>
    %558 = vector.broadcast %557 : vector<1x128xf32> to vector<2x128xf32>
    %559 = arith.mulf %554, %558 : vector<2x128xf32>
    %c0_259 = arith.constant 0 : index
    %c0_260 = arith.constant 0 : index
    %560 = vector.load %arg14[%c0_259, %c0_260] : memref<128x64xf32, #tpu.memory_space<vmem>>, vector<128x64xf32>
    %c0_261 = arith.constant 0 : index
    %c0_262 = arith.constant 0 : index
    %561 = vector.load %arg15[%c0_261, %c0_262] : memref<1x64xf32, #tpu.memory_space<vmem>>, vector<1x64xf32>
    %cst_263 = arith.constant dense<0.000000e+00> : vector<2x64xf32>
    %562 = tpu.matmul %490, %560, %cst_263 {dimension_numbers = #tpu.dot_dimension_numbers<[1], [0], [0], [1], [0, 0, 1, 1], [], []>} : vector<2x128xf32>, vector<128x64xf32>, vector<2x64xf32> -> vector<2x64xf32>
    %563 = vector.broadcast %561 : vector<1x64xf32> to vector<2x64xf32>
    %564 = arith.addf %562, %563 : vector<2x64xf32>
    %cst_264 = arith.constant 0.000000e+00 : f32
    %565 = vector.broadcast %cst_264 : f32 to vector<2x64xf32>
    %566 = arith.maximumf %564, %565 : vector<2x64xf32>
    %cst_265 = arith.constant dense<0.000000e+00> : vector<64xf32>
    %567 = vector.multi_reduction <add>, %566, %cst_265 [0] : vector<2x64xf32> to vector<64xf32>
    %568 = vector.shape_cast %567 : vector<64xf32> to vector<1x64xf32>
    %cst_266 = arith.constant 2.000000e+00 : f32
    %569 = vector.broadcast %cst_266 : f32 to vector<1x64xf32>
    %570 = arith.divf %568, %569 : vector<1x64xf32>
    %571 = vector.broadcast %570 : vector<1x64xf32> to vector<2x64xf32>
    %572 = arith.subf %566, %571 : vector<2x64xf32>
    %573 = arith.mulf %572, %572 : vector<2x64xf32>
    %cst_267 = arith.constant dense<0.000000e+00> : vector<64xf32>
    %574 = vector.multi_reduction <add>, %573, %cst_267 [0] : vector<2x64xf32> to vector<64xf32>
    %575 = vector.shape_cast %574 : vector<64xf32> to vector<1x64xf32>
    %cst_268 = arith.constant 2.000000e+00 : f32
    %576 = vector.broadcast %cst_268 : f32 to vector<1x64xf32>
    %577 = arith.divf %575, %576 : vector<1x64xf32>
    %578 = vector.broadcast %570 : vector<1x64xf32> to vector<2x64xf32>
    %579 = arith.subf %566, %578 : vector<2x64xf32>
    %cst_269 = arith.constant 2.000000e-01 : f32
    %580 = vector.broadcast %cst_269 : f32 to vector<1x64xf32>
    %581 = arith.addf %577, %580 : vector<1x64xf32>
    %582 = math.rsqrt %581 : vector<1x64xf32>
    %583 = vector.broadcast %582 : vector<1x64xf32> to vector<2x64xf32>
    %584 = arith.mulf %579, %583 : vector<2x64xf32>
    %cst_270 = arith.constant dense<0.000000e+00> : vector<2x64xf32>
    %585 = tpu.matmul %513, %560, %cst_270 {dimension_numbers = #tpu.dot_dimension_numbers<[1], [0], [0], [1], [0, 0, 1, 1], [], []>} : vector<2x128xf32>, vector<128x64xf32>, vector<2x64xf32> -> vector<2x64xf32>
    %586 = vector.broadcast %561 : vector<1x64xf32> to vector<2x64xf32>
    %587 = arith.addf %585, %586 : vector<2x64xf32>
    %cst_271 = arith.constant 0.000000e+00 : f32
    %588 = vector.broadcast %cst_271 : f32 to vector<2x64xf32>
    %589 = arith.maximumf %587, %588 : vector<2x64xf32>
    %cst_272 = arith.constant dense<0.000000e+00> : vector<64xf32>
    %590 = vector.multi_reduction <add>, %589, %cst_272 [0] : vector<2x64xf32> to vector<64xf32>
    %591 = vector.shape_cast %590 : vector<64xf32> to vector<1x64xf32>
    %cst_273 = arith.constant 2.000000e+00 : f32
    %592 = vector.broadcast %cst_273 : f32 to vector<1x64xf32>
    %593 = arith.divf %591, %592 : vector<1x64xf32>
    %594 = vector.broadcast %593 : vector<1x64xf32> to vector<2x64xf32>
    %595 = arith.subf %589, %594 : vector<2x64xf32>
    %596 = arith.mulf %595, %595 : vector<2x64xf32>
    %cst_274 = arith.constant dense<0.000000e+00> : vector<64xf32>
    %597 = vector.multi_reduction <add>, %596, %cst_274 [0] : vector<2x64xf32> to vector<64xf32>
    %598 = vector.shape_cast %597 : vector<64xf32> to vector<1x64xf32>
    %cst_275 = arith.constant 2.000000e+00 : f32
    %599 = vector.broadcast %cst_275 : f32 to vector<1x64xf32>
    %600 = arith.divf %598, %599 : vector<1x64xf32>
    %601 = vector.broadcast %593 : vector<1x64xf32> to vector<2x64xf32>
    %602 = arith.subf %589, %601 : vector<2x64xf32>
    %cst_276 = arith.constant 2.000000e-01 : f32
    %603 = vector.broadcast %cst_276 : f32 to vector<1x64xf32>
    %604 = arith.addf %600, %603 : vector<1x64xf32>
    %605 = math.rsqrt %604 : vector<1x64xf32>
    %606 = vector.broadcast %605 : vector<1x64xf32> to vector<2x64xf32>
    %607 = arith.mulf %602, %606 : vector<2x64xf32>
    %cst_277 = arith.constant dense<0.000000e+00> : vector<2x64xf32>
    %608 = tpu.matmul %536, %560, %cst_277 {dimension_numbers = #tpu.dot_dimension_numbers<[1], [0], [0], [1], [0, 0, 1, 1], [], []>} : vector<2x128xf32>, vector<128x64xf32>, vector<2x64xf32> -> vector<2x64xf32>
    %609 = vector.broadcast %561 : vector<1x64xf32> to vector<2x64xf32>
    %610 = arith.addf %608, %609 : vector<2x64xf32>
    %cst_278 = arith.constant 0.000000e+00 : f32
    %611 = vector.broadcast %cst_278 : f32 to vector<2x64xf32>
    %612 = arith.maximumf %610, %611 : vector<2x64xf32>
    %cst_279 = arith.constant dense<0.000000e+00> : vector<64xf32>
    %613 = vector.multi_reduction <add>, %612, %cst_279 [0] : vector<2x64xf32> to vector<64xf32>
    %614 = vector.shape_cast %613 : vector<64xf32> to vector<1x64xf32>
    %cst_280 = arith.constant 2.000000e+00 : f32
    %615 = vector.broadcast %cst_280 : f32 to vector<1x64xf32>
    %616 = arith.divf %614, %615 : vector<1x64xf32>
    %617 = vector.broadcast %616 : vector<1x64xf32> to vector<2x64xf32>
    %618 = arith.subf %612, %617 : vector<2x64xf32>
    %619 = arith.mulf %618, %618 : vector<2x64xf32>
    %cst_281 = arith.constant dense<0.000000e+00> : vector<64xf32>
    %620 = vector.multi_reduction <add>, %619, %cst_281 [0] : vector<2x64xf32> to vector<64xf32>
    %621 = vector.shape_cast %620 : vector<64xf32> to vector<1x64xf32>
    %cst_282 = arith.constant 2.000000e+00 : f32
    %622 = vector.broadcast %cst_282 : f32 to vector<1x64xf32>
    %623 = arith.divf %621, %622 : vector<1x64xf32>
    %624 = vector.broadcast %616 : vector<1x64xf32> to vector<2x64xf32>
    %625 = arith.subf %612, %624 : vector<2x64xf32>
    %cst_283 = arith.constant 2.000000e-01 : f32
    %626 = vector.broadcast %cst_283 : f32 to vector<1x64xf32>
    %627 = arith.addf %623, %626 : vector<1x64xf32>
    %628 = math.rsqrt %627 : vector<1x64xf32>
    %629 = vector.broadcast %628 : vector<1x64xf32> to vector<2x64xf32>
    %630 = arith.mulf %625, %629 : vector<2x64xf32>
    %cst_284 = arith.constant dense<0.000000e+00> : vector<2x64xf32>
    %631 = tpu.matmul %559, %560, %cst_284 {dimension_numbers = #tpu.dot_dimension_numbers<[1], [0], [0], [1], [0, 0, 1, 1], [], []>} : vector<2x128xf32>, vector<128x64xf32>, vector<2x64xf32> -> vector<2x64xf32>
    %632 = vector.broadcast %561 : vector<1x64xf32> to vector<2x64xf32>
    %633 = arith.addf %631, %632 : vector<2x64xf32>
    %cst_285 = arith.constant 0.000000e+00 : f32
    %634 = vector.broadcast %cst_285 : f32 to vector<2x64xf32>
    %635 = arith.maximumf %633, %634 : vector<2x64xf32>
    %cst_286 = arith.constant dense<0.000000e+00> : vector<64xf32>
    %636 = vector.multi_reduction <add>, %635, %cst_286 [0] : vector<2x64xf32> to vector<64xf32>
    %637 = vector.shape_cast %636 : vector<64xf32> to vector<1x64xf32>
    %cst_287 = arith.constant 2.000000e+00 : f32
    %638 = vector.broadcast %cst_287 : f32 to vector<1x64xf32>
    %639 = arith.divf %637, %638 : vector<1x64xf32>
    %640 = vector.broadcast %639 : vector<1x64xf32> to vector<2x64xf32>
    %641 = arith.subf %635, %640 : vector<2x64xf32>
    %642 = arith.mulf %641, %641 : vector<2x64xf32>
    %cst_288 = arith.constant dense<0.000000e+00> : vector<64xf32>
    %643 = vector.multi_reduction <add>, %642, %cst_288 [0] : vector<2x64xf32> to vector<64xf32>
    %644 = vector.shape_cast %643 : vector<64xf32> to vector<1x64xf32>
    %cst_289 = arith.constant 2.000000e+00 : f32
    %645 = vector.broadcast %cst_289 : f32 to vector<1x64xf32>
    %646 = arith.divf %644, %645 : vector<1x64xf32>
    %647 = vector.broadcast %639 : vector<1x64xf32> to vector<2x64xf32>
    %648 = arith.subf %635, %647 : vector<2x64xf32>
    %cst_290 = arith.constant 2.000000e-01 : f32
    %649 = vector.broadcast %cst_290 : f32 to vector<1x64xf32>
    %650 = arith.addf %646, %649 : vector<1x64xf32>
    %651 = math.rsqrt %650 : vector<1x64xf32>
    %652 = vector.broadcast %651 : vector<1x64xf32> to vector<2x64xf32>
    %653 = arith.mulf %648, %652 : vector<2x64xf32>
    %c0_291 = arith.constant 0 : index
    %c0_292 = arith.constant 0 : index
    %654 = vector.load %arg16[%c0_291, %c0_292] : memref<64x32xf32, #tpu.memory_space<vmem>>, vector<64x32xf32>
    %c0_293 = arith.constant 0 : index
    %c0_294 = arith.constant 0 : index
    %655 = vector.load %arg17[%c0_293, %c0_294] : memref<1x32xf32, #tpu.memory_space<vmem>>, vector<1x32xf32>
    %cst_295 = arith.constant dense<0.000000e+00> : vector<2x32xf32>
    %656 = tpu.matmul %584, %654, %cst_295 {dimension_numbers = #tpu.dot_dimension_numbers<[1], [0], [0], [1], [0, 0, 1, 1], [], []>} : vector<2x64xf32>, vector<64x32xf32>, vector<2x32xf32> -> vector<2x32xf32>
    %657 = vector.broadcast %655 : vector<1x32xf32> to vector<2x32xf32>
    %658 = arith.addf %656, %657 : vector<2x32xf32>
    %cst_296 = arith.constant 0.000000e+00 : f32
    %659 = vector.broadcast %cst_296 : f32 to vector<2x32xf32>
    %660 = arith.maximumf %658, %659 : vector<2x32xf32>
    %cst_297 = arith.constant dense<0.000000e+00> : vector<32xf32>
    %661 = vector.multi_reduction <add>, %660, %cst_297 [0] : vector<2x32xf32> to vector<32xf32>
    %662 = vector.shape_cast %661 : vector<32xf32> to vector<1x32xf32>
    %cst_298 = arith.constant 2.000000e+00 : f32
    %663 = vector.broadcast %cst_298 : f32 to vector<1x32xf32>
    %664 = arith.divf %662, %663 : vector<1x32xf32>
    %665 = vector.broadcast %664 : vector<1x32xf32> to vector<2x32xf32>
    %666 = arith.subf %660, %665 : vector<2x32xf32>
    %667 = arith.mulf %666, %666 : vector<2x32xf32>
    %cst_299 = arith.constant dense<0.000000e+00> : vector<32xf32>
    %668 = vector.multi_reduction <add>, %667, %cst_299 [0] : vector<2x32xf32> to vector<32xf32>
    %669 = vector.shape_cast %668 : vector<32xf32> to vector<1x32xf32>
    %cst_300 = arith.constant 2.000000e+00 : f32
    %670 = vector.broadcast %cst_300 : f32 to vector<1x32xf32>
    %671 = arith.divf %669, %670 : vector<1x32xf32>
    %672 = vector.broadcast %664 : vector<1x32xf32> to vector<2x32xf32>
    %673 = arith.subf %660, %672 : vector<2x32xf32>
    %cst_301 = arith.constant 2.000000e-01 : f32
    %674 = vector.broadcast %cst_301 : f32 to vector<1x32xf32>
    %675 = arith.addf %671, %674 : vector<1x32xf32>
    %676 = math.rsqrt %675 : vector<1x32xf32>
    %677 = vector.broadcast %676 : vector<1x32xf32> to vector<2x32xf32>
    %678 = arith.mulf %673, %677 : vector<2x32xf32>
    %cst_302 = arith.constant dense<0.000000e+00> : vector<2x32xf32>
    %679 = tpu.matmul %607, %654, %cst_302 {dimension_numbers = #tpu.dot_dimension_numbers<[1], [0], [0], [1], [0, 0, 1, 1], [], []>} : vector<2x64xf32>, vector<64x32xf32>, vector<2x32xf32> -> vector<2x32xf32>
    %680 = vector.broadcast %655 : vector<1x32xf32> to vector<2x32xf32>
    %681 = arith.addf %679, %680 : vector<2x32xf32>
    %cst_303 = arith.constant 0.000000e+00 : f32
    %682 = vector.broadcast %cst_303 : f32 to vector<2x32xf32>
    %683 = arith.maximumf %681, %682 : vector<2x32xf32>
    %cst_304 = arith.constant dense<0.000000e+00> : vector<32xf32>
    %684 = vector.multi_reduction <add>, %683, %cst_304 [0] : vector<2x32xf32> to vector<32xf32>
    %685 = vector.shape_cast %684 : vector<32xf32> to vector<1x32xf32>
    %cst_305 = arith.constant 2.000000e+00 : f32
    %686 = vector.broadcast %cst_305 : f32 to vector<1x32xf32>
    %687 = arith.divf %685, %686 : vector<1x32xf32>
    %688 = vector.broadcast %687 : vector<1x32xf32> to vector<2x32xf32>
    %689 = arith.subf %683, %688 : vector<2x32xf32>
    %690 = arith.mulf %689, %689 : vector<2x32xf32>
    %cst_306 = arith.constant dense<0.000000e+00> : vector<32xf32>
    %691 = vector.multi_reduction <add>, %690, %cst_306 [0] : vector<2x32xf32> to vector<32xf32>
    %692 = vector.shape_cast %691 : vector<32xf32> to vector<1x32xf32>
    %cst_307 = arith.constant 2.000000e+00 : f32
    %693 = vector.broadcast %cst_307 : f32 to vector<1x32xf32>
    %694 = arith.divf %692, %693 : vector<1x32xf32>
    %695 = vector.broadcast %687 : vector<1x32xf32> to vector<2x32xf32>
    %696 = arith.subf %683, %695 : vector<2x32xf32>
    %cst_308 = arith.constant 2.000000e-01 : f32
    %697 = vector.broadcast %cst_308 : f32 to vector<1x32xf32>
    %698 = arith.addf %694, %697 : vector<1x32xf32>
    %699 = math.rsqrt %698 : vector<1x32xf32>
    %700 = vector.broadcast %699 : vector<1x32xf32> to vector<2x32xf32>
    %701 = arith.mulf %696, %700 : vector<2x32xf32>
    %cst_309 = arith.constant dense<0.000000e+00> : vector<2x32xf32>
    %702 = tpu.matmul %630, %654, %cst_309 {dimension_numbers = #tpu.dot_dimension_numbers<[1], [0], [0], [1], [0, 0, 1, 1], [], []>} : vector<2x64xf32>, vector<64x32xf32>, vector<2x32xf32> -> vector<2x32xf32>
    %703 = vector.broadcast %655 : vector<1x32xf32> to vector<2x32xf32>
    %704 = arith.addf %702, %703 : vector<2x32xf32>
    %cst_310 = arith.constant 0.000000e+00 : f32
    %705 = vector.broadcast %cst_310 : f32 to vector<2x32xf32>
    %706 = arith.maximumf %704, %705 : vector<2x32xf32>
    %cst_311 = arith.constant dense<0.000000e+00> : vector<32xf32>
    %707 = vector.multi_reduction <add>, %706, %cst_311 [0] : vector<2x32xf32> to vector<32xf32>
    %708 = vector.shape_cast %707 : vector<32xf32> to vector<1x32xf32>
    %cst_312 = arith.constant 2.000000e+00 : f32
    %709 = vector.broadcast %cst_312 : f32 to vector<1x32xf32>
    %710 = arith.divf %708, %709 : vector<1x32xf32>
    %711 = vector.broadcast %710 : vector<1x32xf32> to vector<2x32xf32>
    %712 = arith.subf %706, %711 : vector<2x32xf32>
    %713 = arith.mulf %712, %712 : vector<2x32xf32>
    %cst_313 = arith.constant dense<0.000000e+00> : vector<32xf32>
    %714 = vector.multi_reduction <add>, %713, %cst_313 [0] : vector<2x32xf32> to vector<32xf32>
    %715 = vector.shape_cast %714 : vector<32xf32> to vector<1x32xf32>
    %cst_314 = arith.constant 2.000000e+00 : f32
    %716 = vector.broadcast %cst_314 : f32 to vector<1x32xf32>
    %717 = arith.divf %715, %716 : vector<1x32xf32>
    %718 = vector.broadcast %710 : vector<1x32xf32> to vector<2x32xf32>
    %719 = arith.subf %706, %718 : vector<2x32xf32>
    %cst_315 = arith.constant 2.000000e-01 : f32
    %720 = vector.broadcast %cst_315 : f32 to vector<1x32xf32>
    %721 = arith.addf %717, %720 : vector<1x32xf32>
    %722 = math.rsqrt %721 : vector<1x32xf32>
    %723 = vector.broadcast %722 : vector<1x32xf32> to vector<2x32xf32>
    %724 = arith.mulf %719, %723 : vector<2x32xf32>
    %cst_316 = arith.constant dense<0.000000e+00> : vector<2x32xf32>
    %725 = tpu.matmul %653, %654, %cst_316 {dimension_numbers = #tpu.dot_dimension_numbers<[1], [0], [0], [1], [0, 0, 1, 1], [], []>} : vector<2x64xf32>, vector<64x32xf32>, vector<2x32xf32> -> vector<2x32xf32>
    %726 = vector.broadcast %655 : vector<1x32xf32> to vector<2x32xf32>
    %727 = arith.addf %725, %726 : vector<2x32xf32>
    %cst_317 = arith.constant 0.000000e+00 : f32
    %728 = vector.broadcast %cst_317 : f32 to vector<2x32xf32>
    %729 = arith.maximumf %727, %728 : vector<2x32xf32>
    %cst_318 = arith.constant dense<0.000000e+00> : vector<32xf32>
    %730 = vector.multi_reduction <add>, %729, %cst_318 [0] : vector<2x32xf32> to vector<32xf32>
    %731 = vector.shape_cast %730 : vector<32xf32> to vector<1x32xf32>
    %cst_319 = arith.constant 2.000000e+00 : f32
    %732 = vector.broadcast %cst_319 : f32 to vector<1x32xf32>
    %733 = arith.divf %731, %732 : vector<1x32xf32>
    %734 = vector.broadcast %733 : vector<1x32xf32> to vector<2x32xf32>
    %735 = arith.subf %729, %734 : vector<2x32xf32>
    %736 = arith.mulf %735, %735 : vector<2x32xf32>
    %cst_320 = arith.constant dense<0.000000e+00> : vector<32xf32>
    %737 = vector.multi_reduction <add>, %736, %cst_320 [0] : vector<2x32xf32> to vector<32xf32>
    %738 = vector.shape_cast %737 : vector<32xf32> to vector<1x32xf32>
    %cst_321 = arith.constant 2.000000e+00 : f32
    %739 = vector.broadcast %cst_321 : f32 to vector<1x32xf32>
    %740 = arith.divf %738, %739 : vector<1x32xf32>
    %741 = vector.broadcast %733 : vector<1x32xf32> to vector<2x32xf32>
    %742 = arith.subf %729, %741 : vector<2x32xf32>
    %cst_322 = arith.constant 2.000000e-01 : f32
    %743 = vector.broadcast %cst_322 : f32 to vector<1x32xf32>
    %744 = arith.addf %740, %743 : vector<1x32xf32>
    %745 = math.rsqrt %744 : vector<1x32xf32>
    %746 = vector.broadcast %745 : vector<1x32xf32> to vector<2x32xf32>
    %747 = arith.mulf %742, %746 : vector<2x32xf32>
    %c0_323 = arith.constant 0 : index
    %c0_324 = arith.constant 0 : index
    %748 = vector.load %arg18[%c0_323, %c0_324] : memref<32x16xf32, #tpu.memory_space<vmem>>, vector<32x16xf32>
    %c0_325 = arith.constant 0 : index
    %c0_326 = arith.constant 0 : index
    %749 = vector.load %arg19[%c0_325, %c0_326] : memref<1x16xf32, #tpu.memory_space<vmem>>, vector<1x16xf32>
    %cst_327 = arith.constant dense<0.000000e+00> : vector<2x16xf32>
    %750 = tpu.matmul %678, %748, %cst_327 {dimension_numbers = #tpu.dot_dimension_numbers<[1], [0], [0], [1], [0, 0, 1, 1], [], []>} : vector<2x32xf32>, vector<32x16xf32>, vector<2x16xf32> -> vector<2x16xf32>
    %751 = vector.broadcast %749 : vector<1x16xf32> to vector<2x16xf32>
    %752 = arith.addf %750, %751 : vector<2x16xf32>
    %cst_328 = arith.constant 0.000000e+00 : f32
    %753 = vector.broadcast %cst_328 : f32 to vector<2x16xf32>
    %754 = arith.maximumf %752, %753 : vector<2x16xf32>
    %cst_329 = arith.constant dense<0.000000e+00> : vector<16xf32>
    %755 = vector.multi_reduction <add>, %754, %cst_329 [0] : vector<2x16xf32> to vector<16xf32>
    %756 = vector.shape_cast %755 : vector<16xf32> to vector<1x16xf32>
    %cst_330 = arith.constant 2.000000e+00 : f32
    %757 = vector.broadcast %cst_330 : f32 to vector<1x16xf32>
    %758 = arith.divf %756, %757 : vector<1x16xf32>
    %759 = vector.broadcast %758 : vector<1x16xf32> to vector<2x16xf32>
    %760 = arith.subf %754, %759 : vector<2x16xf32>
    %761 = arith.mulf %760, %760 : vector<2x16xf32>
    %cst_331 = arith.constant dense<0.000000e+00> : vector<16xf32>
    %762 = vector.multi_reduction <add>, %761, %cst_331 [0] : vector<2x16xf32> to vector<16xf32>
    %763 = vector.shape_cast %762 : vector<16xf32> to vector<1x16xf32>
    %cst_332 = arith.constant 2.000000e+00 : f32
    %764 = vector.broadcast %cst_332 : f32 to vector<1x16xf32>
    %765 = arith.divf %763, %764 : vector<1x16xf32>
    %766 = vector.broadcast %758 : vector<1x16xf32> to vector<2x16xf32>
    %767 = arith.subf %754, %766 : vector<2x16xf32>
    %cst_333 = arith.constant 2.000000e-01 : f32
    %768 = vector.broadcast %cst_333 : f32 to vector<1x16xf32>
    %769 = arith.addf %765, %768 : vector<1x16xf32>
    %770 = math.rsqrt %769 : vector<1x16xf32>
    %771 = vector.broadcast %770 : vector<1x16xf32> to vector<2x16xf32>
    %772 = arith.mulf %767, %771 : vector<2x16xf32>
    %cst_334 = arith.constant dense<0.000000e+00> : vector<2x16xf32>
    %773 = tpu.matmul %701, %748, %cst_334 {dimension_numbers = #tpu.dot_dimension_numbers<[1], [0], [0], [1], [0, 0, 1, 1], [], []>} : vector<2x32xf32>, vector<32x16xf32>, vector<2x16xf32> -> vector<2x16xf32>
    %774 = vector.broadcast %749 : vector<1x16xf32> to vector<2x16xf32>
    %775 = arith.addf %773, %774 : vector<2x16xf32>
    %cst_335 = arith.constant 0.000000e+00 : f32
    %776 = vector.broadcast %cst_335 : f32 to vector<2x16xf32>
    %777 = arith.maximumf %775, %776 : vector<2x16xf32>
    %cst_336 = arith.constant dense<0.000000e+00> : vector<16xf32>
    %778 = vector.multi_reduction <add>, %777, %cst_336 [0] : vector<2x16xf32> to vector<16xf32>
    %779 = vector.shape_cast %778 : vector<16xf32> to vector<1x16xf32>
    %cst_337 = arith.constant 2.000000e+00 : f32
    %780 = vector.broadcast %cst_337 : f32 to vector<1x16xf32>
    %781 = arith.divf %779, %780 : vector<1x16xf32>
    %782 = vector.broadcast %781 : vector<1x16xf32> to vector<2x16xf32>
    %783 = arith.subf %777, %782 : vector<2x16xf32>
    %784 = arith.mulf %783, %783 : vector<2x16xf32>
    %cst_338 = arith.constant dense<0.000000e+00> : vector<16xf32>
    %785 = vector.multi_reduction <add>, %784, %cst_338 [0] : vector<2x16xf32> to vector<16xf32>
    %786 = vector.shape_cast %785 : vector<16xf32> to vector<1x16xf32>
    %cst_339 = arith.constant 2.000000e+00 : f32
    %787 = vector.broadcast %cst_339 : f32 to vector<1x16xf32>
    %788 = arith.divf %786, %787 : vector<1x16xf32>
    %789 = vector.broadcast %781 : vector<1x16xf32> to vector<2x16xf32>
    %790 = arith.subf %777, %789 : vector<2x16xf32>
    %cst_340 = arith.constant 2.000000e-01 : f32
    %791 = vector.broadcast %cst_340 : f32 to vector<1x16xf32>
    %792 = arith.addf %788, %791 : vector<1x16xf32>
    %793 = math.rsqrt %792 : vector<1x16xf32>
    %794 = vector.broadcast %793 : vector<1x16xf32> to vector<2x16xf32>
    %795 = arith.mulf %790, %794 : vector<2x16xf32>
    %cst_341 = arith.constant dense<0.000000e+00> : vector<2x16xf32>
    %796 = tpu.matmul %724, %748, %cst_341 {dimension_numbers = #tpu.dot_dimension_numbers<[1], [0], [0], [1], [0, 0, 1, 1], [], []>} : vector<2x32xf32>, vector<32x16xf32>, vector<2x16xf32> -> vector<2x16xf32>
    %797 = vector.broadcast %749 : vector<1x16xf32> to vector<2x16xf32>
    %798 = arith.addf %796, %797 : vector<2x16xf32>
    %cst_342 = arith.constant 0.000000e+00 : f32
    %799 = vector.broadcast %cst_342 : f32 to vector<2x16xf32>
    %800 = arith.maximumf %798, %799 : vector<2x16xf32>
    %cst_343 = arith.constant dense<0.000000e+00> : vector<16xf32>
    %801 = vector.multi_reduction <add>, %800, %cst_343 [0] : vector<2x16xf32> to vector<16xf32>
    %802 = vector.shape_cast %801 : vector<16xf32> to vector<1x16xf32>
    %cst_344 = arith.constant 2.000000e+00 : f32
    %803 = vector.broadcast %cst_344 : f32 to vector<1x16xf32>
    %804 = arith.divf %802, %803 : vector<1x16xf32>
    %805 = vector.broadcast %804 : vector<1x16xf32> to vector<2x16xf32>
    %806 = arith.subf %800, %805 : vector<2x16xf32>
    %807 = arith.mulf %806, %806 : vector<2x16xf32>
    %cst_345 = arith.constant dense<0.000000e+00> : vector<16xf32>
    %808 = vector.multi_reduction <add>, %807, %cst_345 [0] : vector<2x16xf32> to vector<16xf32>
    %809 = vector.shape_cast %808 : vector<16xf32> to vector<1x16xf32>
    %cst_346 = arith.constant 2.000000e+00 : f32
    %810 = vector.broadcast %cst_346 : f32 to vector<1x16xf32>
    %811 = arith.divf %809, %810 : vector<1x16xf32>
    %812 = vector.broadcast %804 : vector<1x16xf32> to vector<2x16xf32>
    %813 = arith.subf %800, %812 : vector<2x16xf32>
    %cst_347 = arith.constant 2.000000e-01 : f32
    %814 = vector.broadcast %cst_347 : f32 to vector<1x16xf32>
    %815 = arith.addf %811, %814 : vector<1x16xf32>
    %816 = math.rsqrt %815 : vector<1x16xf32>
    %817 = vector.broadcast %816 : vector<1x16xf32> to vector<2x16xf32>
    %818 = arith.mulf %813, %817 : vector<2x16xf32>
    %cst_348 = arith.constant dense<0.000000e+00> : vector<2x16xf32>
    %819 = tpu.matmul %747, %748, %cst_348 {dimension_numbers = #tpu.dot_dimension_numbers<[1], [0], [0], [1], [0, 0, 1, 1], [], []>} : vector<2x32xf32>, vector<32x16xf32>, vector<2x16xf32> -> vector<2x16xf32>
    %820 = vector.broadcast %749 : vector<1x16xf32> to vector<2x16xf32>
    %821 = arith.addf %819, %820 : vector<2x16xf32>
    %cst_349 = arith.constant 0.000000e+00 : f32
    %822 = vector.broadcast %cst_349 : f32 to vector<2x16xf32>
    %823 = arith.maximumf %821, %822 : vector<2x16xf32>
    %cst_350 = arith.constant dense<0.000000e+00> : vector<16xf32>
    %824 = vector.multi_reduction <add>, %823, %cst_350 [0] : vector<2x16xf32> to vector<16xf32>
    %825 = vector.shape_cast %824 : vector<16xf32> to vector<1x16xf32>
    %cst_351 = arith.constant 2.000000e+00 : f32
    %826 = vector.broadcast %cst_351 : f32 to vector<1x16xf32>
    %827 = arith.divf %825, %826 : vector<1x16xf32>
    %828 = vector.broadcast %827 : vector<1x16xf32> to vector<2x16xf32>
    %829 = arith.subf %823, %828 : vector<2x16xf32>
    %830 = arith.mulf %829, %829 : vector<2x16xf32>
    %cst_352 = arith.constant dense<0.000000e+00> : vector<16xf32>
    %831 = vector.multi_reduction <add>, %830, %cst_352 [0] : vector<2x16xf32> to vector<16xf32>
    %832 = vector.shape_cast %831 : vector<16xf32> to vector<1x16xf32>
    %cst_353 = arith.constant 2.000000e+00 : f32
    %833 = vector.broadcast %cst_353 : f32 to vector<1x16xf32>
    %834 = arith.divf %832, %833 : vector<1x16xf32>
    %835 = vector.broadcast %827 : vector<1x16xf32> to vector<2x16xf32>
    %836 = arith.subf %823, %835 : vector<2x16xf32>
    %cst_354 = arith.constant 2.000000e-01 : f32
    %837 = vector.broadcast %cst_354 : f32 to vector<1x16xf32>
    %838 = arith.addf %834, %837 : vector<1x16xf32>
    %839 = math.rsqrt %838 : vector<1x16xf32>
    %840 = vector.broadcast %839 : vector<1x16xf32> to vector<2x16xf32>
    %841 = arith.mulf %836, %840 : vector<2x16xf32>
    %c0_355 = arith.constant 0 : index
    %c0_356 = arith.constant 0 : index
    %842 = vector.load %arg20[%c0_355, %c0_356] : memref<16x3xf32, #tpu.memory_space<vmem>>, vector<16x3xf32>
    %c0_357 = arith.constant 0 : index
    %c0_358 = arith.constant 0 : index
    %843 = vector.load %arg21[%c0_357, %c0_358] : memref<1x3xf32, #tpu.memory_space<vmem>>, vector<1x3xf32>
    %cst_359 = arith.constant dense<0.000000e+00> : vector<2x3xf32>
    %844 = tpu.matmul %772, %842, %cst_359 {dimension_numbers = #tpu.dot_dimension_numbers<[1], [0], [0], [1], [0, 0, 1, 1], [], []>} : vector<2x16xf32>, vector<16x3xf32>, vector<2x3xf32> -> vector<2x3xf32>
    %845 = vector.broadcast %843 : vector<1x3xf32> to vector<2x3xf32>
    %846 = arith.addf %844, %845 : vector<2x3xf32>
    %cst_360 = arith.constant dense<0xFF800000> : vector<2xf32>
    %847 = vector.multi_reduction <maximumf>, %846, %cst_360 [1] : vector<2x3xf32> to vector<2xf32>
    %848 = vector.shape_cast %847 : vector<2xf32> to vector<2x1xf32>
    %849 = vector.broadcast %848 : vector<2x1xf32> to vector<2x3xf32>
    %850 = arith.subf %846, %849 : vector<2x3xf32>
    %851 = math.exp %850 : vector<2x3xf32>
    %cst_361 = arith.constant dense<0.000000e+00> : vector<2xf32>
    %852 = vector.multi_reduction <add>, %851, %cst_361 [1] : vector<2x3xf32> to vector<2xf32>
    %853 = vector.shape_cast %852 : vector<2xf32> to vector<2x1xf32>
    %854 = vector.broadcast %853 : vector<2x1xf32> to vector<2x3xf32>
    %855 = arith.divf %851, %854 : vector<2x3xf32>
    %c0_362 = arith.constant 0 : index
    %c0_363 = arith.constant 0 : index
    %856 = vector.load %arg28[%c0_362, %c0_363] : memref<2x3xf32, #tpu.memory_space<vmem>>, vector<2x3xf32>
    tpu.vector_store %arg28[%c0_362, %c0_363], %855 {strides = array<i32>} : memref<2x3xf32, #tpu.memory_space<vmem>>, vector<2x3xf32>,
    %c0_364 = arith.constant 0 : index
    %c0_365 = arith.constant 0 : index
    %857 = vector.load %arg22[%c0_364, %c0_365] : memref<16x3xf32, #tpu.memory_space<vmem>>, vector<16x3xf32>
    %c0_366 = arith.constant 0 : index
    %c0_367 = arith.constant 0 : index
    %858 = vector.load %arg23[%c0_366, %c0_367] : memref<1x3xf32, #tpu.memory_space<vmem>>, vector<1x3xf32>
    %cst_368 = arith.constant dense<0.000000e+00> : vector<2x3xf32>
    %859 = tpu.matmul %795, %857, %cst_368 {dimension_numbers = #tpu.dot_dimension_numbers<[1], [0], [0], [1], [0, 0, 1, 1], [], []>} : vector<2x16xf32>, vector<16x3xf32>, vector<2x3xf32> -> vector<2x3xf32>
    %860 = vector.broadcast %858 : vector<1x3xf32> to vector<2x3xf32>
    %861 = arith.addf %859, %860 : vector<2x3xf32>
    %cst_369 = arith.constant dense<0xFF800000> : vector<2xf32>
    %862 = vector.multi_reduction <maximumf>, %861, %cst_369 [1] : vector<2x3xf32> to vector<2xf32>
    %863 = vector.shape_cast %862 : vector<2xf32> to vector<2x1xf32>
    %864 = vector.broadcast %863 : vector<2x1xf32> to vector<2x3xf32>
    %865 = arith.subf %861, %864 : vector<2x3xf32>
    %866 = math.exp %865 : vector<2x3xf32>
    %cst_370 = arith.constant dense<0.000000e+00> : vector<2xf32>
    %867 = vector.multi_reduction <add>, %866, %cst_370 [1] : vector<2x3xf32> to vector<2xf32>
    %868 = vector.shape_cast %867 : vector<2xf32> to vector<2x1xf32>
    %869 = vector.broadcast %868 : vector<2x1xf32> to vector<2x3xf32>
    %870 = arith.divf %866, %869 : vector<2x3xf32>
    %c0_371 = arith.constant 0 : index
    %c0_372 = arith.constant 0 : index
    %871 = vector.load %arg29[%c0_371, %c0_372] : memref<2x3xf32, #tpu.memory_space<vmem>>, vector<2x3xf32>
    tpu.vector_store %arg29[%c0_371, %c0_372], %870 {strides = array<i32>} : memref<2x3xf32, #tpu.memory_space<vmem>>, vector<2x3xf32>,
    %c0_373 = arith.constant 0 : index
    %c0_374 = arith.constant 0 : index
    %872 = vector.load %arg24[%c0_373, %c0_374] : memref<16x6xf32, #tpu.memory_space<vmem>>, vector<16x6xf32>
    %c0_375 = arith.constant 0 : index
    %c0_376 = arith.constant 0 : index
    %873 = vector.load %arg25[%c0_375, %c0_376] : memref<1x6xf32, #tpu.memory_space<vmem>>, vector<1x6xf32>
    %cst_377 = arith.constant dense<0.000000e+00> : vector<2x6xf32>
    %874 = tpu.matmul %818, %872, %cst_377 {dimension_numbers = #tpu.dot_dimension_numbers<[1], [0], [0], [1], [0, 0, 1, 1], [], []>} : vector<2x16xf32>, vector<16x6xf32>, vector<2x6xf32> -> vector<2x6xf32>
    %875 = vector.broadcast %873 : vector<1x6xf32> to vector<2x6xf32>
    %876 = arith.addf %874, %875 : vector<2x6xf32>
    %cst_378 = arith.constant dense<0xFF800000> : vector<2xf32>
    %877 = vector.multi_reduction <maximumf>, %876, %cst_378 [1] : vector<2x6xf32> to vector<2xf32>
    %878 = vector.shape_cast %877 : vector<2xf32> to vector<2x1xf32>
    %879 = vector.broadcast %878 : vector<2x1xf32> to vector<2x6xf32>
    %880 = arith.subf %876, %879 : vector<2x6xf32>
    %881 = math.exp %880 : vector<2x6xf32>
    %cst_379 = arith.constant dense<0.000000e+00> : vector<2xf32>
    %882 = vector.multi_reduction <add>, %881, %cst_379 [1] : vector<2x6xf32> to vector<2xf32>
    %883 = vector.shape_cast %882 : vector<2xf32> to vector<2x1xf32>
    %884 = vector.broadcast %883 : vector<2x1xf32> to vector<2x6xf32>
    %885 = arith.divf %881, %884 : vector<2x6xf32>
    %c0_380 = arith.constant 0 : index
    %c0_381 = arith.constant 0 : index
    %886 = vector.load %arg30[%c0_380, %c0_381] : memref<2x6xf32, #tpu.memory_space<vmem>>, vector<2x6xf32>
    tpu.vector_store %arg30[%c0_380, %c0_381], %885 {strides = array<i32>} : memref<2x6xf32, #tpu.memory_space<vmem>>, vector<2x6xf32>,
    %c0_382 = arith.constant 0 : index
    %c0_383 = arith.constant 0 : index
    %887 = vector.load %arg26[%c0_382, %c0_383] : memref<16x4xf32, #tpu.memory_space<vmem>>, vector<16x4xf32>
    %c0_384 = arith.constant 0 : index
    %c0_385 = arith.constant 0 : index
    %888 = vector.load %arg27[%c0_384, %c0_385] : memref<1x4xf32, #tpu.memory_space<vmem>>, vector<1x4xf32>
    %cst_386 = arith.constant dense<0.000000e+00> : vector<2x4xf32>
    %889 = tpu.matmul %841, %887, %cst_386 {dimension_numbers = #tpu.dot_dimension_numbers<[1], [0], [0], [1], [0, 0, 1, 1], [], []>} : vector<2x16xf32>, vector<16x4xf32>, vector<2x4xf32> -> vector<2x4xf32>
    %890 = vector.broadcast %888 : vector<1x4xf32> to vector<2x4xf32>
    %891 = arith.addf %889, %890 : vector<2x4xf32>
    %cst_387 = arith.constant dense<0xFF800000> : vector<2xf32>
    %892 = vector.multi_reduction <maximumf>, %891, %cst_387 [1] : vector<2x4xf32> to vector<2xf32>
    %893 = vector.shape_cast %892 : vector<2xf32> to vector<2x1xf32>
    %894 = vector.broadcast %893 : vector<2x1xf32> to vector<2x4xf32>
    %895 = arith.subf %891, %894 : vector<2x4xf32>
    %896 = math.exp %895 : vector<2x4xf32>
    %cst_388 = arith.constant dense<0.000000e+00> : vector<2xf32>
    %897 = vector.multi_reduction <add>, %896, %cst_388 [1] : vector<2x4xf32> to vector<2xf32>
    %898 = vector.shape_cast %897 : vector<2xf32> to vector<2x1xf32>
    %899 = vector.broadcast %898 : vector<2x1xf32> to vector<2x4xf32>
    %900 = arith.divf %896, %899 : vector<2x4xf32>
    %c0_389 = arith.constant 0 : index
    %c0_390 = arith.constant 0 : index
    %901 = vector.load %arg31[%c0_389, %c0_390] : memref<2x4xf32, #tpu.memory_space<vmem>>, vector<2x4xf32>
    tpu.vector_store %arg31[%c0_389, %c0_390], %900 {strides = array<i32>} : memref<2x4xf32, #tpu.memory_space<vmem>>, vector<2x4xf32>,
    return
  }
  func.func @transform_0(%arg0: i32) -> (i32, i32) {
    %c0_i32 = arith.constant 0 : i32
    %c0_i32_0 = arith.constant 0 : i32
    %c0_i32_1 = arith.constant 0 : i32
    return %c0_i32, %c0_i32_0 : i32, i32
  }
  func.func @transform_1(%arg0: i32) -> (i32, i32) {
    %c0_i32 = arith.constant 0 : i32
    %c0_i32_0 = arith.constant 0 : i32
    %c0_i32_1 = arith.constant 0 : i32
    return %c0_i32, %c0_i32_0 : i32, i32
  }
  func.func @transform_2(%arg0: i32) -> (i32, i32, i32) {
    %c0_i32 = arith.constant 0 : i32
    %c0_i32_0 = arith.constant 0 : i32
    %c0_i32_1 = arith.constant 0 : i32
    %c0_i32_2 = arith.constant 0 : i32
    return %c0_i32, %c0_i32_0, %c0_i32_1 : i32, i32, i32
  }
  func.func @transform_3(%arg0: i32) -> (i32, i32) {
    %c0_i32 = arith.constant 0 : i32
    %c0_i32_0 = arith.constant 0 : i32
    %c0_i32_1 = arith.constant 0 : i32
    return %c0_i32, %c0_i32_0 : i32, i32
  }
  func.func @transform_4(%arg0: i32) -> (i32, i32) {
    %c0_i32 = arith.constant 0 : i32
    %c0_i32_0 = arith.constant 0 : i32
    %c0_i32_1 = arith.constant 0 : i32
    return %c0_i32, %c0_i32_0 : i32, i32
  }
  func.func @transform_5(%arg0: i32) -> (i32, i32) {
    %c0_i32 = arith.constant 0 : i32
    %c0_i32_0 = arith.constant 0 : i32
    %c0_i32_1 = arith.constant 0 : i32
    return %c0_i32, %c0_i32_0 : i32, i32
  }
  func.func @transform_6(%arg0: i32) -> (i32, i32) {
    %c0_i32 = arith.constant 0 : i32
    %c0_i32_0 = arith.constant 0 : i32
    %c0_i32_1 = arith.constant 0 : i32
    return %c0_i32, %c0_i32_0 : i32, i32
  }
  func.func @transform_7(%arg0: i32) -> (i32, i32, i32) {
    %c0_i32 = arith.constant 0 : i32
    %c0_i32_0 = arith.constant 0 : i32
    %c0_i32_1 = arith.constant 0 : i32
    %c0_i32_2 = arith.constant 0 : i32
    return %c0_i32, %c0_i32_0, %c0_i32_1 : i32, i32, i32
  }
  func.func @transform_8(%arg0: i32) -> (i32, i32, i32) {
    %c0_i32 = arith.constant 0 : i32
    %c0_i32_0 = arith.constant 0 : i32
    %c0_i32_1 = arith.constant 0 : i32
    %c0_i32_2 = arith.constant 0 : i32
    return %c0_i32, %c0_i32_0, %c0_i32_1 : i32, i32, i32
  }
  func.func @transform_9(%arg0: i32) -> (i32, i32, i32) {
    %c0_i32 = arith.constant 0 : i32
    %c0_i32_0 = arith.constant 0 : i32
    %c0_i32_1 = arith.constant 0 : i32
    %c0_i32_2 = arith.constant 0 : i32
    return %c0_i32, %c0_i32_0, %c0_i32_1 : i32, i32, i32
  }
  func.func @transform_10(%arg0: i32) -> (i32, i32, i32) {
    %c0_i32 = arith.constant 0 : i32
    %c0_i32_0 = arith.constant 0 : i32
    %c0_i32_1 = arith.constant 0 : i32
    %c0_i32_2 = arith.constant 0 : i32
    return %c0_i32, %c0_i32_0, %c0_i32_1 : i32, i32, i32
  }
  func.func @transform_11(%arg0: i32) -> (i32, i32) {
    %c0_i32 = arith.constant 0 : i32
    %c0_i32_0 = arith.constant 0 : i32
    %c0_i32_1 = arith.constant 0 : i32
    return %c0_i32, %c0_i32_0 : i32, i32
  }
  func.func @transform_12(%arg0: i32) -> (i32, i32) {
    %c0_i32 = arith.constant 0 : i32
    %c0_i32_0 = arith.constant 0 : i32
    %c0_i32_1 = arith.constant 0 : i32
    return %c0_i32, %c0_i32_0 : i32, i32
  }
  func.func @transform_13(%arg0: i32) -> (i32, i32) {
    %c0_i32 = arith.constant 0 : i32
    %c0_i32_0 = arith.constant 0 : i32
    %c0_i32_1 = arith.constant 0 : i32
    return %c0_i32, %c0_i32_0 : i32, i32
  }
  func.func @transform_14(%arg0: i32) -> (i32, i32) {
    %c0_i32 = arith.constant 0 : i32
    %c0_i32_0 = arith.constant 0 : i32
    %c0_i32_1 = arith.constant 0 : i32
    return %c0_i32, %c0_i32_0 : i32, i32
  }
  func.func @transform_15(%arg0: i32) -> (i32, i32) {
    %c0_i32 = arith.constant 0 : i32
    %c0_i32_0 = arith.constant 0 : i32
    %c0_i32_1 = arith.constant 0 : i32
    return %c0_i32, %c0_i32_0 : i32, i32
  }
  func.func @transform_16(%arg0: i32) -> (i32, i32) {
    %c0_i32 = arith.constant 0 : i32
    %c0_i32_0 = arith.constant 0 : i32
    %c0_i32_1 = arith.constant 0 : i32
    return %c0_i32, %c0_i32_0 : i32, i32
  }
  func.func @transform_17(%arg0: i32) -> (i32, i32) {
    %c0_i32 = arith.constant 0 : i32
    %c0_i32_0 = arith.constant 0 : i32
    %c0_i32_1 = arith.constant 0 : i32
    return %c0_i32, %c0_i32_0 : i32, i32
  }
  func.func @transform_18(%arg0: i32) -> (i32, i32) {
    %c0_i32 = arith.constant 0 : i32
    %c0_i32_0 = arith.constant 0 : i32
    %c0_i32_1 = arith.constant 0 : i32
    return %c0_i32, %c0_i32_0 : i32, i32
  }
  func.func @transform_19(%arg0: i32) -> (i32, i32) {
    %c0_i32 = arith.constant 0 : i32
    %c0_i32_0 = arith.constant 0 : i32
    %c0_i32_1 = arith.constant 0 : i32
    return %c0_i32, %c0_i32_0 : i32, i32
  }
  func.func @transform_20(%arg0: i32) -> (i32, i32) {
    %c0_i32 = arith.constant 0 : i32
    %c0_i32_0 = arith.constant 0 : i32
    %c0_i32_1 = arith.constant 0 : i32
    return %c0_i32, %c0_i32_0 : i32, i32
  }
  func.func @transform_21(%arg0: i32) -> (i32, i32) {
    %c0_i32 = arith.constant 0 : i32
    %c0_i32_0 = arith.constant 0 : i32
    %c0_i32_1 = arith.constant 0 : i32
    return %c0_i32, %c0_i32_0 : i32, i32
  }
  func.func @transform_22(%arg0: i32) -> (i32, i32) {
    %c0_i32 = arith.constant 0 : i32
    %c0_i32_0 = arith.constant 0 : i32
    %c0_i32_1 = arith.constant 0 : i32
    return %c0_i32, %c0_i32_0 : i32, i32
  }
  func.func @transform_23(%arg0: i32) -> (i32, i32) {
    %c0_i32 = arith.constant 0 : i32
    %c0_i32_0 = arith.constant 0 : i32
    %c0_i32_1 = arith.constant 0 : i32
    return %c0_i32, %c0_i32_0 : i32, i32
  }
  func.func @transform_24(%arg0: i32) -> (i32, i32) {
    %c0_i32 = arith.constant 0 : i32
    %c0_i32_0 = arith.constant 0 : i32
    %c0_i32_1 = arith.constant 0 : i32
    return %c0_i32, %c0_i32_0 : i32, i32
  }
  func.func @transform_25(%arg0: i32) -> (i32, i32) {
    %c0_i32 = arith.constant 0 : i32
    %c0_i32_0 = arith.constant 0 : i32
    %c0_i32_1 = arith.constant 0 : i32
    return %c0_i32, %c0_i32_0 : i32, i32
  }
  func.func @transform_26(%arg0: i32) -> (i32, i32) {
    %c0_i32 = arith.constant 0 : i32
    %c0_i32_0 = arith.constant 0 : i32
    %c0_i32_1 = arith.constant 0 : i32
    return %c0_i32, %c0_i32_0 : i32, i32
  }
  func.func @transform_27(%arg0: i32) -> (i32, i32) {
    %c0_i32 = arith.constant 0 : i32
    %c0_i32_0 = arith.constant 0 : i32
    %c0_i32_1 = arith.constant 0 : i32
    return %c0_i32, %c0_i32_0 : i32, i32
  }
  func.func @transform_28(%arg0: i32) -> (i32, i32) {
    %c0_i32 = arith.constant 0 : i32
    %c0_i32_0 = arith.constant 0 : i32
    %c0_i32_1 = arith.constant 0 : i32
    return %c0_i32, %c0_i32_0 : i32, i32
  }
  func.func @transform_29(%arg0: i32) -> (i32, i32) {
    %c0_i32 = arith.constant 0 : i32
    %c0_i32_0 = arith.constant 0 : i32
    %c0_i32_1 = arith.constant 0 : i32
    return %c0_i32, %c0_i32_0 : i32, i32
  }
  func.func @transform_30(%arg0: i32) -> (i32, i32) {
    %c0_i32 = arith.constant 0 : i32
    %c0_i32_0 = arith.constant 0 : i32
    %c0_i32_1 = arith.constant 0 : i32
    return %c0_i32, %c0_i32_0 : i32, i32
  }
}

</mosaic_0001>

<llo_original>
// kernel: forward.1
$region0: #{forward.1}
  #allocation0 [shape = 'u32[]', space=smem, size = 0x4, offset = 0x4, fixed_abs, tag = 'smem constant byte address 0x4 - core index']
  #allocation1 [shape = 'u32[144,128]{1,0:T(1,128)}', space=vmem, size = 0x12000, scoped, tag = 'internal scratch']
  %s0 = inlined_call_operand.smem [shape: u32[31], index: -1, kind: input, shape index: {}]
  %s1 = sld [smem:[%s0]]
  %s2 = scalar_lea.smem %s0, 1
  %s3 = sld [smem:[%s2]]
  %s4 = scalar_lea.smem %s0, 2
  %s5 = sld [smem:[%s4]]
  %s6 = scalar_lea.smem %s0, 3
  %s7 = sld [smem:[%s6]]
  %s8 = scalar_lea.smem %s0, 4
  %s9 = sld [smem:[%s8]]
  %s10 = scalar_lea.smem %s0, 5
  %s11 = sld [smem:[%s10]]
  %s12 = scalar_lea.smem %s0, 6
  %s13 = sld [smem:[%s12]]
  %s14 = scalar_lea.smem %s0, 7
  %s15 = sld [smem:[%s14]]
  %s16 = scalar_lea.smem %s0, 8
  %s17 = sld [smem:[%s16]]
  %s18 = scalar_lea.smem %s0, 9
  %s19 = sld [smem:[%s18]]
  %s20 = scalar_lea.smem %s0, 10
  %s21 = sld [smem:[%s20]]
  %s22 = scalar_lea.smem %s0, 11
  %s23 = sld [smem:[%s22]]
  %s24 = scalar_lea.smem %s0, 12
  %s25 = sld [smem:[%s24]]
  %s26 = scalar_lea.smem %s0, 13
  %s27 = sld [smem:[%s26]]
  %s28 = scalar_lea.smem %s0, 14
  %s29 = sld [smem:[%s28]]
  %s30 = scalar_lea.smem %s0, 15
  %s31 = sld [smem:[%s30]]
  %s32 = scalar_lea.smem %s0, 16
  %s33 = sld [smem:[%s32]]
  %s34 = scalar_lea.smem %s0, 17
  %s35 = sld [smem:[%s34]]
  %s36 = scalar_lea.smem %s0, 18
  %s37 = sld [smem:[%s36]]
  %s38 = scalar_lea.smem %s0, 19
  %s39 = sld [smem:[%s38]]
  %s40 = scalar_lea.smem %s0, 20
  %s41 = sld [smem:[%s40]]
  %s42 = scalar_lea.smem %s0, 21
  %s43 = sld [smem:[%s42]]
  %s44 = scalar_lea.smem %s0, 22
  %s45 = sld [smem:[%s44]]
  %s46 = scalar_lea.smem %s0, 23
  %s47 = sld [smem:[%s46]]
  %s48 = scalar_lea.smem %s0, 24
  %s49 = sld [smem:[%s48]]
  %s50 = scalar_lea.smem %s0, 25
  %s51 = sld [smem:[%s50]]
  %s52 = scalar_lea.smem %s0, 26
  %s53 = sld [smem:[%s52]]
  %s54 = scalar_lea.smem %s0, 27
  %s55 = sld [smem:[%s54]]
  %s56 = scalar_lea.smem %s0, 28
  %s57 = sld [smem:[%s56]]
  %s58 = scalar_lea.smem %s0, 29
  %s59 = sld [smem:[%s58]]
  %s60 = scalar_lea.smem %s0, 30
  %s61 = sld [smem:[%s60]]
  %62 = xla_tuple %s55, %s57, %s59, %s61
  %s63 = sld [smem:[#allocation0]]
  $region210: #{forward.1} parent=0
    _
  %s65 = ssub.s32 1, %s63
  %s66 = scalar_select 0, %s65, %s63
  $region1: #{forward.1} parent=0
    #allocation2 [shape = 'u8[524288]{0}', space=vmem, size = 0x80000, scoped, tag = 'input window, operand 3, single buffered']
    #allocation3 [shape = 's32[1]{0}', space=sflag, size = 0x4, scoped, tag = 'scoped memory for forward.1']
    #allocation4 [shape = 's32[1]{0}', space=sflag, size = 0x4, scoped, tag = 'scoped memory for forward.1']
    #allocation5 [shape = 'u8[1024]{0}', space=vmem, size = 0x400, scoped, tag = 'input window, operand 4, single buffered']
    #allocation6 [shape = 's32[1]{0}', space=sflag, size = 0x4, scoped, tag = 'scoped memory for forward.1']
    #allocation7 [shape = 'u8[262144]{0}', space=vmem, size = 0x40000, scoped, tag = 'input window, operand 5, single buffered']
    #allocation8 [shape = 'u8[1024]{0}', space=vmem, size = 0x400, scoped, tag = 'input window, operand 6, single buffered']
    #allocation9 [shape = 's32[1]{0}', space=sflag, size = 0x4, scoped, tag = 'scoped memory for forward.1']
    #allocation10 [shape = 'u8[2097152]{0}', space=vmem, size = 0x200000, scoped, tag = 'input window, operand 7, single buffered']
    #allocation11 [shape = 'u8[8192]{0}', space=vmem, size = 0x2000, scoped, tag = 'input window, operand 8, single buffered']
    #allocation12 [shape = 's32[1]{0}', space=sflag, size = 0x4, scoped, tag = 'scoped memory for forward.1']
    #allocation13 [shape = 'u8[2097152]{0}', space=vmem, size = 0x200000, scoped, tag = 'input window, operand 9, single buffered']
    #allocation14 [shape = 'u8[4096]{0}', space=vmem, size = 0x1000, scoped, tag = 'input window, operand 10, single buffered']
    #allocation15 [shape = 's32[1]{0}', space=sflag, size = 0x4, scoped, tag = 'scoped memory for forward.1']
    #allocation16 [shape = 'u8[131072]{0}', space=vmem, size = 0x20000, scoped, tag = 'input window, operand 11, single buffered']
    #allocation17 [shape = 'u8[512]{0}', space=vmem, size = 0x400, scoped, tag = 'input window, operand 12, single buffered']
    #allocation18 [shape = 's32[1]{0}', space=sflag, size = 0x4, scoped, tag = 'scoped memory for forward.1']
    #allocation19 [shape = 'u8[512]{0}', space=vmem, size = 0x400, scoped, tag = 'input window, operand 14, single buffered']
    #allocation20 [shape = 'u8[512]{0}', space=vmem, size = 0x400, scoped, tag = 'input window, operand 16, single buffered']
    #allocation21 [shape = 's32[1]{0}', space=sflag, size = 0x4, scoped, tag = 'scoped memory for forward.1']
    #allocation22 [shape = 'u8[512]{0}', space=vmem, size = 0x400, scoped, tag = 'input window, operand 18, single buffered']
    #allocation23 [shape = 'u8[512]{0}', space=vmem, size = 0x400, scoped, tag = 'input window, operand 20, single buffered']
    #allocation24 [shape = 's32[1]{0}', space=sflag, size = 0x4, scoped, tag = 'scoped memory for forward.1']
    #allocation25 [shape = 'u8[512]{0}', space=vmem, size = 0x400, scoped, tag = 'input window, operand 22, single buffered']
    #allocation26 [shape = 'u8[512]{0}', space=vmem, size = 0x400, scoped, tag = 'input window, operand 24, single buffered']
    #allocation27 [shape = 's32[1]{0}', space=sflag, size = 0x4, scoped, tag = 'scoped memory for forward.1']
    #allocation28 [shape = 'u8[512]{0}', space=vmem, size = 0x400, scoped, tag = 'input window, operand 26, single buffered']
    #allocation29 [shape = 'u8[1024]{0}', space=vmem, size = 0x400, scoped, tag = 'output window, operand 0, single buffered']
    #allocation30 [shape = 'u8[1024]{0}', space=vmem, size = 0x400, scoped, tag = 'output window, operand 1, single buffered']
    #allocation31 [shape = 's32[1]{0}', space=sflag, size = 0x4, scoped, tag = 'scoped memory for forward.1']
    #allocation32 [shape = 'u8[1024]{0}', space=vmem, size = 0x400, scoped, tag = 'output window, operand 2, single buffered']
    #allocation33 [shape = 'u8[1024]{0}', space=vmem, size = 0x400, scoped, tag = 'output window, operand 3, single buffered']
    #allocation34 [shape = 's32[1]{0}', space=sflag, size = 0x4, scoped, tag = 'scoped memory for forward.1']
    %67 = vsyncpa [#allocation3], 0
    %68 = vsyncpa [#allocation6], 0
    %69 = vsyncpa [#allocation9], 0
    %70 = vsyncpa [#allocation12], 0
    %71 = vsyncpa [#allocation15], 0
    %72 = vsyncpa [#allocation18], 0
    %73 = vsyncpa [#allocation21], 0
    %74 = vsyncpa [#allocation24], 0
    %75 = vsyncpa [#allocation27], 0
    %76 = vsyncpa [#allocation4], 0
    %77 = vsyncpa [#allocation31], 0
    %78 = vsyncpa [#allocation34], 0
    // Predicated region
    $region2: #{forward.1} parent=1 // pred_check
      _
    $region3: #{forward.1} parent=1 // pred_check_branch
      %80 = sbr.rel (0) target = $region5
    $region4: #{forward.1} parent=1 // pred_region
      _
    $region5: #{forward.1} parent=1 // pred_fallthru
      _
    // Predicated region
    $region6: #{forward.1} parent=1 // pred_check
      _
    $region7: #{forward.1} parent=1 // pred_check_branch
      %82 = sbr.rel (0) target = $region9
    $region8: #{forward.1} parent=1 // pred_region
      _
    $region9: #{forward.1} parent=1 // pred_fallthru
      _
    // Predicated region
    $region10: #{forward.1} parent=1 // pred_check
      _
    $region11: #{forward.1} parent=1 // pred_check_branch
      %84 = sbr.rel (0) target = $region13
    $region12: #{forward.1} parent=1 // pred_region
      _
    $region13: #{forward.1} parent=1 // pred_fallthru
      _
    // Predicated region
    $region14: #{forward.1} parent=1 // pred_check
      _
    $region15: #{forward.1} parent=1 // pred_check_branch
      %86 = sbr.rel (0) target = $region17
    $region16: #{forward.1} parent=1 // pred_region
      %s88 = ssub.s32 16384, 16384
      %89 = vsyncadd [#allocation3], %s88
      %s90 = sshll.u32 [#allocation2], 4
      %s91 = int_to_ptr.vmem [resolvable:$true] %s90
      %96 = dma.hbm_to_vmem [thread:$0]  %s7, 16384, %s91, [#allocation3], 256, 256, 16
    $region17: #{forward.1} parent=1 // pred_fallthru
      _
    // Predicated region
    $region18: #{forward.1} parent=1 // pred_check
      _
    $region19: #{forward.1} parent=1 // pred_check_branch
      %98 = sbr.rel (0) target = $region21
    $region20: #{forward.1} parent=1 // pred_region
      %s100 = ssub.s32 32, 32
      %101 = vsyncadd [#allocation6], %s100
      %s103 = sshll.u32 [#allocation5], 4
      %s104 = int_to_ptr.vmem [resolvable:$true] %s103
      %106 = dma.hbm_to_vmem [thread:$0]  %s9, 32, %s104, [#allocation6]
    $region21: #{forward.1} parent=1 // pred_fallthru
      _
    // Predicated region
    $region22: #{forward.1} parent=1 // pred_check
      _
    $region23: #{forward.1} parent=1 // pred_check_branch
      %108 = sbr.rel (0) target = $region25
    $region24: #{forward.1} parent=1 // pred_region
      %s110 = ssub.s32 8192, 8192
      %111 = vsyncadd [#allocation6], %s110
      %s112 = sshll.u32 [#allocation7], 4
      %s113 = int_to_ptr.vmem [resolvable:$true] %s112
      %118 = dma.hbm_to_vmem [thread:$0]  %s11, 8192, %s113, [#allocation6], 256, 256, 16
    $region25: #{forward.1} parent=1 // pred_fallthru
      _
    // Predicated region
    $region26: #{forward.1} parent=1 // pred_check
      _
    $region27: #{forward.1} parent=1 // pred_check_branch
      %120 = sbr.rel (0) target = $region29
    $region28: #{forward.1} parent=1 // pred_region
      %s122 = ssub.s32 32, 32
      %123 = vsyncadd [#allocation9], %s122
      %s125 = sshll.u32 [#allocation8], 4
      %s126 = int_to_ptr.vmem [resolvable:$true] %s125
      %128 = dma.hbm_to_vmem [thread:$0]  %s13, 32, %s126, [#allocation9]
    $region29: #{forward.1} parent=1 // pred_fallthru
      _
    // Predicated region
    $region30: #{forward.1} parent=1 // pred_check
      _
    $region31: #{forward.1} parent=1 // pred_check_branch
      %130 = sbr.rel (0) target = $region33
    $region32: #{forward.1} parent=1 // pred_region
      %s132 = ssub.s32 65536, 65536
      %133 = vsyncadd [#allocation9], %s132
      %s134 = sshll.u32 [#allocation10], 4
      %s135 = int_to_ptr.vmem [resolvable:$true] %s134
      %140 = dma.hbm_to_vmem [thread:$0]  %s15, 65536, %s135, [#allocation9], 256, 256, 16
    $region33: #{forward.1} parent=1 // pred_fallthru
      _
    // Predicated region
    $region34: #{forward.1} parent=1 // pred_check
      _
    $region35: #{forward.1} parent=1 // pred_check_branch
      %142 = sbr.rel (0) target = $region37
    $region36: #{forward.1} parent=1 // pred_region
      %s144 = ssub.s32 256, 256
      %145 = vsyncadd [#allocation12], %s144
      %s146 = sshll.u32 [#allocation11], 4
      %s147 = int_to_ptr.vmem [resolvable:$true] %s146
      %152 = dma.hbm_to_vmem [thread:$0]  %s17, 256, %s147, [#allocation12], 32, 32, 2
    $region37: #{forward.1} parent=1 // pred_fallthru
      _
    // Predicated region
    $region38: #{forward.1} parent=1 // pred_check
      _
    $region39: #{forward.1} parent=1 // pred_check_branch
      %154 = sbr.rel (0) target = $region41
    $region40: #{forward.1} parent=1 // pred_region
      %s156 = ssub.s32 65536, 65536
      %157 = vsyncadd [#allocation12], %s156
      %s158 = sshll.u32 [#allocation13], 4
      %s159 = int_to_ptr.vmem [resolvable:$true] %s158
      %164 = dma.hbm_to_vmem [thread:$0]  %s19, 65536, %s159, [#allocation12], 256, 256, 16
    $region41: #{forward.1} parent=1 // pred_fallthru
      _
    // Predicated region
    $region42: #{forward.1} parent=1 // pred_check
      _
    $region43: #{forward.1} parent=1 // pred_check_branch
      %166 = sbr.rel (0) target = $region45
    $region44: #{forward.1} parent=1 // pred_region
      %s168 = ssub.s32 128, 128
      %169 = vsyncadd [#allocation15], %s168
      %s170 = sshll.u32 [#allocation14], 4
      %s171 = int_to_ptr.vmem [resolvable:$true] %s170
      %176 = dma.hbm_to_vmem [thread:$0]  %s21, 128, %s171, [#allocation15], 32, 32, 2
    $region45: #{forward.1} parent=1 // pred_fallthru
      _
    // Predicated region
    $region46: #{forward.1} parent=1 // pred_check
      _
    $region47: #{forward.1} parent=1 // pred_check_branch
      %178 = sbr.rel (0) target = $region49
    $region48: #{forward.1} parent=1 // pred_region
      %s180 = ssub.s32 4096, 4096
      %181 = vsyncadd [#allocation15], %s180
      %s182 = sshll.u32 [#allocation16], 4
      %s183 = int_to_ptr.vmem [resolvable:$true] %s182
      %188 = dma.hbm_to_vmem [thread:$0]  %s23, 4096, %s183, [#allocation15], 128, 128, 8
    $region49: #{forward.1} parent=1 // pred_fallthru
      _
    // Predicated region
    $region50: #{forward.1} parent=1 // pred_check
      _
    $region51: #{forward.1} parent=1 // pred_check_branch
      %190 = sbr.rel (0) target = $region53
    $region52: #{forward.1} parent=1 // pred_region
      %s192 = ssub.s32 16, 16
      %193 = vsyncadd [#allocation18], %s192
      %s195 = sshll.u32 [#allocation17], 4
      %s196 = int_to_ptr.vmem [resolvable:$true] %s195
      %198 = dma.hbm_to_vmem [thread:$0]  %s25, 16, %s196, [#allocation18]
    $region53: #{forward.1} parent=1 // pred_fallthru
      _
    // Predicated region
    $region54: #{forward.1} parent=1 // pred_check
      _
    $region55: #{forward.1} parent=1 // pred_check_branch
      %200 = sbr.rel (0) target = $region57
    $region56: #{forward.1} parent=1 // pred_region
      _
    $region57: #{forward.1} parent=1 // pred_fallthru
      _
    // Predicated region
    $region58: #{forward.1} parent=1 // pred_check
      _
    $region59: #{forward.1} parent=1 // pred_check_branch
      %202 = sbr.rel (0) target = $region61
    $region60: #{forward.1} parent=1 // pred_region
      %s204 = ssub.s32 16, 16
      %205 = vsyncadd [#allocation18], %s204
      %s207 = sshll.u32 [#allocation19], 4
      %s208 = int_to_ptr.vmem [resolvable:$true] %s207
      %210 = dma.hbm_to_vmem [thread:$0]  %s29, 16, %s208, [#allocation18]
    $region61: #{forward.1} parent=1 // pred_fallthru
      _
    // Predicated region
    $region62: #{forward.1} parent=1 // pred_check
      _
    $region63: #{forward.1} parent=1 // pred_check_branch
      %212 = sbr.rel (0) target = $region65
    $region64: #{forward.1} parent=1 // pred_region
      _
    $region65: #{forward.1} parent=1 // pred_fallthru
      _
    // Predicated region
    $region66: #{forward.1} parent=1 // pred_check
      _
    $region67: #{forward.1} parent=1 // pred_check_branch
      %214 = sbr.rel (0) target = $region69
    $region68: #{forward.1} parent=1 // pred_region
      %s216 = ssub.s32 16, 16
      %217 = vsyncadd [#allocation21], %s216
      %s219 = sshll.u32 [#allocation20], 4
      %s220 = int_to_ptr.vmem [resolvable:$true] %s219
      %222 = dma.hbm_to_vmem [thread:$0]  %s33, 16, %s220, [#allocation21]
    $region69: #{forward.1} parent=1 // pred_fallthru
      _
    // Predicated region
    $region70: #{forward.1} parent=1 // pred_check
      _
    $region71: #{forward.1} parent=1 // pred_check_branch
      %224 = sbr.rel (0) target = $region73
    $region72: #{forward.1} parent=1 // pred_region
      _
    $region73: #{forward.1} parent=1 // pred_fallthru
      _
    // Predicated region
    $region74: #{forward.1} parent=1 // pred_check
      _
    $region75: #{forward.1} parent=1 // pred_check_branch
      %226 = sbr.rel (0) target = $region77
    $region76: #{forward.1} parent=1 // pred_region
      %s228 = ssub.s32 16, 16
      %229 = vsyncadd [#allocation21], %s228
      %s231 = sshll.u32 [#allocation22], 4
      %s232 = int_to_ptr.vmem [resolvable:$true] %s231
      %234 = dma.hbm_to_vmem [thread:$0]  %s37, 16, %s232, [#allocation21]
    $region77: #{forward.1} parent=1 // pred_fallthru
      _
    // Predicated region
    $region78: #{forward.1} parent=1 // pred_check
      _
    $region79: #{forward.1} parent=1 // pred_check_branch
      %236 = sbr.rel (0) target = $region81
    $region80: #{forward.1} parent=1 // pred_region
      _
    $region81: #{forward.1} parent=1 // pred_fallthru
      _
    // Predicated region
    $region82: #{forward.1} parent=1 // pred_check
      _
    $region83: #{forward.1} parent=1 // pred_check_branch
      %238 = sbr.rel (0) target = $region85
    $region84: #{forward.1} parent=1 // pred_region
      %s240 = ssub.s32 16, 16
      %241 = vsyncadd [#allocation24], %s240
      %s243 = sshll.u32 [#allocation23], 4
      %s244 = int_to_ptr.vmem [resolvable:$true] %s243
      %246 = dma.hbm_to_vmem [thread:$0]  %s41, 16, %s244, [#allocation24]
    $region85: #{forward.1} parent=1 // pred_fallthru
      _
    // Predicated region
    $region86: #{forward.1} parent=1 // pred_check
      _
    $region87: #{forward.1} parent=1 // pred_check_branch
      %248 = sbr.rel (0) target = $region89
    $region88: #{forward.1} parent=1 // pred_region
      _
    $region89: #{forward.1} parent=1 // pred_fallthru
      _
    // Predicated region
    $region90: #{forward.1} parent=1 // pred_check
      _
    $region91: #{forward.1} parent=1 // pred_check_branch
      %250 = sbr.rel (0) target = $region93
    $region92: #{forward.1} parent=1 // pred_region
      %s252 = ssub.s32 16, 16
      %253 = vsyncadd [#allocation24], %s252
      %s255 = sshll.u32 [#allocation25], 4
      %s256 = int_to_ptr.vmem [resolvable:$true] %s255
      %258 = dma.hbm_to_vmem [thread:$0]  %s45, 16, %s256, [#allocation24]
    $region93: #{forward.1} parent=1 // pred_fallthru
      _
    // Predicated region
    $region94: #{forward.1} parent=1 // pred_check
      _
    $region95: #{forward.1} parent=1 // pred_check_branch
      %260 = sbr.rel (0) target = $region97
    $region96: #{forward.1} parent=1 // pred_region
      _
    $region97: #{forward.1} parent=1 // pred_fallthru
      _
    // Predicated region
    $region98: #{forward.1} parent=1 // pred_check
      _
    $region99: #{forward.1} parent=1 // pred_check_branch
      %262 = sbr.rel (0) target = $region101
    $region100: #{forward.1} parent=1 // pred_region
      %s264 = ssub.s32 16, 16
      %265 = vsyncadd [#allocation27], %s264
      %s267 = sshll.u32 [#allocation26], 4
      %s268 = int_to_ptr.vmem [resolvable:$true] %s267
      %270 = dma.hbm_to_vmem [thread:$0]  %s49, 16, %s268, [#allocation27]
    $region101: #{forward.1} parent=1 // pred_fallthru
      _
    // Predicated region
    $region102: #{forward.1} parent=1 // pred_check
      _
    $region103: #{forward.1} parent=1 // pred_check_branch
      %272 = sbr.rel (0) target = $region105
    $region104: #{forward.1} parent=1 // pred_region
      _
    $region105: #{forward.1} parent=1 // pred_fallthru
      _
    // Predicated region
    $region106: #{forward.1} parent=1 // pred_check
      _
    $region107: #{forward.1} parent=1 // pred_check_branch
      %274 = sbr.rel (0) target = $region109
    $region108: #{forward.1} parent=1 // pred_region
      %s276 = ssub.s32 16, 16
      %277 = vsyncadd [#allocation27], %s276
      %s279 = sshll.u32 [#allocation28], 4
      %s280 = int_to_ptr.vmem [resolvable:$true] %s279
      %282 = dma.hbm_to_vmem [thread:$0]  %s53, 16, %s280, [#allocation27]
    $region109: #{forward.1} parent=1 // pred_fallthru
      _
    // Predicated region
    $region110: #{forward.1} parent=1 // pred_check
      _
    $region111: #{forward.1} parent=1 // pred_check_branch
      %284 = sbr.rel (0) target = $region113
    $region112: #{forward.1} parent=1 // pred_region
      %285 = dma.done [#allocation3], 16384
    $region113: #{forward.1} parent=1 // pred_fallthru
      _
    // Predicated region
    $region114: #{forward.1} parent=1 // pred_check
      _
    $region115: #{forward.1} parent=1 // pred_check_branch
      %287 = sbr.rel (0) target = $region117
    $region116: #{forward.1} parent=1 // pred_region
      %288 = dma.done [#allocation6], 32
    $region117: #{forward.1} parent=1 // pred_fallthru
      _
    // Predicated region
    $region118: #{forward.1} parent=1 // pred_check
      _
    $region119: #{forward.1} parent=1 // pred_check_branch
      %290 = sbr.rel (0) target = $region121
    $region120: #{forward.1} parent=1 // pred_region
      %291 = dma.done [#allocation6], 8192
    $region121: #{forward.1} parent=1 // pred_fallthru
      _
    // Predicated region
    $region122: #{forward.1} parent=1 // pred_check
      _
    $region123: #{forward.1} parent=1 // pred_check_branch
      %293 = sbr.rel (0) target = $region125
    $region124: #{forward.1} parent=1 // pred_region
      %294 = dma.done [#allocation9], 32
    $region125: #{forward.1} parent=1 // pred_fallthru
      _
    // Predicated region
    $region126: #{forward.1} parent=1 // pred_check
      _
    $region127: #{forward.1} parent=1 // pred_check_branch
      %296 = sbr.rel (0) target = $region129
    $region128: #{forward.1} parent=1 // pred_region
      %297 = dma.done [#allocation9], 65536
    $region129: #{forward.1} parent=1 // pred_fallthru
      _
    // Predicated region
    $region130: #{forward.1} parent=1 // pred_check
      _
    $region131: #{forward.1} parent=1 // pred_check_branch
      %299 = sbr.rel (0) target = $region133
    $region132: #{forward.1} parent=1 // pred_region
      %300 = dma.done [#allocation12], 256
    $region133: #{forward.1} parent=1 // pred_fallthru
      _
    // Predicated region
    $region134: #{forward.1} parent=1 // pred_check
      _
    $region135: #{forward.1} parent=1 // pred_check_branch
      %302 = sbr.rel (0) target = $region137
    $region136: #{forward.1} parent=1 // pred_region
      %303 = dma.done [#allocation12], 65536
    $region137: #{forward.1} parent=1 // pred_fallthru
      _
    // Predicated region
    $region138: #{forward.1} parent=1 // pred_check
      _
    $region139: #{forward.1} parent=1 // pred_check_branch
      %305 = sbr.rel (0) target = $region141
    $region140: #{forward.1} parent=1 // pred_region
      %306 = dma.done [#allocation15], 128
    $region141: #{forward.1} parent=1 // pred_fallthru
      _
    // Predicated region
    $region142: #{forward.1} parent=1 // pred_check
      _
    $region143: #{forward.1} parent=1 // pred_check_branch
      %308 = sbr.rel (0) target = $region145
    $region144: #{forward.1} parent=1 // pred_region
      %309 = dma.done [#allocation15], 4096
    $region145: #{forward.1} parent=1 // pred_fallthru
      _
    // Predicated region
    $region146: #{forward.1} parent=1 // pred_check
      _
    $region147: #{forward.1} parent=1 // pred_check_branch
      %311 = sbr.rel (0) target = $region149
    $region148: #{forward.1} parent=1 // pred_region
      %312 = dma.done [#allocation18], 16
    $region149: #{forward.1} parent=1 // pred_fallthru
      _
    // Predicated region
    $region150: #{forward.1} parent=1 // pred_check
      _
    $region151: #{forward.1} parent=1 // pred_check_branch
      %314 = sbr.rel (0) target = $region153
    $region152: #{forward.1} parent=1 // pred_region
      %315 = dma.done [#allocation18], 16
    $region153: #{forward.1} parent=1 // pred_fallthru
      _
    // Predicated region
    $region154: #{forward.1} parent=1 // pred_check
      _
    $region155: #{forward.1} parent=1 // pred_check_branch
      %317 = sbr.rel (0) target = $region157
    $region156: #{forward.1} parent=1 // pred_region
      %318 = dma.done [#allocation21], 16
    $region157: #{forward.1} parent=1 // pred_fallthru
      _
    // Predicated region
    $region158: #{forward.1} parent=1 // pred_check
      _
    $region159: #{forward.1} parent=1 // pred_check_branch
      %320 = sbr.rel (0) target = $region161
    $region160: #{forward.1} parent=1 // pred_region
      %321 = dma.done [#allocation21], 16
    $region161: #{forward.1} parent=1 // pred_fallthru
      _
    // Predicated region
    $region162: #{forward.1} parent=1 // pred_check
      _
    $region163: #{forward.1} parent=1 // pred_check_branch
      %323 = sbr.rel (0) target = $region165
    $region164: #{forward.1} parent=1 // pred_region
      %324 = dma.done [#allocation24], 16
    $region165: #{forward.1} parent=1 // pred_fallthru
      _
    // Predicated region
    $region166: #{forward.1} parent=1 // pred_check
      _
    $region167: #{forward.1} parent=1 // pred_check_branch
      %326 = sbr.rel (0) target = $region169
    $region168: #{forward.1} parent=1 // pred_region
      %327 = dma.done [#allocation24], 16
    $region169: #{forward.1} parent=1 // pred_fallthru
      _
    // Predicated region
    $region170: #{forward.1} parent=1 // pred_check
      _
    $region171: #{forward.1} parent=1 // pred_check_branch
      %329 = sbr.rel (0) target = $region173
    $region172: #{forward.1} parent=1 // pred_region
      %330 = dma.done [#allocation27], 16
    $region173: #{forward.1} parent=1 // pred_fallthru
      _
    // Predicated region
    $region174: #{forward.1} parent=1 // pred_check
      _
    $region175: #{forward.1} parent=1 // pred_check_branch
      %332 = sbr.rel (0) target = $region177
    $region176: #{forward.1} parent=1 // pred_region
      %333 = dma.done [#allocation27], 16
    $region177: #{forward.1} parent=1 // pred_fallthru
      _
    %v334 = vld [vmem:[%s1] sm:$0xff]
    %v335 = vld [vmem:[#allocation2] sm:$0xff]
    %v336 = vld [vmem:[#allocation2 + $0x8] sm:$0xff]
    %v337 = vld [vmem:[#allocation2 + $0x10] sm:$0xff]
    %v338 = vld [vmem:[#allocation2 + $0x18] sm:$0xff]
    %v339 = vld [vmem:[#allocation2 + $0x20] sm:$0xff]
    %v340 = vld [vmem:[#allocation2 + $0x28] sm:$0xff]
    %v341 = vld [vmem:[#allocation2 + $0x30] sm:$0xff]
    %v342 = vld [vmem:[#allocation2 + $0x38] sm:$0xff]
    %v343 = vld [vmem:[#allocation2 + $0x40] sm:$0xff]
    %v344 = vld [vmem:[#allocation2 + $0x48] sm:$0xff]
    %v345 = vld [vmem:[#allocation2 + $0x50] sm:$0xff]
    %v346 = vld [vmem:[#allocation2 + $0x58] sm:$0xff]
    %v347 = vld [vmem:[#allocation2 + $0x60] sm:$0xff]
    %v348 = vld [vmem:[#allocation2 + $0x68] sm:$0xff]
    %v349 = vld [vmem:[#allocation2 + $0x70] sm:$0xff]
    %v350 = vld [vmem:[#allocation2 + $0x78] sm:$0xff]
    %v351 = vld [vmem:[#allocation2 + $0x80] sm:$0xff]
    %v352 = vld [vmem:[#allocation2 + $0x88] sm:$0xff]
    %v353 = vld [vmem:[#allocation2 + $0x90] sm:$0xff]
    %v354 = vld [vmem:[#allocation2 + $0x98] sm:$0xff]
    %v355 = vld [vmem:[#allocation2 + $0xa0] sm:$0xff]
    %v356 = vld [vmem:[#allocation2 + $0xa8] sm:$0xff]
    %v357 = vld [vmem:[#allocation2 + $0xb0] sm:$0xff]
    %v358 = vld [vmem:[#allocation2 + $0xb8] sm:$0xff]
    %v359 = vld [vmem:[#allocation2 + $0xc0] sm:$0xff]
    %v360 = vld [vmem:[#allocation2 + $0xc8] sm:$0xff]
    %v361 = vld [vmem:[#allocation2 + $0xd0] sm:$0xff]
    %v362 = vld [vmem:[#allocation2 + $0xd8] sm:$0xff]
    %v363 = vld [vmem:[#allocation2 + $0xe0] sm:$0xff]
    %v364 = vld [vmem:[#allocation2 + $0xe8] sm:$0xff]
    %v365 = vld [vmem:[#allocation2 + $0xf0] sm:$0xff]
    %v366 = vld [vmem:[#allocation2 + $0xf8] sm:$0xff]
    %v367 = vld [vmem:[#allocation2 + $0x100] sm:$0xff]
    %v368 = vld [vmem:[#allocation2 + $0x108] sm:$0xff]
    %v369 = vld [vmem:[#allocation2 + $0x110] sm:$0xff]
    %v370 = vld [vmem:[#allocation2 + $0x118] sm:$0xff]
    %v371 = vld [vmem:[#allocation2 + $0x120] sm:$0xff]
    %v372 = vld [vmem:[#allocation2 + $0x128] sm:$0xff]
    %v373 = vld [vmem:[#allocation2 + $0x130] sm:$0xff]
    %v374 = vld [vmem:[#allocation2 + $0x138] sm:$0xff]
    %v375 = vld [vmem:[#allocation2 + $0x140] sm:$0xff]
    %v376 = vld [vmem:[#allocation2 + $0x148] sm:$0xff]
    %v377 = vld [vmem:[#allocation2 + $0x150] sm:$0xff]
    %v378 = vld [vmem:[#allocation2 + $0x158] sm:$0xff]
    %v379 = vld [vmem:[#allocation2 + $0x160] sm:$0xff]
    %v380 = vld [vmem:[#allocation2 + $0x168] sm:$0xff]
    %v381 = vld [vmem:[#allocation2 + $0x170] sm:$0xff]
    %v382 = vld [vmem:[#allocation2 + $0x178] sm:$0xff]
    %v383 = vld [vmem:[#allocation2 + $0x180] sm:$0xff]
    %v384 = vld [vmem:[#allocation2 + $0x188] sm:$0xff]
    %v385 = vld [vmem:[#allocation2 + $0x190] sm:$0xff]
    %v386 = vld [vmem:[#allocation2 + $0x198] sm:$0xff]
    %v387 = vld [vmem:[#allocation2 + $0x1a0] sm:$0xff]
    %v388 = vld [vmem:[#allocation2 + $0x1a8] sm:$0xff]
    %v389 = vld [vmem:[#allocation2 + $0x1b0] sm:$0xff]
    %v390 = vld [vmem:[#allocation2 + $0x1b8] sm:$0xff]
    %v391 = vld [vmem:[#allocation2 + $0x1c0] sm:$0xff]
    %v392 = vld [vmem:[#allocation2 + $0x1c8] sm:$0xff]
    %v393 = vld [vmem:[#allocation2 + $0x1d0] sm:$0xff]
    %v394 = vld [vmem:[#allocation2 + $0x1d8] sm:$0xff]
    %v395 = vld [vmem:[#allocation2 + $0x1e0] sm:$0xff]
    %v396 = vld [vmem:[#allocation2 + $0x1e8] sm:$0xff]
    %v397 = vld [vmem:[#allocation2 + $0x1f0] sm:$0xff]
    %v398 = vld [vmem:[#allocation2 + $0x1f8] sm:$0xff]
    %v399 = vld [vmem:[#allocation2 + $0x200] sm:$0xff]
    %v400 = vld [vmem:[#allocation2 + $0x208] sm:$0xff]
    %v401 = vld [vmem:[#allocation2 + $0x210] sm:$0xff]
    %v402 = vld [vmem:[#allocation2 + $0x218] sm:$0xff]
    %v403 = vld [vmem:[#allocation2 + $0x220] sm:$0xff]
    %v404 = vld [vmem:[#allocation2 + $0x228] sm:$0xff]
    %v405 = vld [vmem:[#allocation2 + $0x230] sm:$0xff]
    %v406 = vld [vmem:[#allocation2 + $0x238] sm:$0xff]
    %v407 = vld [vmem:[#allocation2 + $0x240] sm:$0xff]
    %v408 = vld [vmem:[#allocation2 + $0x248] sm:$0xff]
    %v409 = vld [vmem:[#allocation2 + $0x250] sm:$0xff]
    %v410 = vld [vmem:[#allocation2 + $0x258] sm:$0xff]
    %v411 = vld [vmem:[#allocation2 + $0x260] sm:$0xff]
    %v412 = vld [vmem:[#allocation2 + $0x268] sm:$0xff]
    %v413 = vld [vmem:[#allocation2 + $0x270] sm:$0xff]
    %v414 = vld [vmem:[#allocation2 + $0x278] sm:$0xff]
    %v415 = vld [vmem:[#allocation2 + $0x280] sm:$0xff]
    %v416 = vld [vmem:[#allocation2 + $0x288] sm:$0xff]
    %v417 = vld [vmem:[#allocation2 + $0x290] sm:$0xff]
    %v418 = vld [vmem:[#allocation2 + $0x298] sm:$0xff]
    %v419 = vld [vmem:[#allocation2 + $0x2a0] sm:$0xff]
    %v420 = vld [vmem:[#allocation2 + $0x2a8] sm:$0xff]
    %v421 = vld [vmem:[#allocation2 + $0x2b0] sm:$0xff]
    %v422 = vld [vmem:[#allocation2 + $0x2b8] sm:$0xff]
    %v423 = vld [vmem:[#allocation2 + $0x2c0] sm:$0xff]
    %v424 = vld [vmem:[#allocation2 + $0x2c8] sm:$0xff]
    %v425 = vld [vmem:[#allocation2 + $0x2d0] sm:$0xff]
    %v426 = vld [vmem:[#allocation2 + $0x2d8] sm:$0xff]
    %v427 = vld [vmem:[#allocation2 + $0x2e0] sm:$0xff]
    %v428 = vld [vmem:[#allocation2 + $0x2e8] sm:$0xff]
    %v429 = vld [vmem:[#allocation2 + $0x2f0] sm:$0xff]
    %v430 = vld [vmem:[#allocation2 + $0x2f8] sm:$0xff]
    %v431 = vld [vmem:[#allocation2 + $0x300] sm:$0xff]
    %v432 = vld [vmem:[#allocation2 + $0x308] sm:$0xff]
    %v433 = vld [vmem:[#allocation2 + $0x310] sm:$0xff]
    %v434 = vld [vmem:[#allocation2 + $0x318] sm:$0xff]
    %v435 = vld [vmem:[#allocation2 + $0x320] sm:$0xff]
    %v436 = vld [vmem:[#allocation2 + $0x328] sm:$0xff]
    %v437 = vld [vmem:[#allocation2 + $0x330] sm:$0xff]
    %v438 = vld [vmem:[#allocation2 + $0x338] sm:$0xff]
    %v439 = vld [vmem:[#allocation2 + $0x340] sm:$0xff]
    %v440 = vld [vmem:[#allocation2 + $0x348] sm:$0xff]
    %v441 = vld [vmem:[#allocation2 + $0x350] sm:$0xff]
    %v442 = vld [vmem:[#allocation2 + $0x358] sm:$0xff]
    %v443 = vld [vmem:[#allocation2 + $0x360] sm:$0xff]
    %v444 = vld [vmem:[#allocation2 + $0x368] sm:$0xff]
    %v445 = vld [vmem:[#allocation2 + $0x370] sm:$0xff]
    %v446 = vld [vmem:[#allocation2 + $0x378] sm:$0xff]
    %v447 = vld [vmem:[#allocation2 + $0x380] sm:$0xff]
    %v448 = vld [vmem:[#allocation2 + $0x388] sm:$0xff]
    %v449 = vld [vmem:[#allocation2 + $0x390] sm:$0xff]
    %v450 = vld [vmem:[#allocation2 + $0x398] sm:$0xff]
    %v451 = vld [vmem:[#allocation2 + $0x3a0] sm:$0xff]
    %v452 = vld [vmem:[#allocation2 + $0x3a8] sm:$0xff]
    %v453 = vld [vmem:[#allocation2 + $0x3b0] sm:$0xff]
    %v454 = vld [vmem:[#allocation2 + $0x3b8] sm:$0xff]
    %v455 = vld [vmem:[#allocation2 + $0x3c0] sm:$0xff]
    %v456 = vld [vmem:[#allocation2 + $0x3c8] sm:$0xff]
    %v457 = vld [vmem:[#allocation2 + $0x3d0] sm:$0xff]
    %v458 = vld [vmem:[#allocation2 + $0x3d8] sm:$0xff]
    %v459 = vld [vmem:[#allocation2 + $0x3e0] sm:$0xff]
    %v460 = vld [vmem:[#allocation2 + $0x3e8] sm:$0xff]
    %v461 = vld [vmem:[#allocation2 + $0x3f0] sm:$0xff]
    %v462 = vld [vmem:[#allocation2 + $0x3f8] sm:$0xff]
    %v463 = vld [vmem:[#allocation5] sm:$0x3]
    %v465 = vlaneseq
    %v466 = vshrl.u32 %v465, 7
    %v467 = vsub.s32 0, %v466
    %v468 = vrot.slane %v463, %v467
    %v469 = vlaneseq
    %v470 = vshrl.u32 %v469, 7
    %v471 = vsub.s32 1, %v470
    %v472 = vrot.slane %v463, %v471
    %v476 = vcombine.high %v334, %v334
    %v478 = vunpack.c.l.s4 1983009808
    %v479 = vunpack.c.0.s8 %v478
    %v480 = vlaneseq
    %v481 = vshrl.u32 %v480, 7
    %v482 = vsub.s32 %v479, %v481
    %v483 = vrot.slane %v334, %v482
    %v485 = vunpack.c.l.s4 1983009808
    %v486 = vunpack.c.0.s8 %v485
    %v487 = vlaneseq
    %v488 = vshrl.u32 %v487, 7
    %v489 = vsub.s32 %v486, %v488
    %v490 = vrot.slane %v476, %v489
    %v491 = vcombine.high %v483, %v483
    %v492 = vcombine.high %v490, %v490
    %497 = vmatprep.subr.mxu0 %v366
    %498 = vmatpush1.msra.mxu0 %v365
    %499 = vmatprep.subr.mxu0 %v364
    %500 = vmatpush1.msra.mxu0 %v363
    %501 = vmatprep.subr.mxu0 %v362
    %502 = vmatpush1.msra.mxu0 %v361
    %503 = vmatprep.subr.mxu0 %v360
    %504 = vmatpush1.msra.mxu0 %v359
    %505 = vmatprep.subr.mxu0 %v358
    %506 = vmatpush1.msra.mxu0 %v357
    %507 = vmatprep.subr.mxu0 %v356
    %508 = vmatpush1.msra.mxu0 %v355
    %509 = vmatprep.subr.mxu0 %v354
    %510 = vmatpush1.msra.mxu0 %v353
    %511 = vmatprep.subr.mxu0 %v352
    %512 = vmatpush1.msra.mxu0 %v351
    %513 = vmatprep.subr.mxu0 %v350
    %514 = vmatpush1.msra.mxu0 %v349
    %515 = vmatprep.subr.mxu0 %v348
    %516 = vmatpush1.msra.mxu0 %v347
    %517 = vmatprep.subr.mxu0 %v346
    %518 = vmatpush1.msra.mxu0 %v345
    %519 = vmatprep.subr.mxu0 %v344
    %520 = vmatpush1.msra.mxu0 %v343
    %521 = vmatprep.subr.mxu0 %v342
    %522 = vmatpush1.msra.mxu0 %v341
    %523 = vmatprep.subr.mxu0 %v340
    %524 = vmatpush1.msra.mxu0 %v339
    %525 = vmatprep.subr.mxu0 %v338
    %526 = vmatpush1.msra.mxu0 %v337
    %527 = vmatprep.subr.mxu0 %v336
    %528 = vmatpush1.msra.mxu0 %v335
    %529 = vmatprep.subr.mxu0 %v398
    %530 = vmatpush2.msra.mxu0 %v397
    %531 = vmatprep.subr.mxu0 %v396
    %532 = vmatpush2.msra.mxu0 %v395
    %533 = vmatprep.subr.mxu0 %v394
    %534 = vmatpush2.msra.mxu0 %v393
    %535 = vmatprep.subr.mxu0 %v392
    %536 = vmatpush2.msra.mxu0 %v391
    %537 = vmatprep.subr.mxu0 %v390
    %538 = vmatpush2.msra.mxu0 %v389
    %539 = vmatprep.subr.mxu0 %v388
    %540 = vmatpush2.msra.mxu0 %v387
    %541 = vmatprep.subr.mxu0 %v386
    %542 = vmatpush2.msra.mxu0 %v385
    %543 = vmatprep.subr.mxu0 %v384
    %544 = vmatpush2.msra.mxu0 %v383
    %545 = vmatprep.subr.mxu0 %v382
    %546 = vmatpush2.msra.mxu0 %v381
    %547 = vmatprep.subr.mxu0 %v380
    %548 = vmatpush2.msra.mxu0 %v379
    %549 = vmatprep.subr.mxu0 %v378
    %550 = vmatpush2.msra.mxu0 %v377
    %551 = vmatprep.subr.mxu0 %v376
    %552 = vmatpush2.msra.mxu0 %v375
    %553 = vmatprep.subr.mxu0 %v374
    %554 = vmatpush2.msra.mxu0 %v373
    %555 = vmatprep.subr.mxu0 %v372
    %556 = vmatpush2.msra.mxu0 %v371
    %557 = vmatprep.subr.mxu0 %v370
    %558 = vmatpush2.msra.mxu0 %v369
    %559 = vmatprep.subr.mxu0 %v368
    %560 = vmatpush2.msra.mxu0 %v367
    %561 = vmatprep.mubr.f32.mxu0 %v491
    %562 = vmatmul.mubr.f32.gmra.mxu0 %v483
    %v563 = vpop.f32.mrf.mxu0
    %v564 = vadd.f32 %v468, %v563
    %v565 = vpop.f32.mrf.mxu0
    %v566 = vadd.f32 %v472, %v565
    %567 = vdwg.mxu0
    %568 = vmatprep.subr.mxu0 %v430
    %569 = vmatpush1.msra.mxu0 %v429
    %570 = vmatprep.subr.mxu0 %v428
    %571 = vmatpush1.msra.mxu0 %v427
    %572 = vmatprep.subr.mxu0 %v426
    %573 = vmatpush1.msra.mxu0 %v425
    %574 = vmatprep.subr.mxu0 %v424
    %575 = vmatpush1.msra.mxu0 %v423
    %576 = vmatprep.subr.mxu0 %v422
    %577 = vmatpush1.msra.mxu0 %v421
    %578 = vmatprep.subr.mxu0 %v420
    %579 = vmatpush1.msra.mxu0 %v419
    %580 = vmatprep.subr.mxu0 %v418
    %581 = vmatpush1.msra.mxu0 %v417
    %582 = vmatprep.subr.mxu0 %v416
    %583 = vmatpush1.msra.mxu0 %v415
    %584 = vmatprep.subr.mxu0 %v414
    %585 = vmatpush1.msra.mxu0 %v413
    %586 = vmatprep.subr.mxu0 %v412
    %587 = vmatpush1.msra.mxu0 %v411
    %588 = vmatprep.subr.mxu0 %v410
    %589 = vmatpush1.msra.mxu0 %v409
    %590 = vmatprep.subr.mxu0 %v408
    %591 = vmatpush1.msra.mxu0 %v407
    %592 = vmatprep.subr.mxu0 %v406
    %593 = vmatpush1.msra.mxu0 %v405
    %594 = vmatprep.subr.mxu0 %v404
    %595 = vmatpush1.msra.mxu0 %v403
    %596 = vmatprep.subr.mxu0 %v402
    %597 = vmatpush1.msra.mxu0 %v401
    %598 = vmatprep.subr.mxu0 %v400
    %599 = vmatpush1.msra.mxu0 %v399
    %600 = vmatprep.subr.mxu0 %v462
    %601 = vmatpush2.msra.mxu0 %v461
    %602 = vmatprep.subr.mxu0 %v460
    %603 = vmatpush2.msra.mxu0 %v459
    %604 = vmatprep.subr.mxu0 %v458
    %605 = vmatpush2.msra.mxu0 %v457
    %606 = vmatprep.subr.mxu0 %v456
    %607 = vmatpush2.msra.mxu0 %v455
    %608 = vmatprep.subr.mxu0 %v454
    %609 = vmatpush2.msra.mxu0 %v453
    %610 = vmatprep.subr.mxu0 %v452
    %611 = vmatpush2.msra.mxu0 %v451
    %612 = vmatprep.subr.mxu0 %v450
    %613 = vmatpush2.msra.mxu0 %v449
    %614 = vmatprep.subr.mxu0 %v448
    %615 = vmatpush2.msra.mxu0 %v447
    %616 = vmatprep.subr.mxu0 %v446
    %617 = vmatpush2.msra.mxu0 %v445
    %618 = vmatprep.subr.mxu0 %v444
    %619 = vmatpush2.msra.mxu0 %v443
    %620 = vmatprep.subr.mxu0 %v442
    %621 = vmatpush2.msra.mxu0 %v441
    %622 = vmatprep.subr.mxu0 %v440
    %623 = vmatpush2.msra.mxu0 %v439
    %624 = vmatprep.subr.mxu0 %v438
    %625 = vmatpush2.msra.mxu0 %v437
    %626 = vmatprep.subr.mxu0 %v436
    %627 = vmatpush2.msra.mxu0 %v435
    %628 = vmatprep.subr.mxu0 %v434
    %629 = vmatpush2.msra.mxu0 %v433
    %630 = vmatprep.subr.mxu0 %v432
    %631 = vmatpush2.msra.mxu0 %v431
    %632 = vmatprep.mubr.f32.mxu0 %v492
    %633 = vmatmul.mubr.f32.gmra.mxu0 %v490
    %v634 = vpop.f32.mrf.mxu0
    %v635 = vadd.f32 %v564, %v634
    %v636 = vpop.f32.mrf.mxu0
    %v637 = vadd.f32 %v566, %v636
    %638 = vdwg.mxu0
    %v639 = vmax.f32 %v635, 0.0
    %v640 = vmax.f32 %v637, 0.0
    %vm641 = vcmask 1041408
    %v642 = vsel %vm641, %v639, 0.0
    %v643 = vrot.slane %v642, 4
    %v644 = vadd.f32 %v642, %v643
    %v645 = vrot.slane %v644, 2
    %v646 = vadd.f32 %v644, %v645
    %v647 = vrot.slane %v646, 1
    %v648 = vadd.f32 %v646, %v647
    %v649 = vsel %vm641, %v640, 0.0
    %v650 = vrot.slane %v649, 4
    %v651 = vadd.f32 %v649, %v650
    %v652 = vrot.slane %v651, 2
    %v653 = vadd.f32 %v651, %v652
    %v654 = vrot.slane %v653, 1
    %v655 = vadd.f32 %v653, %v654
    %v656 = vrcp.pop 2.0
    %v657 = vmul.f32 %v648, %v656
    %v658 = vmul.f32 %v655, %v656
    %v659 = vsub.f32 %v639, %v657
    %v660 = vsub.f32 %v640, %v658
    %v661 = vmul.f32 %v659, %v659
    %v662 = vmul.f32 %v660, %v660
    %v663 = vsel %vm641, %v661, 0.0
    %v664 = vrot.slane %v663, 4
    %v665 = vadd.f32 %v663, %v664
    %v666 = vrot.slane %v665, 2
    %v667 = vadd.f32 %v665, %v666
    %v668 = vrot.slane %v667, 1
    %v669 = vadd.f32 %v667, %v668
    %v670 = vsel %vm641, %v662, 0.0
    %v671 = vrot.slane %v670, 4
    %v672 = vadd.f32 %v670, %v671
    %v673 = vrot.slane %v672, 2
    %v674 = vadd.f32 %v672, %v673
    %v675 = vrot.slane %v674, 1
    %v676 = vadd.f32 %v674, %v675
    %v677 = vmul.f32 %v669, %v656
    %v678 = vmul.f32 %v676, %v656
    %v679 = vadd.f32 %v677, 0.2
    %v680 = vadd.f32 %v678, 0.2
    %v681 = vrsqrt.pop %v679
    %v682 = vrsqrt.pop %v680
    %v683 = vmul.f32 %v659, %v681
    %v684 = vmul.f32 %v660, %v682
    %v685 = vld [vmem:[#allocation7] sm:$0xff]
    %v686 = vld [vmem:[#allocation7 + $0x8] sm:$0xff]
    %v687 = vld [vmem:[#allocation7 + $0x10] sm:$0xff]
    %v688 = vld [vmem:[#allocation7 + $0x18] sm:$0xff]
    %v689 = vld [vmem:[#allocation7 + $0x20] sm:$0xff]
    %v690 = vld [vmem:[#allocation7 + $0x28] sm:$0xff]
    %v691 = vld [vmem:[#allocation7 + $0x30] sm:$0xff]
    %v692 = vld [vmem:[#allocation7 + $0x38] sm:$0xff]
    %v693 = vld [vmem:[#allocation7 + $0x40] sm:$0xff]
    %v694 = vld [vmem:[#allocation7 + $0x48] sm:$0xff]
    %v695 = vld [vmem:[#allocation7 + $0x50] sm:$0xff]
    %v696 = vld [vmem:[#allocation7 + $0x58] sm:$0xff]
    %v697 = vld [vmem:[#allocation7 + $0x60] sm:$0xff]
    %v698 = vld [vmem:[#allocation7 + $0x68] sm:$0xff]
    %v699 = vld [vmem:[#allocation7 + $0x70] sm:$0xff]
    %v700 = vld [vmem:[#allocation7 + $0x78] sm:$0xff]
    %v701 = vld [vmem:[#allocation7 + $0x80] sm:$0xff]
    %v702 = vld [vmem:[#allocation7 + $0x88] sm:$0xff]
    %v703 = vld [vmem:[#allocation7 + $0x90] sm:$0xff]
    %v704 = vld [vmem:[#allocation7 + $0x98] sm:$0xff]
    %v705 = vld [vmem:[#allocation7 + $0xa0] sm:$0xff]
    %v706 = vld [vmem:[#allocation7 + $0xa8] sm:$0xff]
    %v707 = vld [vmem:[#allocation7 + $0xb0] sm:$0xff]
    %v708 = vld [vmem:[#allocation7 + $0xb8] sm:$0xff]
    %v709 = vld [vmem:[#allocation7 + $0xc0] sm:$0xff]
    %v710 = vld [vmem:[#allocation7 + $0xc8] sm:$0xff]
    %v711 = vld [vmem:[#allocation7 + $0xd0] sm:$0xff]
    %v712 = vld [vmem:[#allocation7 + $0xd8] sm:$0xff]
    %v713 = vld [vmem:[#allocation7 + $0xe0] sm:$0xff]
    %v714 = vld [vmem:[#allocation7 + $0xe8] sm:$0xff]
    %v715 = vld [vmem:[#allocation7 + $0xf0] sm:$0xff]
    %v716 = vld [vmem:[#allocation7 + $0xf8] sm:$0xff]
    %v717 = vld [vmem:[#allocation7 + $0x100] sm:$0xff]
    %v718 = vld [vmem:[#allocation7 + $0x108] sm:$0xff]
    %v719 = vld [vmem:[#allocation7 + $0x110] sm:$0xff]
    %v720 = vld [vmem:[#allocation7 + $0x118] sm:$0xff]
    %v721 = vld [vmem:[#allocation7 + $0x120] sm:$0xff]
    %v722 = vld [vmem:[#allocation7 + $0x128] sm:$0xff]
    %v723 = vld [vmem:[#allocation7 + $0x130] sm:$0xff]
    %v724 = vld [vmem:[#allocation7 + $0x138] sm:$0xff]
    %v725 = vld [vmem:[#allocation7 + $0x140] sm:$0xff]
    %v726 = vld [vmem:[#allocation7 + $0x148] sm:$0xff]
    %v727 = vld [vmem:[#allocation7 + $0x150] sm:$0xff]
    %v728 = vld [vmem:[#allocation7 + $0x158] sm:$0xff]
    %v729 = vld [vmem:[#allocation7 + $0x160] sm:$0xff]
    %v730 = vld [vmem:[#allocation7 + $0x168] sm:$0xff]
    %v731 = vld [vmem:[#allocation7 + $0x170] sm:$0xff]
    %v732 = vld [vmem:[#allocation7 + $0x178] sm:$0xff]
    %v733 = vld [vmem:[#allocation7 + $0x180] sm:$0xff]
    %v734 = vld [vmem:[#allocation7 + $0x188] sm:$0xff]
    %v735 = vld [vmem:[#allocation7 + $0x190] sm:$0xff]
    %v736 = vld [vmem:[#allocation7 + $0x198] sm:$0xff]
    %v737 = vld [vmem:[#allocation7 + $0x1a0] sm:$0xff]
    %v738 = vld [vmem:[#allocation7 + $0x1a8] sm:$0xff]
    %v739 = vld [vmem:[#allocation7 + $0x1b0] sm:$0xff]
    %v740 = vld [vmem:[#allocation7 + $0x1b8] sm:$0xff]
    %v741 = vld [vmem:[#allocation7 + $0x1c0] sm:$0xff]
    %v742 = vld [vmem:[#allocation7 + $0x1c8] sm:$0xff]
    %v743 = vld [vmem:[#allocation7 + $0x1d0] sm:$0xff]
    %v744 = vld [vmem:[#allocation7 + $0x1d8] sm:$0xff]
    %v745 = vld [vmem:[#allocation7 + $0x1e0] sm:$0xff]
    %v746 = vld [vmem:[#allocation7 + $0x1e8] sm:$0xff]
    %v747 = vld [vmem:[#allocation7 + $0x1f0] sm:$0xff]
    %v748 = vld [vmem:[#allocation7 + $0x1f8] sm:$0xff]
    %v749 = vld [vmem:[#allocation8] sm:$0x3]
    %v751 = vlaneseq
    %v752 = vshrl.u32 %v751, 7
    %v753 = vsub.s32 0, %v752
    %v754 = vrot.slane %v749, %v753
    %v755 = vlaneseq
    %v756 = vshrl.u32 %v755, 7
    %v757 = vsub.s32 1, %v756
    %v758 = vrot.slane %v749, %v757
    %761 = vmatprep.subr.mxu0 %v716
    %762 = vmatpush1.msra.mxu0 %v715
    %763 = vmatprep.subr.mxu0 %v714
    %764 = vmatpush1.msra.mxu0 %v713
    %765 = vmatprep.subr.mxu0 %v712
    %766 = vmatpush1.msra.mxu0 %v711
    %767 = vmatprep.subr.mxu0 %v710
    %768 = vmatpush1.msra.mxu0 %v709
    %769 = vmatprep.subr.mxu0 %v708
    %770 = vmatpush1.msra.mxu0 %v707
    %771 = vmatprep.subr.mxu0 %v706
    %772 = vmatpush1.msra.mxu0 %v705
    %773 = vmatprep.subr.mxu0 %v704
    %774 = vmatpush1.msra.mxu0 %v703
    %775 = vmatprep.subr.mxu0 %v702
    %776 = vmatpush1.msra.mxu0 %v701
    %777 = vmatprep.subr.mxu0 %v700
    %778 = vmatpush1.msra.mxu0 %v699
    %779 = vmatprep.subr.mxu0 %v698
    %780 = vmatpush1.msra.mxu0 %v697
    %781 = vmatprep.subr.mxu0 %v696
    %782 = vmatpush1.msra.mxu0 %v695
    %783 = vmatprep.subr.mxu0 %v694
    %784 = vmatpush1.msra.mxu0 %v693
    %785 = vmatprep.subr.mxu0 %v692
    %786 = vmatpush1.msra.mxu0 %v691
    %787 = vmatprep.subr.mxu0 %v690
    %788 = vmatpush1.msra.mxu0 %v689
    %789 = vmatprep.subr.mxu0 %v688
    %790 = vmatpush1.msra.mxu0 %v687
    %791 = vmatprep.subr.mxu0 %v686
    %792 = vmatpush1.msra.mxu0 %v685
    %793 = vmatprep.subr.mxu0 %v748
    %794 = vmatpush2.msra.mxu0 %v747
    %795 = vmatprep.subr.mxu0 %v746
    %796 = vmatpush2.msra.mxu0 %v745
    %797 = vmatprep.subr.mxu0 %v744
    %798 = vmatpush2.msra.mxu0 %v743
    %799 = vmatprep.subr.mxu0 %v742
    %800 = vmatpush2.msra.mxu0 %v741
    %801 = vmatprep.subr.mxu0 %v740
    %802 = vmatpush2.msra.mxu0 %v739
    %803 = vmatprep.subr.mxu0 %v738
    %804 = vmatpush2.msra.mxu0 %v737
    %805 = vmatprep.subr.mxu0 %v736
    %806 = vmatpush2.msra.mxu0 %v735
    %807 = vmatprep.subr.mxu0 %v734
    %808 = vmatpush2.msra.mxu0 %v733
    %809 = vmatprep.subr.mxu0 %v732
    %810 = vmatpush2.msra.mxu0 %v731
    %811 = vmatprep.subr.mxu0 %v730
    %812 = vmatpush2.msra.mxu0 %v729
    %813 = vmatprep.subr.mxu0 %v728
    %814 = vmatpush2.msra.mxu0 %v727
    %815 = vmatprep.subr.mxu0 %v726
    %816 = vmatpush2.msra.mxu0 %v725
    %817 = vmatprep.subr.mxu0 %v724
    %818 = vmatpush2.msra.mxu0 %v723
    %819 = vmatprep.subr.mxu0 %v722
    %820 = vmatpush2.msra.mxu0 %v721
    %821 = vmatprep.subr.mxu0 %v720
    %822 = vmatpush2.msra.mxu0 %v719
    %823 = vmatprep.subr.mxu0 %v718
    %824 = vmatpush2.msra.mxu0 %v717
    %825 = vmatprep.mubr.f32.mxu0 %v684
    %826 = vmatmul.mubr.f32.gmra.mxu0 %v683
    %v827 = vpop.f32.mrf.mxu0
    %v828 = vadd.f32 %v754, %v827
    %v829 = vpop.f32.mrf.mxu0
    %v830 = vadd.f32 %v758, %v829
    %831 = vdwg.mxu0
    %v832 = vmax.f32 %v828, 0.0
    %v833 = vmax.f32 %v830, 0.0
    %v834 = vsel %vm641, %v832, 0.0
    %v835 = vrot.slane %v834, 4
    %v836 = vadd.f32 %v834, %v835
    %v837 = vrot.slane %v836, 2
    %v838 = vadd.f32 %v836, %v837
    %v839 = vrot.slane %v838, 1
    %v840 = vadd.f32 %v838, %v839
    %v841 = vsel %vm641, %v833, 0.0
    %v842 = vrot.slane %v841, 4
    %v843 = vadd.f32 %v841, %v842
    %v844 = vrot.slane %v843, 2
    %v845 = vadd.f32 %v843, %v844
    %v846 = vrot.slane %v845, 1
    %v847 = vadd.f32 %v845, %v846
    %v848 = vmul.f32 %v840, %v656
    %v849 = vmul.f32 %v847, %v656
    %v850 = vsub.f32 %v832, %v848
    %v851 = vsub.f32 %v833, %v849
    %v852 = vmul.f32 %v850, %v850
    %v853 = vmul.f32 %v851, %v851
    %v854 = vsel %vm641, %v852, 0.0
    %v855 = vrot.slane %v854, 4
    %v856 = vadd.f32 %v854, %v855
    %v857 = vrot.slane %v856, 2
    %v858 = vadd.f32 %v856, %v857
    %v859 = vrot.slane %v858, 1
    %v860 = vadd.f32 %v858, %v859
    %v861 = vsel %vm641, %v853, 0.0
    %v862 = vrot.slane %v861, 4
    %v863 = vadd.f32 %v861, %v862
    %v864 = vrot.slane %v863, 2
    %v865 = vadd.f32 %v863, %v864
    %v866 = vrot.slane %v865, 1
    %v867 = vadd.f32 %v865, %v866
    %v868 = vmul.f32 %v860, %v656
    %v869 = vmul.f32 %v867, %v656
    %v870 = vadd.f32 %v868, 0.2
    %v871 = vadd.f32 %v869, 0.2
    %v872 = vrsqrt.pop %v870
    %v873 = vrsqrt.pop %v871
    %v874 = vmul.f32 %v850, %v872
    %v875 = vmul.f32 %v851, %v873
    %v876 = vld [vmem:[%s3] sm:$0xff]
    %v878 = vcombine.high %v876, %v876
    %v880 = vunpack.c.l.s4 1983009808
    %v881 = vunpack.c.0.s8 %v880
    %v882 = vlaneseq
    %v883 = vshrl.u32 %v882, 7
    %v884 = vsub.s32 %v881, %v883
    %v885 = vrot.slane %v876, %v884
    %v887 = vunpack.c.l.s4 1983009808
    %v888 = vunpack.c.0.s8 %v887
    %v889 = vlaneseq
    %v890 = vshrl.u32 %v889, 7
    %v891 = vsub.s32 %v888, %v890
    %v892 = vrot.slane %v878, %v891
    %v893 = vcombine.high %v885, %v885
    %v894 = vcombine.high %v892, %v892
    %899 = vmatprep.subr.mxu0 %v366
    %900 = vmatpush1.msra.mxu0 %v365
    %901 = vmatprep.subr.mxu0 %v364
    %902 = vmatpush1.msra.mxu0 %v363
    %903 = vmatprep.subr.mxu0 %v362
    %904 = vmatpush1.msra.mxu0 %v361
    %905 = vmatprep.subr.mxu0 %v360
    %906 = vmatpush1.msra.mxu0 %v359
    %907 = vmatprep.subr.mxu0 %v358
    %908 = vmatpush1.msra.mxu0 %v357
    %909 = vmatprep.subr.mxu0 %v356
    %910 = vmatpush1.msra.mxu0 %v355
    %911 = vmatprep.subr.mxu0 %v354
    %912 = vmatpush1.msra.mxu0 %v353
    %913 = vmatprep.subr.mxu0 %v352
    %914 = vmatpush1.msra.mxu0 %v351
    %915 = vmatprep.subr.mxu0 %v350
    %916 = vmatpush1.msra.mxu0 %v349
    %917 = vmatprep.subr.mxu0 %v348
    %918 = vmatpush1.msra.mxu0 %v347
    %919 = vmatprep.subr.mxu0 %v346
    %920 = vmatpush1.msra.mxu0 %v345
    %921 = vmatprep.subr.mxu0 %v344
    %922 = vmatpush1.msra.mxu0 %v343
    %923 = vmatprep.subr.mxu0 %v342
    %924 = vmatpush1.msra.mxu0 %v341
    %925 = vmatprep.subr.mxu0 %v340
    %926 = vmatpush1.msra.mxu0 %v339
    %927 = vmatprep.subr.mxu0 %v338
    %928 = vmatpush1.msra.mxu0 %v337
    %929 = vmatprep.subr.mxu0 %v336
    %930 = vmatpush1.msra.mxu0 %v335
    %931 = vmatprep.subr.mxu0 %v398
    %932 = vmatpush2.msra.mxu0 %v397
    %933 = vmatprep.subr.mxu0 %v396
    %934 = vmatpush2.msra.mxu0 %v395
    %935 = vmatprep.subr.mxu0 %v394
    %936 = vmatpush2.msra.mxu0 %v393
    %937 = vmatprep.subr.mxu0 %v392
    %938 = vmatpush2.msra.mxu0 %v391
    %939 = vmatprep.subr.mxu0 %v390
    %940 = vmatpush2.msra.mxu0 %v389
    %941 = vmatprep.subr.mxu0 %v388
    %942 = vmatpush2.msra.mxu0 %v387
    %943 = vmatprep.subr.mxu0 %v386
    %944 = vmatpush2.msra.mxu0 %v385
    %945 = vmatprep.subr.mxu0 %v384
    %946 = vmatpush2.msra.mxu0 %v383
    %947 = vmatprep.subr.mxu0 %v382
    %948 = vmatpush2.msra.mxu0 %v381
    %949 = vmatprep.subr.mxu0 %v380
    %950 = vmatpush2.msra.mxu0 %v379
    %951 = vmatprep.subr.mxu0 %v378
    %952 = vmatpush2.msra.mxu0 %v377
    %953 = vmatprep.subr.mxu0 %v376
    %954 = vmatpush2.msra.mxu0 %v375
    %955 = vmatprep.subr.mxu0 %v374
    %956 = vmatpush2.msra.mxu0 %v373
    %957 = vmatprep.subr.mxu0 %v372
    %958 = vmatpush2.msra.mxu0 %v371
    %959 = vmatprep.subr.mxu0 %v370
    %960 = vmatpush2.msra.mxu0 %v369
    %961 = vmatprep.subr.mxu0 %v368
    %962 = vmatpush2.msra.mxu0 %v367
    %963 = vmatprep.mubr.f32.mxu0 %v893
    %964 = vmatmul.mubr.f32.gmra.mxu0 %v885
    %v965 = vpop.f32.mrf.mxu0
    %v966 = vadd.f32 %v468, %v965
    %v967 = vpop.f32.mrf.mxu0
    %v968 = vadd.f32 %v472, %v967
    %969 = vdwg.mxu0
    %970 = vmatprep.subr.mxu0 %v430
    %971 = vmatpush1.msra.mxu0 %v429
    %972 = vmatprep.subr.mxu0 %v428
    %973 = vmatpush1.msra.mxu0 %v427
    %974 = vmatprep.subr.mxu0 %v426
    %975 = vmatpush1.msra.mxu0 %v425
    %976 = vmatprep.subr.mxu0 %v424
    %977 = vmatpush1.msra.mxu0 %v423
    %978 = vmatprep.subr.mxu0 %v422
    %979 = vmatpush1.msra.mxu0 %v421
    %980 = vmatprep.subr.mxu0 %v420
    %981 = vmatpush1.msra.mxu0 %v419
    %982 = vmatprep.subr.mxu0 %v418
    %983 = vmatpush1.msra.mxu0 %v417
    %984 = vmatprep.subr.mxu0 %v416
    %985 = vmatpush1.msra.mxu0 %v415
    %986 = vmatprep.subr.mxu0 %v414
    %987 = vmatpush1.msra.mxu0 %v413
    %988 = vmatprep.subr.mxu0 %v412
    %989 = vmatpush1.msra.mxu0 %v411
    %990 = vmatprep.subr.mxu0 %v410
    %991 = vmatpush1.msra.mxu0 %v409
    %992 = vmatprep.subr.mxu0 %v408
    %993 = vmatpush1.msra.mxu0 %v407
    %994 = vmatprep.subr.mxu0 %v406
    %995 = vmatpush1.msra.mxu0 %v405
    %996 = vmatprep.subr.mxu0 %v404
    %997 = vmatpush1.msra.mxu0 %v403
    %998 = vmatprep.subr.mxu0 %v402
    %999 = vmatpush1.msra.mxu0 %v401
    %1000 = vmatprep.subr.mxu0 %v400
    %1001 = vmatpush1.msra.mxu0 %v399
    %1002 = vmatprep.subr.mxu0 %v462
    %1003 = vmatpush2.msra.mxu0 %v461
    %1004 = vmatprep.subr.mxu0 %v460
    %1005 = vmatpush2.msra.mxu0 %v459
    %1006 = vmatprep.subr.mxu0 %v458
    %1007 = vmatpush2.msra.mxu0 %v457
    %1008 = vmatprep.subr.mxu0 %v456
    %1009 = vmatpush2.msra.mxu0 %v455
    %1010 = vmatprep.subr.mxu0 %v454
    %1011 = vmatpush2.msra.mxu0 %v453
    %1012 = vmatprep.subr.mxu0 %v452
    %1013 = vmatpush2.msra.mxu0 %v451
    %1014 = vmatprep.subr.mxu0 %v450
    %1015 = vmatpush2.msra.mxu0 %v449
    %1016 = vmatprep.subr.mxu0 %v448
    %1017 = vmatpush2.msra.mxu0 %v447
    %1018 = vmatprep.subr.mxu0 %v446
    %1019 = vmatpush2.msra.mxu0 %v445
    %1020 = vmatprep.subr.mxu0 %v444
    %1021 = vmatpush2.msra.mxu0 %v443
    %1022 = vmatprep.subr.mxu0 %v442
    %1023 = vmatpush2.msra.mxu0 %v441
    %1024 = vmatprep.subr.mxu0 %v440
    %1025 = vmatpush2.msra.mxu0 %v439
    %1026 = vmatprep.subr.mxu0 %v438
    %1027 = vmatpush2.msra.mxu0 %v437
    %1028 = vmatprep.subr.mxu0 %v436
    %1029 = vmatpush2.msra.mxu0 %v435
    %1030 = vmatprep.subr.mxu0 %v434
    %1031 = vmatpush2.msra.mxu0 %v433
    %1032 = vmatprep.subr.mxu0 %v432
    %1033 = vmatpush2.msra.mxu0 %v431
    %1034 = vmatprep.mubr.f32.mxu0 %v894
    %1035 = vmatmul.mubr.f32.gmra.mxu0 %v892
    %v1036 = vpop.f32.mrf.mxu0
    %v1037 = vadd.f32 %v966, %v1036
    %v1038 = vpop.f32.mrf.mxu0
    %v1039 = vadd.f32 %v968, %v1038
    %1040 = vdwg.mxu0
    %v1041 = vmax.f32 %v1037, 0.0
    %v1042 = vmax.f32 %v1039, 0.0
    %v1043 = vsel %vm641, %v1041, 0.0
    %v1044 = vrot.slane %v1043, 4
    %v1045 = vadd.f32 %v1043, %v1044
    %v1046 = vrot.slane %v1045, 2
    %v1047 = vadd.f32 %v1045, %v1046
    %v1048 = vrot.slane %v1047, 1
    %v1049 = vadd.f32 %v1047, %v1048
    %v1050 = vsel %vm641, %v1042, 0.0
    %v1051 = vrot.slane %v1050, 4
    %v1052 = vadd.f32 %v1050, %v1051
    %v1053 = vrot.slane %v1052, 2
    %v1054 = vadd.f32 %v1052, %v1053
    %v1055 = vrot.slane %v1054, 1
    %v1056 = vadd.f32 %v1054, %v1055
    %v1057 = vmul.f32 %v1049, %v656
    %v1058 = vmul.f32 %v1056, %v656
    %v1059 = vsub.f32 %v1041, %v1057
    %v1060 = vsub.f32 %v1042, %v1058
    %v1061 = vmul.f32 %v1059, %v1059
    %v1062 = vmul.f32 %v1060, %v1060
    %v1063 = vsel %vm641, %v1061, 0.0
    %v1064 = vrot.slane %v1063, 4
    %v1065 = vadd.f32 %v1063, %v1064
    %v1066 = vrot.slane %v1065, 2
    %v1067 = vadd.f32 %v1065, %v1066
    %v1068 = vrot.slane %v1067, 1
    %v1069 = vadd.f32 %v1067, %v1068
    %v1070 = vsel %vm641, %v1062, 0.0
    %v1071 = vrot.slane %v1070, 4
    %v1072 = vadd.f32 %v1070, %v1071
    %v1073 = vrot.slane %v1072, 2
    %v1074 = vadd.f32 %v1072, %v1073
    %v1075 = vrot.slane %v1074, 1
    %v1076 = vadd.f32 %v1074, %v1075
    %v1077 = vmul.f32 %v1069, %v656
    %v1078 = vmul.f32 %v1076, %v656
    %v1079 = vadd.f32 %v1077, 0.2
    %v1080 = vadd.f32 %v1078, 0.2
    %v1081 = vrsqrt.pop %v1079
    %v1082 = vrsqrt.pop %v1080
    %v1083 = vmul.f32 %v1059, %v1081
    %v1084 = vmul.f32 %v1060, %v1082
    %1085 = vmatprep.subr.mxu0 %v716
    %1086 = vmatpush1.msra.mxu0 %v715
    %1087 = vmatprep.subr.mxu0 %v714
    %1088 = vmatpush1.msra.mxu0 %v713
    %1089 = vmatprep.subr.mxu0 %v712
    %1090 = vmatpush1.msra.mxu0 %v711
    %1091 = vmatprep.subr.mxu0 %v710
    %1092 = vmatpush1.msra.mxu0 %v709
    %1093 = vmatprep.subr.mxu0 %v708
    %1094 = vmatpush1.msra.mxu0 %v707
    %1095 = vmatprep.subr.mxu0 %v706
    %1096 = vmatpush1.msra.mxu0 %v705
    %1097 = vmatprep.subr.mxu0 %v704
    %1098 = vmatpush1.msra.mxu0 %v703
    %1099 = vmatprep.subr.mxu0 %v702
    %1100 = vmatpush1.msra.mxu0 %v701
    %1101 = vmatprep.subr.mxu0 %v700
    %1102 = vmatpush1.msra.mxu0 %v699
    %1103 = vmatprep.subr.mxu0 %v698
    %1104 = vmatpush1.msra.mxu0 %v697
    %1105 = vmatprep.subr.mxu0 %v696
    %1106 = vmatpush1.msra.mxu0 %v695
    %1107 = vmatprep.subr.mxu0 %v694
    %1108 = vmatpush1.msra.mxu0 %v693
    %1109 = vmatprep.subr.mxu0 %v692
    %1110 = vmatpush1.msra.mxu0 %v691
    %1111 = vmatprep.subr.mxu0 %v690
    %1112 = vmatpush1.msra.mxu0 %v689
    %1113 = vmatprep.subr.mxu0 %v688
    %1114 = vmatpush1.msra.mxu0 %v687
    %1115 = vmatprep.subr.mxu0 %v686
    %1116 = vmatpush1.msra.mxu0 %v685
    %1117 = vmatprep.subr.mxu0 %v748
    %1118 = vmatpush2.msra.mxu0 %v747
    %1119 = vmatprep.subr.mxu0 %v746
    %1120 = vmatpush2.msra.mxu0 %v745
    %1121 = vmatprep.subr.mxu0 %v744
    %1122 = vmatpush2.msra.mxu0 %v743
    %1123 = vmatprep.subr.mxu0 %v742
    %1124 = vmatpush2.msra.mxu0 %v741
    %1125 = vmatprep.subr.mxu0 %v740
    %1126 = vmatpush2.msra.mxu0 %v739
    %1127 = vmatprep.subr.mxu0 %v738
    %1128 = vmatpush2.msra.mxu0 %v737
    %1129 = vmatprep.subr.mxu0 %v736
    %1130 = vmatpush2.msra.mxu0 %v735
    %1131 = vmatprep.subr.mxu0 %v734
    %1132 = vmatpush2.msra.mxu0 %v733
    %1133 = vmatprep.subr.mxu0 %v732
    %1134 = vmatpush2.msra.mxu0 %v731
    %1135 = vmatprep.subr.mxu0 %v730
    %1136 = vmatpush2.msra.mxu0 %v729
    %1137 = vmatprep.subr.mxu0 %v728
    %1138 = vmatpush2.msra.mxu0 %v727
    %1139 = vmatprep.subr.mxu0 %v726
    %1140 = vmatpush2.msra.mxu0 %v725
    %1141 = vmatprep.subr.mxu0 %v724
    %1142 = vmatpush2.msra.mxu0 %v723
    %1143 = vmatprep.subr.mxu0 %v722
    %1144 = vmatpush2.msra.mxu0 %v721
    %1145 = vmatprep.subr.mxu0 %v720
    %1146 = vmatpush2.msra.mxu0 %v719
    %1147 = vmatprep.subr.mxu0 %v718
    %1148 = vmatpush2.msra.mxu0 %v717
    %1149 = vmatprep.mubr.f32.mxu0 %v1084
    %1150 = vmatmul.mubr.f32.gmra.mxu0 %v1083
    %v1151 = vpop.f32.mrf.mxu0
    %v1152 = vadd.f32 %v754, %v1151
    %v1153 = vpop.f32.mrf.mxu0
    %v1154 = vadd.f32 %v758, %v1153
    %1155 = vdwg.mxu0
    %v1156 = vmax.f32 %v1152, 0.0
    %v1157 = vmax.f32 %v1154, 0.0
    %v1158 = vsel %vm641, %v1156, 0.0
    %v1159 = vrot.slane %v1158, 4
    %v1160 = vadd.f32 %v1158, %v1159
    %v1161 = vrot.slane %v1160, 2
    %v1162 = vadd.f32 %v1160, %v1161
    %v1163 = vrot.slane %v1162, 1
    %v1164 = vadd.f32 %v1162, %v1163
    %v1165 = vsel %vm641, %v1157, 0.0
    %v1166 = vrot.slane %v1165, 4
    %v1167 = vadd.f32 %v1165, %v1166
    %v1168 = vrot.slane %v1167, 2
    %v1169 = vadd.f32 %v1167, %v1168
    %v1170 = vrot.slane %v1169, 1
    %v1171 = vadd.f32 %v1169, %v1170
    %v1172 = vmul.f32 %v1164, %v656
    %v1173 = vmul.f32 %v1171, %v656
    %v1174 = vsub.f32 %v1156, %v1172
    %v1175 = vsub.f32 %v1157, %v1173
    %v1176 = vmul.f32 %v1174, %v1174
    %v1177 = vmul.f32 %v1175, %v1175
    %v1178 = vsel %vm641, %v1176, 0.0
    %v1179 = vrot.slane %v1178, 4
    %v1180 = vadd.f32 %v1178, %v1179
    %v1181 = vrot.slane %v1180, 2
    %v1182 = vadd.f32 %v1180, %v1181
    %v1183 = vrot.slane %v1182, 1
    %v1184 = vadd.f32 %v1182, %v1183
    %v1185 = vsel %vm641, %v1177, 0.0
    %v1186 = vrot.slane %v1185, 4
    %v1187 = vadd.f32 %v1185, %v1186
    %v1188 = vrot.slane %v1187, 2
    %v1189 = vadd.f32 %v1187, %v1188
    %v1190 = vrot.slane %v1189, 1
    %v1191 = vadd.f32 %v1189, %v1190
    %v1192 = vmul.f32 %v1184, %v656
    %v1193 = vmul.f32 %v1191, %v656
    %v1194 = vadd.f32 %v1192, 0.2
    %v1195 = vadd.f32 %v1193, 0.2
    %v1196 = vrsqrt.pop %v1194
    %v1197 = vrsqrt.pop %v1195
    %v1198 = vmul.f32 %v1174, %v1196
    %v1199 = vmul.f32 %v1175, %v1197
    %v1200 = vld [vmem:[#allocation10] sm:$0xff]
    %v1201 = vld [vmem:[#allocation10 + $0x8] sm:$0xff]
    %v1202 = vld [vmem:[#allocation10 + $0x10] sm:$0xff]
    %v1203 = vld [vmem:[#allocation10 + $0x18] sm:$0xff]
    %v1204 = vld [vmem:[#allocation10 + $0x20] sm:$0xff]
    %v1205 = vld [vmem:[#allocation10 + $0x28] sm:$0xff]
    %v1206 = vld [vmem:[#allocation10 + $0x30] sm:$0xff]
    %v1207 = vld [vmem:[#allocation10 + $0x38] sm:$0xff]
    %v1208 = vld [vmem:[#allocation10 + $0x40] sm:$0xff]
    %v1209 = vld [vmem:[#allocation10 + $0x48] sm:$0xff]
    %v1210 = vld [vmem:[#allocation10 + $0x50] sm:$0xff]
    %v1211 = vld [vmem:[#allocation10 + $0x58] sm:$0xff]
    %v1212 = vld [vmem:[#allocation10 + $0x60] sm:$0xff]
    %v1213 = vld [vmem:[#allocation10 + $0x68] sm:$0xff]
    %v1214 = vld [vmem:[#allocation10 + $0x70] sm:$0xff]
    %v1215 = vld [vmem:[#allocation10 + $0x78] sm:$0xff]
    %v1216 = vld [vmem:[#allocation10 + $0x80] sm:$0xff]
    %v1217 = vld [vmem:[#allocation10 + $0x88] sm:$0xff]
    %v1218 = vld [vmem:[#allocation10 + $0x90] sm:$0xff]
    %v1219 = vld [vmem:[#allocation10 + $0x98] sm:$0xff]
    %v1220 = vld [vmem:[#allocation10 + $0xa0] sm:$0xff]
    %v1221 = vld [vmem:[#allocation10 + $0xa8] sm:$0xff]
    %v1222 = vld [vmem:[#allocation10 + $0xb0] sm:$0xff]
    %v1223 = vld [vmem:[#allocation10 + $0xb8] sm:$0xff]
    %v1224 = vld [vmem:[#allocation10 + $0xc0] sm:$0xff]
    %v1225 = vld [vmem:[#allocation10 + $0xc8] sm:$0xff]
    %v1226 = vld [vmem:[#allocation10 + $0xd0] sm:$0xff]
    %v1227 = vld [vmem:[#allocation10 + $0xd8] sm:$0xff]
    %v1228 = vld [vmem:[#allocation10 + $0xe0] sm:$0xff]
    %v1229 = vld [vmem:[#allocation10 + $0xe8] sm:$0xff]
    %v1230 = vld [vmem:[#allocation10 + $0xf0] sm:$0xff]
    %v1231 = vld [vmem:[#allocation10 + $0xf8] sm:$0xff]
    %v1232 = vld [vmem:[#allocation10 + $0x100] sm:$0xff]
    %v1233 = vld [vmem:[#allocation10 + $0x108] sm:$0xff]
    %v1234 = vld [vmem:[#allocation10 + $0x110] sm:$0xff]
    %v1235 = vld [vmem:[#allocation10 + $0x118] sm:$0xff]
    %v1236 = vld [vmem:[#allocation10 + $0x120] sm:$0xff]
    %v1237 = vld [vmem:[#allocation10 + $0x128] sm:$0xff]
    %v1238 = vld [vmem:[#allocation10 + $0x130] sm:$0xff]
    %v1239 = vld [vmem:[#allocation10 + $0x138] sm:$0xff]
    %v1240 = vld [vmem:[#allocation10 + $0x140] sm:$0xff]
    %v1241 = vld [vmem:[#allocation10 + $0x148] sm:$0xff]
    %v1242 = vld [vmem:[#allocation10 + $0x150] sm:$0xff]
    %v1243 = vld [vmem:[#allocation10 + $0x158] sm:$0xff]
    %v1244 = vld [vmem:[#allocation10 + $0x160] sm:$0xff]
    %v1245 = vld [vmem:[#allocation10 + $0x168] sm:$0xff]
    %v1246 = vld [vmem:[#allocation10 + $0x170] sm:$0xff]
    %v1247 = vld [vmem:[#allocation10 + $0x178] sm:$0xff]
    %v1248 = vld [vmem:[#allocation10 + $0x180] sm:$0xff]
    %v1249 = vld [vmem:[#allocation10 + $0x188] sm:$0xff]
    %v1250 = vld [vmem:[#allocation10 + $0x190] sm:$0xff]
    %v1251 = vld [vmem:[#allocation10 + $0x198] sm:$0xff]
    %v1252 = vld [vmem:[#allocation10 + $0x1a0] sm:$0xff]
    %v1253 = vld [vmem:[#allocation10 + $0x1a8] sm:$0xff]
    %v1254 = vld [vmem:[#allocation10 + $0x1b0] sm:$0xff]
    %v1255 = vld [vmem:[#allocation10 + $0x1b8] sm:$0xff]
    %v1256 = vld [vmem:[#allocation10 + $0x1c0] sm:$0xff]
    %v1257 = vld [vmem:[#allocation10 + $0x1c8] sm:$0xff]
    %v1258 = vld [vmem:[#allocation10 + $0x1d0] sm:$0xff]
    %v1259 = vld [vmem:[#allocation10 + $0x1d8] sm:$0xff]
    %v1260 = vld [vmem:[#allocation10 + $0x1e0] sm:$0xff]
    %v1261 = vld [vmem:[#allocation10 + $0x1e8] sm:$0xff]
    %v1262 = vld [vmem:[#allocation10 + $0x1f0] sm:$0xff]
    %v1263 = vld [vmem:[#allocation10 + $0x1f8] sm:$0xff]
    %v1264 = vld [vmem:[#allocation11] sm:$0x3]
    %v1266 = vlaneseq
    %v1267 = vshrl.u32 %v1266, 7
    %v1268 = vsub.s32 0, %v1267
    %v1269 = vrot.slane %v1264, %v1268
    %v1270 = vlaneseq
    %v1271 = vshrl.u32 %v1270, 7
    %v1272 = vsub.s32 1, %v1271
    %v1273 = vrot.slane %v1264, %v1272
    %1276 = vmatprep.subr.mxu0 %v1231
    %1277 = vmatpush1.msra.mxu0 %v1230
    %1278 = vmatprep.subr.mxu0 %v1229
    %1279 = vmatpush1.msra.mxu0 %v1228
    %1280 = vmatprep.subr.mxu0 %v1227
    %1281 = vmatpush1.msra.mxu0 %v1226
    %1282 = vmatprep.subr.mxu0 %v1225
    %1283 = vmatpush1.msra.mxu0 %v1224
    %1284 = vmatprep.subr.mxu0 %v1223
    %1285 = vmatpush1.msra.mxu0 %v1222
    %1286 = vmatprep.subr.mxu0 %v1221
    %1287 = vmatpush1.msra.mxu0 %v1220
    %1288 = vmatprep.subr.mxu0 %v1219
    %1289 = vmatpush1.msra.mxu0 %v1218
    %1290 = vmatprep.subr.mxu0 %v1217
    %1291 = vmatpush1.msra.mxu0 %v1216
    %1292 = vmatprep.subr.mxu0 %v1215
    %1293 = vmatpush1.msra.mxu0 %v1214
    %1294 = vmatprep.subr.mxu0 %v1213
    %1295 = vmatpush1.msra.mxu0 %v1212
    %1296 = vmatprep.subr.mxu0 %v1211
    %1297 = vmatpush1.msra.mxu0 %v1210
    %1298 = vmatprep.subr.mxu0 %v1209
    %1299 = vmatpush1.msra.mxu0 %v1208
    %1300 = vmatprep.subr.mxu0 %v1207
    %1301 = vmatpush1.msra.mxu0 %v1206
    %1302 = vmatprep.subr.mxu0 %v1205
    %1303 = vmatpush1.msra.mxu0 %v1204
    %1304 = vmatprep.subr.mxu0 %v1203
    %1305 = vmatpush1.msra.mxu0 %v1202
    %1306 = vmatprep.subr.mxu0 %v1201
    %1307 = vmatpush1.msra.mxu0 %v1200
    %1308 = vmatprep.subr.mxu0 %v1263
    %1309 = vmatpush2.msra.mxu0 %v1262
    %1310 = vmatprep.subr.mxu0 %v1261
    %1311 = vmatpush2.msra.mxu0 %v1260
    %1312 = vmatprep.subr.mxu0 %v1259
    %1313 = vmatpush2.msra.mxu0 %v1258
    %1314 = vmatprep.subr.mxu0 %v1257
    %1315 = vmatpush2.msra.mxu0 %v1256
    %1316 = vmatprep.subr.mxu0 %v1255
    %1317 = vmatpush2.msra.mxu0 %v1254
    %1318 = vmatprep.subr.mxu0 %v1253
    %1319 = vmatpush2.msra.mxu0 %v1252
    %1320 = vmatprep.subr.mxu0 %v1251
    %1321 = vmatpush2.msra.mxu0 %v1250
    %1322 = vmatprep.subr.mxu0 %v1249
    %1323 = vmatpush2.msra.mxu0 %v1248
    %1324 = vmatprep.subr.mxu0 %v1247
    %1325 = vmatpush2.msra.mxu0 %v1246
    %1326 = vmatprep.subr.mxu0 %v1245
    %1327 = vmatpush2.msra.mxu0 %v1244
    %1328 = vmatprep.subr.mxu0 %v1243
    %1329 = vmatpush2.msra.mxu0 %v1242
    %1330 = vmatprep.subr.mxu0 %v1241
    %1331 = vmatpush2.msra.mxu0 %v1240
    %1332 = vmatprep.subr.mxu0 %v1239
    %1333 = vmatpush2.msra.mxu0 %v1238
    %1334 = vmatprep.subr.mxu0 %v1237
    %1335 = vmatpush2.msra.mxu0 %v1236
    %1336 = vmatprep.subr.mxu0 %v1235
    %1337 = vmatpush2.msra.mxu0 %v1234
    %1338 = vmatprep.subr.mxu0 %v1233
    %1339 = vmatpush2.msra.mxu0 %v1232
    %1340 = vmatprep.mubr.f32.mxu0 %v875
    %1341 = vmatmul.mubr.f32.gmra.mxu0 %v874
    %v1342 = vpop.f32.mrf.mxu0
    %v1343 = vadd.f32 %v1269, %v1342
    %v1344 = vpop.f32.mrf.mxu0
    %v1345 = vadd.f32 %v1273, %v1344
    %1346 = vdwg.mxu0
    %v1347 = vmax.f32 %v1343, 0.0
    %v1348 = vmax.f32 %v1345, 0.0
    %v1349 = vsel %vm641, %v1347, 0.0
    %v1350 = vrot.slane %v1349, 4
    %v1351 = vadd.f32 %v1349, %v1350
    %v1352 = vrot.slane %v1351, 2
    %v1353 = vadd.f32 %v1351, %v1352
    %v1354 = vrot.slane %v1353, 1
    %v1355 = vadd.f32 %v1353, %v1354
    %v1356 = vsel %vm641, %v1348, 0.0
    %v1357 = vrot.slane %v1356, 4
    %v1358 = vadd.f32 %v1356, %v1357
    %v1359 = vrot.slane %v1358, 2
    %v1360 = vadd.f32 %v1358, %v1359
    %v1361 = vrot.slane %v1360, 1
    %v1362 = vadd.f32 %v1360, %v1361
    %v1363 = vmul.f32 %v1355, %v656
    %v1364 = vmul.f32 %v1362, %v656
    %v1365 = vsub.f32 %v1347, %v1363
    %v1366 = vsub.f32 %v1348, %v1364
    %v1367 = vmul.f32 %v1365, %v1365
    %v1368 = vmul.f32 %v1366, %v1366
    %v1369 = vsel %vm641, %v1367, 0.0
    %v1370 = vrot.slane %v1369, 4
    %v1371 = vadd.f32 %v1369, %v1370
    %v1372 = vrot.slane %v1371, 2
    %v1373 = vadd.f32 %v1371, %v1372
    %v1374 = vrot.slane %v1373, 1
    %v1375 = vadd.f32 %v1373, %v1374
    %v1376 = vsel %vm641, %v1368, 0.0
    %v1377 = vrot.slane %v1376, 4
    %v1378 = vadd.f32 %v1376, %v1377
    %v1379 = vrot.slane %v1378, 2
    %v1380 = vadd.f32 %v1378, %v1379
    %v1381 = vrot.slane %v1380, 1
    %v1382 = vadd.f32 %v1380, %v1381
    %v1383 = vmul.f32 %v1375, %v656
    %v1384 = vmul.f32 %v1382, %v656
    %v1385 = vadd.f32 %v1383, 0.2
    %v1386 = vadd.f32 %v1384, 0.2
    %v1387 = vrsqrt.pop %v1385
    %v1388 = vrsqrt.pop %v1386
    %v1389 = vmul.f32 %v1365, %v1387
    %v1390 = vmul.f32 %v1366, %v1388
    %v1391 = vld [vmem:[%s5] sm:$0xf]
    %v1394 = vunpack.c.l.s4 1983009808
    %v1395 = vunpack.c.0.s8 %v1394
    %v1396 = vlaneseq
    %v1397 = vshrl.u32 %v1396, 7
    %v1398 = vsub.s32 %v1395, %v1397
    %v1399 = vrot.slane %v1391, %v1398
    %v1400 = vcombine.high %v1399, %v1399
    %v1403 = vmul.f32 %v1389, %v1399
    %v1404 = vmul.f32 %v1390, %v1400
    %s1405 = scalar_lea.vmem [#allocation10], 512
    %v1406 = vld [vmem:[%s1405] sm:$0xff]
    %v1407 = vld [vmem:[%s1405 + $0x8] sm:$0xff]
    %v1408 = vld [vmem:[%s1405 + $0x10] sm:$0xff]
    %v1409 = vld [vmem:[%s1405 + $0x18] sm:$0xff]
    %v1410 = vld [vmem:[%s1405 + $0x20] sm:$0xff]
    %v1411 = vld [vmem:[%s1405 + $0x28] sm:$0xff]
    %v1412 = vld [vmem:[%s1405 + $0x30] sm:$0xff]
    %v1413 = vld [vmem:[%s1405 + $0x38] sm:$0xff]
    %v1414 = vld [vmem:[%s1405 + $0x40] sm:$0xff]
    %v1415 = vld [vmem:[%s1405 + $0x48] sm:$0xff]
    %v1416 = vld [vmem:[%s1405 + $0x50] sm:$0xff]
    %v1417 = vld [vmem:[%s1405 + $0x58] sm:$0xff]
    %v1418 = vld [vmem:[%s1405 + $0x60] sm:$0xff]
    %v1419 = vld [vmem:[%s1405 + $0x68] sm:$0xff]
    %v1420 = vld [vmem:[%s1405 + $0x70] sm:$0xff]
    %v1421 = vld [vmem:[%s1405 + $0x78] sm:$0xff]
    %v1422 = vld [vmem:[%s1405 + $0x80] sm:$0xff]
    %v1423 = vld [vmem:[%s1405 + $0x88] sm:$0xff]
    %v1424 = vld [vmem:[%s1405 + $0x90] sm:$0xff]
    %v1425 = vld [vmem:[%s1405 + $0x98] sm:$0xff]
    %v1426 = vld [vmem:[%s1405 + $0xa0] sm:$0xff]
    %v1427 = vld [vmem:[%s1405 + $0xa8] sm:$0xff]
    %v1428 = vld [vmem:[%s1405 + $0xb0] sm:$0xff]
    %v1429 = vld [vmem:[%s1405 + $0xb8] sm:$0xff]
    %v1430 = vld [vmem:[%s1405 + $0xc0] sm:$0xff]
    %v1431 = vld [vmem:[%s1405 + $0xc8] sm:$0xff]
    %v1432 = vld [vmem:[%s1405 + $0xd0] sm:$0xff]
    %v1433 = vld [vmem:[%s1405 + $0xd8] sm:$0xff]
    %v1434 = vld [vmem:[%s1405 + $0xe0] sm:$0xff]
    %v1435 = vld [vmem:[%s1405 + $0xe8] sm:$0xff]
    %v1436 = vld [vmem:[%s1405 + $0xf0] sm:$0xff]
    %v1437 = vld [vmem:[%s1405 + $0xf8] sm:$0xff]
    %v1438 = vld [vmem:[%s1405 + $0x100] sm:$0xff]
    %v1439 = vld [vmem:[%s1405 + $0x108] sm:$0xff]
    %v1440 = vld [vmem:[%s1405 + $0x110] sm:$0xff]
    %v1441 = vld [vmem:[%s1405 + $0x118] sm:$0xff]
    %v1442 = vld [vmem:[%s1405 + $0x120] sm:$0xff]
    %v1443 = vld [vmem:[%s1405 + $0x128] sm:$0xff]
    %v1444 = vld [vmem:[%s1405 + $0x130] sm:$0xff]
    %v1445 = vld [vmem:[%s1405 + $0x138] sm:$0xff]
    %v1446 = vld [vmem:[%s1405 + $0x140] sm:$0xff]
    %v1447 = vld [vmem:[%s1405 + $0x148] sm:$0xff]
    %v1448 = vld [vmem:[%s1405 + $0x150] sm:$0xff]
    %v1449 = vld [vmem:[%s1405 + $0x158] sm:$0xff]
    %v1450 = vld [vmem:[%s1405 + $0x160] sm:$0xff]
    %v1451 = vld [vmem:[%s1405 + $0x168] sm:$0xff]
    %v1452 = vld [vmem:[%s1405 + $0x170] sm:$0xff]
    %v1453 = vld [vmem:[%s1405 + $0x178] sm:$0xff]
    %v1454 = vld [vmem:[%s1405 + $0x180] sm:$0xff]
    %v1455 = vld [vmem:[%s1405 + $0x188] sm:$0xff]
    %v1456 = vld [vmem:[%s1405 + $0x190] sm:$0xff]
    %v1457 = vld [vmem:[%s1405 + $0x198] sm:$0xff]
    %v1458 = vld [vmem:[%s1405 + $0x1a0] sm:$0xff]
    %v1459 = vld [vmem:[%s1405 + $0x1a8] sm:$0xff]
    %v1460 = vld [vmem:[%s1405 + $0x1b0] sm:$0xff]
    %v1461 = vld [vmem:[%s1405 + $0x1b8] sm:$0xff]
    %v1462 = vld [vmem:[%s1405 + $0x1c0] sm:$0xff]
    %v1463 = vld [vmem:[%s1405 + $0x1c8] sm:$0xff]
    %v1464 = vld [vmem:[%s1405 + $0x1d0] sm:$0xff]
    %v1465 = vld [vmem:[%s1405 + $0x1d8] sm:$0xff]
    %v1466 = vld [vmem:[%s1405 + $0x1e0] sm:$0xff]
    %v1467 = vld [vmem:[%s1405 + $0x1e8] sm:$0xff]
    %v1468 = vld [vmem:[%s1405 + $0x1f0] sm:$0xff]
    %v1469 = vld [vmem:[%s1405 + $0x1f8] sm:$0xff]
    %s1470 = scalar_lea.vmem [#allocation11], 2
    %v1471 = vld [vmem:[%s1470] sm:$0x3]
    %v1473 = vlaneseq
    %v1474 = vshrl.u32 %v1473, 7
    %v1475 = vsub.s32 0, %v1474
    %v1476 = vrot.slane %v1471, %v1475
    %v1477 = vlaneseq
    %v1478 = vshrl.u32 %v1477, 7
    %v1479 = vsub.s32 1, %v1478
    %v1480 = vrot.slane %v1471, %v1479
    %1483 = vmatprep.subr.mxu0 %v1437
    %1484 = vmatpush1.msra.mxu0 %v1436
    %1485 = vmatprep.subr.mxu0 %v1435
    %1486 = vmatpush1.msra.mxu0 %v1434
    %1487 = vmatprep.subr.mxu0 %v1433
    %1488 = vmatpush1.msra.mxu0 %v1432
    %1489 = vmatprep.subr.mxu0 %v1431
    %1490 = vmatpush1.msra.mxu0 %v1430
    %1491 = vmatprep.subr.mxu0 %v1429
    %1492 = vmatpush1.msra.mxu0 %v1428
    %1493 = vmatprep.subr.mxu0 %v1427
    %1494 = vmatpush1.msra.mxu0 %v1426
    %1495 = vmatprep.subr.mxu0 %v1425
    %1496 = vmatpush1.msra.mxu0 %v1424
    %1497 = vmatprep.subr.mxu0 %v1423
    %1498 = vmatpush1.msra.mxu0 %v1422
    %1499 = vmatprep.subr.mxu0 %v1421
    %1500 = vmatpush1.msra.mxu0 %v1420
    %1501 = vmatprep.subr.mxu0 %v1419
    %1502 = vmatpush1.msra.mxu0 %v1418
    %1503 = vmatprep.subr.mxu0 %v1417
    %1504 = vmatpush1.msra.mxu0 %v1416
    %1505 = vmatprep.subr.mxu0 %v1415
    %1506 = vmatpush1.msra.mxu0 %v1414
    %1507 = vmatprep.subr.mxu0 %v1413
    %1508 = vmatpush1.msra.mxu0 %v1412
    %1509 = vmatprep.subr.mxu0 %v1411
    %1510 = vmatpush1.msra.mxu0 %v1410
    %1511 = vmatprep.subr.mxu0 %v1409
    %1512 = vmatpush1.msra.mxu0 %v1408
    %1513 = vmatprep.subr.mxu0 %v1407
    %1514 = vmatpush1.msra.mxu0 %v1406
    %1515 = vmatprep.subr.mxu0 %v1469
    %1516 = vmatpush2.msra.mxu0 %v1468
    %1517 = vmatprep.subr.mxu0 %v1467
    %1518 = vmatpush2.msra.mxu0 %v1466
    %1519 = vmatprep.subr.mxu0 %v1465
    %1520 = vmatpush2.msra.mxu0 %v1464
    %1521 = vmatprep.subr.mxu0 %v1463
    %1522 = vmatpush2.msra.mxu0 %v1462
    %1523 = vmatprep.subr.mxu0 %v1461
    %1524 = vmatpush2.msra.mxu0 %v1460
    %1525 = vmatprep.subr.mxu0 %v1459
    %1526 = vmatpush2.msra.mxu0 %v1458
    %1527 = vmatprep.subr.mxu0 %v1457
    %1528 = vmatpush2.msra.mxu0 %v1456
    %1529 = vmatprep.subr.mxu0 %v1455
    %1530 = vmatpush2.msra.mxu0 %v1454
    %1531 = vmatprep.subr.mxu0 %v1453
    %1532 = vmatpush2.msra.mxu0 %v1452
    %1533 = vmatprep.subr.mxu0 %v1451
    %1534 = vmatpush2.msra.mxu0 %v1450
    %1535 = vmatprep.subr.mxu0 %v1449
    %1536 = vmatpush2.msra.mxu0 %v1448
    %1537 = vmatprep.subr.mxu0 %v1447
    %1538 = vmatpush2.msra.mxu0 %v1446
    %1539 = vmatprep.subr.mxu0 %v1445
    %1540 = vmatpush2.msra.mxu0 %v1444
    %1541 = vmatprep.subr.mxu0 %v1443
    %1542 = vmatpush2.msra.mxu0 %v1442
    %1543 = vmatprep.subr.mxu0 %v1441
    %1544 = vmatpush2.msra.mxu0 %v1440
    %1545 = vmatprep.subr.mxu0 %v1439
    %1546 = vmatpush2.msra.mxu0 %v1438
    %1547 = vmatprep.mubr.f32.mxu0 %v875
    %1548 = vmatmul.mubr.f32.gmra.mxu0 %v874
    %v1549 = vpop.f32.mrf.mxu0
    %v1550 = vadd.f32 %v1476, %v1549
    %v1551 = vpop.f32.mrf.mxu0
    %v1552 = vadd.f32 %v1480, %v1551
    %1553 = vdwg.mxu0
    %v1554 = vmax.f32 %v1550, 0.0
    %v1555 = vmax.f32 %v1552, 0.0
    %v1556 = vsel %vm641, %v1554, 0.0
    %v1557 = vrot.slane %v1556, 4
    %v1558 = vadd.f32 %v1556, %v1557
    %v1559 = vrot.slane %v1558, 2
    %v1560 = vadd.f32 %v1558, %v1559
    %v1561 = vrot.slane %v1560, 1
    %v1562 = vadd.f32 %v1560, %v1561
    %v1563 = vsel %vm641, %v1555, 0.0
    %v1564 = vrot.slane %v1563, 4
    %v1565 = vadd.f32 %v1563, %v1564
    %v1566 = vrot.slane %v1565, 2
    %v1567 = vadd.f32 %v1565, %v1566
    %v1568 = vrot.slane %v1567, 1
    %v1569 = vadd.f32 %v1567, %v1568
    %v1570 = vmul.f32 %v1562, %v656
    %v1571 = vmul.f32 %v1569, %v656
    %v1572 = vsub.f32 %v1554, %v1570
    %v1573 = vsub.f32 %v1555, %v1571
    %v1574 = vmul.f32 %v1572, %v1572
    %v1575 = vmul.f32 %v1573, %v1573
    %v1576 = vsel %vm641, %v1574, 0.0
    %v1577 = vrot.slane %v1576, 4
    %v1578 = vadd.f32 %v1576, %v1577
    %v1579 = vrot.slane %v1578, 2
    %v1580 = vadd.f32 %v1578, %v1579
    %v1581 = vrot.slane %v1580, 1
    %v1582 = vadd.f32 %v1580, %v1581
    %v1583 = vsel %vm641, %v1575, 0.0
    %v1584 = vrot.slane %v1583, 4
    %v1585 = vadd.f32 %v1583, %v1584
    %v1586 = vrot.slane %v1585, 2
    %v1587 = vadd.f32 %v1585, %v1586
    %v1588 = vrot.slane %v1587, 1
    %v1589 = vadd.f32 %v1587, %v1588
    %v1590 = vmul.f32 %v1582, %v656
    %v1591 = vmul.f32 %v1589, %v656
    %v1592 = vadd.f32 %v1590, 0.2
    %v1593 = vadd.f32 %v1591, 0.2
    %v1594 = vrsqrt.pop %v1592
    %v1595 = vrsqrt.pop %v1593
    %v1596 = vmul.f32 %v1572, %v1594
    %v1597 = vmul.f32 %v1573, %v1595
    %s1598 = scalar_lea.vmem %s5, 4
    %v1599 = vld [vmem:[%s1598] sm:$0xf]
    %v1602 = vunpack.c.l.s4 1983009808
    %v1603 = vunpack.c.0.s8 %v1602
    %v1604 = vlaneseq
    %v1605 = vshrl.u32 %v1604, 7
    %v1606 = vsub.s32 %v1603, %v1605
    %v1607 = vrot.slane %v1599, %v1606
    %v1608 = vcombine.high %v1607, %v1607
    %v1611 = vmul.f32 %v1596, %v1607
    %v1612 = vmul.f32 %v1597, %v1608
    %s1613 = scalar_lea.vmem [#allocation10], 1024
    %v1614 = vld [vmem:[%s1613] sm:$0xff]
    %v1615 = vld [vmem:[%s1613 + $0x8] sm:$0xff]
    %v1616 = vld [vmem:[%s1613 + $0x10] sm:$0xff]
    %v1617 = vld [vmem:[%s1613 + $0x18] sm:$0xff]
    %v1618 = vld [vmem:[%s1613 + $0x20] sm:$0xff]
    %v1619 = vld [vmem:[%s1613 + $0x28] sm:$0xff]
    %v1620 = vld [vmem:[%s1613 + $0x30] sm:$0xff]
    %v1621 = vld [vmem:[%s1613 + $0x38] sm:$0xff]
    %v1622 = vld [vmem:[%s1613 + $0x40] sm:$0xff]
    %v1623 = vld [vmem:[%s1613 + $0x48] sm:$0xff]
    %v1624 = vld [vmem:[%s1613 + $0x50] sm:$0xff]
    %v1625 = vld [vmem:[%s1613 + $0x58] sm:$0xff]
    %v1626 = vld [vmem:[%s1613 + $0x60] sm:$0xff]
    %v1627 = vld [vmem:[%s1613 + $0x68] sm:$0xff]
    %v1628 = vld [vmem:[%s1613 + $0x70] sm:$0xff]
    %v1629 = vld [vmem:[%s1613 + $0x78] sm:$0xff]
    %v1630 = vld [vmem:[%s1613 + $0x80] sm:$0xff]
    %v1631 = vld [vmem:[%s1613 + $0x88] sm:$0xff]
    %v1632 = vld [vmem:[%s1613 + $0x90] sm:$0xff]
    %v1633 = vld [vmem:[%s1613 + $0x98] sm:$0xff]
    %v1634 = vld [vmem:[%s1613 + $0xa0] sm:$0xff]
    %v1635 = vld [vmem:[%s1613 + $0xa8] sm:$0xff]
    %v1636 = vld [vmem:[%s1613 + $0xb0] sm:$0xff]
    %v1637 = vld [vmem:[%s1613 + $0xb8] sm:$0xff]
    %v1638 = vld [vmem:[%s1613 + $0xc0] sm:$0xff]
    %v1639 = vld [vmem:[%s1613 + $0xc8] sm:$0xff]
    %v1640 = vld [vmem:[%s1613 + $0xd0] sm:$0xff]
    %v1641 = vld [vmem:[%s1613 + $0xd8] sm:$0xff]
    %v1642 = vld [vmem:[%s1613 + $0xe0] sm:$0xff]
    %v1643 = vld [vmem:[%s1613 + $0xe8] sm:$0xff]
    %v1644 = vld [vmem:[%s1613 + $0xf0] sm:$0xff]
    %v1645 = vld [vmem:[%s1613 + $0xf8] sm:$0xff]
    %v1646 = vld [vmem:[%s1613 + $0x100] sm:$0xff]
    %v1647 = vld [vmem:[%s1613 + $0x108] sm:$0xff]
    %v1648 = vld [vmem:[%s1613 + $0x110] sm:$0xff]
    %v1649 = vld [vmem:[%s1613 + $0x118] sm:$0xff]
    %v1650 = vld [vmem:[%s1613 + $0x120] sm:$0xff]
    %v1651 = vld [vmem:[%s1613 + $0x128] sm:$0xff]
    %v1652 = vld [vmem:[%s1613 + $0x130] sm:$0xff]
    %v1653 = vld [vmem:[%s1613 + $0x138] sm:$0xff]
    %v1654 = vld [vmem:[%s1613 + $0x140] sm:$0xff]
    %v1655 = vld [vmem:[%s1613 + $0x148] sm:$0xff]
    %v1656 = vld [vmem:[%s1613 + $0x150] sm:$0xff]
    %v1657 = vld [vmem:[%s1613 + $0x158] sm:$0xff]
    %v1658 = vld [vmem:[%s1613 + $0x160] sm:$0xff]
    %v1659 = vld [vmem:[%s1613 + $0x168] sm:$0xff]
    %v1660 = vld [vmem:[%s1613 + $0x170] sm:$0xff]
    %v1661 = vld [vmem:[%s1613 + $0x178] sm:$0xff]
    %v1662 = vld [vmem:[%s1613 + $0x180] sm:$0xff]
    %v1663 = vld [vmem:[%s1613 + $0x188] sm:$0xff]
    %v1664 = vld [vmem:[%s1613 + $0x190] sm:$0xff]
    %v1665 = vld [vmem:[%s1613 + $0x198] sm:$0xff]
    %v1666 = vld [vmem:[%s1613 + $0x1a0] sm:$0xff]
    %v1667 = vld [vmem:[%s1613 + $0x1a8] sm:$0xff]
    %v1668 = vld [vmem:[%s1613 + $0x1b0] sm:$0xff]
    %v1669 = vld [vmem:[%s1613 + $0x1b8] sm:$0xff]
    %v1670 = vld [vmem:[%s1613 + $0x1c0] sm:$0xff]
    %v1671 = vld [vmem:[%s1613 + $0x1c8] sm:$0xff]
    %v1672 = vld [vmem:[%s1613 + $0x1d0] sm:$0xff]
    %v1673 = vld [vmem:[%s1613 + $0x1d8] sm:$0xff]
    %v1674 = vld [vmem:[%s1613 + $0x1e0] sm:$0xff]
    %v1675 = vld [vmem:[%s1613 + $0x1e8] sm:$0xff]
    %v1676 = vld [vmem:[%s1613 + $0x1f0] sm:$0xff]
    %v1677 = vld [vmem:[%s1613 + $0x1f8] sm:$0xff]
    %s1678 = scalar_lea.vmem [#allocation11], 4
    %v1679 = vld [vmem:[%s1678] sm:$0x3]
    %v1681 = vlaneseq
    %v1682 = vshrl.u32 %v1681, 7
    %v1683 = vsub.s32 0, %v1682
    %v1684 = vrot.slane %v1679, %v1683
    %v1685 = vlaneseq
    %v1686 = vshrl.u32 %v1685, 7
    %v1687 = vsub.s32 1, %v1686
    %v1688 = vrot.slane %v1679, %v1687
    %1691 = vmatprep.subr.mxu0 %v1645
    %1692 = vmatpush1.msra.mxu0 %v1644
    %1693 = vmatprep.subr.mxu0 %v1643
    %1694 = vmatpush1.msra.mxu0 %v1642
    %1695 = vmatprep.subr.mxu0 %v1641
    %1696 = vmatpush1.msra.mxu0 %v1640
    %1697 = vmatprep.subr.mxu0 %v1639
    %1698 = vmatpush1.msra.mxu0 %v1638
    %1699 = vmatprep.subr.mxu0 %v1637
    %1700 = vmatpush1.msra.mxu0 %v1636
    %1701 = vmatprep.subr.mxu0 %v1635
    %1702 = vmatpush1.msra.mxu0 %v1634
    %1703 = vmatprep.subr.mxu0 %v1633
    %1704 = vmatpush1.msra.mxu0 %v1632
    %1705 = vmatprep.subr.mxu0 %v1631
    %1706 = vmatpush1.msra.mxu0 %v1630
    %1707 = vmatprep.subr.mxu0 %v1629
    %1708 = vmatpush1.msra.mxu0 %v1628
    %1709 = vmatprep.subr.mxu0 %v1627
    %1710 = vmatpush1.msra.mxu0 %v1626
    %1711 = vmatprep.subr.mxu0 %v1625
    %1712 = vmatpush1.msra.mxu0 %v1624
    %1713 = vmatprep.subr.mxu0 %v1623
    %1714 = vmatpush1.msra.mxu0 %v1622
    %1715 = vmatprep.subr.mxu0 %v1621
    %1716 = vmatpush1.msra.mxu0 %v1620
    %1717 = vmatprep.subr.mxu0 %v1619
    %1718 = vmatpush1.msra.mxu0 %v1618
    %1719 = vmatprep.subr.mxu0 %v1617
    %1720 = vmatpush1.msra.mxu0 %v1616
    %1721 = vmatprep.subr.mxu0 %v1615
    %1722 = vmatpush1.msra.mxu0 %v1614
    %1723 = vmatprep.subr.mxu0 %v1677
    %1724 = vmatpush2.msra.mxu0 %v1676
    %1725 = vmatprep.subr.mxu0 %v1675
    %1726 = vmatpush2.msra.mxu0 %v1674
    %1727 = vmatprep.subr.mxu0 %v1673
    %1728 = vmatpush2.msra.mxu0 %v1672
    %1729 = vmatprep.subr.mxu0 %v1671
    %1730 = vmatpush2.msra.mxu0 %v1670
    %1731 = vmatprep.subr.mxu0 %v1669
    %1732 = vmatpush2.msra.mxu0 %v1668
    %1733 = vmatprep.subr.mxu0 %v1667
    %1734 = vmatpush2.msra.mxu0 %v1666
    %1735 = vmatprep.subr.mxu0 %v1665
    %1736 = vmatpush2.msra.mxu0 %v1664
    %1737 = vmatprep.subr.mxu0 %v1663
    %1738 = vmatpush2.msra.mxu0 %v1662
    %1739 = vmatprep.subr.mxu0 %v1661
    %1740 = vmatpush2.msra.mxu0 %v1660
    %1741 = vmatprep.subr.mxu0 %v1659
    %1742 = vmatpush2.msra.mxu0 %v1658
    %1743 = vmatprep.subr.mxu0 %v1657
    %1744 = vmatpush2.msra.mxu0 %v1656
    %1745 = vmatprep.subr.mxu0 %v1655
    %1746 = vmatpush2.msra.mxu0 %v1654
    %1747 = vmatprep.subr.mxu0 %v1653
    %1748 = vmatpush2.msra.mxu0 %v1652
    %1749 = vmatprep.subr.mxu0 %v1651
    %1750 = vmatpush2.msra.mxu0 %v1650
    %1751 = vmatprep.subr.mxu0 %v1649
    %1752 = vmatpush2.msra.mxu0 %v1648
    %1753 = vmatprep.subr.mxu0 %v1647
    %1754 = vmatpush2.msra.mxu0 %v1646
    %1755 = vmatprep.mubr.f32.mxu0 %v875
    %1756 = vmatmul.mubr.f32.gmra.mxu0 %v874
    %v1757 = vpop.f32.mrf.mxu0
    %v1758 = vadd.f32 %v1684, %v1757
    %v1759 = vpop.f32.mrf.mxu0
    %v1760 = vadd.f32 %v1688, %v1759
    %1761 = vdwg.mxu0
    %v1762 = vmax.f32 %v1758, 0.0
    %v1763 = vmax.f32 %v1760, 0.0
    %v1764 = vsel %vm641, %v1762, 0.0
    %v1765 = vrot.slane %v1764, 4
    %v1766 = vadd.f32 %v1764, %v1765
    %v1767 = vrot.slane %v1766, 2
    %v1768 = vadd.f32 %v1766, %v1767
    %v1769 = vrot.slane %v1768, 1
    %v1770 = vadd.f32 %v1768, %v1769
    %v1771 = vsel %vm641, %v1763, 0.0
    %v1772 = vrot.slane %v1771, 4
    %v1773 = vadd.f32 %v1771, %v1772
    %v1774 = vrot.slane %v1773, 2
    %v1775 = vadd.f32 %v1773, %v1774
    %v1776 = vrot.slane %v1775, 1
    %v1777 = vadd.f32 %v1775, %v1776
    %v1778 = vmul.f32 %v1770, %v656
    %v1779 = vmul.f32 %v1777, %v656
    %v1780 = vsub.f32 %v1762, %v1778
    %v1781 = vsub.f32 %v1763, %v1779
    %v1782 = vmul.f32 %v1780, %v1780
    %v1783 = vmul.f32 %v1781, %v1781
    %v1784 = vsel %vm641, %v1782, 0.0
    %v1785 = vrot.slane %v1784, 4
    %v1786 = vadd.f32 %v1784, %v1785
    %v1787 = vrot.slane %v1786, 2
    %v1788 = vadd.f32 %v1786, %v1787
    %v1789 = vrot.slane %v1788, 1
    %v1790 = vadd.f32 %v1788, %v1789
    %v1791 = vsel %vm641, %v1783, 0.0
    %v1792 = vrot.slane %v1791, 4
    %v1793 = vadd.f32 %v1791, %v1792
    %v1794 = vrot.slane %v1793, 2
    %v1795 = vadd.f32 %v1793, %v1794
    %v1796 = vrot.slane %v1795, 1
    %v1797 = vadd.f32 %v1795, %v1796
    %v1798 = vmul.f32 %v1790, %v656
    %v1799 = vmul.f32 %v1797, %v656
    %v1800 = vadd.f32 %v1798, 0.2
    %v1801 = vadd.f32 %v1799, 0.2
    %v1802 = vrsqrt.pop %v1800
    %v1803 = vrsqrt.pop %v1801
    %v1804 = vmul.f32 %v1780, %v1802
    %v1805 = vmul.f32 %v1781, %v1803
    %s1806 = scalar_lea.vmem %s5, 8
    %v1807 = vld [vmem:[%s1806] sm:$0xf]
    %v1810 = vunpack.c.l.s4 1983009808
    %v1811 = vunpack.c.0.s8 %v1810
    %v1812 = vlaneseq
    %v1813 = vshrl.u32 %v1812, 7
    %v1814 = vsub.s32 %v1811, %v1813
    %v1815 = vrot.slane %v1807, %v1814
    %v1816 = vcombine.high %v1815, %v1815
    %v1819 = vmul.f32 %v1804, %v1815
    %v1820 = vmul.f32 %v1805, %v1816
    %s1821 = scalar_lea.vmem [#allocation10], 1536
    %v1822 = vld [vmem:[%s1821] sm:$0xff]
    %v1823 = vld [vmem:[%s1821 + $0x8] sm:$0xff]
    %v1824 = vld [vmem:[%s1821 + $0x10] sm:$0xff]
    %v1825 = vld [vmem:[%s1821 + $0x18] sm:$0xff]
    %v1826 = vld [vmem:[%s1821 + $0x20] sm:$0xff]
    %v1827 = vld [vmem:[%s1821 + $0x28] sm:$0xff]
    %v1828 = vld [vmem:[%s1821 + $0x30] sm:$0xff]
    %v1829 = vld [vmem:[%s1821 + $0x38] sm:$0xff]
    %v1830 = vld [vmem:[%s1821 + $0x40] sm:$0xff]
    %v1831 = vld [vmem:[%s1821 + $0x48] sm:$0xff]
    %v1832 = vld [vmem:[%s1821 + $0x50] sm:$0xff]
    %v1833 = vld [vmem:[%s1821 + $0x58] sm:$0xff]
    %v1834 = vld [vmem:[%s1821 + $0x60] sm:$0xff]
    %v1835 = vld [vmem:[%s1821 + $0x68] sm:$0xff]
    %v1836 = vld [vmem:[%s1821 + $0x70] sm:$0xff]
    %v1837 = vld [vmem:[%s1821 + $0x78] sm:$0xff]
    %v1838 = vld [vmem:[%s1821 + $0x80] sm:$0xff]
    %v1839 = vld [vmem:[%s1821 + $0x88] sm:$0xff]
    %v1840 = vld [vmem:[%s1821 + $0x90] sm:$0xff]
    %v1841 = vld [vmem:[%s1821 + $0x98] sm:$0xff]
    %v1842 = vld [vmem:[%s1821 + $0xa0] sm:$0xff]
    %v1843 = vld [vmem:[%s1821 + $0xa8] sm:$0xff]
    %v1844 = vld [vmem:[%s1821 + $0xb0] sm:$0xff]
    %v1845 = vld [vmem:[%s1821 + $0xb8] sm:$0xff]
    %v1846 = vld [vmem:[%s1821 + $0xc0] sm:$0xff]
    %v1847 = vld [vmem:[%s1821 + $0xc8] sm:$0xff]
    %v1848 = vld [vmem:[%s1821 + $0xd0] sm:$0xff]
    %v1849 = vld [vmem:[%s1821 + $0xd8] sm:$0xff]
    %v1850 = vld [vmem:[%s1821 + $0xe0] sm:$0xff]
    %v1851 = vld [vmem:[%s1821 + $0xe8] sm:$0xff]
    %v1852 = vld [vmem:[%s1821 + $0xf0] sm:$0xff]
    %v1853 = vld [vmem:[%s1821 + $0xf8] sm:$0xff]
    %v1854 = vld [vmem:[%s1821 + $0x100] sm:$0xff]
    %v1855 = vld [vmem:[%s1821 + $0x108] sm:$0xff]
    %v1856 = vld [vmem:[%s1821 + $0x110] sm:$0xff]
    %v1857 = vld [vmem:[%s1821 + $0x118] sm:$0xff]
    %v1858 = vld [vmem:[%s1821 + $0x120] sm:$0xff]
    %v1859 = vld [vmem:[%s1821 + $0x128] sm:$0xff]
    %v1860 = vld [vmem:[%s1821 + $0x130] sm:$0xff]
    %v1861 = vld [vmem:[%s1821 + $0x138] sm:$0xff]
    %v1862 = vld [vmem:[%s1821 + $0x140] sm:$0xff]
    %v1863 = vld [vmem:[%s1821 + $0x148] sm:$0xff]
    %v1864 = vld [vmem:[%s1821 + $0x150] sm:$0xff]
    %v1865 = vld [vmem:[%s1821 + $0x158] sm:$0xff]
    %v1866 = vld [vmem:[%s1821 + $0x160] sm:$0xff]
    %v1867 = vld [vmem:[%s1821 + $0x168] sm:$0xff]
    %v1868 = vld [vmem:[%s1821 + $0x170] sm:$0xff]
    %v1869 = vld [vmem:[%s1821 + $0x178] sm:$0xff]
    %v1870 = vld [vmem:[%s1821 + $0x180] sm:$0xff]
    %v1871 = vld [vmem:[%s1821 + $0x188] sm:$0xff]
    %v1872 = vld [vmem:[%s1821 + $0x190] sm:$0xff]
    %v1873 = vld [vmem:[%s1821 + $0x198] sm:$0xff]
    %v1874 = vld [vmem:[%s1821 + $0x1a0] sm:$0xff]
    %v1875 = vld [vmem:[%s1821 + $0x1a8] sm:$0xff]
    %v1876 = vld [vmem:[%s1821 + $0x1b0] sm:$0xff]
    %v1877 = vld [vmem:[%s1821 + $0x1b8] sm:$0xff]
    %v1878 = vld [vmem:[%s1821 + $0x1c0] sm:$0xff]
    %v1879 = vld [vmem:[%s1821 + $0x1c8] sm:$0xff]
    %v1880 = vld [vmem:[%s1821 + $0x1d0] sm:$0xff]
    %v1881 = vld [vmem:[%s1821 + $0x1d8] sm:$0xff]
    %v1882 = vld [vmem:[%s1821 + $0x1e0] sm:$0xff]
    %v1883 = vld [vmem:[%s1821 + $0x1e8] sm:$0xff]
    %v1884 = vld [vmem:[%s1821 + $0x1f0] sm:$0xff]
    %v1885 = vld [vmem:[%s1821 + $0x1f8] sm:$0xff]
    %s1886 = scalar_lea.vmem [#allocation11], 6
    %v1887 = vld [vmem:[%s1886] sm:$0x3]
    %v1889 = vlaneseq
    %v1890 = vshrl.u32 %v1889, 7
    %v1891 = vsub.s32 0, %v1890
    %v1892 = vrot.slane %v1887, %v1891
    %v1893 = vlaneseq
    %v1894 = vshrl.u32 %v1893, 7
    %v1895 = vsub.s32 1, %v1894
    %v1896 = vrot.slane %v1887, %v1895
    %1899 = vmatprep.subr.mxu0 %v1853
    %1900 = vmatpush1.msra.mxu0 %v1852
    %1901 = vmatprep.subr.mxu0 %v1851
    %1902 = vmatpush1.msra.mxu0 %v1850
    %1903 = vmatprep.subr.mxu0 %v1849
    %1904 = vmatpush1.msra.mxu0 %v1848
    %1905 = vmatprep.subr.mxu0 %v1847
    %1906 = vmatpush1.msra.mxu0 %v1846
    %1907 = vmatprep.subr.mxu0 %v1845
    %1908 = vmatpush1.msra.mxu0 %v1844
    %1909 = vmatprep.subr.mxu0 %v1843
    %1910 = vmatpush1.msra.mxu0 %v1842
    %1911 = vmatprep.subr.mxu0 %v1841
    %1912 = vmatpush1.msra.mxu0 %v1840
    %1913 = vmatprep.subr.mxu0 %v1839
    %1914 = vmatpush1.msra.mxu0 %v1838
    %1915 = vmatprep.subr.mxu0 %v1837
    %1916 = vmatpush1.msra.mxu0 %v1836
    %1917 = vmatprep.subr.mxu0 %v1835
    %1918 = vmatpush1.msra.mxu0 %v1834
    %1919 = vmatprep.subr.mxu0 %v1833
    %1920 = vmatpush1.msra.mxu0 %v1832
    %1921 = vmatprep.subr.mxu0 %v1831
    %1922 = vmatpush1.msra.mxu0 %v1830
    %1923 = vmatprep.subr.mxu0 %v1829
    %1924 = vmatpush1.msra.mxu0 %v1828
    %1925 = vmatprep.subr.mxu0 %v1827
    %1926 = vmatpush1.msra.mxu0 %v1826
    %1927 = vmatprep.subr.mxu0 %v1825
    %1928 = vmatpush1.msra.mxu0 %v1824
    %1929 = vmatprep.subr.mxu0 %v1823
    %1930 = vmatpush1.msra.mxu0 %v1822
    %1931 = vmatprep.subr.mxu0 %v1885
    %1932 = vmatpush2.msra.mxu0 %v1884
    %1933 = vmatprep.subr.mxu0 %v1883
    %1934 = vmatpush2.msra.mxu0 %v1882
    %1935 = vmatprep.subr.mxu0 %v1881
    %1936 = vmatpush2.msra.mxu0 %v1880
    %1937 = vmatprep.subr.mxu0 %v1879
    %1938 = vmatpush2.msra.mxu0 %v1878
    %1939 = vmatprep.subr.mxu0 %v1877
    %1940 = vmatpush2.msra.mxu0 %v1876
    %1941 = vmatprep.subr.mxu0 %v1875
    %1942 = vmatpush2.msra.mxu0 %v1874
    %1943 = vmatprep.subr.mxu0 %v1873
    %1944 = vmatpush2.msra.mxu0 %v1872
    %1945 = vmatprep.subr.mxu0 %v1871
    %1946 = vmatpush2.msra.mxu0 %v1870
    %1947 = vmatprep.subr.mxu0 %v1869
    %1948 = vmatpush2.msra.mxu0 %v1868
    %1949 = vmatprep.subr.mxu0 %v1867
    %1950 = vmatpush2.msra.mxu0 %v1866
    %1951 = vmatprep.subr.mxu0 %v1865
    %1952 = vmatpush2.msra.mxu0 %v1864
    %1953 = vmatprep.subr.mxu0 %v1863
    %1954 = vmatpush2.msra.mxu0 %v1862
    %1955 = vmatprep.subr.mxu0 %v1861
    %1956 = vmatpush2.msra.mxu0 %v1860
    %1957 = vmatprep.subr.mxu0 %v1859
    %1958 = vmatpush2.msra.mxu0 %v1858
    %1959 = vmatprep.subr.mxu0 %v1857
    %1960 = vmatpush2.msra.mxu0 %v1856
    %1961 = vmatprep.subr.mxu0 %v1855
    %1962 = vmatpush2.msra.mxu0 %v1854
    %1963 = vmatprep.mubr.f32.mxu0 %v875
    %1964 = vmatmul.mubr.f32.gmra.mxu0 %v874
    %v1965 = vpop.f32.mrf.mxu0
    %v1966 = vadd.f32 %v1892, %v1965
    %v1967 = vpop.f32.mrf.mxu0
    %v1968 = vadd.f32 %v1896, %v1967
    %1969 = vdwg.mxu0
    %v1970 = vmax.f32 %v1966, 0.0
    %v1971 = vmax.f32 %v1968, 0.0
    %v1972 = vsel %vm641, %v1970, 0.0
    %v1973 = vrot.slane %v1972, 4
    %v1974 = vadd.f32 %v1972, %v1973
    %v1975 = vrot.slane %v1974, 2
    %v1976 = vadd.f32 %v1974, %v1975
    %v1977 = vrot.slane %v1976, 1
    %v1978 = vadd.f32 %v1976, %v1977
    %v1979 = vsel %vm641, %v1971, 0.0
    %v1980 = vrot.slane %v1979, 4
    %v1981 = vadd.f32 %v1979, %v1980
    %v1982 = vrot.slane %v1981, 2
    %v1983 = vadd.f32 %v1981, %v1982
    %v1984 = vrot.slane %v1983, 1
    %v1985 = vadd.f32 %v1983, %v1984
    %v1986 = vmul.f32 %v1978, %v656
    %v1987 = vmul.f32 %v1985, %v656
    %v1988 = vsub.f32 %v1970, %v1986
    %v1989 = vsub.f32 %v1971, %v1987
    %v1990 = vmul.f32 %v1988, %v1988
    %v1991 = vmul.f32 %v1989, %v1989
    %v1992 = vsel %vm641, %v1990, 0.0
    %v1993 = vrot.slane %v1992, 4
    %v1994 = vadd.f32 %v1992, %v1993
    %v1995 = vrot.slane %v1994, 2
    %v1996 = vadd.f32 %v1994, %v1995
    %v1997 = vrot.slane %v1996, 1
    %v1998 = vadd.f32 %v1996, %v1997
    %v1999 = vsel %vm641, %v1991, 0.0
    %v2000 = vrot.slane %v1999, 4
    %v2001 = vadd.f32 %v1999, %v2000
    %v2002 = vrot.slane %v2001, 2
    %v2003 = vadd.f32 %v2001, %v2002
    %v2004 = vrot.slane %v2003, 1
    %v2005 = vadd.f32 %v2003, %v2004
    %v2006 = vmul.f32 %v1998, %v656
    %v2007 = vmul.f32 %v2005, %v656
    %v2008 = vadd.f32 %v2006, 0.2
    %v2009 = vadd.f32 %v2007, 0.2
    %v2010 = vrsqrt.pop %v2008
    %v2011 = vrsqrt.pop %v2009
    %v2012 = vmul.f32 %v1988, %v2010
    %v2013 = vmul.f32 %v1989, %v2011
    %s2014 = scalar_lea.vmem %s5, 12
    %v2015 = vld [vmem:[%s2014] sm:$0xf]
    %v2018 = vunpack.c.l.s4 1983009808
    %v2019 = vunpack.c.0.s8 %v2018
    %v2020 = vlaneseq
    %v2021 = vshrl.u32 %v2020, 7
    %v2022 = vsub.s32 %v2019, %v2021
    %v2023 = vrot.slane %v2015, %v2022
    %v2024 = vcombine.high %v2023, %v2023
    %v2027 = vmul.f32 %v2012, %v2023
    %v2028 = vmul.f32 %v2013, %v2024
    %s2029 = scalar_lea.vmem [#allocation10], 2048
    %v2030 = vld [vmem:[%s2029] sm:$0xff]
    %v2031 = vld [vmem:[%s2029 + $0x8] sm:$0xff]
    %v2032 = vld [vmem:[%s2029 + $0x10] sm:$0xff]
    %v2033 = vld [vmem:[%s2029 + $0x18] sm:$0xff]
    %v2034 = vld [vmem:[%s2029 + $0x20] sm:$0xff]
    %v2035 = vld [vmem:[%s2029 + $0x28] sm:$0xff]
    %v2036 = vld [vmem:[%s2029 + $0x30] sm:$0xff]
    %v2037 = vld [vmem:[%s2029 + $0x38] sm:$0xff]
    %v2038 = vld [vmem:[%s2029 + $0x40] sm:$0xff]
    %v2039 = vld [vmem:[%s2029 + $0x48] sm:$0xff]
    %v2040 = vld [vmem:[%s2029 + $0x50] sm:$0xff]
    %v2041 = vld [vmem:[%s2029 + $0x58] sm:$0xff]
    %v2042 = vld [vmem:[%s2029 + $0x60] sm:$0xff]
    %v2043 = vld [vmem:[%s2029 + $0x68] sm:$0xff]
    %v2044 = vld [vmem:[%s2029 + $0x70] sm:$0xff]
    %v2045 = vld [vmem:[%s2029 + $0x78] sm:$0xff]
    %v2046 = vld [vmem:[%s2029 + $0x80] sm:$0xff]
    %v2047 = vld [vmem:[%s2029 + $0x88] sm:$0xff]
    %v2048 = vld [vmem:[%s2029 + $0x90] sm:$0xff]
    %v2049 = vld [vmem:[%s2029 + $0x98] sm:$0xff]
    %v2050 = vld [vmem:[%s2029 + $0xa0] sm:$0xff]
    %v2051 = vld [vmem:[%s2029 + $0xa8] sm:$0xff]
    %v2052 = vld [vmem:[%s2029 + $0xb0] sm:$0xff]
    %v2053 = vld [vmem:[%s2029 + $0xb8] sm:$0xff]
    %v2054 = vld [vmem:[%s2029 + $0xc0] sm:$0xff]
    %v2055 = vld [vmem:[%s2029 + $0xc8] sm:$0xff]
    %v2056 = vld [vmem:[%s2029 + $0xd0] sm:$0xff]
    %v2057 = vld [vmem:[%s2029 + $0xd8] sm:$0xff]
    %v2058 = vld [vmem:[%s2029 + $0xe0] sm:$0xff]
    %v2059 = vld [vmem:[%s2029 + $0xe8] sm:$0xff]
    %v2060 = vld [vmem:[%s2029 + $0xf0] sm:$0xff]
    %v2061 = vld [vmem:[%s2029 + $0xf8] sm:$0xff]
    %v2062 = vld [vmem:[%s2029 + $0x100] sm:$0xff]
    %v2063 = vld [vmem:[%s2029 + $0x108] sm:$0xff]
    %v2064 = vld [vmem:[%s2029 + $0x110] sm:$0xff]
    %v2065 = vld [vmem:[%s2029 + $0x118] sm:$0xff]
    %v2066 = vld [vmem:[%s2029 + $0x120] sm:$0xff]
    %v2067 = vld [vmem:[%s2029 + $0x128] sm:$0xff]
    %v2068 = vld [vmem:[%s2029 + $0x130] sm:$0xff]
    %v2069 = vld [vmem:[%s2029 + $0x138] sm:$0xff]
    %v2070 = vld [vmem:[%s2029 + $0x140] sm:$0xff]
    %v2071 = vld [vmem:[%s2029 + $0x148] sm:$0xff]
    %v2072 = vld [vmem:[%s2029 + $0x150] sm:$0xff]
    %v2073 = vld [vmem:[%s2029 + $0x158] sm:$0xff]
    %v2074 = vld [vmem:[%s2029 + $0x160] sm:$0xff]
    %v2075 = vld [vmem:[%s2029 + $0x168] sm:$0xff]
    %v2076 = vld [vmem:[%s2029 + $0x170] sm:$0xff]
    %v2077 = vld [vmem:[%s2029 + $0x178] sm:$0xff]
    %v2078 = vld [vmem:[%s2029 + $0x180] sm:$0xff]
    %v2079 = vld [vmem:[%s2029 + $0x188] sm:$0xff]
    %v2080 = vld [vmem:[%s2029 + $0x190] sm:$0xff]
    %v2081 = vld [vmem:[%s2029 + $0x198] sm:$0xff]
    %v2082 = vld [vmem:[%s2029 + $0x1a0] sm:$0xff]
    %v2083 = vld [vmem:[%s2029 + $0x1a8] sm:$0xff]
    %v2084 = vld [vmem:[%s2029 + $0x1b0] sm:$0xff]
    %v2085 = vld [vmem:[%s2029 + $0x1b8] sm:$0xff]
    %v2086 = vld [vmem:[%s2029 + $0x1c0] sm:$0xff]
    %v2087 = vld [vmem:[%s2029 + $0x1c8] sm:$0xff]
    %v2088 = vld [vmem:[%s2029 + $0x1d0] sm:$0xff]
    %v2089 = vld [vmem:[%s2029 + $0x1d8] sm:$0xff]
    %v2090 = vld [vmem:[%s2029 + $0x1e0] sm:$0xff]
    %v2091 = vld [vmem:[%s2029 + $0x1e8] sm:$0xff]
    %v2092 = vld [vmem:[%s2029 + $0x1f0] sm:$0xff]
    %v2093 = vld [vmem:[%s2029 + $0x1f8] sm:$0xff]
    %s2094 = scalar_lea.vmem [#allocation11], 8
    %v2095 = vld [vmem:[%s2094] sm:$0x3]
    %v2097 = vlaneseq
    %v2098 = vshrl.u32 %v2097, 7
    %v2099 = vsub.s32 0, %v2098
    %v2100 = vrot.slane %v2095, %v2099
    %v2101 = vlaneseq
    %v2102 = vshrl.u32 %v2101, 7
    %v2103 = vsub.s32 1, %v2102
    %v2104 = vrot.slane %v2095, %v2103
    %2107 = vmatprep.subr.mxu0 %v2061
    %2108 = vmatpush1.msra.mxu0 %v2060
    %2109 = vmatprep.subr.mxu0 %v2059
    %2110 = vmatpush1.msra.mxu0 %v2058
    %2111 = vmatprep.subr.mxu0 %v2057
    %2112 = vmatpush1.msra.mxu0 %v2056
    %2113 = vmatprep.subr.mxu0 %v2055
    %2114 = vmatpush1.msra.mxu0 %v2054
    %2115 = vmatprep.subr.mxu0 %v2053
    %2116 = vmatpush1.msra.mxu0 %v2052
    %2117 = vmatprep.subr.mxu0 %v2051
    %2118 = vmatpush1.msra.mxu0 %v2050
    %2119 = vmatprep.subr.mxu0 %v2049
    %2120 = vmatpush1.msra.mxu0 %v2048
    %2121 = vmatprep.subr.mxu0 %v2047
    %2122 = vmatpush1.msra.mxu0 %v2046
    %2123 = vmatprep.subr.mxu0 %v2045
    %2124 = vmatpush1.msra.mxu0 %v2044
    %2125 = vmatprep.subr.mxu0 %v2043
    %2126 = vmatpush1.msra.mxu0 %v2042
    %2127 = vmatprep.subr.mxu0 %v2041
    %2128 = vmatpush1.msra.mxu0 %v2040
    %2129 = vmatprep.subr.mxu0 %v2039
    %2130 = vmatpush1.msra.mxu0 %v2038
    %2131 = vmatprep.subr.mxu0 %v2037
    %2132 = vmatpush1.msra.mxu0 %v2036
    %2133 = vmatprep.subr.mxu0 %v2035
    %2134 = vmatpush1.msra.mxu0 %v2034
    %2135 = vmatprep.subr.mxu0 %v2033
    %2136 = vmatpush1.msra.mxu0 %v2032
    %2137 = vmatprep.subr.mxu0 %v2031
    %2138 = vmatpush1.msra.mxu0 %v2030
    %2139 = vmatprep.subr.mxu0 %v2093
    %2140 = vmatpush2.msra.mxu0 %v2092
    %2141 = vmatprep.subr.mxu0 %v2091
    %2142 = vmatpush2.msra.mxu0 %v2090
    %2143 = vmatprep.subr.mxu0 %v2089
    %2144 = vmatpush2.msra.mxu0 %v2088
    %2145 = vmatprep.subr.mxu0 %v2087
    %2146 = vmatpush2.msra.mxu0 %v2086
    %2147 = vmatprep.subr.mxu0 %v2085
    %2148 = vmatpush2.msra.mxu0 %v2084
    %2149 = vmatprep.subr.mxu0 %v2083
    %2150 = vmatpush2.msra.mxu0 %v2082
    %2151 = vmatprep.subr.mxu0 %v2081
    %2152 = vmatpush2.msra.mxu0 %v2080
    %2153 = vmatprep.subr.mxu0 %v2079
    %2154 = vmatpush2.msra.mxu0 %v2078
    %2155 = vmatprep.subr.mxu0 %v2077
    %2156 = vmatpush2.msra.mxu0 %v2076
    %2157 = vmatprep.subr.mxu0 %v2075
    %2158 = vmatpush2.msra.mxu0 %v2074
    %2159 = vmatprep.subr.mxu0 %v2073
    %2160 = vmatpush2.msra.mxu0 %v2072
    %2161 = vmatprep.subr.mxu0 %v2071
    %2162 = vmatpush2.msra.mxu0 %v2070
    %2163 = vmatprep.subr.mxu0 %v2069
    %2164 = vmatpush2.msra.mxu0 %v2068
    %2165 = vmatprep.subr.mxu0 %v2067
    %2166 = vmatpush2.msra.mxu0 %v2066
    %2167 = vmatprep.subr.mxu0 %v2065
    %2168 = vmatpush2.msra.mxu0 %v2064
    %2169 = vmatprep.subr.mxu0 %v2063
    %2170 = vmatpush2.msra.mxu0 %v2062
    %2171 = vmatprep.mubr.f32.mxu0 %v1199
    %2172 = vmatmul.mubr.f32.gmra.mxu0 %v1198
    %v2173 = vpop.f32.mrf.mxu0
    %v2174 = vadd.f32 %v2100, %v2173
    %v2175 = vpop.f32.mrf.mxu0
    %v2176 = vadd.f32 %v2104, %v2175
    %2177 = vdwg.mxu0
    %v2178 = vmax.f32 %v2174, 0.0
    %v2179 = vmax.f32 %v2176, 0.0
    %v2180 = vsel %vm641, %v2178, 0.0
    %v2181 = vrot.slane %v2180, 4
    %v2182 = vadd.f32 %v2180, %v2181
    %v2183 = vrot.slane %v2182, 2
    %v2184 = vadd.f32 %v2182, %v2183
    %v2185 = vrot.slane %v2184, 1
    %v2186 = vadd.f32 %v2184, %v2185
    %v2187 = vsel %vm641, %v2179, 0.0
    %v2188 = vrot.slane %v2187, 4
    %v2189 = vadd.f32 %v2187, %v2188
    %v2190 = vrot.slane %v2189, 2
    %v2191 = vadd.f32 %v2189, %v2190
    %v2192 = vrot.slane %v2191, 1
    %v2193 = vadd.f32 %v2191, %v2192
    %v2194 = vmul.f32 %v2186, %v656
    %v2195 = vmul.f32 %v2193, %v656
    %v2196 = vsub.f32 %v2178, %v2194
    %v2197 = vsub.f32 %v2179, %v2195
    %v2198 = vmul.f32 %v2196, %v2196
    %v2199 = vmul.f32 %v2197, %v2197
    %v2200 = vsel %vm641, %v2198, 0.0
    %v2201 = vrot.slane %v2200, 4
    %v2202 = vadd.f32 %v2200, %v2201
    %v2203 = vrot.slane %v2202, 2
    %v2204 = vadd.f32 %v2202, %v2203
    %v2205 = vrot.slane %v2204, 1
    %v2206 = vadd.f32 %v2204, %v2205
    %v2207 = vsel %vm641, %v2199, 0.0
    %v2208 = vrot.slane %v2207, 4
    %v2209 = vadd.f32 %v2207, %v2208
    %v2210 = vrot.slane %v2209, 2
    %v2211 = vadd.f32 %v2209, %v2210
    %v2212 = vrot.slane %v2211, 1
    %v2213 = vadd.f32 %v2211, %v2212
    %v2214 = vmul.f32 %v2206, %v656
    %v2215 = vmul.f32 %v2213, %v656
    %v2216 = vadd.f32 %v2214, 0.2
    %v2217 = vadd.f32 %v2215, 0.2
    %v2218 = vrsqrt.pop %v2216
    %v2219 = vrsqrt.pop %v2217
    %v2220 = vmul.f32 %v2196, %v2218
    %v2221 = vmul.f32 %v2197, %v2219
    %s2222 = scalar_lea.vmem %s5, 16
    %v2223 = vld [vmem:[%s2222] sm:$0xf]
    %v2226 = vunpack.c.l.s4 1983009808
    %v2227 = vunpack.c.0.s8 %v2226
    %v2228 = vlaneseq
    %v2229 = vshrl.u32 %v2228, 7
    %v2230 = vsub.s32 %v2227, %v2229
    %v2231 = vrot.slane %v2223, %v2230
    %v2232 = vcombine.high %v2231, %v2231
    %v2235 = vmul.f32 %v2220, %v2231
    %v2236 = vmul.f32 %v2221, %v2232
    %s2237 = scalar_lea.vmem [#allocation10], 2560
    %v2238 = vld [vmem:[%s2237] sm:$0xff]
    %v2239 = vld [vmem:[%s2237 + $0x8] sm:$0xff]
    %v2240 = vld [vmem:[%s2237 + $0x10] sm:$0xff]
    %v2241 = vld [vmem:[%s2237 + $0x18] sm:$0xff]
    %v2242 = vld [vmem:[%s2237 + $0x20] sm:$0xff]
    %v2243 = vld [vmem:[%s2237 + $0x28] sm:$0xff]
    %v2244 = vld [vmem:[%s2237 + $0x30] sm:$0xff]
    %v2245 = vld [vmem:[%s2237 + $0x38] sm:$0xff]
    %v2246 = vld [vmem:[%s2237 + $0x40] sm:$0xff]
    %v2247 = vld [vmem:[%s2237 + $0x48] sm:$0xff]
    %v2248 = vld [vmem:[%s2237 + $0x50] sm:$0xff]
    %v2249 = vld [vmem:[%s2237 + $0x58] sm:$0xff]
    %v2250 = vld [vmem:[%s2237 + $0x60] sm:$0xff]
    %v2251 = vld [vmem:[%s2237 + $0x68] sm:$0xff]
    %v2252 = vld [vmem:[%s2237 + $0x70] sm:$0xff]
    %v2253 = vld [vmem:[%s2237 + $0x78] sm:$0xff]
    %v2254 = vld [vmem:[%s2237 + $0x80] sm:$0xff]
    %v2255 = vld [vmem:[%s2237 + $0x88] sm:$0xff]
    %v2256 = vld [vmem:[%s2237 + $0x90] sm:$0xff]
    %v2257 = vld [vmem:[%s2237 + $0x98] sm:$0xff]
    %v2258 = vld [vmem:[%s2237 + $0xa0] sm:$0xff]
    %v2259 = vld [vmem:[%s2237 + $0xa8] sm:$0xff]
    %v2260 = vld [vmem:[%s2237 + $0xb0] sm:$0xff]
    %v2261 = vld [vmem:[%s2237 + $0xb8] sm:$0xff]
    %v2262 = vld [vmem:[%s2237 + $0xc0] sm:$0xff]
    %v2263 = vld [vmem:[%s2237 + $0xc8] sm:$0xff]
    %v2264 = vld [vmem:[%s2237 + $0xd0] sm:$0xff]
    %v2265 = vld [vmem:[%s2237 + $0xd8] sm:$0xff]
    %v2266 = vld [vmem:[%s2237 + $0xe0] sm:$0xff]
    %v2267 = vld [vmem:[%s2237 + $0xe8] sm:$0xff]
    %v2268 = vld [vmem:[%s2237 + $0xf0] sm:$0xff]
    %v2269 = vld [vmem:[%s2237 + $0xf8] sm:$0xff]
    %v2270 = vld [vmem:[%s2237 + $0x100] sm:$0xff]
    %v2271 = vld [vmem:[%s2237 + $0x108] sm:$0xff]
    %v2272 = vld [vmem:[%s2237 + $0x110] sm:$0xff]
    %v2273 = vld [vmem:[%s2237 + $0x118] sm:$0xff]
    %v2274 = vld [vmem:[%s2237 + $0x120] sm:$0xff]
    %v2275 = vld [vmem:[%s2237 + $0x128] sm:$0xff]
    %v2276 = vld [vmem:[%s2237 + $0x130] sm:$0xff]
    %v2277 = vld [vmem:[%s2237 + $0x138] sm:$0xff]
    %v2278 = vld [vmem:[%s2237 + $0x140] sm:$0xff]
    %v2279 = vld [vmem:[%s2237 + $0x148] sm:$0xff]
    %v2280 = vld [vmem:[%s2237 + $0x150] sm:$0xff]
    %v2281 = vld [vmem:[%s2237 + $0x158] sm:$0xff]
    %v2282 = vld [vmem:[%s2237 + $0x160] sm:$0xff]
    %v2283 = vld [vmem:[%s2237 + $0x168] sm:$0xff]
    %v2284 = vld [vmem:[%s2237 + $0x170] sm:$0xff]
    %v2285 = vld [vmem:[%s2237 + $0x178] sm:$0xff]
    %v2286 = vld [vmem:[%s2237 + $0x180] sm:$0xff]
    %v2287 = vld [vmem:[%s2237 + $0x188] sm:$0xff]
    %v2288 = vld [vmem:[%s2237 + $0x190] sm:$0xff]
    %v2289 = vld [vmem:[%s2237 + $0x198] sm:$0xff]
    %v2290 = vld [vmem:[%s2237 + $0x1a0] sm:$0xff]
    %v2291 = vld [vmem:[%s2237 + $0x1a8] sm:$0xff]
    %v2292 = vld [vmem:[%s2237 + $0x1b0] sm:$0xff]
    %v2293 = vld [vmem:[%s2237 + $0x1b8] sm:$0xff]
    %v2294 = vld [vmem:[%s2237 + $0x1c0] sm:$0xff]
    %v2295 = vld [vmem:[%s2237 + $0x1c8] sm:$0xff]
    %v2296 = vld [vmem:[%s2237 + $0x1d0] sm:$0xff]
    %v2297 = vld [vmem:[%s2237 + $0x1d8] sm:$0xff]
    %v2298 = vld [vmem:[%s2237 + $0x1e0] sm:$0xff]
    %v2299 = vld [vmem:[%s2237 + $0x1e8] sm:$0xff]
    %v2300 = vld [vmem:[%s2237 + $0x1f0] sm:$0xff]
    %v2301 = vld [vmem:[%s2237 + $0x1f8] sm:$0xff]
    %s2302 = scalar_lea.vmem [#allocation11], 10
    %v2303 = vld [vmem:[%s2302] sm:$0x3]
    %v2305 = vlaneseq
    %v2306 = vshrl.u32 %v2305, 7
    %v2307 = vsub.s32 0, %v2306
    %v2308 = vrot.slane %v2303, %v2307
    %v2309 = vlaneseq
    %v2310 = vshrl.u32 %v2309, 7
    %v2311 = vsub.s32 1, %v2310
    %v2312 = vrot.slane %v2303, %v2311
    %2315 = vmatprep.subr.mxu0 %v2269
    %2316 = vmatpush1.msra.mxu0 %v2268
    %2317 = vmatprep.subr.mxu0 %v2267
    %2318 = vmatpush1.msra.mxu0 %v2266
    %2319 = vmatprep.subr.mxu0 %v2265
    %2320 = vmatpush1.msra.mxu0 %v2264
    %2321 = vmatprep.subr.mxu0 %v2263
    %2322 = vmatpush1.msra.mxu0 %v2262
    %2323 = vmatprep.subr.mxu0 %v2261
    %2324 = vmatpush1.msra.mxu0 %v2260
    %2325 = vmatprep.subr.mxu0 %v2259
    %2326 = vmatpush1.msra.mxu0 %v2258
    %2327 = vmatprep.subr.mxu0 %v2257
    %2328 = vmatpush1.msra.mxu0 %v2256
    %2329 = vmatprep.subr.mxu0 %v2255
    %2330 = vmatpush1.msra.mxu0 %v2254
    %2331 = vmatprep.subr.mxu0 %v2253
    %2332 = vmatpush1.msra.mxu0 %v2252
    %2333 = vmatprep.subr.mxu0 %v2251
    %2334 = vmatpush1.msra.mxu0 %v2250
    %2335 = vmatprep.subr.mxu0 %v2249
    %2336 = vmatpush1.msra.mxu0 %v2248
    %2337 = vmatprep.subr.mxu0 %v2247
    %2338 = vmatpush1.msra.mxu0 %v2246
    %2339 = vmatprep.subr.mxu0 %v2245
    %2340 = vmatpush1.msra.mxu0 %v2244
    %2341 = vmatprep.subr.mxu0 %v2243
    %2342 = vmatpush1.msra.mxu0 %v2242
    %2343 = vmatprep.subr.mxu0 %v2241
    %2344 = vmatpush1.msra.mxu0 %v2240
    %2345 = vmatprep.subr.mxu0 %v2239
    %2346 = vmatpush1.msra.mxu0 %v2238
    %2347 = vmatprep.subr.mxu0 %v2301
    %2348 = vmatpush2.msra.mxu0 %v2300
    %2349 = vmatprep.subr.mxu0 %v2299
    %2350 = vmatpush2.msra.mxu0 %v2298
    %2351 = vmatprep.subr.mxu0 %v2297
    %2352 = vmatpush2.msra.mxu0 %v2296
    %2353 = vmatprep.subr.mxu0 %v2295
    %2354 = vmatpush2.msra.mxu0 %v2294
    %2355 = vmatprep.subr.mxu0 %v2293
    %2356 = vmatpush2.msra.mxu0 %v2292
    %2357 = vmatprep.subr.mxu0 %v2291
    %2358 = vmatpush2.msra.mxu0 %v2290
    %2359 = vmatprep.subr.mxu0 %v2289
    %2360 = vmatpush2.msra.mxu0 %v2288
    %2361 = vmatprep.subr.mxu0 %v2287
    %2362 = vmatpush2.msra.mxu0 %v2286
    %2363 = vmatprep.subr.mxu0 %v2285
    %2364 = vmatpush2.msra.mxu0 %v2284
    %2365 = vmatprep.subr.mxu0 %v2283
    %2366 = vmatpush2.msra.mxu0 %v2282
    %2367 = vmatprep.subr.mxu0 %v2281
    %2368 = vmatpush2.msra.mxu0 %v2280
    %2369 = vmatprep.subr.mxu0 %v2279
    %2370 = vmatpush2.msra.mxu0 %v2278
    %2371 = vmatprep.subr.mxu0 %v2277
    %2372 = vmatpush2.msra.mxu0 %v2276
    %2373 = vmatprep.subr.mxu0 %v2275
    %2374 = vmatpush2.msra.mxu0 %v2274
    %2375 = vmatprep.subr.mxu0 %v2273
    %2376 = vmatpush2.msra.mxu0 %v2272
    %2377 = vmatprep.subr.mxu0 %v2271
    %2378 = vmatpush2.msra.mxu0 %v2270
    %2379 = vmatprep.mubr.f32.mxu0 %v1199
    %2380 = vmatmul.mubr.f32.gmra.mxu0 %v1198
    %v2381 = vpop.f32.mrf.mxu0
    %v2382 = vadd.f32 %v2308, %v2381
    %v2383 = vpop.f32.mrf.mxu0
    %v2384 = vadd.f32 %v2312, %v2383
    %2385 = vdwg.mxu0
    %v2386 = vmax.f32 %v2382, 0.0
    %v2387 = vmax.f32 %v2384, 0.0
    %v2388 = vsel %vm641, %v2386, 0.0
    %v2389 = vrot.slane %v2388, 4
    %v2390 = vadd.f32 %v2388, %v2389
    %v2391 = vrot.slane %v2390, 2
    %v2392 = vadd.f32 %v2390, %v2391
    %v2393 = vrot.slane %v2392, 1
    %v2394 = vadd.f32 %v2392, %v2393
    %v2395 = vsel %vm641, %v2387, 0.0
    %v2396 = vrot.slane %v2395, 4
    %v2397 = vadd.f32 %v2395, %v2396
    %v2398 = vrot.slane %v2397, 2
    %v2399 = vadd.f32 %v2397, %v2398
    %v2400 = vrot.slane %v2399, 1
    %v2401 = vadd.f32 %v2399, %v2400
    %v2402 = vmul.f32 %v2394, %v656
    %v2403 = vmul.f32 %v2401, %v656
    %v2404 = vsub.f32 %v2386, %v2402
    %v2405 = vsub.f32 %v2387, %v2403
    %v2406 = vmul.f32 %v2404, %v2404
    %v2407 = vmul.f32 %v2405, %v2405
    %v2408 = vsel %vm641, %v2406, 0.0
    %v2409 = vrot.slane %v2408, 4
    %v2410 = vadd.f32 %v2408, %v2409
    %v2411 = vrot.slane %v2410, 2
    %v2412 = vadd.f32 %v2410, %v2411
    %v2413 = vrot.slane %v2412, 1
    %v2414 = vadd.f32 %v2412, %v2413
    %v2415 = vsel %vm641, %v2407, 0.0
    %v2416 = vrot.slane %v2415, 4
    %v2417 = vadd.f32 %v2415, %v2416
    %v2418 = vrot.slane %v2417, 2
    %v2419 = vadd.f32 %v2417, %v2418
    %v2420 = vrot.slane %v2419, 1
    %v2421 = vadd.f32 %v2419, %v2420
    %v2422 = vmul.f32 %v2414, %v656
    %v2423 = vmul.f32 %v2421, %v656
    %v2424 = vadd.f32 %v2422, 0.2
    %v2425 = vadd.f32 %v2423, 0.2
    %v2426 = vrsqrt.pop %v2424
    %v2427 = vrsqrt.pop %v2425
    %v2428 = vmul.f32 %v2404, %v2426
    %v2429 = vmul.f32 %v2405, %v2427
    %s2430 = scalar_lea.vmem %s5, 20
    %v2431 = vld [vmem:[%s2430] sm:$0xf]
    %v2434 = vunpack.c.l.s4 1983009808
    %v2435 = vunpack.c.0.s8 %v2434
    %v2436 = vlaneseq
    %v2437 = vshrl.u32 %v2436, 7
    %v2438 = vsub.s32 %v2435, %v2437
    %v2439 = vrot.slane %v2431, %v2438
    %v2440 = vcombine.high %v2439, %v2439
    %v2443 = vmul.f32 %v2428, %v2439
    %v2444 = vmul.f32 %v2429, %v2440
    %s2445 = scalar_lea.vmem [#allocation10], 3072
    %v2446 = vld [vmem:[%s2445] sm:$0xff]
    %v2447 = vld [vmem:[%s2445 + $0x8] sm:$0xff]
    %v2448 = vld [vmem:[%s2445 + $0x10] sm:$0xff]
    %v2449 = vld [vmem:[%s2445 + $0x18] sm:$0xff]
    %v2450 = vld [vmem:[%s2445 + $0x20] sm:$0xff]
    %v2451 = vld [vmem:[%s2445 + $0x28] sm:$0xff]
    %v2452 = vld [vmem:[%s2445 + $0x30] sm:$0xff]
    %v2453 = vld [vmem:[%s2445 + $0x38] sm:$0xff]
    %v2454 = vld [vmem:[%s2445 + $0x40] sm:$0xff]
    %v2455 = vld [vmem:[%s2445 + $0x48] sm:$0xff]
    %v2456 = vld [vmem:[%s2445 + $0x50] sm:$0xff]
    %v2457 = vld [vmem:[%s2445 + $0x58] sm:$0xff]
    %v2458 = vld [vmem:[%s2445 + $0x60] sm:$0xff]
    %v2459 = vld [vmem:[%s2445 + $0x68] sm:$0xff]
    %v2460 = vld [vmem:[%s2445 + $0x70] sm:$0xff]
    %v2461 = vld [vmem:[%s2445 + $0x78] sm:$0xff]
    %v2462 = vld [vmem:[%s2445 + $0x80] sm:$0xff]
    %v2463 = vld [vmem:[%s2445 + $0x88] sm:$0xff]
    %v2464 = vld [vmem:[%s2445 + $0x90] sm:$0xff]
    %v2465 = vld [vmem:[%s2445 + $0x98] sm:$0xff]
    %v2466 = vld [vmem:[%s2445 + $0xa0] sm:$0xff]
    %v2467 = vld [vmem:[%s2445 + $0xa8] sm:$0xff]
    %v2468 = vld [vmem:[%s2445 + $0xb0] sm:$0xff]
    %v2469 = vld [vmem:[%s2445 + $0xb8] sm:$0xff]
    %v2470 = vld [vmem:[%s2445 + $0xc0] sm:$0xff]
    %v2471 = vld [vmem:[%s2445 + $0xc8] sm:$0xff]
    %v2472 = vld [vmem:[%s2445 + $0xd0] sm:$0xff]
    %v2473 = vld [vmem:[%s2445 + $0xd8] sm:$0xff]
    %v2474 = vld [vmem:[%s2445 + $0xe0] sm:$0xff]
    %v2475 = vld [vmem:[%s2445 + $0xe8] sm:$0xff]
    %v2476 = vld [vmem:[%s2445 + $0xf0] sm:$0xff]
    %v2477 = vld [vmem:[%s2445 + $0xf8] sm:$0xff]
    %v2478 = vld [vmem:[%s2445 + $0x100] sm:$0xff]
    %v2479 = vld [vmem:[%s2445 + $0x108] sm:$0xff]
    %v2480 = vld [vmem:[%s2445 + $0x110] sm:$0xff]
    %v2481 = vld [vmem:[%s2445 + $0x118] sm:$0xff]
    %v2482 = vld [vmem:[%s2445 + $0x120] sm:$0xff]
    %v2483 = vld [vmem:[%s2445 + $0x128] sm:$0xff]
    %v2484 = vld [vmem:[%s2445 + $0x130] sm:$0xff]
    %v2485 = vld [vmem:[%s2445 + $0x138] sm:$0xff]
    %v2486 = vld [vmem:[%s2445 + $0x140] sm:$0xff]
    %v2487 = vld [vmem:[%s2445 + $0x148] sm:$0xff]
    %v2488 = vld [vmem:[%s2445 + $0x150] sm:$0xff]
    %v2489 = vld [vmem:[%s2445 + $0x158] sm:$0xff]
    %v2490 = vld [vmem:[%s2445 + $0x160] sm:$0xff]
    %v2491 = vld [vmem:[%s2445 + $0x168] sm:$0xff]
    %v2492 = vld [vmem:[%s2445 + $0x170] sm:$0xff]
    %v2493 = vld [vmem:[%s2445 + $0x178] sm:$0xff]
    %v2494 = vld [vmem:[%s2445 + $0x180] sm:$0xff]
    %v2495 = vld [vmem:[%s2445 + $0x188] sm:$0xff]
    %v2496 = vld [vmem:[%s2445 + $0x190] sm:$0xff]
    %v2497 = vld [vmem:[%s2445 + $0x198] sm:$0xff]
    %v2498 = vld [vmem:[%s2445 + $0x1a0] sm:$0xff]
    %v2499 = vld [vmem:[%s2445 + $0x1a8] sm:$0xff]
    %v2500 = vld [vmem:[%s2445 + $0x1b0] sm:$0xff]
    %v2501 = vld [vmem:[%s2445 + $0x1b8] sm:$0xff]
    %v2502 = vld [vmem:[%s2445 + $0x1c0] sm:$0xff]
    %v2503 = vld [vmem:[%s2445 + $0x1c8] sm:$0xff]
    %v2504 = vld [vmem:[%s2445 + $0x1d0] sm:$0xff]
    %v2505 = vld [vmem:[%s2445 + $0x1d8] sm:$0xff]
    %v2506 = vld [vmem:[%s2445 + $0x1e0] sm:$0xff]
    %v2507 = vld [vmem:[%s2445 + $0x1e8] sm:$0xff]
    %v2508 = vld [vmem:[%s2445 + $0x1f0] sm:$0xff]
    %v2509 = vld [vmem:[%s2445 + $0x1f8] sm:$0xff]
    %s2510 = scalar_lea.vmem [#allocation11], 12
    %v2511 = vld [vmem:[%s2510] sm:$0x3]
    %v2513 = vlaneseq
    %v2514 = vshrl.u32 %v2513, 7
    %v2515 = vsub.s32 0, %v2514
    %v2516 = vrot.slane %v2511, %v2515
    %v2517 = vlaneseq
    %v2518 = vshrl.u32 %v2517, 7
    %v2519 = vsub.s32 1, %v2518
    %v2520 = vrot.slane %v2511, %v2519
    %2523 = vmatprep.subr.mxu0 %v2477
    %2524 = vmatpush1.msra.mxu0 %v2476
    %2525 = vmatprep.subr.mxu0 %v2475
    %2526 = vmatpush1.msra.mxu0 %v2474
    %2527 = vmatprep.subr.mxu0 %v2473
    %2528 = vmatpush1.msra.mxu0 %v2472
    %2529 = vmatprep.subr.mxu0 %v2471
    %2530 = vmatpush1.msra.mxu0 %v2470
    %2531 = vmatprep.subr.mxu0 %v2469
    %2532 = vmatpush1.msra.mxu0 %v2468
    %2533 = vmatprep.subr.mxu0 %v2467
    %2534 = vmatpush1.msra.mxu0 %v2466
    %2535 = vmatprep.subr.mxu0 %v2465
    %2536 = vmatpush1.msra.mxu0 %v2464
    %2537 = vmatprep.subr.mxu0 %v2463
    %2538 = vmatpush1.msra.mxu0 %v2462
    %2539 = vmatprep.subr.mxu0 %v2461
    %2540 = vmatpush1.msra.mxu0 %v2460
    %2541 = vmatprep.subr.mxu0 %v2459
    %2542 = vmatpush1.msra.mxu0 %v2458
    %2543 = vmatprep.subr.mxu0 %v2457
    %2544 = vmatpush1.msra.mxu0 %v2456
    %2545 = vmatprep.subr.mxu0 %v2455
    %2546 = vmatpush1.msra.mxu0 %v2454
    %2547 = vmatprep.subr.mxu0 %v2453
    %2548 = vmatpush1.msra.mxu0 %v2452
    %2549 = vmatprep.subr.mxu0 %v2451
    %2550 = vmatpush1.msra.mxu0 %v2450
    %2551 = vmatprep.subr.mxu0 %v2449
    %2552 = vmatpush1.msra.mxu0 %v2448
    %2553 = vmatprep.subr.mxu0 %v2447
    %2554 = vmatpush1.msra.mxu0 %v2446
    %2555 = vmatprep.subr.mxu0 %v2509
    %2556 = vmatpush2.msra.mxu0 %v2508
    %2557 = vmatprep.subr.mxu0 %v2507
    %2558 = vmatpush2.msra.mxu0 %v2506
    %2559 = vmatprep.subr.mxu0 %v2505
    %2560 = vmatpush2.msra.mxu0 %v2504
    %2561 = vmatprep.subr.mxu0 %v2503
    %2562 = vmatpush2.msra.mxu0 %v2502
    %2563 = vmatprep.subr.mxu0 %v2501
    %2564 = vmatpush2.msra.mxu0 %v2500
    %2565 = vmatprep.subr.mxu0 %v2499
    %2566 = vmatpush2.msra.mxu0 %v2498
    %2567 = vmatprep.subr.mxu0 %v2497
    %2568 = vmatpush2.msra.mxu0 %v2496
    %2569 = vmatprep.subr.mxu0 %v2495
    %2570 = vmatpush2.msra.mxu0 %v2494
    %2571 = vmatprep.subr.mxu0 %v2493
    %2572 = vmatpush2.msra.mxu0 %v2492
    %2573 = vmatprep.subr.mxu0 %v2491
    %2574 = vmatpush2.msra.mxu0 %v2490
    %2575 = vmatprep.subr.mxu0 %v2489
    %2576 = vmatpush2.msra.mxu0 %v2488
    %2577 = vmatprep.subr.mxu0 %v2487
    %2578 = vmatpush2.msra.mxu0 %v2486
    %2579 = vmatprep.subr.mxu0 %v2485
    %2580 = vmatpush2.msra.mxu0 %v2484
    %2581 = vmatprep.subr.mxu0 %v2483
    %2582 = vmatpush2.msra.mxu0 %v2482
    %2583 = vmatprep.subr.mxu0 %v2481
    %2584 = vmatpush2.msra.mxu0 %v2480
    %2585 = vmatprep.subr.mxu0 %v2479
    %2586 = vmatpush2.msra.mxu0 %v2478
    %2587 = vmatprep.mubr.f32.mxu0 %v1199
    %2588 = vmatmul.mubr.f32.gmra.mxu0 %v1198
    %v2589 = vpop.f32.mrf.mxu0
    %v2590 = vadd.f32 %v2516, %v2589
    %v2591 = vpop.f32.mrf.mxu0
    %v2592 = vadd.f32 %v2520, %v2591
    %2593 = vdwg.mxu0
    %v2594 = vmax.f32 %v2590, 0.0
    %v2595 = vmax.f32 %v2592, 0.0
    %v2596 = vsel %vm641, %v2594, 0.0
    %v2597 = vrot.slane %v2596, 4
    %v2598 = vadd.f32 %v2596, %v2597
    %v2599 = vrot.slane %v2598, 2
    %v2600 = vadd.f32 %v2598, %v2599
    %v2601 = vrot.slane %v2600, 1
    %v2602 = vadd.f32 %v2600, %v2601
    %v2603 = vsel %vm641, %v2595, 0.0
    %v2604 = vrot.slane %v2603, 4
    %v2605 = vadd.f32 %v2603, %v2604
    %v2606 = vrot.slane %v2605, 2
    %v2607 = vadd.f32 %v2605, %v2606
    %v2608 = vrot.slane %v2607, 1
    %v2609 = vadd.f32 %v2607, %v2608
    %v2610 = vmul.f32 %v2602, %v656
    %v2611 = vmul.f32 %v2609, %v656
    %v2612 = vsub.f32 %v2594, %v2610
    %v2613 = vsub.f32 %v2595, %v2611
    %v2614 = vmul.f32 %v2612, %v2612
    %v2615 = vmul.f32 %v2613, %v2613
    %v2616 = vsel %vm641, %v2614, 0.0
    %v2617 = vrot.slane %v2616, 4
    %v2618 = vadd.f32 %v2616, %v2617
    %v2619 = vrot.slane %v2618, 2
    %v2620 = vadd.f32 %v2618, %v2619
    %v2621 = vrot.slane %v2620, 1
    %v2622 = vadd.f32 %v2620, %v2621
    %v2623 = vsel %vm641, %v2615, 0.0
    %v2624 = vrot.slane %v2623, 4
    %v2625 = vadd.f32 %v2623, %v2624
    %v2626 = vrot.slane %v2625, 2
    %v2627 = vadd.f32 %v2625, %v2626
    %v2628 = vrot.slane %v2627, 1
    %v2629 = vadd.f32 %v2627, %v2628
    %v2630 = vmul.f32 %v2622, %v656
    %v2631 = vmul.f32 %v2629, %v656
    %v2632 = vadd.f32 %v2630, 0.2
    %v2633 = vadd.f32 %v2631, 0.2
    %v2634 = vrsqrt.pop %v2632
    %v2635 = vrsqrt.pop %v2633
    %v2636 = vmul.f32 %v2612, %v2634
    %v2637 = vmul.f32 %v2613, %v2635
    %s2638 = scalar_lea.vmem %s5, 24
    %v2639 = vld [vmem:[%s2638] sm:$0xf]
    %v2642 = vunpack.c.l.s4 1983009808
    %v2643 = vunpack.c.0.s8 %v2642
    %v2644 = vlaneseq
    %v2645 = vshrl.u32 %v2644, 7
    %v2646 = vsub.s32 %v2643, %v2645
    %v2647 = vrot.slane %v2639, %v2646
    %v2648 = vcombine.high %v2647, %v2647
    %v2651 = vmul.f32 %v2636, %v2647
    %v2652 = vmul.f32 %v2637, %v2648
    %s2653 = scalar_lea.vmem [#allocation10], 3584
    %v2654 = vld [vmem:[%s2653] sm:$0xff]
    %v2655 = vld [vmem:[%s2653 + $0x8] sm:$0xff]
    %v2656 = vld [vmem:[%s2653 + $0x10] sm:$0xff]
    %v2657 = vld [vmem:[%s2653 + $0x18] sm:$0xff]
    %v2658 = vld [vmem:[%s2653 + $0x20] sm:$0xff]
    %v2659 = vld [vmem:[%s2653 + $0x28] sm:$0xff]
    %v2660 = vld [vmem:[%s2653 + $0x30] sm:$0xff]
    %v2661 = vld [vmem:[%s2653 + $0x38] sm:$0xff]
    %v2662 = vld [vmem:[%s2653 + $0x40] sm:$0xff]
    %v2663 = vld [vmem:[%s2653 + $0x48] sm:$0xff]
    %v2664 = vld [vmem:[%s2653 + $0x50] sm:$0xff]
    %v2665 = vld [vmem:[%s2653 + $0x58] sm:$0xff]
    %v2666 = vld [vmem:[%s2653 + $0x60] sm:$0xff]
    %v2667 = vld [vmem:[%s2653 + $0x68] sm:$0xff]
    %v2668 = vld [vmem:[%s2653 + $0x70] sm:$0xff]
    %v2669 = vld [vmem:[%s2653 + $0x78] sm:$0xff]
    %v2670 = vld [vmem:[%s2653 + $0x80] sm:$0xff]
    %v2671 = vld [vmem:[%s2653 + $0x88] sm:$0xff]
    %v2672 = vld [vmem:[%s2653 + $0x90] sm:$0xff]
    %v2673 = vld [vmem:[%s2653 + $0x98] sm:$0xff]
    %v2674 = vld [vmem:[%s2653 + $0xa0] sm:$0xff]
    %v2675 = vld [vmem:[%s2653 + $0xa8] sm:$0xff]
    %v2676 = vld [vmem:[%s2653 + $0xb0] sm:$0xff]
    %v2677 = vld [vmem:[%s2653 + $0xb8] sm:$0xff]
    %v2678 = vld [vmem:[%s2653 + $0xc0] sm:$0xff]
    %v2679 = vld [vmem:[%s2653 + $0xc8] sm:$0xff]
    %v2680 = vld [vmem:[%s2653 + $0xd0] sm:$0xff]
    %v2681 = vld [vmem:[%s2653 + $0xd8] sm:$0xff]
    %v2682 = vld [vmem:[%s2653 + $0xe0] sm:$0xff]
    %v2683 = vld [vmem:[%s2653 + $0xe8] sm:$0xff]
    %v2684 = vld [vmem:[%s2653 + $0xf0] sm:$0xff]
    %v2685 = vld [vmem:[%s2653 + $0xf8] sm:$0xff]
    %v2686 = vld [vmem:[%s2653 + $0x100] sm:$0xff]
    %v2687 = vld [vmem:[%s2653 + $0x108] sm:$0xff]
    %v2688 = vld [vmem:[%s2653 + $0x110] sm:$0xff]
    %v2689 = vld [vmem:[%s2653 + $0x118] sm:$0xff]
    %v2690 = vld [vmem:[%s2653 + $0x120] sm:$0xff]
    %v2691 = vld [vmem:[%s2653 + $0x128] sm:$0xff]
    %v2692 = vld [vmem:[%s2653 + $0x130] sm:$0xff]
    %v2693 = vld [vmem:[%s2653 + $0x138] sm:$0xff]
    %v2694 = vld [vmem:[%s2653 + $0x140] sm:$0xff]
    %v2695 = vld [vmem:[%s2653 + $0x148] sm:$0xff]
    %v2696 = vld [vmem:[%s2653 + $0x150] sm:$0xff]
    %v2697 = vld [vmem:[%s2653 + $0x158] sm:$0xff]
    %v2698 = vld [vmem:[%s2653 + $0x160] sm:$0xff]
    %v2699 = vld [vmem:[%s2653 + $0x168] sm:$0xff]
    %v2700 = vld [vmem:[%s2653 + $0x170] sm:$0xff]
    %v2701 = vld [vmem:[%s2653 + $0x178] sm:$0xff]
    %v2702 = vld [vmem:[%s2653 + $0x180] sm:$0xff]
    %v2703 = vld [vmem:[%s2653 + $0x188] sm:$0xff]
    %v2704 = vld [vmem:[%s2653 + $0x190] sm:$0xff]
    %v2705 = vld [vmem:[%s2653 + $0x198] sm:$0xff]
    %v2706 = vld [vmem:[%s2653 + $0x1a0] sm:$0xff]
    %v2707 = vld [vmem:[%s2653 + $0x1a8] sm:$0xff]
    %v2708 = vld [vmem:[%s2653 + $0x1b0] sm:$0xff]
    %v2709 = vld [vmem:[%s2653 + $0x1b8] sm:$0xff]
    %v2710 = vld [vmem:[%s2653 + $0x1c0] sm:$0xff]
    %v2711 = vld [vmem:[%s2653 + $0x1c8] sm:$0xff]
    %v2712 = vld [vmem:[%s2653 + $0x1d0] sm:$0xff]
    %v2713 = vld [vmem:[%s2653 + $0x1d8] sm:$0xff]
    %v2714 = vld [vmem:[%s2653 + $0x1e0] sm:$0xff]
    %v2715 = vld [vmem:[%s2653 + $0x1e8] sm:$0xff]
    %v2716 = vld [vmem:[%s2653 + $0x1f0] sm:$0xff]
    %v2717 = vld [vmem:[%s2653 + $0x1f8] sm:$0xff]
    %s2718 = scalar_lea.vmem [#allocation11], 14
    %v2719 = vld [vmem:[%s2718] sm:$0x3]
    %v2721 = vlaneseq
    %v2722 = vshrl.u32 %v2721, 7
    %v2723 = vsub.s32 0, %v2722
    %v2724 = vrot.slane %v2719, %v2723
    %v2725 = vlaneseq
    %v2726 = vshrl.u32 %v2725, 7
    %v2727 = vsub.s32 1, %v2726
    %v2728 = vrot.slane %v2719, %v2727
    %2731 = vmatprep.subr.mxu0 %v2685
    %2732 = vmatpush1.msra.mxu0 %v2684
    %2733 = vmatprep.subr.mxu0 %v2683
    %2734 = vmatpush1.msra.mxu0 %v2682
    %2735 = vmatprep.subr.mxu0 %v2681
    %2736 = vmatpush1.msra.mxu0 %v2680
    %2737 = vmatprep.subr.mxu0 %v2679
    %2738 = vmatpush1.msra.mxu0 %v2678
    %2739 = vmatprep.subr.mxu0 %v2677
    %2740 = vmatpush1.msra.mxu0 %v2676
    %2741 = vmatprep.subr.mxu0 %v2675
    %2742 = vmatpush1.msra.mxu0 %v2674
    %2743 = vmatprep.subr.mxu0 %v2673
    %2744 = vmatpush1.msra.mxu0 %v2672
    %2745 = vmatprep.subr.mxu0 %v2671
    %2746 = vmatpush1.msra.mxu0 %v2670
    %2747 = vmatprep.subr.mxu0 %v2669
    %2748 = vmatpush1.msra.mxu0 %v2668
    %2749 = vmatprep.subr.mxu0 %v2667
    %2750 = vmatpush1.msra.mxu0 %v2666
    %2751 = vmatprep.subr.mxu0 %v2665
    %2752 = vmatpush1.msra.mxu0 %v2664
    %2753 = vmatprep.subr.mxu0 %v2663
    %2754 = vmatpush1.msra.mxu0 %v2662
    %2755 = vmatprep.subr.mxu0 %v2661
    %2756 = vmatpush1.msra.mxu0 %v2660
    %2757 = vmatprep.subr.mxu0 %v2659
    %2758 = vmatpush1.msra.mxu0 %v2658
    %2759 = vmatprep.subr.mxu0 %v2657
    %2760 = vmatpush1.msra.mxu0 %v2656
    %2761 = vmatprep.subr.mxu0 %v2655
    %2762 = vmatpush1.msra.mxu0 %v2654
    %2763 = vmatprep.subr.mxu0 %v2717
    %2764 = vmatpush2.msra.mxu0 %v2716
    %2765 = vmatprep.subr.mxu0 %v2715
    %2766 = vmatpush2.msra.mxu0 %v2714
    %2767 = vmatprep.subr.mxu0 %v2713
    %2768 = vmatpush2.msra.mxu0 %v2712
    %2769 = vmatprep.subr.mxu0 %v2711
    %2770 = vmatpush2.msra.mxu0 %v2710
    %2771 = vmatprep.subr.mxu0 %v2709
    %2772 = vmatpush2.msra.mxu0 %v2708
    %2773 = vmatprep.subr.mxu0 %v2707
    %2774 = vmatpush2.msra.mxu0 %v2706
    %2775 = vmatprep.subr.mxu0 %v2705
    %2776 = vmatpush2.msra.mxu0 %v2704
    %2777 = vmatprep.subr.mxu0 %v2703
    %2778 = vmatpush2.msra.mxu0 %v2702
    %2779 = vmatprep.subr.mxu0 %v2701
    %2780 = vmatpush2.msra.mxu0 %v2700
    %2781 = vmatprep.subr.mxu0 %v2699
    %2782 = vmatpush2.msra.mxu0 %v2698
    %2783 = vmatprep.subr.mxu0 %v2697
    %2784 = vmatpush2.msra.mxu0 %v2696
    %2785 = vmatprep.subr.mxu0 %v2695
    %2786 = vmatpush2.msra.mxu0 %v2694
    %2787 = vmatprep.subr.mxu0 %v2693
    %2788 = vmatpush2.msra.mxu0 %v2692
    %2789 = vmatprep.subr.mxu0 %v2691
    %2790 = vmatpush2.msra.mxu0 %v2690
    %2791 = vmatprep.subr.mxu0 %v2689
    %2792 = vmatpush2.msra.mxu0 %v2688
    %2793 = vmatprep.subr.mxu0 %v2687
    %2794 = vmatpush2.msra.mxu0 %v2686
    %2795 = vmatprep.mubr.f32.mxu0 %v1199
    %2796 = vmatmul.mubr.f32.gmra.mxu0 %v1198
    %v2797 = vpop.f32.mrf.mxu0
    %v2798 = vadd.f32 %v2724, %v2797
    %v2799 = vpop.f32.mrf.mxu0
    %v2800 = vadd.f32 %v2728, %v2799
    %2801 = vdwg.mxu0
    %v2802 = vmax.f32 %v2798, 0.0
    %v2803 = vmax.f32 %v2800, 0.0
    %v2804 = vsel %vm641, %v2802, 0.0
    %v2805 = vrot.slane %v2804, 4
    %v2806 = vadd.f32 %v2804, %v2805
    %v2807 = vrot.slane %v2806, 2
    %v2808 = vadd.f32 %v2806, %v2807
    %v2809 = vrot.slane %v2808, 1
    %v2810 = vadd.f32 %v2808, %v2809
    %v2811 = vsel %vm641, %v2803, 0.0
    %v2812 = vrot.slane %v2811, 4
    %v2813 = vadd.f32 %v2811, %v2812
    %v2814 = vrot.slane %v2813, 2
    %v2815 = vadd.f32 %v2813, %v2814
    %v2816 = vrot.slane %v2815, 1
    %v2817 = vadd.f32 %v2815, %v2816
    %v2818 = vmul.f32 %v2810, %v656
    %v2819 = vmul.f32 %v2817, %v656
    %v2820 = vsub.f32 %v2802, %v2818
    %v2821 = vsub.f32 %v2803, %v2819
    %v2822 = vmul.f32 %v2820, %v2820
    %v2823 = vmul.f32 %v2821, %v2821
    %v2824 = vsel %vm641, %v2822, 0.0
    %v2825 = vrot.slane %v2824, 4
    %v2826 = vadd.f32 %v2824, %v2825
    %v2827 = vrot.slane %v2826, 2
    %v2828 = vadd.f32 %v2826, %v2827
    %v2829 = vrot.slane %v2828, 1
    %v2830 = vadd.f32 %v2828, %v2829
    %v2831 = vsel %vm641, %v2823, 0.0
    %v2832 = vrot.slane %v2831, 4
    %v2833 = vadd.f32 %v2831, %v2832
    %v2834 = vrot.slane %v2833, 2
    %v2835 = vadd.f32 %v2833, %v2834
    %v2836 = vrot.slane %v2835, 1
    %v2837 = vadd.f32 %v2835, %v2836
    %v2838 = vmul.f32 %v2830, %v656
    %v2839 = vmul.f32 %v2837, %v656
    %v2840 = vadd.f32 %v2838, 0.2
    %v2841 = vadd.f32 %v2839, 0.2
    %v2842 = vrsqrt.pop %v2840
    %v2843 = vrsqrt.pop %v2841
    %v2844 = vmul.f32 %v2820, %v2842
    %v2845 = vmul.f32 %v2821, %v2843
    %s2846 = scalar_lea.vmem %s5, 28
    %v2847 = vld [vmem:[%s2846] sm:$0xf]
    %v2850 = vunpack.c.l.s4 1983009808
    %v2851 = vunpack.c.0.s8 %v2850
    %v2852 = vlaneseq
    %v2853 = vshrl.u32 %v2852, 7
    %v2854 = vsub.s32 %v2851, %v2853
    %v2855 = vrot.slane %v2847, %v2854
    %v2856 = vcombine.high %v2855, %v2855
    %v2859 = vmul.f32 %v2844, %v2855
    %v2860 = vmul.f32 %v2845, %v2856
    %v2861 = vld [vmem:[#allocation13] sm:$0xff]
    %v2862 = vld [vmem:[#allocation13 + $0x8] sm:$0xff]
    %v2863 = vld [vmem:[#allocation13 + $0x10] sm:$0xff]
    %v2864 = vld [vmem:[#allocation13 + $0x18] sm:$0xff]
    %v2865 = vld [vmem:[#allocation13 + $0x20] sm:$0xff]
    %v2866 = vld [vmem:[#allocation13 + $0x28] sm:$0xff]
    %v2867 = vld [vmem:[#allocation13 + $0x30] sm:$0xff]
    %v2868 = vld [vmem:[#allocation13 + $0x38] sm:$0xff]
    %v2869 = vld [vmem:[#allocation13 + $0x40] sm:$0xff]
    %v2870 = vld [vmem:[#allocation13 + $0x48] sm:$0xff]
    %v2871 = vld [vmem:[#allocation13 + $0x50] sm:$0xff]
    %v2872 = vld [vmem:[#allocation13 + $0x58] sm:$0xff]
    %v2873 = vld [vmem:[#allocation13 + $0x60] sm:$0xff]
    %v2874 = vld [vmem:[#allocation13 + $0x68] sm:$0xff]
    %v2875 = vld [vmem:[#allocation13 + $0x70] sm:$0xff]
    %v2876 = vld [vmem:[#allocation13 + $0x78] sm:$0xff]
    %v2877 = vld [vmem:[#allocation13 + $0x80] sm:$0xff]
    %v2878 = vld [vmem:[#allocation13 + $0x88] sm:$0xff]
    %v2879 = vld [vmem:[#allocation13 + $0x90] sm:$0xff]
    %v2880 = vld [vmem:[#allocation13 + $0x98] sm:$0xff]
    %v2881 = vld [vmem:[#allocation13 + $0xa0] sm:$0xff]
    %v2882 = vld [vmem:[#allocation13 + $0xa8] sm:$0xff]
    %v2883 = vld [vmem:[#allocation13 + $0xb0] sm:$0xff]
    %v2884 = vld [vmem:[#allocation13 + $0xb8] sm:$0xff]
    %v2885 = vld [vmem:[#allocation13 + $0xc0] sm:$0xff]
    %v2886 = vld [vmem:[#allocation13 + $0xc8] sm:$0xff]
    %v2887 = vld [vmem:[#allocation13 + $0xd0] sm:$0xff]
    %v2888 = vld [vmem:[#allocation13 + $0xd8] sm:$0xff]
    %v2889 = vld [vmem:[#allocation13 + $0xe0] sm:$0xff]
    %v2890 = vld [vmem:[#allocation13 + $0xe8] sm:$0xff]
    %v2891 = vld [vmem:[#allocation13 + $0xf0] sm:$0xff]
    %v2892 = vld [vmem:[#allocation13 + $0xf8] sm:$0xff]
    %v2893 = vld [vmem:[#allocation13 + $0x100] sm:$0xff]
    %v2894 = vld [vmem:[#allocation13 + $0x108] sm:$0xff]
    %v2895 = vld [vmem:[#allocation13 + $0x110] sm:$0xff]
    %v2896 = vld [vmem:[#allocation13 + $0x118] sm:$0xff]
    %v2897 = vld [vmem:[#allocation13 + $0x120] sm:$0xff]
    %v2898 = vld [vmem:[#allocation13 + $0x128] sm:$0xff]
    %v2899 = vld [vmem:[#allocation13 + $0x130] sm:$0xff]
    %v2900 = vld [vmem:[#allocation13 + $0x138] sm:$0xff]
    %v2901 = vld [vmem:[#allocation13 + $0x140] sm:$0xff]
    %v2902 = vld [vmem:[#allocation13 + $0x148] sm:$0xff]
    %v2903 = vld [vmem:[#allocation13 + $0x150] sm:$0xff]
    %v2904 = vld [vmem:[#allocation13 + $0x158] sm:$0xff]
    %v2905 = vld [vmem:[#allocation13 + $0x160] sm:$0xff]
    %v2906 = vld [vmem:[#allocation13 + $0x168] sm:$0xff]
    %v2907 = vld [vmem:[#allocation13 + $0x170] sm:$0xff]
    %v2908 = vld [vmem:[#allocation13 + $0x178] sm:$0xff]
    %v2909 = vld [vmem:[#allocation13 + $0x180] sm:$0xff]
    %v2910 = vld [vmem:[#allocation13 + $0x188] sm:$0xff]
    %v2911 = vld [vmem:[#allocation13 + $0x190] sm:$0xff]
    %v2912 = vld [vmem:[#allocation13 + $0x198] sm:$0xff]
    %v2913 = vld [vmem:[#allocation13 + $0x1a0] sm:$0xff]
    %v2914 = vld [vmem:[#allocation13 + $0x1a8] sm:$0xff]
    %v2915 = vld [vmem:[#allocation13 + $0x1b0] sm:$0xff]
    %v2916 = vld [vmem:[#allocation13 + $0x1b8] sm:$0xff]
    %v2917 = vld [vmem:[#allocation13 + $0x1c0] sm:$0xff]
    %v2918 = vld [vmem:[#allocation13 + $0x1c8] sm:$0xff]
    %v2919 = vld [vmem:[#allocation13 + $0x1d0] sm:$0xff]
    %v2920 = vld [vmem:[#allocation13 + $0x1d8] sm:$0xff]
    %v2921 = vld [vmem:[#allocation13 + $0x1e0] sm:$0xff]
    %v2922 = vld [vmem:[#allocation13 + $0x1e8] sm:$0xff]
    %v2923 = vld [vmem:[#allocation13 + $0x1f0] sm:$0xff]
    %v2924 = vld [vmem:[#allocation13 + $0x1f8] sm:$0xff]
    %v2925 = vld [vmem:[#allocation13 + $0x200] sm:$0xff]
    %v2926 = vld [vmem:[#allocation13 + $0x208] sm:$0xff]
    %v2927 = vld [vmem:[#allocation13 + $0x210] sm:$0xff]
    %v2928 = vld [vmem:[#allocation13 + $0x218] sm:$0xff]
    %v2929 = vld [vmem:[#allocation13 + $0x220] sm:$0xff]
    %v2930 = vld [vmem:[#allocation13 + $0x228] sm:$0xff]
    %v2931 = vld [vmem:[#allocation13 + $0x230] sm:$0xff]
    %v2932 = vld [vmem:[#allocation13 + $0x238] sm:$0xff]
    %v2933 = vld [vmem:[#allocation13 + $0x240] sm:$0xff]
    %v2934 = vld [vmem:[#allocation13 + $0x248] sm:$0xff]
    %v2935 = vld [vmem:[#allocation13 + $0x250] sm:$0xff]
    %v2936 = vld [vmem:[#allocation13 + $0x258] sm:$0xff]
    %v2937 = vld [vmem:[#allocation13 + $0x260] sm:$0xff]
    %v2938 = vld [vmem:[#allocation13 + $0x268] sm:$0xff]
    %v2939 = vld [vmem:[#allocation13 + $0x270] sm:$0xff]
    %v2940 = vld [vmem:[#allocation13 + $0x278] sm:$0xff]
    %v2941 = vld [vmem:[#allocation13 + $0x280] sm:$0xff]
    %v2942 = vld [vmem:[#allocation13 + $0x288] sm:$0xff]
    %v2943 = vld [vmem:[#allocation13 + $0x290] sm:$0xff]
    %v2944 = vld [vmem:[#allocation13 + $0x298] sm:$0xff]
    %v2945 = vld [vmem:[#allocation13 + $0x2a0] sm:$0xff]
    %v2946 = vld [vmem:[#allocation13 + $0x2a8] sm:$0xff]
    %v2947 = vld [vmem:[#allocation13 + $0x2b0] sm:$0xff]
    %v2948 = vld [vmem:[#allocation13 + $0x2b8] sm:$0xff]
    %v2949 = vld [vmem:[#allocation13 + $0x2c0] sm:$0xff]
    %v2950 = vld [vmem:[#allocation13 + $0x2c8] sm:$0xff]
    %v2951 = vld [vmem:[#allocation13 + $0x2d0] sm:$0xff]
    %v2952 = vld [vmem:[#allocation13 + $0x2d8] sm:$0xff]
    %v2953 = vld [vmem:[#allocation13 + $0x2e0] sm:$0xff]
    %v2954 = vld [vmem:[#allocation13 + $0x2e8] sm:$0xff]
    %v2955 = vld [vmem:[#allocation13 + $0x2f0] sm:$0xff]
    %v2956 = vld [vmem:[#allocation13 + $0x2f8] sm:$0xff]
    %v2957 = vld [vmem:[#allocation13 + $0x300] sm:$0xff]
    %v2958 = vld [vmem:[#allocation13 + $0x308] sm:$0xff]
    %v2959 = vld [vmem:[#allocation13 + $0x310] sm:$0xff]
    %v2960 = vld [vmem:[#allocation13 + $0x318] sm:$0xff]
    %v2961 = vld [vmem:[#allocation13 + $0x320] sm:$0xff]
    %v2962 = vld [vmem:[#allocation13 + $0x328] sm:$0xff]
    %v2963 = vld [vmem:[#allocation13 + $0x330] sm:$0xff]
    %v2964 = vld [vmem:[#allocation13 + $0x338] sm:$0xff]
    %v2965 = vld [vmem:[#allocation13 + $0x340] sm:$0xff]
    %v2966 = vld [vmem:[#allocation13 + $0x348] sm:$0xff]
    %v2967 = vld [vmem:[#allocation13 + $0x350] sm:$0xff]
    %v2968 = vld [vmem:[#allocation13 + $0x358] sm:$0xff]
    %v2969 = vld [vmem:[#allocation13 + $0x360] sm:$0xff]
    %v2970 = vld [vmem:[#allocation13 + $0x368] sm:$0xff]
    %v2971 = vld [vmem:[#allocation13 + $0x370] sm:$0xff]
    %v2972 = vld [vmem:[#allocation13 + $0x378] sm:$0xff]
    %v2973 = vld [vmem:[#allocation13 + $0x380] sm:$0xff]
    %v2974 = vld [vmem:[#allocation13 + $0x388] sm:$0xff]
    %v2975 = vld [vmem:[#allocation13 + $0x390] sm:$0xff]
    %v2976 = vld [vmem:[#allocation13 + $0x398] sm:$0xff]
    %v2977 = vld [vmem:[#allocation13 + $0x3a0] sm:$0xff]
    %v2978 = vld [vmem:[#allocation13 + $0x3a8] sm:$0xff]
    %v2979 = vld [vmem:[#allocation13 + $0x3b0] sm:$0xff]
    %v2980 = vld [vmem:[#allocation13 + $0x3b8] sm:$0xff]
    %v2981 = vld [vmem:[#allocation13 + $0x3c0] sm:$0xff]
    %v2982 = vld [vmem:[#allocation13 + $0x3c8] sm:$0xff]
    %v2983 = vld [vmem:[#allocation13 + $0x3d0] sm:$0xff]
    %v2984 = vld [vmem:[#allocation13 + $0x3d8] sm:$0xff]
    %v2985 = vld [vmem:[#allocation13 + $0x3e0] sm:$0xff]
    %v2986 = vld [vmem:[#allocation13 + $0x3e8] sm:$0xff]
    %v2987 = vld [vmem:[#allocation13 + $0x3f0] sm:$0xff]
    %v2988 = vld [vmem:[#allocation13 + $0x3f8] sm:$0xff]
    %v2989 = vld [vmem:[#allocation14] sm:$0x3]
    %v2991 = vlaneseq
    %v2992 = vshrl.u32 %v2991, 7
    %v2993 = vsub.s32 0, %v2992
    %v2994 = vrot.slane %v2989, %v2993
    %v2995 = vlaneseq
    %v2996 = vshrl.u32 %v2995, 7
    %v2997 = vsub.s32 1, %v2996
    %v2998 = vrot.slane %v2989, %v2997
    %3001 = vmatprep.subr.mxu0 %v2892
    %3002 = vmatpush1.msra.mxu0 %v2891
    %3003 = vmatprep.subr.mxu0 %v2890
    %3004 = vmatpush1.msra.mxu0 %v2889
    %3005 = vmatprep.subr.mxu0 %v2888
    %3006 = vmatpush1.msra.mxu0 %v2887
    %3007 = vmatprep.subr.mxu0 %v2886
    %3008 = vmatpush1.msra.mxu0 %v2885
    %3009 = vmatprep.subr.mxu0 %v2884
    %3010 = vmatpush1.msra.mxu0 %v2883
    %3011 = vmatprep.subr.mxu0 %v2882
    %3012 = vmatpush1.msra.mxu0 %v2881
    %3013 = vmatprep.subr.mxu0 %v2880
    %3014 = vmatpush1.msra.mxu0 %v2879
    %3015 = vmatprep.subr.mxu0 %v2878
    %3016 = vmatpush1.msra.mxu0 %v2877
    %3017 = vmatprep.subr.mxu0 %v2876
    %3018 = vmatpush1.msra.mxu0 %v2875
    %3019 = vmatprep.subr.mxu0 %v2874
    %3020 = vmatpush1.msra.mxu0 %v2873
    %3021 = vmatprep.subr.mxu0 %v2872
    %3022 = vmatpush1.msra.mxu0 %v2871
    %3023 = vmatprep.subr.mxu0 %v2870
    %3024 = vmatpush1.msra.mxu0 %v2869
    %3025 = vmatprep.subr.mxu0 %v2868
    %3026 = vmatpush1.msra.mxu0 %v2867
    %3027 = vmatprep.subr.mxu0 %v2866
    %3028 = vmatpush1.msra.mxu0 %v2865
    %3029 = vmatprep.subr.mxu0 %v2864
    %3030 = vmatpush1.msra.mxu0 %v2863
    %3031 = vmatprep.subr.mxu0 %v2862
    %3032 = vmatpush1.msra.mxu0 %v2861
    %3033 = vmatprep.subr.mxu0 %v2924
    %3034 = vmatpush2.msra.mxu0 %v2923
    %3035 = vmatprep.subr.mxu0 %v2922
    %3036 = vmatpush2.msra.mxu0 %v2921
    %3037 = vmatprep.subr.mxu0 %v2920
    %3038 = vmatpush2.msra.mxu0 %v2919
    %3039 = vmatprep.subr.mxu0 %v2918
    %3040 = vmatpush2.msra.mxu0 %v2917
    %3041 = vmatprep.subr.mxu0 %v2916
    %3042 = vmatpush2.msra.mxu0 %v2915
    %3043 = vmatprep.subr.mxu0 %v2914
    %3044 = vmatpush2.msra.mxu0 %v2913
    %3045 = vmatprep.subr.mxu0 %v2912
    %3046 = vmatpush2.msra.mxu0 %v2911
    %3047 = vmatprep.subr.mxu0 %v2910
    %3048 = vmatpush2.msra.mxu0 %v2909
    %3049 = vmatprep.subr.mxu0 %v2908
    %3050 = vmatpush2.msra.mxu0 %v2907
    %3051 = vmatprep.subr.mxu0 %v2906
    %3052 = vmatpush2.msra.mxu0 %v2905
    %3053 = vmatprep.subr.mxu0 %v2904
    %3054 = vmatpush2.msra.mxu0 %v2903
    %3055 = vmatprep.subr.mxu0 %v2902
    %3056 = vmatpush2.msra.mxu0 %v2901
    %3057 = vmatprep.subr.mxu0 %v2900
    %3058 = vmatpush2.msra.mxu0 %v2899
    %3059 = vmatprep.subr.mxu0 %v2898
    %3060 = vmatpush2.msra.mxu0 %v2897
    %3061 = vmatprep.subr.mxu0 %v2896
    %3062 = vmatpush2.msra.mxu0 %v2895
    %3063 = vmatprep.subr.mxu0 %v2894
    %3064 = vmatpush2.msra.mxu0 %v2893
    %3065 = vmatprep.mubr.f32.mxu0 %v1404
    %3066 = vmatmul.mubr.f32.gmra.mxu0 %v1403
    %v3067 = vpop.f32.mrf.mxu0
    %v3068 = vadd.f32 %v2994, %v3067
    %v3069 = vpop.f32.mrf.mxu0
    %v3070 = vadd.f32 %v2998, %v3069
    %3071 = vdwg.mxu0
    %3072 = vmatprep.subr.mxu0 %v2956
    %3073 = vmatpush1.msra.mxu0 %v2955
    %3074 = vmatprep.subr.mxu0 %v2954
    %3075 = vmatpush1.msra.mxu0 %v2953
    %3076 = vmatprep.subr.mxu0 %v2952
    %3077 = vmatpush1.msra.mxu0 %v2951
    %3078 = vmatprep.subr.mxu0 %v2950
    %3079 = vmatpush1.msra.mxu0 %v2949
    %3080 = vmatprep.subr.mxu0 %v2948
    %3081 = vmatpush1.msra.mxu0 %v2947
    %3082 = vmatprep.subr.mxu0 %v2946
    %3083 = vmatpush1.msra.mxu0 %v2945
    %3084 = vmatprep.subr.mxu0 %v2944
    %3085 = vmatpush1.msra.mxu0 %v2943
    %3086 = vmatprep.subr.mxu0 %v2942
    %3087 = vmatpush1.msra.mxu0 %v2941
    %3088 = vmatprep.subr.mxu0 %v2940
    %3089 = vmatpush1.msra.mxu0 %v2939
    %3090 = vmatprep.subr.mxu0 %v2938
    %3091 = vmatpush1.msra.mxu0 %v2937
    %3092 = vmatprep.subr.mxu0 %v2936
    %3093 = vmatpush1.msra.mxu0 %v2935
    %3094 = vmatprep.subr.mxu0 %v2934
    %3095 = vmatpush1.msra.mxu0 %v2933
    %3096 = vmatprep.subr.mxu0 %v2932
    %3097 = vmatpush1.msra.mxu0 %v2931
    %3098 = vmatprep.subr.mxu0 %v2930
    %3099 = vmatpush1.msra.mxu0 %v2929
    %3100 = vmatprep.subr.mxu0 %v2928
    %3101 = vmatpush1.msra.mxu0 %v2927
    %3102 = vmatprep.subr.mxu0 %v2926
    %3103 = vmatpush1.msra.mxu0 %v2925
    %3104 = vmatprep.subr.mxu0 %v2988
    %3105 = vmatpush2.msra.mxu0 %v2987
    %3106 = vmatprep.subr.mxu0 %v2986
    %3107 = vmatpush2.msra.mxu0 %v2985
    %3108 = vmatprep.subr.mxu0 %v2984
    %3109 = vmatpush2.msra.mxu0 %v2983
    %3110 = vmatprep.subr.mxu0 %v2982
    %3111 = vmatpush2.msra.mxu0 %v2981
    %3112 = vmatprep.subr.mxu0 %v2980
    %3113 = vmatpush2.msra.mxu0 %v2979
    %3114 = vmatprep.subr.mxu0 %v2978
    %3115 = vmatpush2.msra.mxu0 %v2977
    %3116 = vmatprep.subr.mxu0 %v2976
    %3117 = vmatpush2.msra.mxu0 %v2975
    %3118 = vmatprep.subr.mxu0 %v2974
    %3119 = vmatpush2.msra.mxu0 %v2973
    %3120 = vmatprep.subr.mxu0 %v2972
    %3121 = vmatpush2.msra.mxu0 %v2971
    %3122 = vmatprep.subr.mxu0 %v2970
    %3123 = vmatpush2.msra.mxu0 %v2969
    %3124 = vmatprep.subr.mxu0 %v2968
    %3125 = vmatpush2.msra.mxu0 %v2967
    %3126 = vmatprep.subr.mxu0 %v2966
    %3127 = vmatpush2.msra.mxu0 %v2965
    %3128 = vmatprep.subr.mxu0 %v2964
    %3129 = vmatpush2.msra.mxu0 %v2963
    %3130 = vmatprep.subr.mxu0 %v2962
    %3131 = vmatpush2.msra.mxu0 %v2961
    %3132 = vmatprep.subr.mxu0 %v2960
    %3133 = vmatpush2.msra.mxu0 %v2959
    %3134 = vmatprep.subr.mxu0 %v2958
    %3135 = vmatpush2.msra.mxu0 %v2957
    %3136 = vmatprep.mubr.f32.mxu0 %v2236
    %3137 = vmatmul.mubr.f32.gmra.mxu0 %v2235
    %v3138 = vpop.f32.mrf.mxu0
    %v3139 = vadd.f32 %v3068, %v3138
    %v3140 = vpop.f32.mrf.mxu0
    %v3141 = vadd.f32 %v3070, %v3140
    %3142 = vdwg.mxu0
    %v3143 = vmax.f32 %v3139, 0.0
    %v3144 = vmax.f32 %v3141, 0.0
    %v3145 = vsel %vm641, %v3143, 0.0
    %v3146 = vrot.slane %v3145, 4
    %v3147 = vadd.f32 %v3145, %v3146
    %v3148 = vrot.slane %v3147, 2
    %v3149 = vadd.f32 %v3147, %v3148
    %v3150 = vrot.slane %v3149, 1
    %v3151 = vadd.f32 %v3149, %v3150
    %v3152 = vsel %vm641, %v3144, 0.0
    %v3153 = vrot.slane %v3152, 4
    %v3154 = vadd.f32 %v3152, %v3153
    %v3155 = vrot.slane %v3154, 2
    %v3156 = vadd.f32 %v3154, %v3155
    %v3157 = vrot.slane %v3156, 1
    %v3158 = vadd.f32 %v3156, %v3157
    %v3159 = vmul.f32 %v3151, %v656
    %v3160 = vmul.f32 %v3158, %v656
    %v3161 = vsub.f32 %v3143, %v3159
    %v3162 = vsub.f32 %v3144, %v3160
    %v3163 = vmul.f32 %v3161, %v3161
    %v3164 = vmul.f32 %v3162, %v3162
    %v3165 = vsel %vm641, %v3163, 0.0
    %v3166 = vrot.slane %v3165, 4
    %v3167 = vadd.f32 %v3165, %v3166
    %v3168 = vrot.slane %v3167, 2
    %v3169 = vadd.f32 %v3167, %v3168
    %v3170 = vrot.slane %v3169, 1
    %v3171 = vadd.f32 %v3169, %v3170
    %v3172 = vsel %vm641, %v3164, 0.0
    %v3173 = vrot.slane %v3172, 4
    %v3174 = vadd.f32 %v3172, %v3173
    %v3175 = vrot.slane %v3174, 2
    %v3176 = vadd.f32 %v3174, %v3175
    %v3177 = vrot.slane %v3176, 1
    %v3178 = vadd.f32 %v3176, %v3177
    %v3179 = vmul.f32 %v3171, %v656
    %v3180 = vmul.f32 %v3178, %v656
    %v3181 = vadd.f32 %v3179, 0.2
    %v3182 = vadd.f32 %v3180, 0.2
    %v3183 = vrsqrt.pop %v3181
    %v3184 = vrsqrt.pop %v3182
    %v3185 = vmul.f32 %v3161, %v3183
    %v3186 = vmul.f32 %v3162, %v3184
    %s3187 = scalar_lea.vmem %s5, 32
    %v3188 = vld [vmem:[%s3187] sm:$0xf]
    %v3191 = vunpack.c.l.s4 1983009808
    %v3192 = vunpack.c.0.s8 %v3191
    %v3193 = vlaneseq
    %v3194 = vshrl.u32 %v3193, 7
    %v3195 = vsub.s32 %v3192, %v3194
    %v3196 = vrot.slane %v3188, %v3195
    %v3197 = vcombine.high %v3196, %v3196
    %v3200 = vmul.f32 %v3185, %v3196
    %v3201 = vmul.f32 %v3186, %v3197
    %s3202 = scalar_lea.vmem [#allocation13], 1024
    %v3203 = vld [vmem:[%s3202] sm:$0xff]
    %v3204 = vld [vmem:[%s3202 + $0x8] sm:$0xff]
    %v3205 = vld [vmem:[%s3202 + $0x10] sm:$0xff]
    %v3206 = vld [vmem:[%s3202 + $0x18] sm:$0xff]
    %v3207 = vld [vmem:[%s3202 + $0x20] sm:$0xff]
    %v3208 = vld [vmem:[%s3202 + $0x28] sm:$0xff]
    %v3209 = vld [vmem:[%s3202 + $0x30] sm:$0xff]
    %v3210 = vld [vmem:[%s3202 + $0x38] sm:$0xff]
    %v3211 = vld [vmem:[%s3202 + $0x40] sm:$0xff]
    %v3212 = vld [vmem:[%s3202 + $0x48] sm:$0xff]
    %v3213 = vld [vmem:[%s3202 + $0x50] sm:$0xff]
    %v3214 = vld [vmem:[%s3202 + $0x58] sm:$0xff]
    %v3215 = vld [vmem:[%s3202 + $0x60] sm:$0xff]
    %v3216 = vld [vmem:[%s3202 + $0x68] sm:$0xff]
    %v3217 = vld [vmem:[%s3202 + $0x70] sm:$0xff]
    %v3218 = vld [vmem:[%s3202 + $0x78] sm:$0xff]
    %v3219 = vld [vmem:[%s3202 + $0x80] sm:$0xff]
    %v3220 = vld [vmem:[%s3202 + $0x88] sm:$0xff]
    %v3221 = vld [vmem:[%s3202 + $0x90] sm:$0xff]
    %v3222 = vld [vmem:[%s3202 + $0x98] sm:$0xff]
    %v3223 = vld [vmem:[%s3202 + $0xa0] sm:$0xff]
    %v3224 = vld [vmem:[%s3202 + $0xa8] sm:$0xff]
    %v3225 = vld [vmem:[%s3202 + $0xb0] sm:$0xff]
    %v3226 = vld [vmem:[%s3202 + $0xb8] sm:$0xff]
    %v3227 = vld [vmem:[%s3202 + $0xc0] sm:$0xff]
    %v3228 = vld [vmem:[%s3202 + $0xc8] sm:$0xff]
    %v3229 = vld [vmem:[%s3202 + $0xd0] sm:$0xff]
    %v3230 = vld [vmem:[%s3202 + $0xd8] sm:$0xff]
    %v3231 = vld [vmem:[%s3202 + $0xe0] sm:$0xff]
    %v3232 = vld [vmem:[%s3202 + $0xe8] sm:$0xff]
    %v3233 = vld [vmem:[%s3202 + $0xf0] sm:$0xff]
    %v3234 = vld [vmem:[%s3202 + $0xf8] sm:$0xff]
    %v3235 = vld [vmem:[%s3202 + $0x100] sm:$0xff]
    %v3236 = vld [vmem:[%s3202 + $0x108] sm:$0xff]
    %v3237 = vld [vmem:[%s3202 + $0x110] sm:$0xff]
    %v3238 = vld [vmem:[%s3202 + $0x118] sm:$0xff]
    %v3239 = vld [vmem:[%s3202 + $0x120] sm:$0xff]
    %v3240 = vld [vmem:[%s3202 + $0x128] sm:$0xff]
    %v3241 = vld [vmem:[%s3202 + $0x130] sm:$0xff]
    %v3242 = vld [vmem:[%s3202 + $0x138] sm:$0xff]
    %v3243 = vld [vmem:[%s3202 + $0x140] sm:$0xff]
    %v3244 = vld [vmem:[%s3202 + $0x148] sm:$0xff]
    %v3245 = vld [vmem:[%s3202 + $0x150] sm:$0xff]
    %v3246 = vld [vmem:[%s3202 + $0x158] sm:$0xff]
    %v3247 = vld [vmem:[%s3202 + $0x160] sm:$0xff]
    %v3248 = vld [vmem:[%s3202 + $0x168] sm:$0xff]
    %v3249 = vld [vmem:[%s3202 + $0x170] sm:$0xff]
    %v3250 = vld [vmem:[%s3202 + $0x178] sm:$0xff]
    %v3251 = vld [vmem:[%s3202 + $0x180] sm:$0xff]
    %v3252 = vld [vmem:[%s3202 + $0x188] sm:$0xff]
    %v3253 = vld [vmem:[%s3202 + $0x190] sm:$0xff]
    %v3254 = vld [vmem:[%s3202 + $0x198] sm:$0xff]
    %v3255 = vld [vmem:[%s3202 + $0x1a0] sm:$0xff]
    %v3256 = vld [vmem:[%s3202 + $0x1a8] sm:$0xff]
    %v3257 = vld [vmem:[%s3202 + $0x1b0] sm:$0xff]
    %v3258 = vld [vmem:[%s3202 + $0x1b8] sm:$0xff]
    %v3259 = vld [vmem:[%s3202 + $0x1c0] sm:$0xff]
    %v3260 = vld [vmem:[%s3202 + $0x1c8] sm:$0xff]
    %v3261 = vld [vmem:[%s3202 + $0x1d0] sm:$0xff]
    %v3262 = vld [vmem:[%s3202 + $0x1d8] sm:$0xff]
    %v3263 = vld [vmem:[%s3202 + $0x1e0] sm:$0xff]
    %v3264 = vld [vmem:[%s3202 + $0x1e8] sm:$0xff]
    %v3265 = vld [vmem:[%s3202 + $0x1f0] sm:$0xff]
    %v3266 = vld [vmem:[%s3202 + $0x1f8] sm:$0xff]
    %v3267 = vld [vmem:[%s3202 + $0x200] sm:$0xff]
    %v3268 = vld [vmem:[%s3202 + $0x208] sm:$0xff]
    %v3269 = vld [vmem:[%s3202 + $0x210] sm:$0xff]
    %v3270 = vld [vmem:[%s3202 + $0x218] sm:$0xff]
    %v3271 = vld [vmem:[%s3202 + $0x220] sm:$0xff]
    %v3272 = vld [vmem:[%s3202 + $0x228] sm:$0xff]
    %v3273 = vld [vmem:[%s3202 + $0x230] sm:$0xff]
    %v3274 = vld [vmem:[%s3202 + $0x238] sm:$0xff]
    %v3275 = vld [vmem:[%s3202 + $0x240] sm:$0xff]
    %v3276 = vld [vmem:[%s3202 + $0x248] sm:$0xff]
    %v3277 = vld [vmem:[%s3202 + $0x250] sm:$0xff]
    %v3278 = vld [vmem:[%s3202 + $0x258] sm:$0xff]
    %v3279 = vld [vmem:[%s3202 + $0x260] sm:$0xff]
    %v3280 = vld [vmem:[%s3202 + $0x268] sm:$0xff]
    %v3281 = vld [vmem:[%s3202 + $0x270] sm:$0xff]
    %v3282 = vld [vmem:[%s3202 + $0x278] sm:$0xff]
    %v3283 = vld [vmem:[%s3202 + $0x280] sm:$0xff]
    %v3284 = vld [vmem:[%s3202 + $0x288] sm:$0xff]
    %v3285 = vld [vmem:[%s3202 + $0x290] sm:$0xff]
    %v3286 = vld [vmem:[%s3202 + $0x298] sm:$0xff]
    %v3287 = vld [vmem:[%s3202 + $0x2a0] sm:$0xff]
    %v3288 = vld [vmem:[%s3202 + $0x2a8] sm:$0xff]
    %v3289 = vld [vmem:[%s3202 + $0x2b0] sm:$0xff]
    %v3290 = vld [vmem:[%s3202 + $0x2b8] sm:$0xff]
    %v3291 = vld [vmem:[%s3202 + $0x2c0] sm:$0xff]
    %v3292 = vld [vmem:[%s3202 + $0x2c8] sm:$0xff]
    %v3293 = vld [vmem:[%s3202 + $0x2d0] sm:$0xff]
    %v3294 = vld [vmem:[%s3202 + $0x2d8] sm:$0xff]
    %v3295 = vld [vmem:[%s3202 + $0x2e0] sm:$0xff]
    %v3296 = vld [vmem:[%s3202 + $0x2e8] sm:$0xff]
    %v3297 = vld [vmem:[%s3202 + $0x2f0] sm:$0xff]
    %v3298 = vld [vmem:[%s3202 + $0x2f8] sm:$0xff]
    %v3299 = vld [vmem:[%s3202 + $0x300] sm:$0xff]
    %v3300 = vld [vmem:[%s3202 + $0x308] sm:$0xff]
    %v3301 = vld [vmem:[%s3202 + $0x310] sm:$0xff]
    %v3302 = vld [vmem:[%s3202 + $0x318] sm:$0xff]
    %v3303 = vld [vmem:[%s3202 + $0x320] sm:$0xff]
    %v3304 = vld [vmem:[%s3202 + $0x328] sm:$0xff]
    %v3305 = vld [vmem:[%s3202 + $0x330] sm:$0xff]
    %v3306 = vld [vmem:[%s3202 + $0x338] sm:$0xff]
    %v3307 = vld [vmem:[%s3202 + $0x340] sm:$0xff]
    %v3308 = vld [vmem:[%s3202 + $0x348] sm:$0xff]
    %v3309 = vld [vmem:[%s3202 + $0x350] sm:$0xff]
    %v3310 = vld [vmem:[%s3202 + $0x358] sm:$0xff]
    %v3311 = vld [vmem:[%s3202 + $0x360] sm:$0xff]
    %v3312 = vld [vmem:[%s3202 + $0x368] sm:$0xff]
    %v3313 = vld [vmem:[%s3202 + $0x370] sm:$0xff]
    %v3314 = vld [vmem:[%s3202 + $0x378] sm:$0xff]
    %v3315 = vld [vmem:[%s3202 + $0x380] sm:$0xff]
    %v3316 = vld [vmem:[%s3202 + $0x388] sm:$0xff]
    %v3317 = vld [vmem:[%s3202 + $0x390] sm:$0xff]
    %v3318 = vld [vmem:[%s3202 + $0x398] sm:$0xff]
    %v3319 = vld [vmem:[%s3202 + $0x3a0] sm:$0xff]
    %v3320 = vld [vmem:[%s3202 + $0x3a8] sm:$0xff]
    %v3321 = vld [vmem:[%s3202 + $0x3b0] sm:$0xff]
    %v3322 = vld [vmem:[%s3202 + $0x3b8] sm:$0xff]
    %v3323 = vld [vmem:[%s3202 + $0x3c0] sm:$0xff]
    %v3324 = vld [vmem:[%s3202 + $0x3c8] sm:$0xff]
    %v3325 = vld [vmem:[%s3202 + $0x3d0] sm:$0xff]
    %v3326 = vld [vmem:[%s3202 + $0x3d8] sm:$0xff]
    %v3327 = vld [vmem:[%s3202 + $0x3e0] sm:$0xff]
    %v3328 = vld [vmem:[%s3202 + $0x3e8] sm:$0xff]
    %v3329 = vld [vmem:[%s3202 + $0x3f0] sm:$0xff]
    %v3330 = vld [vmem:[%s3202 + $0x3f8] sm:$0xff]
    %s3331 = scalar_lea.vmem [#allocation14], 2
    %v3332 = vld [vmem:[%s3331] sm:$0x3]
    %v3334 = vlaneseq
    %v3335 = vshrl.u32 %v3334, 7
    %v3336 = vsub.s32 0, %v3335
    %v3337 = vrot.slane %v3332, %v3336
    %v3338 = vlaneseq
    %v3339 = vshrl.u32 %v3338, 7
    %v3340 = vsub.s32 1, %v3339
    %v3341 = vrot.slane %v3332, %v3340
    %3344 = vmatprep.subr.mxu0 %v3234
    %3345 = vmatpush1.msra.mxu0 %v3233
    %3346 = vmatprep.subr.mxu0 %v3232
    %3347 = vmatpush1.msra.mxu0 %v3231
    %3348 = vmatprep.subr.mxu0 %v3230
    %3349 = vmatpush1.msra.mxu0 %v3229
    %3350 = vmatprep.subr.mxu0 %v3228
    %3351 = vmatpush1.msra.mxu0 %v3227
    %3352 = vmatprep.subr.mxu0 %v3226
    %3353 = vmatpush1.msra.mxu0 %v3225
    %3354 = vmatprep.subr.mxu0 %v3224
    %3355 = vmatpush1.msra.mxu0 %v3223
    %3356 = vmatprep.subr.mxu0 %v3222
    %3357 = vmatpush1.msra.mxu0 %v3221
    %3358 = vmatprep.subr.mxu0 %v3220
    %3359 = vmatpush1.msra.mxu0 %v3219
    %3360 = vmatprep.subr.mxu0 %v3218
    %3361 = vmatpush1.msra.mxu0 %v3217
    %3362 = vmatprep.subr.mxu0 %v3216
    %3363 = vmatpush1.msra.mxu0 %v3215
    %3364 = vmatprep.subr.mxu0 %v3214
    %3365 = vmatpush1.msra.mxu0 %v3213
    %3366 = vmatprep.subr.mxu0 %v3212
    %3367 = vmatpush1.msra.mxu0 %v3211
    %3368 = vmatprep.subr.mxu0 %v3210
    %3369 = vmatpush1.msra.mxu0 %v3209
    %3370 = vmatprep.subr.mxu0 %v3208
    %3371 = vmatpush1.msra.mxu0 %v3207
    %3372 = vmatprep.subr.mxu0 %v3206
    %3373 = vmatpush1.msra.mxu0 %v3205
    %3374 = vmatprep.subr.mxu0 %v3204
    %3375 = vmatpush1.msra.mxu0 %v3203
    %3376 = vmatprep.subr.mxu0 %v3266
    %3377 = vmatpush2.msra.mxu0 %v3265
    %3378 = vmatprep.subr.mxu0 %v3264
    %3379 = vmatpush2.msra.mxu0 %v3263
    %3380 = vmatprep.subr.mxu0 %v3262
    %3381 = vmatpush2.msra.mxu0 %v3261
    %3382 = vmatprep.subr.mxu0 %v3260
    %3383 = vmatpush2.msra.mxu0 %v3259
    %3384 = vmatprep.subr.mxu0 %v3258
    %3385 = vmatpush2.msra.mxu0 %v3257
    %3386 = vmatprep.subr.mxu0 %v3256
    %3387 = vmatpush2.msra.mxu0 %v3255
    %3388 = vmatprep.subr.mxu0 %v3254
    %3389 = vmatpush2.msra.mxu0 %v3253
    %3390 = vmatprep.subr.mxu0 %v3252
    %3391 = vmatpush2.msra.mxu0 %v3251
    %3392 = vmatprep.subr.mxu0 %v3250
    %3393 = vmatpush2.msra.mxu0 %v3249
    %3394 = vmatprep.subr.mxu0 %v3248
    %3395 = vmatpush2.msra.mxu0 %v3247
    %3396 = vmatprep.subr.mxu0 %v3246
    %3397 = vmatpush2.msra.mxu0 %v3245
    %3398 = vmatprep.subr.mxu0 %v3244
    %3399 = vmatpush2.msra.mxu0 %v3243
    %3400 = vmatprep.subr.mxu0 %v3242
    %3401 = vmatpush2.msra.mxu0 %v3241
    %3402 = vmatprep.subr.mxu0 %v3240
    %3403 = vmatpush2.msra.mxu0 %v3239
    %3404 = vmatprep.subr.mxu0 %v3238
    %3405 = vmatpush2.msra.mxu0 %v3237
    %3406 = vmatprep.subr.mxu0 %v3236
    %3407 = vmatpush2.msra.mxu0 %v3235
    %3408 = vmatprep.mubr.f32.mxu0 %v1612
    %3409 = vmatmul.mubr.f32.gmra.mxu0 %v1611
    %v3410 = vpop.f32.mrf.mxu0
    %v3411 = vadd.f32 %v3337, %v3410
    %v3412 = vpop.f32.mrf.mxu0
    %v3413 = vadd.f32 %v3341, %v3412
    %3414 = vdwg.mxu0
    %3415 = vmatprep.subr.mxu0 %v3298
    %3416 = vmatpush1.msra.mxu0 %v3297
    %3417 = vmatprep.subr.mxu0 %v3296
    %3418 = vmatpush1.msra.mxu0 %v3295
    %3419 = vmatprep.subr.mxu0 %v3294
    %3420 = vmatpush1.msra.mxu0 %v3293
    %3421 = vmatprep.subr.mxu0 %v3292
    %3422 = vmatpush1.msra.mxu0 %v3291
    %3423 = vmatprep.subr.mxu0 %v3290
    %3424 = vmatpush1.msra.mxu0 %v3289
    %3425 = vmatprep.subr.mxu0 %v3288
    %3426 = vmatpush1.msra.mxu0 %v3287
    %3427 = vmatprep.subr.mxu0 %v3286
    %3428 = vmatpush1.msra.mxu0 %v3285
    %3429 = vmatprep.subr.mxu0 %v3284
    %3430 = vmatpush1.msra.mxu0 %v3283
    %3431 = vmatprep.subr.mxu0 %v3282
    %3432 = vmatpush1.msra.mxu0 %v3281
    %3433 = vmatprep.subr.mxu0 %v3280
    %3434 = vmatpush1.msra.mxu0 %v3279
    %3435 = vmatprep.subr.mxu0 %v3278
    %3436 = vmatpush1.msra.mxu0 %v3277
    %3437 = vmatprep.subr.mxu0 %v3276
    %3438 = vmatpush1.msra.mxu0 %v3275
    %3439 = vmatprep.subr.mxu0 %v3274
    %3440 = vmatpush1.msra.mxu0 %v3273
    %3441 = vmatprep.subr.mxu0 %v3272
    %3442 = vmatpush1.msra.mxu0 %v3271
    %3443 = vmatprep.subr.mxu0 %v3270
    %3444 = vmatpush1.msra.mxu0 %v3269
    %3445 = vmatprep.subr.mxu0 %v3268
    %3446 = vmatpush1.msra.mxu0 %v3267
    %3447 = vmatprep.subr.mxu0 %v3330
    %3448 = vmatpush2.msra.mxu0 %v3329
    %3449 = vmatprep.subr.mxu0 %v3328
    %3450 = vmatpush2.msra.mxu0 %v3327
    %3451 = vmatprep.subr.mxu0 %v3326
    %3452 = vmatpush2.msra.mxu0 %v3325
    %3453 = vmatprep.subr.mxu0 %v3324
    %3454 = vmatpush2.msra.mxu0 %v3323
    %3455 = vmatprep.subr.mxu0 %v3322
    %3456 = vmatpush2.msra.mxu0 %v3321
    %3457 = vmatprep.subr.mxu0 %v3320
    %3458 = vmatpush2.msra.mxu0 %v3319
    %3459 = vmatprep.subr.mxu0 %v3318
    %3460 = vmatpush2.msra.mxu0 %v3317
    %3461 = vmatprep.subr.mxu0 %v3316
    %3462 = vmatpush2.msra.mxu0 %v3315
    %3463 = vmatprep.subr.mxu0 %v3314
    %3464 = vmatpush2.msra.mxu0 %v3313
    %3465 = vmatprep.subr.mxu0 %v3312
    %3466 = vmatpush2.msra.mxu0 %v3311
    %3467 = vmatprep.subr.mxu0 %v3310
    %3468 = vmatpush2.msra.mxu0 %v3309
    %3469 = vmatprep.subr.mxu0 %v3308
    %3470 = vmatpush2.msra.mxu0 %v3307
    %3471 = vmatprep.subr.mxu0 %v3306
    %3472 = vmatpush2.msra.mxu0 %v3305
    %3473 = vmatprep.subr.mxu0 %v3304
    %3474 = vmatpush2.msra.mxu0 %v3303
    %3475 = vmatprep.subr.mxu0 %v3302
    %3476 = vmatpush2.msra.mxu0 %v3301
    %3477 = vmatprep.subr.mxu0 %v3300
    %3478 = vmatpush2.msra.mxu0 %v3299
    %3479 = vmatprep.mubr.f32.mxu0 %v2444
    %3480 = vmatmul.mubr.f32.gmra.mxu0 %v2443
    %v3481 = vpop.f32.mrf.mxu0
    %v3482 = vadd.f32 %v3411, %v3481
    %v3483 = vpop.f32.mrf.mxu0
    %v3484 = vadd.f32 %v3413, %v3483
    %3485 = vdwg.mxu0
    %v3486 = vmax.f32 %v3482, 0.0
    %v3487 = vmax.f32 %v3484, 0.0
    %v3488 = vsel %vm641, %v3486, 0.0
    %v3489 = vrot.slane %v3488, 4
    %v3490 = vadd.f32 %v3488, %v3489
    %v3491 = vrot.slane %v3490, 2
    %v3492 = vadd.f32 %v3490, %v3491
    %v3493 = vrot.slane %v3492, 1
    %v3494 = vadd.f32 %v3492, %v3493
    %v3495 = vsel %vm641, %v3487, 0.0
    %v3496 = vrot.slane %v3495, 4
    %v3497 = vadd.f32 %v3495, %v3496
    %v3498 = vrot.slane %v3497, 2
    %v3499 = vadd.f32 %v3497, %v3498
    %v3500 = vrot.slane %v3499, 1
    %v3501 = vadd.f32 %v3499, %v3500
    %v3502 = vmul.f32 %v3494, %v656
    %v3503 = vmul.f32 %v3501, %v656
    %v3504 = vsub.f32 %v3486, %v3502
    %v3505 = vsub.f32 %v3487, %v3503
    %v3506 = vmul.f32 %v3504, %v3504
    %v3507 = vmul.f32 %v3505, %v3505
    %v3508 = vsel %vm641, %v3506, 0.0
    %v3509 = vrot.slane %v3508, 4
    %v3510 = vadd.f32 %v3508, %v3509
    %v3511 = vrot.slane %v3510, 2
    %v3512 = vadd.f32 %v3510, %v3511
    %v3513 = vrot.slane %v3512, 1
    %v3514 = vadd.f32 %v3512, %v3513
    %v3515 = vsel %vm641, %v3507, 0.0
    %v3516 = vrot.slane %v3515, 4
    %v3517 = vadd.f32 %v3515, %v3516
    %v3518 = vrot.slane %v3517, 2
    %v3519 = vadd.f32 %v3517, %v3518
    %v3520 = vrot.slane %v3519, 1
    %v3521 = vadd.f32 %v3519, %v3520
    %v3522 = vmul.f32 %v3514, %v656
    %v3523 = vmul.f32 %v3521, %v656
    %v3524 = vadd.f32 %v3522, 0.2
    %v3525 = vadd.f32 %v3523, 0.2
    %v3526 = vrsqrt.pop %v3524
    %v3527 = vrsqrt.pop %v3525
    %v3528 = vmul.f32 %v3504, %v3526
    %v3529 = vmul.f32 %v3505, %v3527
    %s3530 = scalar_lea.vmem %s5, 36
    %v3531 = vld [vmem:[%s3530] sm:$0xf]
    %v3534 = vunpack.c.l.s4 1983009808
    %v3535 = vunpack.c.0.s8 %v3534
    %v3536 = vlaneseq
    %v3537 = vshrl.u32 %v3536, 7
    %v3538 = vsub.s32 %v3535, %v3537
    %v3539 = vrot.slane %v3531, %v3538
    %v3540 = vcombine.high %v3539, %v3539
    %v3543 = vmul.f32 %v3528, %v3539
    %v3544 = vmul.f32 %v3529, %v3540
    %s3545 = scalar_lea.vmem [#allocation13], 2048
    %v3546 = vld [vmem:[%s3545] sm:$0xff]
    %v3547 = vld [vmem:[%s3545 + $0x8] sm:$0xff]
    %v3548 = vld [vmem:[%s3545 + $0x10] sm:$0xff]
    %v3549 = vld [vmem:[%s3545 + $0x18] sm:$0xff]
    %v3550 = vld [vmem:[%s3545 + $0x20] sm:$0xff]
    %v3551 = vld [vmem:[%s3545 + $0x28] sm:$0xff]
    %v3552 = vld [vmem:[%s3545 + $0x30] sm:$0xff]
    %v3553 = vld [vmem:[%s3545 + $0x38] sm:$0xff]
    %v3554 = vld [vmem:[%s3545 + $0x40] sm:$0xff]
    %v3555 = vld [vmem:[%s3545 + $0x48] sm:$0xff]
    %v3556 = vld [vmem:[%s3545 + $0x50] sm:$0xff]
    %v3557 = vld [vmem:[%s3545 + $0x58] sm:$0xff]
    %v3558 = vld [vmem:[%s3545 + $0x60] sm:$0xff]
    %v3559 = vld [vmem:[%s3545 + $0x68] sm:$0xff]
    %v3560 = vld [vmem:[%s3545 + $0x70] sm:$0xff]
    %v3561 = vld [vmem:[%s3545 + $0x78] sm:$0xff]
    %v3562 = vld [vmem:[%s3545 + $0x80] sm:$0xff]
    %v3563 = vld [vmem:[%s3545 + $0x88] sm:$0xff]
    %v3564 = vld [vmem:[%s3545 + $0x90] sm:$0xff]
    %v3565 = vld [vmem:[%s3545 + $0x98] sm:$0xff]
    %v3566 = vld [vmem:[%s3545 + $0xa0] sm:$0xff]
    %v3567 = vld [vmem:[%s3545 + $0xa8] sm:$0xff]
    %v3568 = vld [vmem:[%s3545 + $0xb0] sm:$0xff]
    %v3569 = vld [vmem:[%s3545 + $0xb8] sm:$0xff]
    %v3570 = vld [vmem:[%s3545 + $0xc0] sm:$0xff]
    %v3571 = vld [vmem:[%s3545 + $0xc8] sm:$0xff]
    %v3572 = vld [vmem:[%s3545 + $0xd0] sm:$0xff]
    %v3573 = vld [vmem:[%s3545 + $0xd8] sm:$0xff]
    %v3574 = vld [vmem:[%s3545 + $0xe0] sm:$0xff]
    %v3575 = vld [vmem:[%s3545 + $0xe8] sm:$0xff]
    %v3576 = vld [vmem:[%s3545 + $0xf0] sm:$0xff]
    %v3577 = vld [vmem:[%s3545 + $0xf8] sm:$0xff]
    %v3578 = vld [vmem:[%s3545 + $0x100] sm:$0xff]
    %v3579 = vld [vmem:[%s3545 + $0x108] sm:$0xff]
    %v3580 = vld [vmem:[%s3545 + $0x110] sm:$0xff]
    %v3581 = vld [vmem:[%s3545 + $0x118] sm:$0xff]
    %v3582 = vld [vmem:[%s3545 + $0x120] sm:$0xff]
    %v3583 = vld [vmem:[%s3545 + $0x128] sm:$0xff]
    %v3584 = vld [vmem:[%s3545 + $0x130] sm:$0xff]
    %v3585 = vld [vmem:[%s3545 + $0x138] sm:$0xff]
    %v3586 = vld [vmem:[%s3545 + $0x140] sm:$0xff]
    %v3587 = vld [vmem:[%s3545 + $0x148] sm:$0xff]
    %v3588 = vld [vmem:[%s3545 + $0x150] sm:$0xff]
    %v3589 = vld [vmem:[%s3545 + $0x158] sm:$0xff]
    %v3590 = vld [vmem:[%s3545 + $0x160] sm:$0xff]
    %v3591 = vld [vmem:[%s3545 + $0x168] sm:$0xff]
    %v3592 = vld [vmem:[%s3545 + $0x170] sm:$0xff]
    %v3593 = vld [vmem:[%s3545 + $0x178] sm:$0xff]
    %v3594 = vld [vmem:[%s3545 + $0x180] sm:$0xff]
    %v3595 = vld [vmem:[%s3545 + $0x188] sm:$0xff]
    %v3596 = vld [vmem:[%s3545 + $0x190] sm:$0xff]
    %v3597 = vld [vmem:[%s3545 + $0x198] sm:$0xff]
    %v3598 = vld [vmem:[%s3545 + $0x1a0] sm:$0xff]
    %v3599 = vld [vmem:[%s3545 + $0x1a8] sm:$0xff]
    %v3600 = vld [vmem:[%s3545 + $0x1b0] sm:$0xff]
    %v3601 = vld [vmem:[%s3545 + $0x1b8] sm:$0xff]
    %v3602 = vld [vmem:[%s3545 + $0x1c0] sm:$0xff]
    %v3603 = vld [vmem:[%s3545 + $0x1c8] sm:$0xff]
    %v3604 = vld [vmem:[%s3545 + $0x1d0] sm:$0xff]
    %v3605 = vld [vmem:[%s3545 + $0x1d8] sm:$0xff]
    %v3606 = vld [vmem:[%s3545 + $0x1e0] sm:$0xff]
    %v3607 = vld [vmem:[%s3545 + $0x1e8] sm:$0xff]
    %v3608 = vld [vmem:[%s3545 + $0x1f0] sm:$0xff]
    %v3609 = vld [vmem:[%s3545 + $0x1f8] sm:$0xff]
    %v3610 = vld [vmem:[%s3545 + $0x200] sm:$0xff]
    %v3611 = vld [vmem:[%s3545 + $0x208] sm:$0xff]
    %v3612 = vld [vmem:[%s3545 + $0x210] sm:$0xff]
    %v3613 = vld [vmem:[%s3545 + $0x218] sm:$0xff]
    %v3614 = vld [vmem:[%s3545 + $0x220] sm:$0xff]
    %v3615 = vld [vmem:[%s3545 + $0x228] sm:$0xff]
    %v3616 = vld [vmem:[%s3545 + $0x230] sm:$0xff]
    %v3617 = vld [vmem:[%s3545 + $0x238] sm:$0xff]
    %v3618 = vld [vmem:[%s3545 + $0x240] sm:$0xff]
    %v3619 = vld [vmem:[%s3545 + $0x248] sm:$0xff]
    %v3620 = vld [vmem:[%s3545 + $0x250] sm:$0xff]
    %v3621 = vld [vmem:[%s3545 + $0x258] sm:$0xff]
    %v3622 = vld [vmem:[%s3545 + $0x260] sm:$0xff]
    %v3623 = vld [vmem:[%s3545 + $0x268] sm:$0xff]
    %v3624 = vld [vmem:[%s3545 + $0x270] sm:$0xff]
    %v3625 = vld [vmem:[%s3545 + $0x278] sm:$0xff]
    %v3626 = vld [vmem:[%s3545 + $0x280] sm:$0xff]
    %v3627 = vld [vmem:[%s3545 + $0x288] sm:$0xff]
    %v3628 = vld [vmem:[%s3545 + $0x290] sm:$0xff]
    %v3629 = vld [vmem:[%s3545 + $0x298] sm:$0xff]
    %v3630 = vld [vmem:[%s3545 + $0x2a0] sm:$0xff]
    %v3631 = vld [vmem:[%s3545 + $0x2a8] sm:$0xff]
    %v3632 = vld [vmem:[%s3545 + $0x2b0] sm:$0xff]
    %v3633 = vld [vmem:[%s3545 + $0x2b8] sm:$0xff]
    %v3634 = vld [vmem:[%s3545 + $0x2c0] sm:$0xff]
    %v3635 = vld [vmem:[%s3545 + $0x2c8] sm:$0xff]
    %v3636 = vld [vmem:[%s3545 + $0x2d0] sm:$0xff]
    %v3637 = vld [vmem:[%s3545 + $0x2d8] sm:$0xff]
    %v3638 = vld [vmem:[%s3545 + $0x2e0] sm:$0xff]
    %v3639 = vld [vmem:[%s3545 + $0x2e8] sm:$0xff]
    %v3640 = vld [vmem:[%s3545 + $0x2f0] sm:$0xff]
    %v3641 = vld [vmem:[%s3545 + $0x2f8] sm:$0xff]
    %v3642 = vld [vmem:[%s3545 + $0x300] sm:$0xff]
    %v3643 = vld [vmem:[%s3545 + $0x308] sm:$0xff]
    %v3644 = vld [vmem:[%s3545 + $0x310] sm:$0xff]
    %v3645 = vld [vmem:[%s3545 + $0x318] sm:$0xff]
    %v3646 = vld [vmem:[%s3545 + $0x320] sm:$0xff]
    %v3647 = vld [vmem:[%s3545 + $0x328] sm:$0xff]
    %v3648 = vld [vmem:[%s3545 + $0x330] sm:$0xff]
    %v3649 = vld [vmem:[%s3545 + $0x338] sm:$0xff]
    %v3650 = vld [vmem:[%s3545 + $0x340] sm:$0xff]
    %v3651 = vld [vmem:[%s3545 + $0x348] sm:$0xff]
    %v3652 = vld [vmem:[%s3545 + $0x350] sm:$0xff]
    %v3653 = vld [vmem:[%s3545 + $0x358] sm:$0xff]
    %v3654 = vld [vmem:[%s3545 + $0x360] sm:$0xff]
    %v3655 = vld [vmem:[%s3545 + $0x368] sm:$0xff]
    %v3656 = vld [vmem:[%s3545 + $0x370] sm:$0xff]
    %v3657 = vld [vmem:[%s3545 + $0x378] sm:$0xff]
    %v3658 = vld [vmem:[%s3545 + $0x380] sm:$0xff]
    %v3659 = vld [vmem:[%s3545 + $0x388] sm:$0xff]
    %v3660 = vld [vmem:[%s3545 + $0x390] sm:$0xff]
    %v3661 = vld [vmem:[%s3545 + $0x398] sm:$0xff]
    %v3662 = vld [vmem:[%s3545 + $0x3a0] sm:$0xff]
    %v3663 = vld [vmem:[%s3545 + $0x3a8] sm:$0xff]
    %v3664 = vld [vmem:[%s3545 + $0x3b0] sm:$0xff]
    %v3665 = vld [vmem:[%s3545 + $0x3b8] sm:$0xff]
    %v3666 = vld [vmem:[%s3545 + $0x3c0] sm:$0xff]
    %v3667 = vld [vmem:[%s3545 + $0x3c8] sm:$0xff]
    %v3668 = vld [vmem:[%s3545 + $0x3d0] sm:$0xff]
    %v3669 = vld [vmem:[%s3545 + $0x3d8] sm:$0xff]
    %v3670 = vld [vmem:[%s3545 + $0x3e0] sm:$0xff]
    %v3671 = vld [vmem:[%s3545 + $0x3e8] sm:$0xff]
    %v3672 = vld [vmem:[%s3545 + $0x3f0] sm:$0xff]
    %v3673 = vld [vmem:[%s3545 + $0x3f8] sm:$0xff]
    %s3674 = scalar_lea.vmem [#allocation14], 4
    %v3675 = vld [vmem:[%s3674] sm:$0x3]
    %v3677 = vlaneseq
    %v3678 = vshrl.u32 %v3677, 7
    %v3679 = vsub.s32 0, %v3678
    %v3680 = vrot.slane %v3675, %v3679
    %v3681 = vlaneseq
    %v3682 = vshrl.u32 %v3681, 7
    %v3683 = vsub.s32 1, %v3682
    %v3684 = vrot.slane %v3675, %v3683
    %3687 = vmatprep.subr.mxu0 %v3577
    %3688 = vmatpush1.msra.mxu0 %v3576
    %3689 = vmatprep.subr.mxu0 %v3575
    %3690 = vmatpush1.msra.mxu0 %v3574
    %3691 = vmatprep.subr.mxu0 %v3573
    %3692 = vmatpush1.msra.mxu0 %v3572
    %3693 = vmatprep.subr.mxu0 %v3571
    %3694 = vmatpush1.msra.mxu0 %v3570
    %3695 = vmatprep.subr.mxu0 %v3569
    %3696 = vmatpush1.msra.mxu0 %v3568
    %3697 = vmatprep.subr.mxu0 %v3567
    %3698 = vmatpush1.msra.mxu0 %v3566
    %3699 = vmatprep.subr.mxu0 %v3565
    %3700 = vmatpush1.msra.mxu0 %v3564
    %3701 = vmatprep.subr.mxu0 %v3563
    %3702 = vmatpush1.msra.mxu0 %v3562
    %3703 = vmatprep.subr.mxu0 %v3561
    %3704 = vmatpush1.msra.mxu0 %v3560
    %3705 = vmatprep.subr.mxu0 %v3559
    %3706 = vmatpush1.msra.mxu0 %v3558
    %3707 = vmatprep.subr.mxu0 %v3557
    %3708 = vmatpush1.msra.mxu0 %v3556
    %3709 = vmatprep.subr.mxu0 %v3555
    %3710 = vmatpush1.msra.mxu0 %v3554
    %3711 = vmatprep.subr.mxu0 %v3553
    %3712 = vmatpush1.msra.mxu0 %v3552
    %3713 = vmatprep.subr.mxu0 %v3551
    %3714 = vmatpush1.msra.mxu0 %v3550
    %3715 = vmatprep.subr.mxu0 %v3549
    %3716 = vmatpush1.msra.mxu0 %v3548
    %3717 = vmatprep.subr.mxu0 %v3547
    %3718 = vmatpush1.msra.mxu0 %v3546
    %3719 = vmatprep.subr.mxu0 %v3609
    %3720 = vmatpush2.msra.mxu0 %v3608
    %3721 = vmatprep.subr.mxu0 %v3607
    %3722 = vmatpush2.msra.mxu0 %v3606
    %3723 = vmatprep.subr.mxu0 %v3605
    %3724 = vmatpush2.msra.mxu0 %v3604
    %3725 = vmatprep.subr.mxu0 %v3603
    %3726 = vmatpush2.msra.mxu0 %v3602
    %3727 = vmatprep.subr.mxu0 %v3601
    %3728 = vmatpush2.msra.mxu0 %v3600
    %3729 = vmatprep.subr.mxu0 %v3599
    %3730 = vmatpush2.msra.mxu0 %v3598
    %3731 = vmatprep.subr.mxu0 %v3597
    %3732 = vmatpush2.msra.mxu0 %v3596
    %3733 = vmatprep.subr.mxu0 %v3595
    %3734 = vmatpush2.msra.mxu0 %v3594
    %3735 = vmatprep.subr.mxu0 %v3593
    %3736 = vmatpush2.msra.mxu0 %v3592
    %3737 = vmatprep.subr.mxu0 %v3591
    %3738 = vmatpush2.msra.mxu0 %v3590
    %3739 = vmatprep.subr.mxu0 %v3589
    %3740 = vmatpush2.msra.mxu0 %v3588
    %3741 = vmatprep.subr.mxu0 %v3587
    %3742 = vmatpush2.msra.mxu0 %v3586
    %3743 = vmatprep.subr.mxu0 %v3585
    %3744 = vmatpush2.msra.mxu0 %v3584
    %3745 = vmatprep.subr.mxu0 %v3583
    %3746 = vmatpush2.msra.mxu0 %v3582
    %3747 = vmatprep.subr.mxu0 %v3581
    %3748 = vmatpush2.msra.mxu0 %v3580
    %3749 = vmatprep.subr.mxu0 %v3579
    %3750 = vmatpush2.msra.mxu0 %v3578
    %3751 = vmatprep.mubr.f32.mxu0 %v1820
    %3752 = vmatmul.mubr.f32.gmra.mxu0 %v1819
    %v3753 = vpop.f32.mrf.mxu0
    %v3754 = vadd.f32 %v3680, %v3753
    %v3755 = vpop.f32.mrf.mxu0
    %v3756 = vadd.f32 %v3684, %v3755
    %3757 = vdwg.mxu0
    %3758 = vmatprep.subr.mxu0 %v3641
    %3759 = vmatpush1.msra.mxu0 %v3640
    %3760 = vmatprep.subr.mxu0 %v3639
    %3761 = vmatpush1.msra.mxu0 %v3638
    %3762 = vmatprep.subr.mxu0 %v3637
    %3763 = vmatpush1.msra.mxu0 %v3636
    %3764 = vmatprep.subr.mxu0 %v3635
    %3765 = vmatpush1.msra.mxu0 %v3634
    %3766 = vmatprep.subr.mxu0 %v3633
    %3767 = vmatpush1.msra.mxu0 %v3632
    %3768 = vmatprep.subr.mxu0 %v3631
    %3769 = vmatpush1.msra.mxu0 %v3630
    %3770 = vmatprep.subr.mxu0 %v3629
    %3771 = vmatpush1.msra.mxu0 %v3628
    %3772 = vmatprep.subr.mxu0 %v3627
    %3773 = vmatpush1.msra.mxu0 %v3626
    %3774 = vmatprep.subr.mxu0 %v3625
    %3775 = vmatpush1.msra.mxu0 %v3624
    %3776 = vmatprep.subr.mxu0 %v3623
    %3777 = vmatpush1.msra.mxu0 %v3622
    %3778 = vmatprep.subr.mxu0 %v3621
    %3779 = vmatpush1.msra.mxu0 %v3620
    %3780 = vmatprep.subr.mxu0 %v3619
    %3781 = vmatpush1.msra.mxu0 %v3618
    %3782 = vmatprep.subr.mxu0 %v3617
    %3783 = vmatpush1.msra.mxu0 %v3616
    %3784 = vmatprep.subr.mxu0 %v3615
    %3785 = vmatpush1.msra.mxu0 %v3614
    %3786 = vmatprep.subr.mxu0 %v3613
    %3787 = vmatpush1.msra.mxu0 %v3612
    %3788 = vmatprep.subr.mxu0 %v3611
    %3789 = vmatpush1.msra.mxu0 %v3610
    %3790 = vmatprep.subr.mxu0 %v3673
    %3791 = vmatpush2.msra.mxu0 %v3672
    %3792 = vmatprep.subr.mxu0 %v3671
    %3793 = vmatpush2.msra.mxu0 %v3670
    %3794 = vmatprep.subr.mxu0 %v3669
    %3795 = vmatpush2.msra.mxu0 %v3668
    %3796 = vmatprep.subr.mxu0 %v3667
    %3797 = vmatpush2.msra.mxu0 %v3666
    %3798 = vmatprep.subr.mxu0 %v3665
    %3799 = vmatpush2.msra.mxu0 %v3664
    %3800 = vmatprep.subr.mxu0 %v3663
    %3801 = vmatpush2.msra.mxu0 %v3662
    %3802 = vmatprep.subr.mxu0 %v3661
    %3803 = vmatpush2.msra.mxu0 %v3660
    %3804 = vmatprep.subr.mxu0 %v3659
    %3805 = vmatpush2.msra.mxu0 %v3658
    %3806 = vmatprep.subr.mxu0 %v3657
    %3807 = vmatpush2.msra.mxu0 %v3656
    %3808 = vmatprep.subr.mxu0 %v3655
    %3809 = vmatpush2.msra.mxu0 %v3654
    %3810 = vmatprep.subr.mxu0 %v3653
    %3811 = vmatpush2.msra.mxu0 %v3652
    %3812 = vmatprep.subr.mxu0 %v3651
    %3813 = vmatpush2.msra.mxu0 %v3650
    %3814 = vmatprep.subr.mxu0 %v3649
    %3815 = vmatpush2.msra.mxu0 %v3648
    %3816 = vmatprep.subr.mxu0 %v3647
    %3817 = vmatpush2.msra.mxu0 %v3646
    %3818 = vmatprep.subr.mxu0 %v3645
    %3819 = vmatpush2.msra.mxu0 %v3644
    %3820 = vmatprep.subr.mxu0 %v3643
    %3821 = vmatpush2.msra.mxu0 %v3642
    %3822 = vmatprep.mubr.f32.mxu0 %v2652
    %3823 = vmatmul.mubr.f32.gmra.mxu0 %v2651
    %v3824 = vpop.f32.mrf.mxu0
    %v3825 = vadd.f32 %v3754, %v3824
    %v3826 = vpop.f32.mrf.mxu0
    %v3827 = vadd.f32 %v3756, %v3826
    %3828 = vdwg.mxu0
    %v3829 = vmax.f32 %v3825, 0.0
    %v3830 = vmax.f32 %v3827, 0.0
    %v3831 = vsel %vm641, %v3829, 0.0
    %v3832 = vrot.slane %v3831, 4
    %v3833 = vadd.f32 %v3831, %v3832
    %v3834 = vrot.slane %v3833, 2
    %v3835 = vadd.f32 %v3833, %v3834
    %v3836 = vrot.slane %v3835, 1
    %v3837 = vadd.f32 %v3835, %v3836
    %v3838 = vsel %vm641, %v3830, 0.0
    %v3839 = vrot.slane %v3838, 4
    %v3840 = vadd.f32 %v3838, %v3839
    %v3841 = vrot.slane %v3840, 2
    %v3842 = vadd.f32 %v3840, %v3841
    %v3843 = vrot.slane %v3842, 1
    %v3844 = vadd.f32 %v3842, %v3843
    %v3845 = vmul.f32 %v3837, %v656
    %v3846 = vmul.f32 %v3844, %v656
    %v3847 = vsub.f32 %v3829, %v3845
    %v3848 = vsub.f32 %v3830, %v3846
    %v3849 = vmul.f32 %v3847, %v3847
    %v3850 = vmul.f32 %v3848, %v3848
    %v3851 = vsel %vm641, %v3849, 0.0
    %v3852 = vrot.slane %v3851, 4
    %v3853 = vadd.f32 %v3851, %v3852
    %v3854 = vrot.slane %v3853, 2
    %v3855 = vadd.f32 %v3853, %v3854
    %v3856 = vrot.slane %v3855, 1
    %v3857 = vadd.f32 %v3855, %v3856
    %v3858 = vsel %vm641, %v3850, 0.0
    %v3859 = vrot.slane %v3858, 4
    %v3860 = vadd.f32 %v3858, %v3859
    %v3861 = vrot.slane %v3860, 2
    %v3862 = vadd.f32 %v3860, %v3861
    %v3863 = vrot.slane %v3862, 1
    %v3864 = vadd.f32 %v3862, %v3863
    %v3865 = vmul.f32 %v3857, %v656
    %v3866 = vmul.f32 %v3864, %v656
    %v3867 = vadd.f32 %v3865, 0.2
    %v3868 = vadd.f32 %v3866, 0.2
    %v3869 = vrsqrt.pop %v3867
    %v3870 = vrsqrt.pop %v3868
    %v3871 = vmul.f32 %v3847, %v3869
    %v3872 = vmul.f32 %v3848, %v3870
    %s3873 = scalar_lea.vmem %s5, 40
    %v3874 = vld [vmem:[%s3873] sm:$0xf]
    %v3877 = vunpack.c.l.s4 1983009808
    %v3878 = vunpack.c.0.s8 %v3877
    %v3879 = vlaneseq
    %v3880 = vshrl.u32 %v3879, 7
    %v3881 = vsub.s32 %v3878, %v3880
    %v3882 = vrot.slane %v3874, %v3881
    %v3883 = vcombine.high %v3882, %v3882
    %v3886 = vmul.f32 %v3871, %v3882
    %v3887 = vmul.f32 %v3872, %v3883
    %s3888 = scalar_lea.vmem [#allocation13], 3072
    %v3889 = vld [vmem:[%s3888] sm:$0xff]
    %v3890 = vld [vmem:[%s3888 + $0x8] sm:$0xff]
    %v3891 = vld [vmem:[%s3888 + $0x10] sm:$0xff]
    %v3892 = vld [vmem:[%s3888 + $0x18] sm:$0xff]
    %v3893 = vld [vmem:[%s3888 + $0x20] sm:$0xff]
    %v3894 = vld [vmem:[%s3888 + $0x28] sm:$0xff]
    %v3895 = vld [vmem:[%s3888 + $0x30] sm:$0xff]
    %v3896 = vld [vmem:[%s3888 + $0x38] sm:$0xff]
    %v3897 = vld [vmem:[%s3888 + $0x40] sm:$0xff]
    %v3898 = vld [vmem:[%s3888 + $0x48] sm:$0xff]
    %v3899 = vld [vmem:[%s3888 + $0x50] sm:$0xff]
    %v3900 = vld [vmem:[%s3888 + $0x58] sm:$0xff]
    %v3901 = vld [vmem:[%s3888 + $0x60] sm:$0xff]
    %v3902 = vld [vmem:[%s3888 + $0x68] sm:$0xff]
    %v3903 = vld [vmem:[%s3888 + $0x70] sm:$0xff]
    %v3904 = vld [vmem:[%s3888 + $0x78] sm:$0xff]
    %v3905 = vld [vmem:[%s3888 + $0x80] sm:$0xff]
    %v3906 = vld [vmem:[%s3888 + $0x88] sm:$0xff]
    %v3907 = vld [vmem:[%s3888 + $0x90] sm:$0xff]
    %v3908 = vld [vmem:[%s3888 + $0x98] sm:$0xff]
    %v3909 = vld [vmem:[%s3888 + $0xa0] sm:$0xff]
    %v3910 = vld [vmem:[%s3888 + $0xa8] sm:$0xff]
    %v3911 = vld [vmem:[%s3888 + $0xb0] sm:$0xff]
    %v3912 = vld [vmem:[%s3888 + $0xb8] sm:$0xff]
    %v3913 = vld [vmem:[%s3888 + $0xc0] sm:$0xff]
    %v3914 = vld [vmem:[%s3888 + $0xc8] sm:$0xff]
    %v3915 = vld [vmem:[%s3888 + $0xd0] sm:$0xff]
    %v3916 = vld [vmem:[%s3888 + $0xd8] sm:$0xff]
    %v3917 = vld [vmem:[%s3888 + $0xe0] sm:$0xff]
    %v3918 = vld [vmem:[%s3888 + $0xe8] sm:$0xff]
    %v3919 = vld [vmem:[%s3888 + $0xf0] sm:$0xff]
    %v3920 = vld [vmem:[%s3888 + $0xf8] sm:$0xff]
    %v3921 = vld [vmem:[%s3888 + $0x100] sm:$0xff]
    %v3922 = vld [vmem:[%s3888 + $0x108] sm:$0xff]
    %v3923 = vld [vmem:[%s3888 + $0x110] sm:$0xff]
    %v3924 = vld [vmem:[%s3888 + $0x118] sm:$0xff]
    %v3925 = vld [vmem:[%s3888 + $0x120] sm:$0xff]
    %v3926 = vld [vmem:[%s3888 + $0x128] sm:$0xff]
    %v3927 = vld [vmem:[%s3888 + $0x130] sm:$0xff]
    %v3928 = vld [vmem:[%s3888 + $0x138] sm:$0xff]
    %v3929 = vld [vmem:[%s3888 + $0x140] sm:$0xff]
    %v3930 = vld [vmem:[%s3888 + $0x148] sm:$0xff]
    %v3931 = vld [vmem:[%s3888 + $0x150] sm:$0xff]
    %v3932 = vld [vmem:[%s3888 + $0x158] sm:$0xff]
    %v3933 = vld [vmem:[%s3888 + $0x160] sm:$0xff]
    %v3934 = vld [vmem:[%s3888 + $0x168] sm:$0xff]
    %v3935 = vld [vmem:[%s3888 + $0x170] sm:$0xff]
    %v3936 = vld [vmem:[%s3888 + $0x178] sm:$0xff]
    %v3937 = vld [vmem:[%s3888 + $0x180] sm:$0xff]
    %v3938 = vld [vmem:[%s3888 + $0x188] sm:$0xff]
    %v3939 = vld [vmem:[%s3888 + $0x190] sm:$0xff]
    %v3940 = vld [vmem:[%s3888 + $0x198] sm:$0xff]
    %v3941 = vld [vmem:[%s3888 + $0x1a0] sm:$0xff]
    %v3942 = vld [vmem:[%s3888 + $0x1a8] sm:$0xff]
    %v3943 = vld [vmem:[%s3888 + $0x1b0] sm:$0xff]
    %v3944 = vld [vmem:[%s3888 + $0x1b8] sm:$0xff]
    %v3945 = vld [vmem:[%s3888 + $0x1c0] sm:$0xff]
    %v3946 = vld [vmem:[%s3888 + $0x1c8] sm:$0xff]
    %v3947 = vld [vmem:[%s3888 + $0x1d0] sm:$0xff]
    %v3948 = vld [vmem:[%s3888 + $0x1d8] sm:$0xff]
    %v3949 = vld [vmem:[%s3888 + $0x1e0] sm:$0xff]
    %v3950 = vld [vmem:[%s3888 + $0x1e8] sm:$0xff]
    %v3951 = vld [vmem:[%s3888 + $0x1f0] sm:$0xff]
    %v3952 = vld [vmem:[%s3888 + $0x1f8] sm:$0xff]
    %v3953 = vld [vmem:[%s3888 + $0x200] sm:$0xff]
    %v3954 = vld [vmem:[%s3888 + $0x208] sm:$0xff]
    %v3955 = vld [vmem:[%s3888 + $0x210] sm:$0xff]
    %v3956 = vld [vmem:[%s3888 + $0x218] sm:$0xff]
    %v3957 = vld [vmem:[%s3888 + $0x220] sm:$0xff]
    %v3958 = vld [vmem:[%s3888 + $0x228] sm:$0xff]
    %v3959 = vld [vmem:[%s3888 + $0x230] sm:$0xff]
    %v3960 = vld [vmem:[%s3888 + $0x238] sm:$0xff]
    %v3961 = vld [vmem:[%s3888 + $0x240] sm:$0xff]
    %v3962 = vld [vmem:[%s3888 + $0x248] sm:$0xff]
    %v3963 = vld [vmem:[%s3888 + $0x250] sm:$0xff]
    %v3964 = vld [vmem:[%s3888 + $0x258] sm:$0xff]
    %v3965 = vld [vmem:[%s3888 + $0x260] sm:$0xff]
    %v3966 = vld [vmem:[%s3888 + $0x268] sm:$0xff]
    %v3967 = vld [vmem:[%s3888 + $0x270] sm:$0xff]
    %v3968 = vld [vmem:[%s3888 + $0x278] sm:$0xff]
    %v3969 = vld [vmem:[%s3888 + $0x280] sm:$0xff]
    %v3970 = vld [vmem:[%s3888 + $0x288] sm:$0xff]
    %v3971 = vld [vmem:[%s3888 + $0x290] sm:$0xff]
    %v3972 = vld [vmem:[%s3888 + $0x298] sm:$0xff]
    %v3973 = vld [vmem:[%s3888 + $0x2a0] sm:$0xff]
    %v3974 = vld [vmem:[%s3888 + $0x2a8] sm:$0xff]
    %v3975 = vld [vmem:[%s3888 + $0x2b0] sm:$0xff]
    %v3976 = vld [vmem:[%s3888 + $0x2b8] sm:$0xff]
    %v3977 = vld [vmem:[%s3888 + $0x2c0] sm:$0xff]
    %v3978 = vld [vmem:[%s3888 + $0x2c8] sm:$0xff]
    %v3979 = vld [vmem:[%s3888 + $0x2d0] sm:$0xff]
    %v3980 = vld [vmem:[%s3888 + $0x2d8] sm:$0xff]
    %v3981 = vld [vmem:[%s3888 + $0x2e0] sm:$0xff]
    %v3982 = vld [vmem:[%s3888 + $0x2e8] sm:$0xff]
    %v3983 = vld [vmem:[%s3888 + $0x2f0] sm:$0xff]
    %v3984 = vld [vmem:[%s3888 + $0x2f8] sm:$0xff]
    %v3985 = vld [vmem:[%s3888 + $0x300] sm:$0xff]
    %v3986 = vld [vmem:[%s3888 + $0x308] sm:$0xff]
    %v3987 = vld [vmem:[%s3888 + $0x310] sm:$0xff]
    %v3988 = vld [vmem:[%s3888 + $0x318] sm:$0xff]
    %v3989 = vld [vmem:[%s3888 + $0x320] sm:$0xff]
    %v3990 = vld [vmem:[%s3888 + $0x328] sm:$0xff]
    %v3991 = vld [vmem:[%s3888 + $0x330] sm:$0xff]
    %v3992 = vld [vmem:[%s3888 + $0x338] sm:$0xff]
    %v3993 = vld [vmem:[%s3888 + $0x340] sm:$0xff]
    %v3994 = vld [vmem:[%s3888 + $0x348] sm:$0xff]
    %v3995 = vld [vmem:[%s3888 + $0x350] sm:$0xff]
    %v3996 = vld [vmem:[%s3888 + $0x358] sm:$0xff]
    %v3997 = vld [vmem:[%s3888 + $0x360] sm:$0xff]
    %v3998 = vld [vmem:[%s3888 + $0x368] sm:$0xff]
    %v3999 = vld [vmem:[%s3888 + $0x370] sm:$0xff]
    %v4000 = vld [vmem:[%s3888 + $0x378] sm:$0xff]
    %v4001 = vld [vmem:[%s3888 + $0x380] sm:$0xff]
    %v4002 = vld [vmem:[%s3888 + $0x388] sm:$0xff]
    %v4003 = vld [vmem:[%s3888 + $0x390] sm:$0xff]
    %v4004 = vld [vmem:[%s3888 + $0x398] sm:$0xff]
    %v4005 = vld [vmem:[%s3888 + $0x3a0] sm:$0xff]
    %v4006 = vld [vmem:[%s3888 + $0x3a8] sm:$0xff]
    %v4007 = vld [vmem:[%s3888 + $0x3b0] sm:$0xff]
    %v4008 = vld [vmem:[%s3888 + $0x3b8] sm:$0xff]
    %v4009 = vld [vmem:[%s3888 + $0x3c0] sm:$0xff]
    %v4010 = vld [vmem:[%s3888 + $0x3c8] sm:$0xff]
    %v4011 = vld [vmem:[%s3888 + $0x3d0] sm:$0xff]
    %v4012 = vld [vmem:[%s3888 + $0x3d8] sm:$0xff]
    %v4013 = vld [vmem:[%s3888 + $0x3e0] sm:$0xff]
    %v4014 = vld [vmem:[%s3888 + $0x3e8] sm:$0xff]
    %v4015 = vld [vmem:[%s3888 + $0x3f0] sm:$0xff]
    %v4016 = vld [vmem:[%s3888 + $0x3f8] sm:$0xff]
    %s4017 = scalar_lea.vmem [#allocation14], 6
    %v4018 = vld [vmem:[%s4017] sm:$0x3]
    %v4020 = vlaneseq
    %v4021 = vshrl.u32 %v4020, 7
    %v4022 = vsub.s32 0, %v4021
    %v4023 = vrot.slane %v4018, %v4022
    %v4024 = vlaneseq
    %v4025 = vshrl.u32 %v4024, 7
    %v4026 = vsub.s32 1, %v4025
    %v4027 = vrot.slane %v4018, %v4026
    %4030 = vmatprep.subr.mxu0 %v3920
    %4031 = vmatpush1.msra.mxu0 %v3919
    %4032 = vmatprep.subr.mxu0 %v3918
    %4033 = vmatpush1.msra.mxu0 %v3917
    %4034 = vmatprep.subr.mxu0 %v3916
    %4035 = vmatpush1.msra.mxu0 %v3915
    %4036 = vmatprep.subr.mxu0 %v3914
    %4037 = vmatpush1.msra.mxu0 %v3913
    %4038 = vmatprep.subr.mxu0 %v3912
    %4039 = vmatpush1.msra.mxu0 %v3911
    %4040 = vmatprep.subr.mxu0 %v3910
    %4041 = vmatpush1.msra.mxu0 %v3909
    %4042 = vmatprep.subr.mxu0 %v3908
    %4043 = vmatpush1.msra.mxu0 %v3907
    %4044 = vmatprep.subr.mxu0 %v3906
    %4045 = vmatpush1.msra.mxu0 %v3905
    %4046 = vmatprep.subr.mxu0 %v3904
    %4047 = vmatpush1.msra.mxu0 %v3903
    %4048 = vmatprep.subr.mxu0 %v3902
    %4049 = vmatpush1.msra.mxu0 %v3901
    %4050 = vmatprep.subr.mxu0 %v3900
    %4051 = vmatpush1.msra.mxu0 %v3899
    %4052 = vmatprep.subr.mxu0 %v3898
    %4053 = vmatpush1.msra.mxu0 %v3897
    %4054 = vmatprep.subr.mxu0 %v3896
    %4055 = vmatpush1.msra.mxu0 %v3895
    %4056 = vmatprep.subr.mxu0 %v3894
    %4057 = vmatpush1.msra.mxu0 %v3893
    %4058 = vmatprep.subr.mxu0 %v3892
    %4059 = vmatpush1.msra.mxu0 %v3891
    %4060 = vmatprep.subr.mxu0 %v3890
    %4061 = vmatpush1.msra.mxu0 %v3889
    %4062 = vmatprep.subr.mxu0 %v3952
    %4063 = vmatpush2.msra.mxu0 %v3951
    %4064 = vmatprep.subr.mxu0 %v3950
    %4065 = vmatpush2.msra.mxu0 %v3949
    %4066 = vmatprep.subr.mxu0 %v3948
    %4067 = vmatpush2.msra.mxu0 %v3947
    %4068 = vmatprep.subr.mxu0 %v3946
    %4069 = vmatpush2.msra.mxu0 %v3945
    %4070 = vmatprep.subr.mxu0 %v3944
    %4071 = vmatpush2.msra.mxu0 %v3943
    %4072 = vmatprep.subr.mxu0 %v3942
    %4073 = vmatpush2.msra.mxu0 %v3941
    %4074 = vmatprep.subr.mxu0 %v3940
    %4075 = vmatpush2.msra.mxu0 %v3939
    %4076 = vmatprep.subr.mxu0 %v3938
    %4077 = vmatpush2.msra.mxu0 %v3937
    %4078 = vmatprep.subr.mxu0 %v3936
    %4079 = vmatpush2.msra.mxu0 %v3935
    %4080 = vmatprep.subr.mxu0 %v3934
    %4081 = vmatpush2.msra.mxu0 %v3933
    %4082 = vmatprep.subr.mxu0 %v3932
    %4083 = vmatpush2.msra.mxu0 %v3931
    %4084 = vmatprep.subr.mxu0 %v3930
    %4085 = vmatpush2.msra.mxu0 %v3929
    %4086 = vmatprep.subr.mxu0 %v3928
    %4087 = vmatpush2.msra.mxu0 %v3927
    %4088 = vmatprep.subr.mxu0 %v3926
    %4089 = vmatpush2.msra.mxu0 %v3925
    %4090 = vmatprep.subr.mxu0 %v3924
    %4091 = vmatpush2.msra.mxu0 %v3923
    %4092 = vmatprep.subr.mxu0 %v3922
    %4093 = vmatpush2.msra.mxu0 %v3921
    %4094 = vmatprep.mubr.f32.mxu0 %v2028
    %4095 = vmatmul.mubr.f32.gmra.mxu0 %v2027
    %v4096 = vpop.f32.mrf.mxu0
    %v4097 = vadd.f32 %v4023, %v4096
    %v4098 = vpop.f32.mrf.mxu0
    %v4099 = vadd.f32 %v4027, %v4098
    %4100 = vdwg.mxu0
    %4101 = vmatprep.subr.mxu0 %v3984
    %4102 = vmatpush1.msra.mxu0 %v3983
    %4103 = vmatprep.subr.mxu0 %v3982
    %4104 = vmatpush1.msra.mxu0 %v3981
    %4105 = vmatprep.subr.mxu0 %v3980
    %4106 = vmatpush1.msra.mxu0 %v3979
    %4107 = vmatprep.subr.mxu0 %v3978
    %4108 = vmatpush1.msra.mxu0 %v3977
    %4109 = vmatprep.subr.mxu0 %v3976
    %4110 = vmatpush1.msra.mxu0 %v3975
    %4111 = vmatprep.subr.mxu0 %v3974
    %4112 = vmatpush1.msra.mxu0 %v3973
    %4113 = vmatprep.subr.mxu0 %v3972
    %4114 = vmatpush1.msra.mxu0 %v3971
    %4115 = vmatprep.subr.mxu0 %v3970
    %4116 = vmatpush1.msra.mxu0 %v3969
    %4117 = vmatprep.subr.mxu0 %v3968
    %4118 = vmatpush1.msra.mxu0 %v3967
    %4119 = vmatprep.subr.mxu0 %v3966
    %4120 = vmatpush1.msra.mxu0 %v3965
    %4121 = vmatprep.subr.mxu0 %v3964
    %4122 = vmatpush1.msra.mxu0 %v3963
    %4123 = vmatprep.subr.mxu0 %v3962
    %4124 = vmatpush1.msra.mxu0 %v3961
    %4125 = vmatprep.subr.mxu0 %v3960
    %4126 = vmatpush1.msra.mxu0 %v3959
    %4127 = vmatprep.subr.mxu0 %v3958
    %4128 = vmatpush1.msra.mxu0 %v3957
    %4129 = vmatprep.subr.mxu0 %v3956
    %4130 = vmatpush1.msra.mxu0 %v3955
    %4131 = vmatprep.subr.mxu0 %v3954
    %4132 = vmatpush1.msra.mxu0 %v3953
    %4133 = vmatprep.subr.mxu0 %v4016
    %4134 = vmatpush2.msra.mxu0 %v4015
    %4135 = vmatprep.subr.mxu0 %v4014
    %4136 = vmatpush2.msra.mxu0 %v4013
    %4137 = vmatprep.subr.mxu0 %v4012
    %4138 = vmatpush2.msra.mxu0 %v4011
    %4139 = vmatprep.subr.mxu0 %v4010
    %4140 = vmatpush2.msra.mxu0 %v4009
    %4141 = vmatprep.subr.mxu0 %v4008
    %4142 = vmatpush2.msra.mxu0 %v4007
    %4143 = vmatprep.subr.mxu0 %v4006
    %4144 = vmatpush2.msra.mxu0 %v4005
    %4145 = vmatprep.subr.mxu0 %v4004
    %4146 = vmatpush2.msra.mxu0 %v4003
    %4147 = vmatprep.subr.mxu0 %v4002
    %4148 = vmatpush2.msra.mxu0 %v4001
    %4149 = vmatprep.subr.mxu0 %v4000
    %4150 = vmatpush2.msra.mxu0 %v3999
    %4151 = vmatprep.subr.mxu0 %v3998
    %4152 = vmatpush2.msra.mxu0 %v3997
    %4153 = vmatprep.subr.mxu0 %v3996
    %4154 = vmatpush2.msra.mxu0 %v3995
    %4155 = vmatprep.subr.mxu0 %v3994
    %4156 = vmatpush2.msra.mxu0 %v3993
    %4157 = vmatprep.subr.mxu0 %v3992
    %4158 = vmatpush2.msra.mxu0 %v3991
    %4159 = vmatprep.subr.mxu0 %v3990
    %4160 = vmatpush2.msra.mxu0 %v3989
    %4161 = vmatprep.subr.mxu0 %v3988
    %4162 = vmatpush2.msra.mxu0 %v3987
    %4163 = vmatprep.subr.mxu0 %v3986
    %4164 = vmatpush2.msra.mxu0 %v3985
    %4165 = vmatprep.mubr.f32.mxu0 %v2860
    %4166 = vmatmul.mubr.f32.gmra.mxu0 %v2859
    %v4167 = vpop.f32.mrf.mxu0
    %v4168 = vadd.f32 %v4097, %v4167
    %v4169 = vpop.f32.mrf.mxu0
    %v4170 = vadd.f32 %v4099, %v4169
    %4171 = vdwg.mxu0
    %v4172 = vmax.f32 %v4168, 0.0
    %v4173 = vmax.f32 %v4170, 0.0
    %v4174 = vsel %vm641, %v4172, 0.0
    %v4175 = vrot.slane %v4174, 4
    %v4176 = vadd.f32 %v4174, %v4175
    %v4177 = vrot.slane %v4176, 2
    %v4178 = vadd.f32 %v4176, %v4177
    %v4179 = vrot.slane %v4178, 1
    %v4180 = vadd.f32 %v4178, %v4179
    %v4181 = vsel %vm641, %v4173, 0.0
    %v4182 = vrot.slane %v4181, 4
    %v4183 = vadd.f32 %v4181, %v4182
    %v4184 = vrot.slane %v4183, 2
    %v4185 = vadd.f32 %v4183, %v4184
    %v4186 = vrot.slane %v4185, 1
    %v4187 = vadd.f32 %v4185, %v4186
    %v4188 = vmul.f32 %v4180, %v656
    %v4189 = vmul.f32 %v4187, %v656
    %v4190 = vsub.f32 %v4172, %v4188
    %v4191 = vsub.f32 %v4173, %v4189
    %v4192 = vmul.f32 %v4190, %v4190
    %v4193 = vmul.f32 %v4191, %v4191
    %v4194 = vsel %vm641, %v4192, 0.0
    %v4195 = vrot.slane %v4194, 4
    %v4196 = vadd.f32 %v4194, %v4195
    %v4197 = vrot.slane %v4196, 2
    %v4198 = vadd.f32 %v4196, %v4197
    %v4199 = vrot.slane %v4198, 1
    %v4200 = vadd.f32 %v4198, %v4199
    %v4201 = vsel %vm641, %v4193, 0.0
    %v4202 = vrot.slane %v4201, 4
    %v4203 = vadd.f32 %v4201, %v4202
    %v4204 = vrot.slane %v4203, 2
    %v4205 = vadd.f32 %v4203, %v4204
    %v4206 = vrot.slane %v4205, 1
    %v4207 = vadd.f32 %v4205, %v4206
    %v4208 = vmul.f32 %v4200, %v656
    %v4209 = vmul.f32 %v4207, %v656
    %v4210 = vadd.f32 %v4208, 0.2
    %v4211 = vadd.f32 %v4209, 0.2
    %v4212 = vrsqrt.pop %v4210
    %v4213 = vrsqrt.pop %v4211
    %v4214 = vmul.f32 %v4190, %v4212
    %v4215 = vmul.f32 %v4191, %v4213
    %s4216 = scalar_lea.vmem %s5, 44
    %v4217 = vld [vmem:[%s4216] sm:$0xf]
    %v4220 = vunpack.c.l.s4 1983009808
    %v4221 = vunpack.c.0.s8 %v4220
    %v4222 = vlaneseq
    %v4223 = vshrl.u32 %v4222, 7
    %v4224 = vsub.s32 %v4221, %v4223
    %v4225 = vrot.slane %v4217, %v4224
    %v4226 = vcombine.high %v4225, %v4225
    %v4229 = vmul.f32 %v4214, %v4225
    %v4230 = vmul.f32 %v4215, %v4226
    %v4231 = vld [vmem:[#allocation16] sm:$0xff]
    %v4232 = vld [vmem:[#allocation16 + $0x8] sm:$0xff]
    %v4233 = vld [vmem:[#allocation16 + $0x10] sm:$0xff]
    %v4234 = vld [vmem:[#allocation16 + $0x18] sm:$0xff]
    %v4235 = vld [vmem:[#allocation16 + $0x20] sm:$0xff]
    %v4236 = vld [vmem:[#allocation16 + $0x28] sm:$0xff]
    %v4237 = vld [vmem:[#allocation16 + $0x30] sm:$0xff]
    %v4238 = vld [vmem:[#allocation16 + $0x38] sm:$0xff]
    %v4239 = vld [vmem:[#allocation16 + $0x40] sm:$0xff]
    %v4240 = vld [vmem:[#allocation16 + $0x48] sm:$0xff]
    %v4241 = vld [vmem:[#allocation16 + $0x50] sm:$0xff]
    %v4242 = vld [vmem:[#allocation16 + $0x58] sm:$0xff]
    %v4243 = vld [vmem:[#allocation16 + $0x60] sm:$0xff]
    %v4244 = vld [vmem:[#allocation16 + $0x68] sm:$0xff]
    %v4245 = vld [vmem:[#allocation16 + $0x70] sm:$0xff]
    %v4246 = vld [vmem:[#allocation16 + $0x78] sm:$0xff]
    %v4247 = vld [vmem:[#allocation16 + $0x80] sm:$0xff]
    %v4248 = vld [vmem:[#allocation16 + $0x88] sm:$0xff]
    %v4249 = vld [vmem:[#allocation16 + $0x90] sm:$0xff]
    %v4250 = vld [vmem:[#allocation16 + $0x98] sm:$0xff]
    %v4251 = vld [vmem:[#allocation16 + $0xa0] sm:$0xff]
    %v4252 = vld [vmem:[#allocation16 + $0xa8] sm:$0xff]
    %v4253 = vld [vmem:[#allocation16 + $0xb0] sm:$0xff]
    %v4254 = vld [vmem:[#allocation16 + $0xb8] sm:$0xff]
    %v4255 = vld [vmem:[#allocation16 + $0xc0] sm:$0xff]
    %v4256 = vld [vmem:[#allocation16 + $0xc8] sm:$0xff]
    %v4257 = vld [vmem:[#allocation16 + $0xd0] sm:$0xff]
    %v4258 = vld [vmem:[#allocation16 + $0xd8] sm:$0xff]
    %v4259 = vld [vmem:[#allocation16 + $0xe0] sm:$0xff]
    %v4260 = vld [vmem:[#allocation16 + $0xe8] sm:$0xff]
    %v4261 = vld [vmem:[#allocation16 + $0xf0] sm:$0xff]
    %v4262 = vld [vmem:[#allocation16 + $0xf8] sm:$0xff]
    %v4263 = vld [vmem:[#allocation17] sm:$0x1]
    %v4265 = vlaneseq
    %v4266 = vshrl.u32 %v4265, 7
    %v4267 = vsub.s32 0, %v4266
    %v4268 = vrot.slane %v4263, %v4267
    %4270 = vmatprep.subr.mxu0 0.0
    %4271 = vmatpush1.msra.mxu0 %v4246
    %4272 = vmatprep.subr.mxu0 0.0
    %4273 = vmatpush1.msra.mxu0 %v4245
    %4274 = vmatprep.subr.mxu0 0.0
    %4275 = vmatpush1.msra.mxu0 %v4244
    %4276 = vmatprep.subr.mxu0 0.0
    %4277 = vmatpush1.msra.mxu0 %v4243
    %4278 = vmatprep.subr.mxu0 0.0
    %4279 = vmatpush1.msra.mxu0 %v4242
    %4280 = vmatprep.subr.mxu0 0.0
    %4281 = vmatpush1.msra.mxu0 %v4241
    %4282 = vmatprep.subr.mxu0 0.0
    %4283 = vmatpush1.msra.mxu0 %v4240
    %4284 = vmatprep.subr.mxu0 0.0
    %4285 = vmatpush1.msra.mxu0 %v4239
    %4286 = vmatprep.subr.mxu0 0.0
    %4287 = vmatpush1.msra.mxu0 %v4238
    %4288 = vmatprep.subr.mxu0 0.0
    %4289 = vmatpush1.msra.mxu0 %v4237
    %4290 = vmatprep.subr.mxu0 0.0
    %4291 = vmatpush1.msra.mxu0 %v4236
    %4292 = vmatprep.subr.mxu0 0.0
    %4293 = vmatpush1.msra.mxu0 %v4235
    %4294 = vmatprep.subr.mxu0 0.0
    %4295 = vmatpush1.msra.mxu0 %v4234
    %4296 = vmatprep.subr.mxu0 0.0
    %4297 = vmatpush1.msra.mxu0 %v4233
    %4298 = vmatprep.subr.mxu0 0.0
    %4299 = vmatpush1.msra.mxu0 %v4232
    %4300 = vmatprep.subr.mxu0 0.0
    %4301 = vmatpush1.msra.mxu0 %v4231
    %4302 = vmatprep.subr.mxu0 0.0
    %4303 = vmatpush2.msra.mxu0 %v4262
    %4304 = vmatprep.subr.mxu0 0.0
    %4305 = vmatpush2.msra.mxu0 %v4261
    %4306 = vmatprep.subr.mxu0 0.0
    %4307 = vmatpush2.msra.mxu0 %v4260
    %4308 = vmatprep.subr.mxu0 0.0
    %4309 = vmatpush2.msra.mxu0 %v4259
    %4310 = vmatprep.subr.mxu0 0.0
    %4311 = vmatpush2.msra.mxu0 %v4258
    %4312 = vmatprep.subr.mxu0 0.0
    %4313 = vmatpush2.msra.mxu0 %v4257
    %4314 = vmatprep.subr.mxu0 0.0
    %4315 = vmatpush2.msra.mxu0 %v4256
    %4316 = vmatprep.subr.mxu0 0.0
    %4317 = vmatpush2.msra.mxu0 %v4255
    %4318 = vmatprep.subr.mxu0 0.0
    %4319 = vmatpush2.msra.mxu0 %v4254
    %4320 = vmatprep.subr.mxu0 0.0
    %4321 = vmatpush2.msra.mxu0 %v4253
    %4322 = vmatprep.subr.mxu0 0.0
    %4323 = vmatpush2.msra.mxu0 %v4252
    %4324 = vmatprep.subr.mxu0 0.0
    %4325 = vmatpush2.msra.mxu0 %v4251
    %4326 = vmatprep.subr.mxu0 0.0
    %4327 = vmatpush2.msra.mxu0 %v4250
    %4328 = vmatprep.subr.mxu0 0.0
    %4329 = vmatpush2.msra.mxu0 %v4249
    %4330 = vmatprep.subr.mxu0 0.0
    %4331 = vmatpush2.msra.mxu0 %v4248
    %4332 = vmatprep.subr.mxu0 0.0
    %4333 = vmatpush2.msra.mxu0 %v4247
    %4334 = vmatprep.mubr.f32.mxu0 %v3201
    %4335 = vmatmul.mubr.f32.gmra.mxu0 %v3200
    %v4336 = vpop.f32.mrf.mxu0
    %v4337 = vadd.f32 %v4268, %v4336
    %v4338 = vpop.f32.mrf.mxu0
    %4339 = vdwg.mxu0
    %v4340 = vmax.f32 %v4337, 0.0
    %v4341 = vsel %vm641, %v4340, 0.0
    %v4342 = vrot.slane %v4341, 4
    %v4343 = vadd.f32 %v4341, %v4342
    %v4344 = vrot.slane %v4343, 2
    %v4345 = vadd.f32 %v4343, %v4344
    %v4346 = vrot.slane %v4345, 1
    %v4347 = vadd.f32 %v4345, %v4346
    %v4348 = vmul.f32 %v4347, %v656
    %v4349 = vsub.f32 %v4340, %v4348
    %v4350 = vmul.f32 %v4349, %v4349
    %v4351 = vsel %vm641, %v4350, 0.0
    %v4352 = vrot.slane %v4351, 4
    %v4353 = vadd.f32 %v4351, %v4352
    %v4354 = vrot.slane %v4353, 2
    %v4355 = vadd.f32 %v4353, %v4354
    %v4356 = vrot.slane %v4355, 1
    %v4357 = vadd.f32 %v4355, %v4356
    %v4358 = vmul.f32 %v4357, %v656
    %v4359 = vadd.f32 %v4358, 0.2
    %v4360 = vrsqrt.pop %v4359
    %v4361 = vmul.f32 %v4349, %v4360
    %4362 = vmatprep.subr.mxu0 0.0
    %4363 = vmatpush1.msra.mxu0 %v4246
    %4364 = vmatprep.subr.mxu0 0.0
    %4365 = vmatpush1.msra.mxu0 %v4245
    %4366 = vmatprep.subr.mxu0 0.0
    %4367 = vmatpush1.msra.mxu0 %v4244
    %4368 = vmatprep.subr.mxu0 0.0
    %4369 = vmatpush1.msra.mxu0 %v4243
    %4370 = vmatprep.subr.mxu0 0.0
    %4371 = vmatpush1.msra.mxu0 %v4242
    %4372 = vmatprep.subr.mxu0 0.0
    %4373 = vmatpush1.msra.mxu0 %v4241
    %4374 = vmatprep.subr.mxu0 0.0
    %4375 = vmatpush1.msra.mxu0 %v4240
    %4376 = vmatprep.subr.mxu0 0.0
    %4377 = vmatpush1.msra.mxu0 %v4239
    %4378 = vmatprep.subr.mxu0 0.0
    %4379 = vmatpush1.msra.mxu0 %v4238
    %4380 = vmatprep.subr.mxu0 0.0
    %4381 = vmatpush1.msra.mxu0 %v4237
    %4382 = vmatprep.subr.mxu0 0.0
    %4383 = vmatpush1.msra.mxu0 %v4236
    %4384 = vmatprep.subr.mxu0 0.0
    %4385 = vmatpush1.msra.mxu0 %v4235
    %4386 = vmatprep.subr.mxu0 0.0
    %4387 = vmatpush1.msra.mxu0 %v4234
    %4388 = vmatprep.subr.mxu0 0.0
    %4389 = vmatpush1.msra.mxu0 %v4233
    %4390 = vmatprep.subr.mxu0 0.0
    %4391 = vmatpush1.msra.mxu0 %v4232
    %4392 = vmatprep.subr.mxu0 0.0
    %4393 = vmatpush1.msra.mxu0 %v4231
    %4394 = vmatprep.subr.mxu0 0.0
    %4395 = vmatpush2.msra.mxu0 %v4262
    %4396 = vmatprep.subr.mxu0 0.0
    %4397 = vmatpush2.msra.mxu0 %v4261
    %4398 = vmatprep.subr.mxu0 0.0
    %4399 = vmatpush2.msra.mxu0 %v4260
    %4400 = vmatprep.subr.mxu0 0.0
    %4401 = vmatpush2.msra.mxu0 %v4259
    %4402 = vmatprep.subr.mxu0 0.0
    %4403 = vmatpush2.msra.mxu0 %v4258
    %4404 = vmatprep.subr.mxu0 0.0
    %4405 = vmatpush2.msra.mxu0 %v4257
    %4406 = vmatprep.subr.mxu0 0.0
    %4407 = vmatpush2.msra.mxu0 %v4256
    %4408 = vmatprep.subr.mxu0 0.0
    %4409 = vmatpush2.msra.mxu0 %v4255
    %4410 = vmatprep.subr.mxu0 0.0
    %4411 = vmatpush2.msra.mxu0 %v4254
    %4412 = vmatprep.subr.mxu0 0.0
    %4413 = vmatpush2.msra.mxu0 %v4253
    %4414 = vmatprep.subr.mxu0 0.0
    %4415 = vmatpush2.msra.mxu0 %v4252
    %4416 = vmatprep.subr.mxu0 0.0
    %4417 = vmatpush2.msra.mxu0 %v4251
    %4418 = vmatprep.subr.mxu0 0.0
    %4419 = vmatpush2.msra.mxu0 %v4250
    %4420 = vmatprep.subr.mxu0 0.0
    %4421 = vmatpush2.msra.mxu0 %v4249
    %4422 = vmatprep.subr.mxu0 0.0
    %4423 = vmatpush2.msra.mxu0 %v4248
    %4424 = vmatprep.subr.mxu0 0.0
    %4425 = vmatpush2.msra.mxu0 %v4247
    %4426 = vmatprep.mubr.f32.mxu0 %v3544
    %4427 = vmatmul.mubr.f32.gmra.mxu0 %v3543
    %v4428 = vpop.f32.mrf.mxu0
    %v4429 = vadd.f32 %v4268, %v4428
    %v4430 = vpop.f32.mrf.mxu0
    %4431 = vdwg.mxu0
    %v4432 = vmax.f32 %v4429, 0.0
    %v4433 = vsel %vm641, %v4432, 0.0
    %v4434 = vrot.slane %v4433, 4
    %v4435 = vadd.f32 %v4433, %v4434
    %v4436 = vrot.slane %v4435, 2
    %v4437 = vadd.f32 %v4435, %v4436
    %v4438 = vrot.slane %v4437, 1
    %v4439 = vadd.f32 %v4437, %v4438
    %v4440 = vmul.f32 %v4439, %v656
    %v4441 = vsub.f32 %v4432, %v4440
    %v4442 = vmul.f32 %v4441, %v4441
    %v4443 = vsel %vm641, %v4442, 0.0
    %v4444 = vrot.slane %v4443, 4
    %v4445 = vadd.f32 %v4443, %v4444
    %v4446 = vrot.slane %v4445, 2
    %v4447 = vadd.f32 %v4445, %v4446
    %v4448 = vrot.slane %v4447, 1
    %v4449 = vadd.f32 %v4447, %v4448
    %v4450 = vmul.f32 %v4449, %v656
    %v4451 = vadd.f32 %v4450, 0.2
    %v4452 = vrsqrt.pop %v4451
    %v4453 = vmul.f32 %v4441, %v4452
    %4454 = vmatprep.subr.mxu0 0.0
    %4455 = vmatpush1.msra.mxu0 %v4246
    %4456 = vmatprep.subr.mxu0 0.0
    %4457 = vmatpush1.msra.mxu0 %v4245
    %4458 = vmatprep.subr.mxu0 0.0
    %4459 = vmatpush1.msra.mxu0 %v4244
    %4460 = vmatprep.subr.mxu0 0.0
    %4461 = vmatpush1.msra.mxu0 %v4243
    %4462 = vmatprep.subr.mxu0 0.0
    %4463 = vmatpush1.msra.mxu0 %v4242
    %4464 = vmatprep.subr.mxu0 0.0
    %4465 = vmatpush1.msra.mxu0 %v4241
    %4466 = vmatprep.subr.mxu0 0.0
    %4467 = vmatpush1.msra.mxu0 %v4240
    %4468 = vmatprep.subr.mxu0 0.0
    %4469 = vmatpush1.msra.mxu0 %v4239
    %4470 = vmatprep.subr.mxu0 0.0
    %4471 = vmatpush1.msra.mxu0 %v4238
    %4472 = vmatprep.subr.mxu0 0.0
    %4473 = vmatpush1.msra.mxu0 %v4237
    %4474 = vmatprep.subr.mxu0 0.0
    %4475 = vmatpush1.msra.mxu0 %v4236
    %4476 = vmatprep.subr.mxu0 0.0
    %4477 = vmatpush1.msra.mxu0 %v4235
    %4478 = vmatprep.subr.mxu0 0.0
    %4479 = vmatpush1.msra.mxu0 %v4234
    %4480 = vmatprep.subr.mxu0 0.0
    %4481 = vmatpush1.msra.mxu0 %v4233
    %4482 = vmatprep.subr.mxu0 0.0
    %4483 = vmatpush1.msra.mxu0 %v4232
    %4484 = vmatprep.subr.mxu0 0.0
    %4485 = vmatpush1.msra.mxu0 %v4231
    %4486 = vmatprep.subr.mxu0 0.0
    %4487 = vmatpush2.msra.mxu0 %v4262
    %4488 = vmatprep.subr.mxu0 0.0
    %4489 = vmatpush2.msra.mxu0 %v4261
    %4490 = vmatprep.subr.mxu0 0.0
    %4491 = vmatpush2.msra.mxu0 %v4260
    %4492 = vmatprep.subr.mxu0 0.0
    %4493 = vmatpush2.msra.mxu0 %v4259
    %4494 = vmatprep.subr.mxu0 0.0
    %4495 = vmatpush2.msra.mxu0 %v4258
    %4496 = vmatprep.subr.mxu0 0.0
    %4497 = vmatpush2.msra.mxu0 %v4257
    %4498 = vmatprep.subr.mxu0 0.0
    %4499 = vmatpush2.msra.mxu0 %v4256
    %4500 = vmatprep.subr.mxu0 0.0
    %4501 = vmatpush2.msra.mxu0 %v4255
    %4502 = vmatprep.subr.mxu0 0.0
    %4503 = vmatpush2.msra.mxu0 %v4254
    %4504 = vmatprep.subr.mxu0 0.0
    %4505 = vmatpush2.msra.mxu0 %v4253
    %4506 = vmatprep.subr.mxu0 0.0
    %4507 = vmatpush2.msra.mxu0 %v4252
    %4508 = vmatprep.subr.mxu0 0.0
    %4509 = vmatpush2.msra.mxu0 %v4251
    %4510 = vmatprep.subr.mxu0 0.0
    %4511 = vmatpush2.msra.mxu0 %v4250
    %4512 = vmatprep.subr.mxu0 0.0
    %4513 = vmatpush2.msra.mxu0 %v4249
    %4514 = vmatprep.subr.mxu0 0.0
    %4515 = vmatpush2.msra.mxu0 %v4248
    %4516 = vmatprep.subr.mxu0 0.0
    %4517 = vmatpush2.msra.mxu0 %v4247
    %4518 = vmatprep.mubr.f32.mxu0 %v3887
    %4519 = vmatmul.mubr.f32.gmra.mxu0 %v3886
    %v4520 = vpop.f32.mrf.mxu0
    %v4521 = vadd.f32 %v4268, %v4520
    %v4522 = vpop.f32.mrf.mxu0
    %4523 = vdwg.mxu0
    %v4524 = vmax.f32 %v4521, 0.0
    %v4525 = vsel %vm641, %v4524, 0.0
    %v4526 = vrot.slane %v4525, 4
    %v4527 = vadd.f32 %v4525, %v4526
    %v4528 = vrot.slane %v4527, 2
    %v4529 = vadd.f32 %v4527, %v4528
    %v4530 = vrot.slane %v4529, 1
    %v4531 = vadd.f32 %v4529, %v4530
    %v4532 = vmul.f32 %v4531, %v656
    %v4533 = vsub.f32 %v4524, %v4532
    %v4534 = vmul.f32 %v4533, %v4533
    %v4535 = vsel %vm641, %v4534, 0.0
    %v4536 = vrot.slane %v4535, 4
    %v4537 = vadd.f32 %v4535, %v4536
    %v4538 = vrot.slane %v4537, 2
    %v4539 = vadd.f32 %v4537, %v4538
    %v4540 = vrot.slane %v4539, 1
    %v4541 = vadd.f32 %v4539, %v4540
    %v4542 = vmul.f32 %v4541, %v656
    %v4543 = vadd.f32 %v4542, 0.2
    %v4544 = vrsqrt.pop %v4543
    %v4545 = vmul.f32 %v4533, %v4544
    %4546 = vmatprep.subr.mxu0 0.0
    %4547 = vmatpush1.msra.mxu0 %v4246
    %4548 = vmatprep.subr.mxu0 0.0
    %4549 = vmatpush1.msra.mxu0 %v4245
    %4550 = vmatprep.subr.mxu0 0.0
    %4551 = vmatpush1.msra.mxu0 %v4244
    %4552 = vmatprep.subr.mxu0 0.0
    %4553 = vmatpush1.msra.mxu0 %v4243
    %4554 = vmatprep.subr.mxu0 0.0
    %4555 = vmatpush1.msra.mxu0 %v4242
    %4556 = vmatprep.subr.mxu0 0.0
    %4557 = vmatpush1.msra.mxu0 %v4241
    %4558 = vmatprep.subr.mxu0 0.0
    %4559 = vmatpush1.msra.mxu0 %v4240
    %4560 = vmatprep.subr.mxu0 0.0
    %4561 = vmatpush1.msra.mxu0 %v4239
    %4562 = vmatprep.subr.mxu0 0.0
    %4563 = vmatpush1.msra.mxu0 %v4238
    %4564 = vmatprep.subr.mxu0 0.0
    %4565 = vmatpush1.msra.mxu0 %v4237
    %4566 = vmatprep.subr.mxu0 0.0
    %4567 = vmatpush1.msra.mxu0 %v4236
    %4568 = vmatprep.subr.mxu0 0.0
    %4569 = vmatpush1.msra.mxu0 %v4235
    %4570 = vmatprep.subr.mxu0 0.0
    %4571 = vmatpush1.msra.mxu0 %v4234
    %4572 = vmatprep.subr.mxu0 0.0
    %4573 = vmatpush1.msra.mxu0 %v4233
    %4574 = vmatprep.subr.mxu0 0.0
    %4575 = vmatpush1.msra.mxu0 %v4232
    %4576 = vmatprep.subr.mxu0 0.0
    %4577 = vmatpush1.msra.mxu0 %v4231
    %4578 = vmatprep.subr.mxu0 0.0
    %4579 = vmatpush2.msra.mxu0 %v4262
    %4580 = vmatprep.subr.mxu0 0.0
    %4581 = vmatpush2.msra.mxu0 %v4261
    %4582 = vmatprep.subr.mxu0 0.0
    %4583 = vmatpush2.msra.mxu0 %v4260
    %4584 = vmatprep.subr.mxu0 0.0
    %4585 = vmatpush2.msra.mxu0 %v4259
    %4586 = vmatprep.subr.mxu0 0.0
    %4587 = vmatpush2.msra.mxu0 %v4258
    %4588 = vmatprep.subr.mxu0 0.0
    %4589 = vmatpush2.msra.mxu0 %v4257
    %4590 = vmatprep.subr.mxu0 0.0
    %4591 = vmatpush2.msra.mxu0 %v4256
    %4592 = vmatprep.subr.mxu0 0.0
    %4593 = vmatpush2.msra.mxu0 %v4255
    %4594 = vmatprep.subr.mxu0 0.0
    %4595 = vmatpush2.msra.mxu0 %v4254
    %4596 = vmatprep.subr.mxu0 0.0
    %4597 = vmatpush2.msra.mxu0 %v4253
    %4598 = vmatprep.subr.mxu0 0.0
    %4599 = vmatpush2.msra.mxu0 %v4252
    %4600 = vmatprep.subr.mxu0 0.0
    %4601 = vmatpush2.msra.mxu0 %v4251
    %4602 = vmatprep.subr.mxu0 0.0
    %4603 = vmatpush2.msra.mxu0 %v4250
    %4604 = vmatprep.subr.mxu0 0.0
    %4605 = vmatpush2.msra.mxu0 %v4249
    %4606 = vmatprep.subr.mxu0 0.0
    %4607 = vmatpush2.msra.mxu0 %v4248
    %4608 = vmatprep.subr.mxu0 0.0
    %4609 = vmatpush2.msra.mxu0 %v4247
    %4610 = vmatprep.mubr.f32.mxu0 %v4230
    %4611 = vmatmul.mubr.f32.gmra.mxu0 %v4229
    %v4612 = vpop.f32.mrf.mxu0
    %v4613 = vadd.f32 %v4268, %v4612
    %v4614 = vpop.f32.mrf.mxu0
    %4615 = vdwg.mxu0
    %v4616 = vmax.f32 %v4613, 0.0
    %v4617 = vsel %vm641, %v4616, 0.0
    %v4618 = vrot.slane %v4617, 4
    %v4619 = vadd.f32 %v4617, %v4618
    %v4620 = vrot.slane %v4619, 2
    %v4621 = vadd.f32 %v4619, %v4620
    %v4622 = vrot.slane %v4621, 1
    %v4623 = vadd.f32 %v4621, %v4622
    %v4624 = vmul.f32 %v4623, %v656
    %v4625 = vsub.f32 %v4616, %v4624
    %v4626 = vmul.f32 %v4625, %v4625
    %v4627 = vsel %vm641, %v4626, 0.0
    %v4628 = vrot.slane %v4627, 4
    %v4629 = vadd.f32 %v4627, %v4628
    %v4630 = vrot.slane %v4629, 2
    %v4631 = vadd.f32 %v4629, %v4630
    %v4632 = vrot.slane %v4631, 1
    %v4633 = vadd.f32 %v4631, %v4632
    %v4634 = vmul.f32 %v4633, %v656
    %v4635 = vadd.f32 %v4634, 0.2
    %v4636 = vrsqrt.pop %v4635
    %v4637 = vmul.f32 %v4625, %v4636
    %v4638 = vld [vmem:[%s27] sm:$0xff]
    %v4639 = vld [vmem:[%s27 + $0x8] sm:$0xff]
    %v4640 = vld [vmem:[%s27 + $0x10] sm:$0xff]
    %v4641 = vld [vmem:[%s27 + $0x18] sm:$0xff]
    %v4642 = vld [vmem:[%s27 + $0x20] sm:$0xff]
    %v4643 = vld [vmem:[%s27 + $0x28] sm:$0xff]
    %v4644 = vld [vmem:[%s27 + $0x30] sm:$0xff]
    %v4645 = vld [vmem:[%s27 + $0x38] sm:$0xff]
    %v4646 = vld [vmem:[%s27 + $0x40] sm:$0xff]
    %v4647 = vld [vmem:[%s27 + $0x48] sm:$0xff]
    %v4648 = vld [vmem:[%s27 + $0x50] sm:$0xff]
    %v4649 = vld [vmem:[%s27 + $0x58] sm:$0xff]
    %v4650 = vld [vmem:[%s27 + $0x60] sm:$0xff]
    %v4651 = vld [vmem:[%s27 + $0x68] sm:$0xff]
    %v4652 = vld [vmem:[%s27 + $0x70] sm:$0xff]
    %v4653 = vld [vmem:[%s27 + $0x78] sm:$0xff]
    %v4654 = vld [vmem:[#allocation19] sm:$0x1]
    %v4656 = vlaneseq
    %v4657 = vshrl.u32 %v4656, 7
    %v4658 = vsub.s32 0, %v4657
    %v4659 = vrot.slane %v4654, %v4658
    %4661 = vmatprep.subr.mxu0 0.0
    %4662 = vmatpush1.msra.mxu0 %v4653
    %4663 = vmatprep.subr.mxu0 0.0
    %4664 = vmatpush1.msra.mxu0 %v4652
    %4665 = vmatprep.subr.mxu0 0.0
    %4666 = vmatpush1.msra.mxu0 %v4651
    %4667 = vmatprep.subr.mxu0 0.0
    %4668 = vmatpush1.msra.mxu0 %v4650
    %4669 = vmatprep.subr.mxu0 0.0
    %4670 = vmatpush1.msra.mxu0 %v4649
    %4671 = vmatprep.subr.mxu0 0.0
    %4672 = vmatpush1.msra.mxu0 %v4648
    %4673 = vmatprep.subr.mxu0 0.0
    %4674 = vmatpush1.msra.mxu0 %v4647
    %4675 = vmatprep.subr.mxu0 0.0
    %4676 = vmatpush1.msra.mxu0 %v4646
    %4677 = vmatprep.subr.mxu0 0.0
    %4678 = vmatpush1.msra.mxu0 %v4645
    %4679 = vmatprep.subr.mxu0 0.0
    %4680 = vmatpush1.msra.mxu0 %v4644
    %4681 = vmatprep.subr.mxu0 0.0
    %4682 = vmatpush1.msra.mxu0 %v4643
    %4683 = vmatprep.subr.mxu0 0.0
    %4684 = vmatpush1.msra.mxu0 %v4642
    %4685 = vmatprep.subr.mxu0 0.0
    %4686 = vmatpush1.msra.mxu0 %v4641
    %4687 = vmatprep.subr.mxu0 0.0
    %4688 = vmatpush1.msra.mxu0 %v4640
    %4689 = vmatprep.subr.mxu0 0.0
    %4690 = vmatpush1.msra.mxu0 %v4639
    %4691 = vmatprep.subr.mxu0 0.0
    %4692 = vmatpush1.msra.mxu0 %v4638
    %4693 = vmatprep.subr.mxu0 0.0
    %4694 = vmatpush2.msra.mxu0 0.0
    %4695 = vmatprep.subr.mxu0 0.0
    %4696 = vmatpush2.msra.mxu0 0.0
    %4697 = vmatprep.subr.mxu0 0.0
    %4698 = vmatpush2.msra.mxu0 0.0
    %4699 = vmatprep.subr.mxu0 0.0
    %4700 = vmatpush2.msra.mxu0 0.0
    %4701 = vmatprep.subr.mxu0 0.0
    %4702 = vmatpush2.msra.mxu0 0.0
    %4703 = vmatprep.subr.mxu0 0.0
    %4704 = vmatpush2.msra.mxu0 0.0
    %4705 = vmatprep.subr.mxu0 0.0
    %4706 = vmatpush2.msra.mxu0 0.0
    %4707 = vmatprep.subr.mxu0 0.0
    %4708 = vmatpush2.msra.mxu0 0.0
    %4709 = vmatprep.subr.mxu0 0.0
    %4710 = vmatpush2.msra.mxu0 0.0
    %4711 = vmatprep.subr.mxu0 0.0
    %4712 = vmatpush2.msra.mxu0 0.0
    %4713 = vmatprep.subr.mxu0 0.0
    %4714 = vmatpush2.msra.mxu0 0.0
    %4715 = vmatprep.subr.mxu0 0.0
    %4716 = vmatpush2.msra.mxu0 0.0
    %4717 = vmatprep.subr.mxu0 0.0
    %4718 = vmatpush2.msra.mxu0 0.0
    %4719 = vmatprep.subr.mxu0 0.0
    %4720 = vmatpush2.msra.mxu0 0.0
    %4721 = vmatprep.subr.mxu0 0.0
    %4722 = vmatpush2.msra.mxu0 0.0
    %4723 = vmatprep.subr.mxu0 0.0
    %4724 = vmatpush2.msra.mxu0 0.0
    %4725 = vmatprep.mubr.f32.mxu0 0.0
    %4726 = vmatmul.mubr.f32.gmra.mxu0 %v4361
    %v4727 = vpop.f32.mrf.mxu0
    %v4728 = vadd.f32 %v4659, %v4727
    %v4729 = vpop.f32.mrf.mxu0
    %4730 = vdwg.mxu0
    %v4731 = vmax.f32 %v4728, 0.0
    %vm4732 = vcmask 517120
    %v4733 = vsel %vm4732, %v4731, 0.0
    %v4734 = vrot.slane %v4733, 4
    %v4735 = vadd.f32 %v4733, %v4734
    %v4736 = vrot.slane %v4735, 2
    %v4737 = vadd.f32 %v4735, %v4736
    %v4738 = vrot.slane %v4737, 1
    %v4739 = vadd.f32 %v4737, %v4738
    %v4740 = vmul.f32 %v4739, %v656
    %v4741 = vsub.f32 %v4731, %v4740
    %v4742 = vmul.f32 %v4741, %v4741
    %v4743 = vsel %vm4732, %v4742, 0.0
    %v4744 = vrot.slane %v4743, 4
    %v4745 = vadd.f32 %v4743, %v4744
    %v4746 = vrot.slane %v4745, 2
    %v4747 = vadd.f32 %v4745, %v4746
    %v4748 = vrot.slane %v4747, 1
    %v4749 = vadd.f32 %v4747, %v4748
    %v4750 = vmul.f32 %v4749, %v656
    %v4751 = vadd.f32 %v4750, 0.2
    %v4752 = vrsqrt.pop %v4751
    %v4753 = vmul.f32 %v4741, %v4752
    %4754 = vmatprep.subr.mxu0 0.0
    %4755 = vmatpush1.msra.mxu0 %v4653
    %4756 = vmatprep.subr.mxu0 0.0
    %4757 = vmatpush1.msra.mxu0 %v4652
    %4758 = vmatprep.subr.mxu0 0.0
    %4759 = vmatpush1.msra.mxu0 %v4651
    %4760 = vmatprep.subr.mxu0 0.0
    %4761 = vmatpush1.msra.mxu0 %v4650
    %4762 = vmatprep.subr.mxu0 0.0
    %4763 = vmatpush1.msra.mxu0 %v4649
    %4764 = vmatprep.subr.mxu0 0.0
    %4765 = vmatpush1.msra.mxu0 %v4648
    %4766 = vmatprep.subr.mxu0 0.0
    %4767 = vmatpush1.msra.mxu0 %v4647
    %4768 = vmatprep.subr.mxu0 0.0
    %4769 = vmatpush1.msra.mxu0 %v4646
    %4770 = vmatprep.subr.mxu0 0.0
    %4771 = vmatpush1.msra.mxu0 %v4645
    %4772 = vmatprep.subr.mxu0 0.0
    %4773 = vmatpush1.msra.mxu0 %v4644
    %4774 = vmatprep.subr.mxu0 0.0
    %4775 = vmatpush1.msra.mxu0 %v4643
    %4776 = vmatprep.subr.mxu0 0.0
    %4777 = vmatpush1.msra.mxu0 %v4642
    %4778 = vmatprep.subr.mxu0 0.0
    %4779 = vmatpush1.msra.mxu0 %v4641
    %4780 = vmatprep.subr.mxu0 0.0
    %4781 = vmatpush1.msra.mxu0 %v4640
    %4782 = vmatprep.subr.mxu0 0.0
    %4783 = vmatpush1.msra.mxu0 %v4639
    %4784 = vmatprep.subr.mxu0 0.0
    %4785 = vmatpush1.msra.mxu0 %v4638
    %4786 = vmatprep.subr.mxu0 0.0
    %4787 = vmatpush2.msra.mxu0 0.0
    %4788 = vmatprep.subr.mxu0 0.0
    %4789 = vmatpush2.msra.mxu0 0.0
    %4790 = vmatprep.subr.mxu0 0.0
    %4791 = vmatpush2.msra.mxu0 0.0
    %4792 = vmatprep.subr.mxu0 0.0
    %4793 = vmatpush2.msra.mxu0 0.0
    %4794 = vmatprep.subr.mxu0 0.0
    %4795 = vmatpush2.msra.mxu0 0.0
    %4796 = vmatprep.subr.mxu0 0.0
    %4797 = vmatpush2.msra.mxu0 0.0
    %4798 = vmatprep.subr.mxu0 0.0
    %4799 = vmatpush2.msra.mxu0 0.0
    %4800 = vmatprep.subr.mxu0 0.0
    %4801 = vmatpush2.msra.mxu0 0.0
    %4802 = vmatprep.subr.mxu0 0.0
    %4803 = vmatpush2.msra.mxu0 0.0
    %4804 = vmatprep.subr.mxu0 0.0
    %4805 = vmatpush2.msra.mxu0 0.0
    %4806 = vmatprep.subr.mxu0 0.0
    %4807 = vmatpush2.msra.mxu0 0.0
    %4808 = vmatprep.subr.mxu0 0.0
    %4809 = vmatpush2.msra.mxu0 0.0
    %4810 = vmatprep.subr.mxu0 0.0
    %4811 = vmatpush2.msra.mxu0 0.0
    %4812 = vmatprep.subr.mxu0 0.0
    %4813 = vmatpush2.msra.mxu0 0.0
    %4814 = vmatprep.subr.mxu0 0.0
    %4815 = vmatpush2.msra.mxu0 0.0
    %4816 = vmatprep.subr.mxu0 0.0
    %4817 = vmatpush2.msra.mxu0 0.0
    %4818 = vmatprep.mubr.f32.mxu0 0.0
    %4819 = vmatmul.mubr.f32.gmra.mxu0 %v4453
    %v4820 = vpop.f32.mrf.mxu0
    %v4821 = vadd.f32 %v4659, %v4820
    %v4822 = vpop.f32.mrf.mxu0
    %4823 = vdwg.mxu0
    %v4824 = vmax.f32 %v4821, 0.0
    %v4825 = vsel %vm4732, %v4824, 0.0
    %v4826 = vrot.slane %v4825, 4
    %v4827 = vadd.f32 %v4825, %v4826
    %v4828 = vrot.slane %v4827, 2
    %v4829 = vadd.f32 %v4827, %v4828
    %v4830 = vrot.slane %v4829, 1
    %v4831 = vadd.f32 %v4829, %v4830
    %v4832 = vmul.f32 %v4831, %v656
    %v4833 = vsub.f32 %v4824, %v4832
    %v4834 = vmul.f32 %v4833, %v4833
    %v4835 = vsel %vm4732, %v4834, 0.0
    %v4836 = vrot.slane %v4835, 4
    %v4837 = vadd.f32 %v4835, %v4836
    %v4838 = vrot.slane %v4837, 2
    %v4839 = vadd.f32 %v4837, %v4838
    %v4840 = vrot.slane %v4839, 1
    %v4841 = vadd.f32 %v4839, %v4840
    %v4842 = vmul.f32 %v4841, %v656
    %v4843 = vadd.f32 %v4842, 0.2
    %v4844 = vrsqrt.pop %v4843
    %v4845 = vmul.f32 %v4833, %v4844
    %4846 = vmatprep.subr.mxu0 0.0
    %4847 = vmatpush1.msra.mxu0 %v4653
    %4848 = vmatprep.subr.mxu0 0.0
    %4849 = vmatpush1.msra.mxu0 %v4652
    %4850 = vmatprep.subr.mxu0 0.0
    %4851 = vmatpush1.msra.mxu0 %v4651
    %4852 = vmatprep.subr.mxu0 0.0
    %4853 = vmatpush1.msra.mxu0 %v4650
    %4854 = vmatprep.subr.mxu0 0.0
    %4855 = vmatpush1.msra.mxu0 %v4649
    %4856 = vmatprep.subr.mxu0 0.0
    %4857 = vmatpush1.msra.mxu0 %v4648
    %4858 = vmatprep.subr.mxu0 0.0
    %4859 = vmatpush1.msra.mxu0 %v4647
    %4860 = vmatprep.subr.mxu0 0.0
    %4861 = vmatpush1.msra.mxu0 %v4646
    %4862 = vmatprep.subr.mxu0 0.0
    %4863 = vmatpush1.msra.mxu0 %v4645
    %4864 = vmatprep.subr.mxu0 0.0
    %4865 = vmatpush1.msra.mxu0 %v4644
    %4866 = vmatprep.subr.mxu0 0.0
    %4867 = vmatpush1.msra.mxu0 %v4643
    %4868 = vmatprep.subr.mxu0 0.0
    %4869 = vmatpush1.msra.mxu0 %v4642
    %4870 = vmatprep.subr.mxu0 0.0
    %4871 = vmatpush1.msra.mxu0 %v4641
    %4872 = vmatprep.subr.mxu0 0.0
    %4873 = vmatpush1.msra.mxu0 %v4640
    %4874 = vmatprep.subr.mxu0 0.0
    %4875 = vmatpush1.msra.mxu0 %v4639
    %4876 = vmatprep.subr.mxu0 0.0
    %4877 = vmatpush1.msra.mxu0 %v4638
    %4878 = vmatprep.subr.mxu0 0.0
    %4879 = vmatpush2.msra.mxu0 0.0
    %4880 = vmatprep.subr.mxu0 0.0
    %4881 = vmatpush2.msra.mxu0 0.0
    %4882 = vmatprep.subr.mxu0 0.0
    %4883 = vmatpush2.msra.mxu0 0.0
    %4884 = vmatprep.subr.mxu0 0.0
    %4885 = vmatpush2.msra.mxu0 0.0
    %4886 = vmatprep.subr.mxu0 0.0
    %4887 = vmatpush2.msra.mxu0 0.0
    %4888 = vmatprep.subr.mxu0 0.0
    %4889 = vmatpush2.msra.mxu0 0.0
    %4890 = vmatprep.subr.mxu0 0.0
    %4891 = vmatpush2.msra.mxu0 0.0
    %4892 = vmatprep.subr.mxu0 0.0
    %4893 = vmatpush2.msra.mxu0 0.0
    %4894 = vmatprep.subr.mxu0 0.0
    %4895 = vmatpush2.msra.mxu0 0.0
    %4896 = vmatprep.subr.mxu0 0.0
    %4897 = vmatpush2.msra.mxu0 0.0
    %4898 = vmatprep.subr.mxu0 0.0
    %4899 = vmatpush2.msra.mxu0 0.0
    %4900 = vmatprep.subr.mxu0 0.0
    %4901 = vmatpush2.msra.mxu0 0.0
    %4902 = vmatprep.subr.mxu0 0.0
    %4903 = vmatpush2.msra.mxu0 0.0
    %4904 = vmatprep.subr.mxu0 0.0
    %4905 = vmatpush2.msra.mxu0 0.0
    %4906 = vmatprep.subr.mxu0 0.0
    %4907 = vmatpush2.msra.mxu0 0.0
    %4908 = vmatprep.subr.mxu0 0.0
    %4909 = vmatpush2.msra.mxu0 0.0
    %4910 = vmatprep.mubr.f32.mxu0 0.0
    %4911 = vmatmul.mubr.f32.gmra.mxu0 %v4545
    %v4912 = vpop.f32.mrf.mxu0
    %v4913 = vadd.f32 %v4659, %v4912
    %v4914 = vpop.f32.mrf.mxu0
    %4915 = vdwg.mxu0
    %v4916 = vmax.f32 %v4913, 0.0
    %v4917 = vsel %vm4732, %v4916, 0.0
    %v4918 = vrot.slane %v4917, 4
    %v4919 = vadd.f32 %v4917, %v4918
    %v4920 = vrot.slane %v4919, 2
    %v4921 = vadd.f32 %v4919, %v4920
    %v4922 = vrot.slane %v4921, 1
    %v4923 = vadd.f32 %v4921, %v4922
    %v4924 = vmul.f32 %v4923, %v656
    %v4925 = vsub.f32 %v4916, %v4924
    %v4926 = vmul.f32 %v4925, %v4925
    %v4927 = vsel %vm4732, %v4926, 0.0
    %v4928 = vrot.slane %v4927, 4
    %v4929 = vadd.f32 %v4927, %v4928
    %v4930 = vrot.slane %v4929, 2
    %v4931 = vadd.f32 %v4929, %v4930
    %v4932 = vrot.slane %v4931, 1
    %v4933 = vadd.f32 %v4931, %v4932
    %v4934 = vmul.f32 %v4933, %v656
    %v4935 = vadd.f32 %v4934, 0.2
    %v4936 = vrsqrt.pop %v4935
    %v4937 = vmul.f32 %v4925, %v4936
    %4938 = vmatprep.subr.mxu0 0.0
    %4939 = vmatpush1.msra.mxu0 %v4653
    %4940 = vmatprep.subr.mxu0 0.0
    %4941 = vmatpush1.msra.mxu0 %v4652
    %4942 = vmatprep.subr.mxu0 0.0
    %4943 = vmatpush1.msra.mxu0 %v4651
    %4944 = vmatprep.subr.mxu0 0.0
    %4945 = vmatpush1.msra.mxu0 %v4650
    %4946 = vmatprep.subr.mxu0 0.0
    %4947 = vmatpush1.msra.mxu0 %v4649
    %4948 = vmatprep.subr.mxu0 0.0
    %4949 = vmatpush1.msra.mxu0 %v4648
    %4950 = vmatprep.subr.mxu0 0.0
    %4951 = vmatpush1.msra.mxu0 %v4647
    %4952 = vmatprep.subr.mxu0 0.0
    %4953 = vmatpush1.msra.mxu0 %v4646
    %4954 = vmatprep.subr.mxu0 0.0
    %4955 = vmatpush1.msra.mxu0 %v4645
    %4956 = vmatprep.subr.mxu0 0.0
    %4957 = vmatpush1.msra.mxu0 %v4644
    %4958 = vmatprep.subr.mxu0 0.0
    %4959 = vmatpush1.msra.mxu0 %v4643
    %4960 = vmatprep.subr.mxu0 0.0
    %4961 = vmatpush1.msra.mxu0 %v4642
    %4962 = vmatprep.subr.mxu0 0.0
    %4963 = vmatpush1.msra.mxu0 %v4641
    %4964 = vmatprep.subr.mxu0 0.0
    %4965 = vmatpush1.msra.mxu0 %v4640
    %4966 = vmatprep.subr.mxu0 0.0
    %4967 = vmatpush1.msra.mxu0 %v4639
    %4968 = vmatprep.subr.mxu0 0.0
    %4969 = vmatpush1.msra.mxu0 %v4638
    %4970 = vmatprep.subr.mxu0 0.0
    %4971 = vmatpush2.msra.mxu0 0.0
    %4972 = vmatprep.subr.mxu0 0.0
    %4973 = vmatpush2.msra.mxu0 0.0
    %4974 = vmatprep.subr.mxu0 0.0
    %4975 = vmatpush2.msra.mxu0 0.0
    %4976 = vmatprep.subr.mxu0 0.0
    %4977 = vmatpush2.msra.mxu0 0.0
    %4978 = vmatprep.subr.mxu0 0.0
    %4979 = vmatpush2.msra.mxu0 0.0
    %4980 = vmatprep.subr.mxu0 0.0
    %4981 = vmatpush2.msra.mxu0 0.0
    %4982 = vmatprep.subr.mxu0 0.0
    %4983 = vmatpush2.msra.mxu0 0.0
    %4984 = vmatprep.subr.mxu0 0.0
    %4985 = vmatpush2.msra.mxu0 0.0
    %4986 = vmatprep.subr.mxu0 0.0
    %4987 = vmatpush2.msra.mxu0 0.0
    %4988 = vmatprep.subr.mxu0 0.0
    %4989 = vmatpush2.msra.mxu0 0.0
    %4990 = vmatprep.subr.mxu0 0.0
    %4991 = vmatpush2.msra.mxu0 0.0
    %4992 = vmatprep.subr.mxu0 0.0
    %4993 = vmatpush2.msra.mxu0 0.0
    %4994 = vmatprep.subr.mxu0 0.0
    %4995 = vmatpush2.msra.mxu0 0.0
    %4996 = vmatprep.subr.mxu0 0.0
    %4997 = vmatpush2.msra.mxu0 0.0
    %4998 = vmatprep.subr.mxu0 0.0
    %4999 = vmatpush2.msra.mxu0 0.0
    %5000 = vmatprep.subr.mxu0 0.0
    %5001 = vmatpush2.msra.mxu0 0.0
    %5002 = vmatprep.mubr.f32.mxu0 0.0
    %5003 = vmatmul.mubr.f32.gmra.mxu0 %v4637
    %v5004 = vpop.f32.mrf.mxu0
    %v5005 = vadd.f32 %v4659, %v5004
    %v5006 = vpop.f32.mrf.mxu0
    %5007 = vdwg.mxu0
    %v5008 = vmax.f32 %v5005, 0.0
    %v5009 = vsel %vm4732, %v5008, 0.0
    %v5010 = vrot.slane %v5009, 4
    %v5011 = vadd.f32 %v5009, %v5010
    %v5012 = vrot.slane %v5011, 2
    %v5013 = vadd.f32 %v5011, %v5012
    %v5014 = vrot.slane %v5013, 1
    %v5015 = vadd.f32 %v5013, %v5014
    %v5016 = vmul.f32 %v5015, %v656
    %v5017 = vsub.f32 %v5008, %v5016
    %v5018 = vmul.f32 %v5017, %v5017
    %v5019 = vsel %vm4732, %v5018, 0.0
    %v5020 = vrot.slane %v5019, 4
    %v5021 = vadd.f32 %v5019, %v5020
    %v5022 = vrot.slane %v5021, 2
    %v5023 = vadd.f32 %v5021, %v5022
    %v5024 = vrot.slane %v5023, 1
    %v5025 = vadd.f32 %v5023, %v5024
    %v5026 = vmul.f32 %v5025, %v656
    %v5027 = vadd.f32 %v5026, 0.2
    %v5028 = vrsqrt.pop %v5027
    %v5029 = vmul.f32 %v5017, %v5028
    %v5030 = vld [vmem:[%s31] sm:$0xff]
    %v5031 = vld [vmem:[%s31 + $0x8] sm:$0xff]
    %v5032 = vld [vmem:[%s31 + $0x10] sm:$0xff]
    %v5033 = vld [vmem:[%s31 + $0x18] sm:$0xff]
    %v5034 = vld [vmem:[%s31 + $0x20] sm:$0xff]
    %v5035 = vld [vmem:[%s31 + $0x28] sm:$0xff]
    %v5036 = vld [vmem:[%s31 + $0x30] sm:$0xff]
    %v5037 = vld [vmem:[%s31 + $0x38] sm:$0xff]
    %v5038 = vld [vmem:[#allocation20] sm:$0x1]
    %v5040 = vlaneseq
    %v5041 = vshrl.u32 %v5040, 7
    %v5042 = vsub.s32 0, %v5041
    %v5043 = vrot.slane %v5038, %v5042
    %vm5045 = vcmask 523264
    %v5047 = vsel %vm5045, %v4753, 0
    %5049 = vmatprep.subr.mxu0 0.0
    %5050 = vmatpush1.msra.mxu0 0.0
    %5051 = vmatprep.subr.mxu0 0.0
    %5052 = vmatpush1.msra.mxu0 0.0
    %5053 = vmatprep.subr.mxu0 0.0
    %5054 = vmatpush1.msra.mxu0 0.0
    %5055 = vmatprep.subr.mxu0 0.0
    %5056 = vmatpush1.msra.mxu0 0.0
    %5057 = vmatprep.subr.mxu0 0.0
    %5058 = vmatpush1.msra.mxu0 0.0
    %5059 = vmatprep.subr.mxu0 0.0
    %5060 = vmatpush1.msra.mxu0 0.0
    %5061 = vmatprep.subr.mxu0 0.0
    %5062 = vmatpush1.msra.mxu0 0.0
    %5063 = vmatprep.subr.mxu0 0.0
    %5064 = vmatpush1.msra.mxu0 0.0
    %5065 = vmatprep.subr.mxu0 0.0
    %5066 = vmatpush1.msra.mxu0 %v5037
    %5067 = vmatprep.subr.mxu0 0.0
    %5068 = vmatpush1.msra.mxu0 %v5036
    %5069 = vmatprep.subr.mxu0 0.0
    %5070 = vmatpush1.msra.mxu0 %v5035
    %5071 = vmatprep.subr.mxu0 0.0
    %5072 = vmatpush1.msra.mxu0 %v5034
    %5073 = vmatprep.subr.mxu0 0.0
    %5074 = vmatpush1.msra.mxu0 %v5033
    %5075 = vmatprep.subr.mxu0 0.0
    %5076 = vmatpush1.msra.mxu0 %v5032
    %5077 = vmatprep.subr.mxu0 0.0
    %5078 = vmatpush1.msra.mxu0 %v5031
    %5079 = vmatprep.subr.mxu0 0.0
    %5080 = vmatpush1.msra.mxu0 %v5030
    %5081 = vmatprep.subr.mxu0 0.0
    %5082 = vmatpush2.msra.mxu0 0.0
    %5083 = vmatprep.subr.mxu0 0.0
    %5084 = vmatpush2.msra.mxu0 0.0
    %5085 = vmatprep.subr.mxu0 0.0
    %5086 = vmatpush2.msra.mxu0 0.0
    %5087 = vmatprep.subr.mxu0 0.0
    %5088 = vmatpush2.msra.mxu0 0.0
    %5089 = vmatprep.subr.mxu0 0.0
    %5090 = vmatpush2.msra.mxu0 0.0
    %5091 = vmatprep.subr.mxu0 0.0
    %5092 = vmatpush2.msra.mxu0 0.0
    %5093 = vmatprep.subr.mxu0 0.0
    %5094 = vmatpush2.msra.mxu0 0.0
    %5095 = vmatprep.subr.mxu0 0.0
    %5096 = vmatpush2.msra.mxu0 0.0
    %5097 = vmatprep.subr.mxu0 0.0
    %5098 = vmatpush2.msra.mxu0 0.0
    %5099 = vmatprep.subr.mxu0 0.0
    %5100 = vmatpush2.msra.mxu0 0.0
    %5101 = vmatprep.subr.mxu0 0.0
    %5102 = vmatpush2.msra.mxu0 0.0
    %5103 = vmatprep.subr.mxu0 0.0
    %5104 = vmatpush2.msra.mxu0 0.0
    %5105 = vmatprep.subr.mxu0 0.0
    %5106 = vmatpush2.msra.mxu0 0.0
    %5107 = vmatprep.subr.mxu0 0.0
    %5108 = vmatpush2.msra.mxu0 0.0
    %5109 = vmatprep.subr.mxu0 0.0
    %5110 = vmatpush2.msra.mxu0 0.0
    %5111 = vmatprep.subr.mxu0 0.0
    %5112 = vmatpush2.msra.mxu0 0.0
    %5113 = vmatprep.mubr.f32.mxu0 0.0
    %5114 = vmatmul.mubr.f32.gmra.mxu0 %v5047
    %v5115 = vpop.f32.mrf.mxu0
    %v5116 = vadd.f32 %v5043, %v5115
    %v5117 = vpop.f32.mrf.mxu0
    %5118 = vdwg.mxu0
    %v5119 = vmax.f32 %v5116, 0.0
    %vm5120 = vcmask 254976
    %v5121 = vsel %vm5120, %v5119, 0.0
    %v5122 = vrot.slane %v5121, 4
    %v5123 = vadd.f32 %v5121, %v5122
    %v5124 = vrot.slane %v5123, 2
    %v5125 = vadd.f32 %v5123, %v5124
    %v5126 = vrot.slane %v5125, 1
    %v5127 = vadd.f32 %v5125, %v5126
    %v5128 = vmul.f32 %v5127, %v656
    %v5129 = vsub.f32 %v5119, %v5128
    %v5130 = vmul.f32 %v5129, %v5129
    %v5131 = vsel %vm5120, %v5130, 0.0
    %v5132 = vrot.slane %v5131, 4
    %v5133 = vadd.f32 %v5131, %v5132
    %v5134 = vrot.slane %v5133, 2
    %v5135 = vadd.f32 %v5133, %v5134
    %v5136 = vrot.slane %v5135, 1
    %v5137 = vadd.f32 %v5135, %v5136
    %v5138 = vmul.f32 %v5137, %v656
    %v5139 = vadd.f32 %v5138, 0.2
    %v5140 = vrsqrt.pop %v5139
    %v5141 = vmul.f32 %v5129, %v5140
    %v5143 = vsel %vm5045, %v4845, 0
    %5145 = vmatprep.subr.mxu0 0.0
    %5146 = vmatpush1.msra.mxu0 0.0
    %5147 = vmatprep.subr.mxu0 0.0
    %5148 = vmatpush1.msra.mxu0 0.0
    %5149 = vmatprep.subr.mxu0 0.0
    %5150 = vmatpush1.msra.mxu0 0.0
    %5151 = vmatprep.subr.mxu0 0.0
    %5152 = vmatpush1.msra.mxu0 0.0
    %5153 = vmatprep.subr.mxu0 0.0
    %5154 = vmatpush1.msra.mxu0 0.0
    %5155 = vmatprep.subr.mxu0 0.0
    %5156 = vmatpush1.msra.mxu0 0.0
    %5157 = vmatprep.subr.mxu0 0.0
    %5158 = vmatpush1.msra.mxu0 0.0
    %5159 = vmatprep.subr.mxu0 0.0
    %5160 = vmatpush1.msra.mxu0 0.0
    %5161 = vmatprep.subr.mxu0 0.0
    %5162 = vmatpush1.msra.mxu0 %v5037
    %5163 = vmatprep.subr.mxu0 0.0
    %5164 = vmatpush1.msra.mxu0 %v5036
    %5165 = vmatprep.subr.mxu0 0.0
    %5166 = vmatpush1.msra.mxu0 %v5035
    %5167 = vmatprep.subr.mxu0 0.0
    %5168 = vmatpush1.msra.mxu0 %v5034
    %5169 = vmatprep.subr.mxu0 0.0
    %5170 = vmatpush1.msra.mxu0 %v5033
    %5171 = vmatprep.subr.mxu0 0.0
    %5172 = vmatpush1.msra.mxu0 %v5032
    %5173 = vmatprep.subr.mxu0 0.0
    %5174 = vmatpush1.msra.mxu0 %v5031
    %5175 = vmatprep.subr.mxu0 0.0
    %5176 = vmatpush1.msra.mxu0 %v5030
    %5177 = vmatprep.subr.mxu0 0.0
    %5178 = vmatpush2.msra.mxu0 0.0
    %5179 = vmatprep.subr.mxu0 0.0
    %5180 = vmatpush2.msra.mxu0 0.0
    %5181 = vmatprep.subr.mxu0 0.0
    %5182 = vmatpush2.msra.mxu0 0.0
    %5183 = vmatprep.subr.mxu0 0.0
    %5184 = vmatpush2.msra.mxu0 0.0
    %5185 = vmatprep.subr.mxu0 0.0
    %5186 = vmatpush2.msra.mxu0 0.0
    %5187 = vmatprep.subr.mxu0 0.0
    %5188 = vmatpush2.msra.mxu0 0.0
    %5189 = vmatprep.subr.mxu0 0.0
    %5190 = vmatpush2.msra.mxu0 0.0
    %5191 = vmatprep.subr.mxu0 0.0
    %5192 = vmatpush2.msra.mxu0 0.0
    %5193 = vmatprep.subr.mxu0 0.0
    %5194 = vmatpush2.msra.mxu0 0.0
    %5195 = vmatprep.subr.mxu0 0.0
    %5196 = vmatpush2.msra.mxu0 0.0
    %5197 = vmatprep.subr.mxu0 0.0
    %5198 = vmatpush2.msra.mxu0 0.0
    %5199 = vmatprep.subr.mxu0 0.0
    %5200 = vmatpush2.msra.mxu0 0.0
    %5201 = vmatprep.subr.mxu0 0.0
    %5202 = vmatpush2.msra.mxu0 0.0
    %5203 = vmatprep.subr.mxu0 0.0
    %5204 = vmatpush2.msra.mxu0 0.0
    %5205 = vmatprep.subr.mxu0 0.0
    %5206 = vmatpush2.msra.mxu0 0.0
    %5207 = vmatprep.subr.mxu0 0.0
    %5208 = vmatpush2.msra.mxu0 0.0
    %5209 = vmatprep.mubr.f32.mxu0 0.0
    %5210 = vmatmul.mubr.f32.gmra.mxu0 %v5143
    %v5211 = vpop.f32.mrf.mxu0
    %v5212 = vadd.f32 %v5043, %v5211
    %v5213 = vpop.f32.mrf.mxu0
    %5214 = vdwg.mxu0
    %v5215 = vmax.f32 %v5212, 0.0
    %v5216 = vsel %vm5120, %v5215, 0.0
    %v5217 = vrot.slane %v5216, 4
    %v5218 = vadd.f32 %v5216, %v5217
    %v5219 = vrot.slane %v5218, 2
    %v5220 = vadd.f32 %v5218, %v5219
    %v5221 = vrot.slane %v5220, 1
    %v5222 = vadd.f32 %v5220, %v5221
    %v5223 = vmul.f32 %v5222, %v656
    %v5224 = vsub.f32 %v5215, %v5223
    %v5225 = vmul.f32 %v5224, %v5224
    %v5226 = vsel %vm5120, %v5225, 0.0
    %v5227 = vrot.slane %v5226, 4
    %v5228 = vadd.f32 %v5226, %v5227
    %v5229 = vrot.slane %v5228, 2
    %v5230 = vadd.f32 %v5228, %v5229
    %v5231 = vrot.slane %v5230, 1
    %v5232 = vadd.f32 %v5230, %v5231
    %v5233 = vmul.f32 %v5232, %v656
    %v5234 = vadd.f32 %v5233, 0.2
    %v5235 = vrsqrt.pop %v5234
    %v5236 = vmul.f32 %v5224, %v5235
    %v5238 = vsel %vm5045, %v4937, 0
    %5240 = vmatprep.subr.mxu0 0.0
    %5241 = vmatpush1.msra.mxu0 0.0
    %5242 = vmatprep.subr.mxu0 0.0
    %5243 = vmatpush1.msra.mxu0 0.0
    %5244 = vmatprep.subr.mxu0 0.0
    %5245 = vmatpush1.msra.mxu0 0.0
    %5246 = vmatprep.subr.mxu0 0.0
    %5247 = vmatpush1.msra.mxu0 0.0
    %5248 = vmatprep.subr.mxu0 0.0
    %5249 = vmatpush1.msra.mxu0 0.0
    %5250 = vmatprep.subr.mxu0 0.0
    %5251 = vmatpush1.msra.mxu0 0.0
    %5252 = vmatprep.subr.mxu0 0.0
    %5253 = vmatpush1.msra.mxu0 0.0
    %5254 = vmatprep.subr.mxu0 0.0
    %5255 = vmatpush1.msra.mxu0 0.0
    %5256 = vmatprep.subr.mxu0 0.0
    %5257 = vmatpush1.msra.mxu0 %v5037
    %5258 = vmatprep.subr.mxu0 0.0
    %5259 = vmatpush1.msra.mxu0 %v5036
    %5260 = vmatprep.subr.mxu0 0.0
    %5261 = vmatpush1.msra.mxu0 %v5035
    %5262 = vmatprep.subr.mxu0 0.0
    %5263 = vmatpush1.msra.mxu0 %v5034
    %5264 = vmatprep.subr.mxu0 0.0
    %5265 = vmatpush1.msra.mxu0 %v5033
    %5266 = vmatprep.subr.mxu0 0.0
    %5267 = vmatpush1.msra.mxu0 %v5032
    %5268 = vmatprep.subr.mxu0 0.0
    %5269 = vmatpush1.msra.mxu0 %v5031
    %5270 = vmatprep.subr.mxu0 0.0
    %5271 = vmatpush1.msra.mxu0 %v5030
    %5272 = vmatprep.subr.mxu0 0.0
    %5273 = vmatpush2.msra.mxu0 0.0
    %5274 = vmatprep.subr.mxu0 0.0
    %5275 = vmatpush2.msra.mxu0 0.0
    %5276 = vmatprep.subr.mxu0 0.0
    %5277 = vmatpush2.msra.mxu0 0.0
    %5278 = vmatprep.subr.mxu0 0.0
    %5279 = vmatpush2.msra.mxu0 0.0
    %5280 = vmatprep.subr.mxu0 0.0
    %5281 = vmatpush2.msra.mxu0 0.0
    %5282 = vmatprep.subr.mxu0 0.0
    %5283 = vmatpush2.msra.mxu0 0.0
    %5284 = vmatprep.subr.mxu0 0.0
    %5285 = vmatpush2.msra.mxu0 0.0
    %5286 = vmatprep.subr.mxu0 0.0
    %5287 = vmatpush2.msra.mxu0 0.0
    %5288 = vmatprep.subr.mxu0 0.0
    %5289 = vmatpush2.msra.mxu0 0.0
    %5290 = vmatprep.subr.mxu0 0.0
    %5291 = vmatpush2.msra.mxu0 0.0
    %5292 = vmatprep.subr.mxu0 0.0
    %5293 = vmatpush2.msra.mxu0 0.0
    %5294 = vmatprep.subr.mxu0 0.0
    %5295 = vmatpush2.msra.mxu0 0.0
    %5296 = vmatprep.subr.mxu0 0.0
    %5297 = vmatpush2.msra.mxu0 0.0
    %5298 = vmatprep.subr.mxu0 0.0
    %5299 = vmatpush2.msra.mxu0 0.0
    %5300 = vmatprep.subr.mxu0 0.0
    %5301 = vmatpush2.msra.mxu0 0.0
    %5302 = vmatprep.subr.mxu0 0.0
    %5303 = vmatpush2.msra.mxu0 0.0
    %5304 = vmatprep.mubr.f32.mxu0 0.0
    %5305 = vmatmul.mubr.f32.gmra.mxu0 %v5238
    %v5306 = vpop.f32.mrf.mxu0
    %v5307 = vadd.f32 %v5043, %v5306
    %v5308 = vpop.f32.mrf.mxu0
    %5309 = vdwg.mxu0
    %v5310 = vmax.f32 %v5307, 0.0
    %v5311 = vsel %vm5120, %v5310, 0.0
    %v5312 = vrot.slane %v5311, 4
    %v5313 = vadd.f32 %v5311, %v5312
    %v5314 = vrot.slane %v5313, 2
    %v5315 = vadd.f32 %v5313, %v5314
    %v5316 = vrot.slane %v5315, 1
    %v5317 = vadd.f32 %v5315, %v5316
    %v5318 = vmul.f32 %v5317, %v656
    %v5319 = vsub.f32 %v5310, %v5318
    %v5320 = vmul.f32 %v5319, %v5319
    %v5321 = vsel %vm5120, %v5320, 0.0
    %v5322 = vrot.slane %v5321, 4
    %v5323 = vadd.f32 %v5321, %v5322
    %v5324 = vrot.slane %v5323, 2
    %v5325 = vadd.f32 %v5323, %v5324
    %v5326 = vrot.slane %v5325, 1
    %v5327 = vadd.f32 %v5325, %v5326
    %v5328 = vmul.f32 %v5327, %v656
    %v5329 = vadd.f32 %v5328, 0.2
    %v5330 = vrsqrt.pop %v5329
    %v5331 = vmul.f32 %v5319, %v5330
    %v5333 = vsel %vm5045, %v5029, 0
    %5335 = vmatprep.subr.mxu0 0.0
    %5336 = vmatpush1.msra.mxu0 0.0
    %5337 = vmatprep.subr.mxu0 0.0
    %5338 = vmatpush1.msra.mxu0 0.0
    %5339 = vmatprep.subr.mxu0 0.0
    %5340 = vmatpush1.msra.mxu0 0.0
    %5341 = vmatprep.subr.mxu0 0.0
    %5342 = vmatpush1.msra.mxu0 0.0
    %5343 = vmatprep.subr.mxu0 0.0
    %5344 = vmatpush1.msra.mxu0 0.0
    %5345 = vmatprep.subr.mxu0 0.0
    %5346 = vmatpush1.msra.mxu0 0.0
    %5347 = vmatprep.subr.mxu0 0.0
    %5348 = vmatpush1.msra.mxu0 0.0
    %5349 = vmatprep.subr.mxu0 0.0
    %5350 = vmatpush1.msra.mxu0 0.0
    %5351 = vmatprep.subr.mxu0 0.0
    %5352 = vmatpush1.msra.mxu0 %v5037
    %5353 = vmatprep.subr.mxu0 0.0
    %5354 = vmatpush1.msra.mxu0 %v5036
    %5355 = vmatprep.subr.mxu0 0.0
    %5356 = vmatpush1.msra.mxu0 %v5035
    %5357 = vmatprep.subr.mxu0 0.0
    %5358 = vmatpush1.msra.mxu0 %v5034
    %5359 = vmatprep.subr.mxu0 0.0
    %5360 = vmatpush1.msra.mxu0 %v5033
    %5361 = vmatprep.subr.mxu0 0.0
    %5362 = vmatpush1.msra.mxu0 %v5032
    %5363 = vmatprep.subr.mxu0 0.0
    %5364 = vmatpush1.msra.mxu0 %v5031
    %5365 = vmatprep.subr.mxu0 0.0
    %5366 = vmatpush1.msra.mxu0 %v5030
    %5367 = vmatprep.subr.mxu0 0.0
    %5368 = vmatpush2.msra.mxu0 0.0
    %5369 = vmatprep.subr.mxu0 0.0
    %5370 = vmatpush2.msra.mxu0 0.0
    %5371 = vmatprep.subr.mxu0 0.0
    %5372 = vmatpush2.msra.mxu0 0.0
    %5373 = vmatprep.subr.mxu0 0.0
    %5374 = vmatpush2.msra.mxu0 0.0
    %5375 = vmatprep.subr.mxu0 0.0
    %5376 = vmatpush2.msra.mxu0 0.0
    %5377 = vmatprep.subr.mxu0 0.0
    %5378 = vmatpush2.msra.mxu0 0.0
    %5379 = vmatprep.subr.mxu0 0.0
    %5380 = vmatpush2.msra.mxu0 0.0
    %5381 = vmatprep.subr.mxu0 0.0
    %5382 = vmatpush2.msra.mxu0 0.0
    %5383 = vmatprep.subr.mxu0 0.0
    %5384 = vmatpush2.msra.mxu0 0.0
    %5385 = vmatprep.subr.mxu0 0.0
    %5386 = vmatpush2.msra.mxu0 0.0
    %5387 = vmatprep.subr.mxu0 0.0
    %5388 = vmatpush2.msra.mxu0 0.0
    %5389 = vmatprep.subr.mxu0 0.0
    %5390 = vmatpush2.msra.mxu0 0.0
    %5391 = vmatprep.subr.mxu0 0.0
    %5392 = vmatpush2.msra.mxu0 0.0
    %5393 = vmatprep.subr.mxu0 0.0
    %5394 = vmatpush2.msra.mxu0 0.0
    %5395 = vmatprep.subr.mxu0 0.0
    %5396 = vmatpush2.msra.mxu0 0.0
    %5397 = vmatprep.subr.mxu0 0.0
    %5398 = vmatpush2.msra.mxu0 0.0
    %5399 = vmatprep.mubr.f32.mxu0 0.0
    %5400 = vmatmul.mubr.f32.gmra.mxu0 %v5333
    %v5401 = vpop.f32.mrf.mxu0
    %v5402 = vadd.f32 %v5043, %v5401
    %v5403 = vpop.f32.mrf.mxu0
    %5404 = vdwg.mxu0
    %v5405 = vmax.f32 %v5402, 0.0
    %v5406 = vsel %vm5120, %v5405, 0.0
    %v5407 = vrot.slane %v5406, 4
    %v5408 = vadd.f32 %v5406, %v5407
    %v5409 = vrot.slane %v5408, 2
    %v5410 = vadd.f32 %v5408, %v5409
    %v5411 = vrot.slane %v5410, 1
    %v5412 = vadd.f32 %v5410, %v5411
    %v5413 = vmul.f32 %v5412, %v656
    %v5414 = vsub.f32 %v5405, %v5413
    %v5415 = vmul.f32 %v5414, %v5414
    %v5416 = vsel %vm5120, %v5415, 0.0
    %v5417 = vrot.slane %v5416, 4
    %v5418 = vadd.f32 %v5416, %v5417
    %v5419 = vrot.slane %v5418, 2
    %v5420 = vadd.f32 %v5418, %v5419
    %v5421 = vrot.slane %v5420, 1
    %v5422 = vadd.f32 %v5420, %v5421
    %v5423 = vmul.f32 %v5422, %v656
    %v5424 = vadd.f32 %v5423, 0.2
    %v5425 = vrsqrt.pop %v5424
    %v5426 = vmul.f32 %v5414, %v5425
    %v5427 = vld [vmem:[%s35] sm:$0xff]
    %v5428 = vld [vmem:[%s35 + $0x8] sm:$0xff]
    %v5429 = vld [vmem:[%s35 + $0x10] sm:$0xff]
    %v5430 = vld [vmem:[%s35 + $0x18] sm:$0xff]
    %v5431 = vld [vmem:[#allocation22] sm:$0x1]
    %v5433 = vlaneseq
    %v5434 = vshrl.u32 %v5433, 7
    %v5435 = vsub.s32 0, %v5434
    %v5436 = vrot.slane %v5431, %v5435
    %vm5438 = vcmask 261120
    %v5440 = vsel %vm5438, %v5141, 0
    %5442 = vmatprep.subr.mxu0 0.0
    %5443 = vmatpush1.msra.mxu0 0.0
    %5444 = vmatprep.subr.mxu0 0.0
    %5445 = vmatpush1.msra.mxu0 0.0
    %5446 = vmatprep.subr.mxu0 0.0
    %5447 = vmatpush1.msra.mxu0 0.0
    %5448 = vmatprep.subr.mxu0 0.0
    %5449 = vmatpush1.msra.mxu0 0.0
    %5450 = vmatprep.subr.mxu0 0.0
    %5451 = vmatpush1.msra.mxu0 0.0
    %5452 = vmatprep.subr.mxu0 0.0
    %5453 = vmatpush1.msra.mxu0 0.0
    %5454 = vmatprep.subr.mxu0 0.0
    %5455 = vmatpush1.msra.mxu0 0.0
    %5456 = vmatprep.subr.mxu0 0.0
    %5457 = vmatpush1.msra.mxu0 0.0
    %5458 = vmatprep.subr.mxu0 0.0
    %5459 = vmatpush1.msra.mxu0 0.0
    %5460 = vmatprep.subr.mxu0 0.0
    %5461 = vmatpush1.msra.mxu0 0.0
    %5462 = vmatprep.subr.mxu0 0.0
    %5463 = vmatpush1.msra.mxu0 0.0
    %5464 = vmatprep.subr.mxu0 0.0
    %5465 = vmatpush1.msra.mxu0 0.0
    %5466 = vmatprep.subr.mxu0 0.0
    %5467 = vmatpush1.msra.mxu0 %v5430
    %5468 = vmatprep.subr.mxu0 0.0
    %5469 = vmatpush1.msra.mxu0 %v5429
    %5470 = vmatprep.subr.mxu0 0.0
    %5471 = vmatpush1.msra.mxu0 %v5428
    %5472 = vmatprep.subr.mxu0 0.0
    %5473 = vmatpush1.msra.mxu0 %v5427
    %5474 = vmatprep.subr.mxu0 0.0
    %5475 = vmatpush2.msra.mxu0 0.0
    %5476 = vmatprep.subr.mxu0 0.0
    %5477 = vmatpush2.msra.mxu0 0.0
    %5478 = vmatprep.subr.mxu0 0.0
    %5479 = vmatpush2.msra.mxu0 0.0
    %5480 = vmatprep.subr.mxu0 0.0
    %5481 = vmatpush2.msra.mxu0 0.0
    %5482 = vmatprep.subr.mxu0 0.0
    %5483 = vmatpush2.msra.mxu0 0.0
    %5484 = vmatprep.subr.mxu0 0.0
    %5485 = vmatpush2.msra.mxu0 0.0
    %5486 = vmatprep.subr.mxu0 0.0
    %5487 = vmatpush2.msra.mxu0 0.0
    %5488 = vmatprep.subr.mxu0 0.0
    %5489 = vmatpush2.msra.mxu0 0.0
    %5490 = vmatprep.subr.mxu0 0.0
    %5491 = vmatpush2.msra.mxu0 0.0
    %5492 = vmatprep.subr.mxu0 0.0
    %5493 = vmatpush2.msra.mxu0 0.0
    %5494 = vmatprep.subr.mxu0 0.0
    %5495 = vmatpush2.msra.mxu0 0.0
    %5496 = vmatprep.subr.mxu0 0.0
    %5497 = vmatpush2.msra.mxu0 0.0
    %5498 = vmatprep.subr.mxu0 0.0
    %5499 = vmatpush2.msra.mxu0 0.0
    %5500 = vmatprep.subr.mxu0 0.0
    %5501 = vmatpush2.msra.mxu0 0.0
    %5502 = vmatprep.subr.mxu0 0.0
    %5503 = vmatpush2.msra.mxu0 0.0
    %5504 = vmatprep.subr.mxu0 0.0
    %5505 = vmatpush2.msra.mxu0 0.0
    %5506 = vmatprep.mubr.f32.mxu0 0.0
    %5507 = vmatmul.mubr.f32.gmra.mxu0 %v5440
    %v5508 = vpop.f32.mrf.mxu0
    %v5509 = vadd.f32 %v5436, %v5508
    %v5510 = vpop.f32.mrf.mxu0
    %5511 = vdwg.mxu0
    %v5512 = vmax.f32 %v5509, 0.0
    %vm5513 = vcmask 123904
    %v5514 = vsel %vm5513, %v5512, 0.0
    %v5515 = vrot.slane %v5514, 4
    %v5516 = vadd.f32 %v5514, %v5515
    %v5517 = vrot.slane %v5516, 2
    %v5518 = vadd.f32 %v5516, %v5517
    %v5519 = vrot.slane %v5518, 1
    %v5520 = vadd.f32 %v5518, %v5519
    %v5521 = vmul.f32 %v5520, %v656
    %v5522 = vsub.f32 %v5512, %v5521
    %v5523 = vmul.f32 %v5522, %v5522
    %v5524 = vsel %vm5513, %v5523, 0.0
    %v5525 = vrot.slane %v5524, 4
    %v5526 = vadd.f32 %v5524, %v5525
    %v5527 = vrot.slane %v5526, 2
    %v5528 = vadd.f32 %v5526, %v5527
    %v5529 = vrot.slane %v5528, 1
    %v5530 = vadd.f32 %v5528, %v5529
    %v5531 = vmul.f32 %v5530, %v656
    %v5532 = vadd.f32 %v5531, 0.2
    %v5533 = vrsqrt.pop %v5532
    %v5534 = vmul.f32 %v5522, %v5533
    %v5536 = vsel %vm5438, %v5236, 0
    %5538 = vmatprep.subr.mxu0 0.0
    %5539 = vmatpush1.msra.mxu0 0.0
    %5540 = vmatprep.subr.mxu0 0.0
    %5541 = vmatpush1.msra.mxu0 0.0
    %5542 = vmatprep.subr.mxu0 0.0
    %5543 = vmatpush1.msra.mxu0 0.0
    %5544 = vmatprep.subr.mxu0 0.0
    %5545 = vmatpush1.msra.mxu0 0.0
    %5546 = vmatprep.subr.mxu0 0.0
    %5547 = vmatpush1.msra.mxu0 0.0
    %5548 = vmatprep.subr.mxu0 0.0
    %5549 = vmatpush1.msra.mxu0 0.0
    %5550 = vmatprep.subr.mxu0 0.0
    %5551 = vmatpush1.msra.mxu0 0.0
    %5552 = vmatprep.subr.mxu0 0.0
    %5553 = vmatpush1.msra.mxu0 0.0
    %5554 = vmatprep.subr.mxu0 0.0
    %5555 = vmatpush1.msra.mxu0 0.0
    %5556 = vmatprep.subr.mxu0 0.0
    %5557 = vmatpush1.msra.mxu0 0.0
    %5558 = vmatprep.subr.mxu0 0.0
    %5559 = vmatpush1.msra.mxu0 0.0
    %5560 = vmatprep.subr.mxu0 0.0
    %5561 = vmatpush1.msra.mxu0 0.0
    %5562 = vmatprep.subr.mxu0 0.0
    %5563 = vmatpush1.msra.mxu0 %v5430
    %5564 = vmatprep.subr.mxu0 0.0
    %5565 = vmatpush1.msra.mxu0 %v5429
    %5566 = vmatprep.subr.mxu0 0.0
    %5567 = vmatpush1.msra.mxu0 %v5428
    %5568 = vmatprep.subr.mxu0 0.0
    %5569 = vmatpush1.msra.mxu0 %v5427
    %5570 = vmatprep.subr.mxu0 0.0
    %5571 = vmatpush2.msra.mxu0 0.0
    %5572 = vmatprep.subr.mxu0 0.0
    %5573 = vmatpush2.msra.mxu0 0.0
    %5574 = vmatprep.subr.mxu0 0.0
    %5575 = vmatpush2.msra.mxu0 0.0
    %5576 = vmatprep.subr.mxu0 0.0
    %5577 = vmatpush2.msra.mxu0 0.0
    %5578 = vmatprep.subr.mxu0 0.0
    %5579 = vmatpush2.msra.mxu0 0.0
    %5580 = vmatprep.subr.mxu0 0.0
    %5581 = vmatpush2.msra.mxu0 0.0
    %5582 = vmatprep.subr.mxu0 0.0
    %5583 = vmatpush2.msra.mxu0 0.0
    %5584 = vmatprep.subr.mxu0 0.0
    %5585 = vmatpush2.msra.mxu0 0.0
    %5586 = vmatprep.subr.mxu0 0.0
    %5587 = vmatpush2.msra.mxu0 0.0
    %5588 = vmatprep.subr.mxu0 0.0
    %5589 = vmatpush2.msra.mxu0 0.0
    %5590 = vmatprep.subr.mxu0 0.0
    %5591 = vmatpush2.msra.mxu0 0.0
    %5592 = vmatprep.subr.mxu0 0.0
    %5593 = vmatpush2.msra.mxu0 0.0
    %5594 = vmatprep.subr.mxu0 0.0
    %5595 = vmatpush2.msra.mxu0 0.0
    %5596 = vmatprep.subr.mxu0 0.0
    %5597 = vmatpush2.msra.mxu0 0.0
    %5598 = vmatprep.subr.mxu0 0.0
    %5599 = vmatpush2.msra.mxu0 0.0
    %5600 = vmatprep.subr.mxu0 0.0
    %5601 = vmatpush2.msra.mxu0 0.0
    %5602 = vmatprep.mubr.f32.mxu0 0.0
    %5603 = vmatmul.mubr.f32.gmra.mxu0 %v5536
    %v5604 = vpop.f32.mrf.mxu0
    %v5605 = vadd.f32 %v5436, %v5604
    %v5606 = vpop.f32.mrf.mxu0
    %5607 = vdwg.mxu0
    %v5608 = vmax.f32 %v5605, 0.0
    %v5609 = vsel %vm5513, %v5608, 0.0
    %v5610 = vrot.slane %v5609, 4
    %v5611 = vadd.f32 %v5609, %v5610
    %v5612 = vrot.slane %v5611, 2
    %v5613 = vadd.f32 %v5611, %v5612
    %v5614 = vrot.slane %v5613, 1
    %v5615 = vadd.f32 %v5613, %v5614
    %v5616 = vmul.f32 %v5615, %v656
    %v5617 = vsub.f32 %v5608, %v5616
    %v5618 = vmul.f32 %v5617, %v5617
    %v5619 = vsel %vm5513, %v5618, 0.0
    %v5620 = vrot.slane %v5619, 4
    %v5621 = vadd.f32 %v5619, %v5620
    %v5622 = vrot.slane %v5621, 2
    %v5623 = vadd.f32 %v5621, %v5622
    %v5624 = vrot.slane %v5623, 1
    %v5625 = vadd.f32 %v5623, %v5624
    %v5626 = vmul.f32 %v5625, %v656
    %v5627 = vadd.f32 %v5626, 0.2
    %v5628 = vrsqrt.pop %v5627
    %v5629 = vmul.f32 %v5617, %v5628
    %v5631 = vsel %vm5438, %v5331, 0
    %5633 = vmatprep.subr.mxu0 0.0
    %5634 = vmatpush1.msra.mxu0 0.0
    %5635 = vmatprep.subr.mxu0 0.0
    %5636 = vmatpush1.msra.mxu0 0.0
    %5637 = vmatprep.subr.mxu0 0.0
    %5638 = vmatpush1.msra.mxu0 0.0
    %5639 = vmatprep.subr.mxu0 0.0
    %5640 = vmatpush1.msra.mxu0 0.0
    %5641 = vmatprep.subr.mxu0 0.0
    %5642 = vmatpush1.msra.mxu0 0.0
    %5643 = vmatprep.subr.mxu0 0.0
    %5644 = vmatpush1.msra.mxu0 0.0
    %5645 = vmatprep.subr.mxu0 0.0
    %5646 = vmatpush1.msra.mxu0 0.0
    %5647 = vmatprep.subr.mxu0 0.0
    %5648 = vmatpush1.msra.mxu0 0.0
    %5649 = vmatprep.subr.mxu0 0.0
    %5650 = vmatpush1.msra.mxu0 0.0
    %5651 = vmatprep.subr.mxu0 0.0
    %5652 = vmatpush1.msra.mxu0 0.0
    %5653 = vmatprep.subr.mxu0 0.0
    %5654 = vmatpush1.msra.mxu0 0.0
    %5655 = vmatprep.subr.mxu0 0.0
    %5656 = vmatpush1.msra.mxu0 0.0
    %5657 = vmatprep.subr.mxu0 0.0
    %5658 = vmatpush1.msra.mxu0 %v5430
    %5659 = vmatprep.subr.mxu0 0.0
    %5660 = vmatpush1.msra.mxu0 %v5429
    %5661 = vmatprep.subr.mxu0 0.0
    %5662 = vmatpush1.msra.mxu0 %v5428
    %5663 = vmatprep.subr.mxu0 0.0
    %5664 = vmatpush1.msra.mxu0 %v5427
    %5665 = vmatprep.subr.mxu0 0.0
    %5666 = vmatpush2.msra.mxu0 0.0
    %5667 = vmatprep.subr.mxu0 0.0
    %5668 = vmatpush2.msra.mxu0 0.0
    %5669 = vmatprep.subr.mxu0 0.0
    %5670 = vmatpush2.msra.mxu0 0.0
    %5671 = vmatprep.subr.mxu0 0.0
    %5672 = vmatpush2.msra.mxu0 0.0
    %5673 = vmatprep.subr.mxu0 0.0
    %5674 = vmatpush2.msra.mxu0 0.0
    %5675 = vmatprep.subr.mxu0 0.0
    %5676 = vmatpush2.msra.mxu0 0.0
    %5677 = vmatprep.subr.mxu0 0.0
    %5678 = vmatpush2.msra.mxu0 0.0
    %5679 = vmatprep.subr.mxu0 0.0
    %5680 = vmatpush2.msra.mxu0 0.0
    %5681 = vmatprep.subr.mxu0 0.0
    %5682 = vmatpush2.msra.mxu0 0.0
    %5683 = vmatprep.subr.mxu0 0.0
    %5684 = vmatpush2.msra.mxu0 0.0
    %5685 = vmatprep.subr.mxu0 0.0
    %5686 = vmatpush2.msra.mxu0 0.0
    %5687 = vmatprep.subr.mxu0 0.0
    %5688 = vmatpush2.msra.mxu0 0.0
    %5689 = vmatprep.subr.mxu0 0.0
    %5690 = vmatpush2.msra.mxu0 0.0
    %5691 = vmatprep.subr.mxu0 0.0
    %5692 = vmatpush2.msra.mxu0 0.0
    %5693 = vmatprep.subr.mxu0 0.0
    %5694 = vmatpush2.msra.mxu0 0.0
    %5695 = vmatprep.subr.mxu0 0.0
    %5696 = vmatpush2.msra.mxu0 0.0
    %5697 = vmatprep.mubr.f32.mxu0 0.0
    %5698 = vmatmul.mubr.f32.gmra.mxu0 %v5631
    %v5699 = vpop.f32.mrf.mxu0
    %v5700 = vadd.f32 %v5436, %v5699
    %v5701 = vpop.f32.mrf.mxu0
    %5702 = vdwg.mxu0
    %v5703 = vmax.f32 %v5700, 0.0
    %v5704 = vsel %vm5513, %v5703, 0.0
    %v5705 = vrot.slane %v5704, 4
    %v5706 = vadd.f32 %v5704, %v5705
    %v5707 = vrot.slane %v5706, 2
    %v5708 = vadd.f32 %v5706, %v5707
    %v5709 = vrot.slane %v5708, 1
    %v5710 = vadd.f32 %v5708, %v5709
    %v5711 = vmul.f32 %v5710, %v656
    %v5712 = vsub.f32 %v5703, %v5711
    %v5713 = vmul.f32 %v5712, %v5712
    %v5714 = vsel %vm5513, %v5713, 0.0
    %v5715 = vrot.slane %v5714, 4
    %v5716 = vadd.f32 %v5714, %v5715
    %v5717 = vrot.slane %v5716, 2
    %v5718 = vadd.f32 %v5716, %v5717
    %v5719 = vrot.slane %v5718, 1
    %v5720 = vadd.f32 %v5718, %v5719
    %v5721 = vmul.f32 %v5720, %v656
    %v5722 = vadd.f32 %v5721, 0.2
    %v5723 = vrsqrt.pop %v5722
    %v5724 = vmul.f32 %v5712, %v5723
    %v5726 = vsel %vm5438, %v5426, 0
    %5728 = vmatprep.subr.mxu0 0.0
    %5729 = vmatpush1.msra.mxu0 0.0
    %5730 = vmatprep.subr.mxu0 0.0
    %5731 = vmatpush1.msra.mxu0 0.0
    %5732 = vmatprep.subr.mxu0 0.0
    %5733 = vmatpush1.msra.mxu0 0.0
    %5734 = vmatprep.subr.mxu0 0.0
    %5735 = vmatpush1.msra.mxu0 0.0
    %5736 = vmatprep.subr.mxu0 0.0
    %5737 = vmatpush1.msra.mxu0 0.0
    %5738 = vmatprep.subr.mxu0 0.0
    %5739 = vmatpush1.msra.mxu0 0.0
    %5740 = vmatprep.subr.mxu0 0.0
    %5741 = vmatpush1.msra.mxu0 0.0
    %5742 = vmatprep.subr.mxu0 0.0
    %5743 = vmatpush1.msra.mxu0 0.0
    %5744 = vmatprep.subr.mxu0 0.0
    %5745 = vmatpush1.msra.mxu0 0.0
    %5746 = vmatprep.subr.mxu0 0.0
    %5747 = vmatpush1.msra.mxu0 0.0
    %5748 = vmatprep.subr.mxu0 0.0
    %5749 = vmatpush1.msra.mxu0 0.0
    %5750 = vmatprep.subr.mxu0 0.0
    %5751 = vmatpush1.msra.mxu0 0.0
    %5752 = vmatprep.subr.mxu0 0.0
    %5753 = vmatpush1.msra.mxu0 %v5430
    %5754 = vmatprep.subr.mxu0 0.0
    %5755 = vmatpush1.msra.mxu0 %v5429
    %5756 = vmatprep.subr.mxu0 0.0
    %5757 = vmatpush1.msra.mxu0 %v5428
    %5758 = vmatprep.subr.mxu0 0.0
    %5759 = vmatpush1.msra.mxu0 %v5427
    %5760 = vmatprep.subr.mxu0 0.0
    %5761 = vmatpush2.msra.mxu0 0.0
    %5762 = vmatprep.subr.mxu0 0.0
    %5763 = vmatpush2.msra.mxu0 0.0
    %5764 = vmatprep.subr.mxu0 0.0
    %5765 = vmatpush2.msra.mxu0 0.0
    %5766 = vmatprep.subr.mxu0 0.0
    %5767 = vmatpush2.msra.mxu0 0.0
    %5768 = vmatprep.subr.mxu0 0.0
    %5769 = vmatpush2.msra.mxu0 0.0
    %5770 = vmatprep.subr.mxu0 0.0
    %5771 = vmatpush2.msra.mxu0 0.0
    %5772 = vmatprep.subr.mxu0 0.0
    %5773 = vmatpush2.msra.mxu0 0.0
    %5774 = vmatprep.subr.mxu0 0.0
    %5775 = vmatpush2.msra.mxu0 0.0
    %5776 = vmatprep.subr.mxu0 0.0
    %5777 = vmatpush2.msra.mxu0 0.0
    %5778 = vmatprep.subr.mxu0 0.0
    %5779 = vmatpush2.msra.mxu0 0.0
    %5780 = vmatprep.subr.mxu0 0.0
    %5781 = vmatpush2.msra.mxu0 0.0
    %5782 = vmatprep.subr.mxu0 0.0
    %5783 = vmatpush2.msra.mxu0 0.0
    %5784 = vmatprep.subr.mxu0 0.0
    %5785 = vmatpush2.msra.mxu0 0.0
    %5786 = vmatprep.subr.mxu0 0.0
    %5787 = vmatpush2.msra.mxu0 0.0
    %5788 = vmatprep.subr.mxu0 0.0
    %5789 = vmatpush2.msra.mxu0 0.0
    %5790 = vmatprep.subr.mxu0 0.0
    %5791 = vmatpush2.msra.mxu0 0.0
    %5792 = vmatprep.mubr.f32.mxu0 0.0
    %5793 = vmatmul.mubr.f32.gmra.mxu0 %v5726
    %v5794 = vpop.f32.mrf.mxu0
    %v5795 = vadd.f32 %v5436, %v5794
    %v5796 = vpop.f32.mrf.mxu0
    %5797 = vdwg.mxu0
    %v5798 = vmax.f32 %v5795, 0.0
    %v5799 = vsel %vm5513, %v5798, 0.0
    %v5800 = vrot.slane %v5799, 4
    %v5801 = vadd.f32 %v5799, %v5800
    %v5802 = vrot.slane %v5801, 2
    %v5803 = vadd.f32 %v5801, %v5802
    %v5804 = vrot.slane %v5803, 1
    %v5805 = vadd.f32 %v5803, %v5804
    %v5806 = vmul.f32 %v5805, %v656
    %v5807 = vsub.f32 %v5798, %v5806
    %v5808 = vmul.f32 %v5807, %v5807
    %v5809 = vsel %vm5513, %v5808, 0.0
    %v5810 = vrot.slane %v5809, 4
    %v5811 = vadd.f32 %v5809, %v5810
    %v5812 = vrot.slane %v5811, 2
    %v5813 = vadd.f32 %v5811, %v5812
    %v5814 = vrot.slane %v5813, 1
    %v5815 = vadd.f32 %v5813, %v5814
    %v5816 = vmul.f32 %v5815, %v656
    %v5817 = vadd.f32 %v5816, 0.2
    %v5818 = vrsqrt.pop %v5817
    %v5819 = vmul.f32 %v5807, %v5818
    %v5820 = vld [vmem:[%s39] sm:$0xff]
    %v5821 = vld [vmem:[%s39 + $0x8] sm:$0xff]
    %v5822 = vld [vmem:[#allocation23] sm:$0x1]
    %v5824 = vlaneseq
    %v5825 = vshrl.u32 %v5824, 7
    %v5826 = vsub.s32 0, %v5825
    %v5827 = vrot.slane %v5822, %v5826
    %vm5829 = vcmask 130048
    %v5831 = vsel %vm5829, %v5534, 0
    %5833 = vmatprep.subr.mxu0 0.0
    %5834 = vmatpush1.msra.mxu0 0.0
    %5835 = vmatprep.subr.mxu0 0.0
    %5836 = vmatpush1.msra.mxu0 0.0
    %5837 = vmatprep.subr.mxu0 0.0
    %5838 = vmatpush1.msra.mxu0 0.0
    %5839 = vmatprep.subr.mxu0 0.0
    %5840 = vmatpush1.msra.mxu0 0.0
    %5841 = vmatprep.subr.mxu0 0.0
    %5842 = vmatpush1.msra.mxu0 0.0
    %5843 = vmatprep.subr.mxu0 0.0
    %5844 = vmatpush1.msra.mxu0 0.0
    %5845 = vmatprep.subr.mxu0 0.0
    %5846 = vmatpush1.msra.mxu0 0.0
    %5847 = vmatprep.subr.mxu0 0.0
    %5848 = vmatpush1.msra.mxu0 0.0
    %5849 = vmatprep.subr.mxu0 0.0
    %5850 = vmatpush1.msra.mxu0 0.0
    %5851 = vmatprep.subr.mxu0 0.0
    %5852 = vmatpush1.msra.mxu0 0.0
    %5853 = vmatprep.subr.mxu0 0.0
    %5854 = vmatpush1.msra.mxu0 0.0
    %5855 = vmatprep.subr.mxu0 0.0
    %5856 = vmatpush1.msra.mxu0 0.0
    %5857 = vmatprep.subr.mxu0 0.0
    %5858 = vmatpush1.msra.mxu0 0.0
    %5859 = vmatprep.subr.mxu0 0.0
    %5860 = vmatpush1.msra.mxu0 0.0
    %5861 = vmatprep.subr.mxu0 0.0
    %5862 = vmatpush1.msra.mxu0 %v5821
    %5863 = vmatprep.subr.mxu0 0.0
    %5864 = vmatpush1.msra.mxu0 %v5820
    %5865 = vmatprep.subr.mxu0 0.0
    %5866 = vmatpush2.msra.mxu0 0.0
    %5867 = vmatprep.subr.mxu0 0.0
    %5868 = vmatpush2.msra.mxu0 0.0
    %5869 = vmatprep.subr.mxu0 0.0
    %5870 = vmatpush2.msra.mxu0 0.0
    %5871 = vmatprep.subr.mxu0 0.0
    %5872 = vmatpush2.msra.mxu0 0.0
    %5873 = vmatprep.subr.mxu0 0.0
    %5874 = vmatpush2.msra.mxu0 0.0
    %5875 = vmatprep.subr.mxu0 0.0
    %5876 = vmatpush2.msra.mxu0 0.0
    %5877 = vmatprep.subr.mxu0 0.0
    %5878 = vmatpush2.msra.mxu0 0.0
    %5879 = vmatprep.subr.mxu0 0.0
    %5880 = vmatpush2.msra.mxu0 0.0
    %5881 = vmatprep.subr.mxu0 0.0
    %5882 = vmatpush2.msra.mxu0 0.0
    %5883 = vmatprep.subr.mxu0 0.0
    %5884 = vmatpush2.msra.mxu0 0.0
    %5885 = vmatprep.subr.mxu0 0.0
    %5886 = vmatpush2.msra.mxu0 0.0
    %5887 = vmatprep.subr.mxu0 0.0
    %5888 = vmatpush2.msra.mxu0 0.0
    %5889 = vmatprep.subr.mxu0 0.0
    %5890 = vmatpush2.msra.mxu0 0.0
    %5891 = vmatprep.subr.mxu0 0.0
    %5892 = vmatpush2.msra.mxu0 0.0
    %5893 = vmatprep.subr.mxu0 0.0
    %5894 = vmatpush2.msra.mxu0 0.0
    %5895 = vmatprep.subr.mxu0 0.0
    %5896 = vmatpush2.msra.mxu0 0.0
    %5897 = vmatprep.mubr.f32.mxu0 0.0
    %5898 = vmatmul.mubr.f32.gmra.mxu0 %v5831
    %v5899 = vpop.f32.mrf.mxu0
    %v5900 = vadd.f32 %v5827, %v5899
    %v5901 = vpop.f32.mrf.mxu0
    %5902 = vdwg.mxu0
    %vm5903 = vcmask 17408
    %v5904 = vsel %vm5903, %v5900, -inf
    %5905 = vmax.xlane.f32.xlu0 %v5904
    %v5906 = vpop.xlane.xlu0 %5905
    %v5907 = vsub.f32 %v5900, %v5906
    %v5908 = vmul.f32 %v5907, 1.442695
    %v5909 = vpow.pop %v5908
    %v5910 = vsel %vm5903, %v5909, 0.0
    %5911 = vadd.xlane.f32.xlu0 %v5910
    %v5912 = vpop.xlane.xlu0 %5911
    %v5913 = vrcp.pop %v5912
    %v5914 = vmul.f32 %v5909, %v5913
    %5915 = vst.msk [vmem:[#allocation29] sm:$0x3] %vm5903, %v5914
    %v5916 = vld [vmem:[%s43] sm:$0xff]
    %v5917 = vld [vmem:[%s43 + $0x8] sm:$0xff]
    %v5918 = vld [vmem:[#allocation25] sm:$0x1]
    %v5920 = vlaneseq
    %v5921 = vshrl.u32 %v5920, 7
    %v5922 = vsub.s32 0, %v5921
    %v5923 = vrot.slane %v5918, %v5922
    %v5926 = vsel %vm5829, %v5629, 0
    %5928 = vmatprep.subr.mxu0 0.0
    %5929 = vmatpush1.msra.mxu0 0.0
    %5930 = vmatprep.subr.mxu0 0.0
    %5931 = vmatpush1.msra.mxu0 0.0
    %5932 = vmatprep.subr.mxu0 0.0
    %5933 = vmatpush1.msra.mxu0 0.0
    %5934 = vmatprep.subr.mxu0 0.0
    %5935 = vmatpush1.msra.mxu0 0.0
    %5936 = vmatprep.subr.mxu0 0.0
    %5937 = vmatpush1.msra.mxu0 0.0
    %5938 = vmatprep.subr.mxu0 0.0
    %5939 = vmatpush1.msra.mxu0 0.0
    %5940 = vmatprep.subr.mxu0 0.0
    %5941 = vmatpush1.msra.mxu0 0.0
    %5942 = vmatprep.subr.mxu0 0.0
    %5943 = vmatpush1.msra.mxu0 0.0
    %5944 = vmatprep.subr.mxu0 0.0
    %5945 = vmatpush1.msra.mxu0 0.0
    %5946 = vmatprep.subr.mxu0 0.0
    %5947 = vmatpush1.msra.mxu0 0.0
    %5948 = vmatprep.subr.mxu0 0.0
    %5949 = vmatpush1.msra.mxu0 0.0
    %5950 = vmatprep.subr.mxu0 0.0
    %5951 = vmatpush1.msra.mxu0 0.0
    %5952 = vmatprep.subr.mxu0 0.0
    %5953 = vmatpush1.msra.mxu0 0.0
    %5954 = vmatprep.subr.mxu0 0.0
    %5955 = vmatpush1.msra.mxu0 0.0
    %5956 = vmatprep.subr.mxu0 0.0
    %5957 = vmatpush1.msra.mxu0 %v5917
    %5958 = vmatprep.subr.mxu0 0.0
    %5959 = vmatpush1.msra.mxu0 %v5916
    %5960 = vmatprep.subr.mxu0 0.0
    %5961 = vmatpush2.msra.mxu0 0.0
    %5962 = vmatprep.subr.mxu0 0.0
    %5963 = vmatpush2.msra.mxu0 0.0
    %5964 = vmatprep.subr.mxu0 0.0
    %5965 = vmatpush2.msra.mxu0 0.0
    %5966 = vmatprep.subr.mxu0 0.0
    %5967 = vmatpush2.msra.mxu0 0.0
    %5968 = vmatprep.subr.mxu0 0.0
    %5969 = vmatpush2.msra.mxu0 0.0
    %5970 = vmatprep.subr.mxu0 0.0
    %5971 = vmatpush2.msra.mxu0 0.0
    %5972 = vmatprep.subr.mxu0 0.0
    %5973 = vmatpush2.msra.mxu0 0.0
    %5974 = vmatprep.subr.mxu0 0.0
    %5975 = vmatpush2.msra.mxu0 0.0
    %5976 = vmatprep.subr.mxu0 0.0
    %5977 = vmatpush2.msra.mxu0 0.0
    %5978 = vmatprep.subr.mxu0 0.0
    %5979 = vmatpush2.msra.mxu0 0.0
    %5980 = vmatprep.subr.mxu0 0.0
    %5981 = vmatpush2.msra.mxu0 0.0
    %5982 = vmatprep.subr.mxu0 0.0
    %5983 = vmatpush2.msra.mxu0 0.0
    %5984 = vmatprep.subr.mxu0 0.0
    %5985 = vmatpush2.msra.mxu0 0.0
    %5986 = vmatprep.subr.mxu0 0.0
    %5987 = vmatpush2.msra.mxu0 0.0
    %5988 = vmatprep.subr.mxu0 0.0
    %5989 = vmatpush2.msra.mxu0 0.0
    %5990 = vmatprep.subr.mxu0 0.0
    %5991 = vmatpush2.msra.mxu0 0.0
    %5992 = vmatprep.mubr.f32.mxu0 0.0
    %5993 = vmatmul.mubr.f32.gmra.mxu0 %v5926
    %v5994 = vpop.f32.mrf.mxu0
    %v5995 = vadd.f32 %v5923, %v5994
    %v5996 = vpop.f32.mrf.mxu0
    %5997 = vdwg.mxu0
    %v5998 = vsel %vm5903, %v5995, -inf
    %5999 = vmax.xlane.f32.xlu0 %v5998
    %v6000 = vpop.xlane.xlu0 %5999
    %v6001 = vsub.f32 %v5995, %v6000
    %v6002 = vmul.f32 %v6001, 1.442695
    %v6003 = vpow.pop %v6002
    %v6004 = vsel %vm5903, %v6003, 0.0
    %6005 = vadd.xlane.f32.xlu0 %v6004
    %v6006 = vpop.xlane.xlu0 %6005
    %v6007 = vrcp.pop %v6006
    %v6008 = vmul.f32 %v6003, %v6007
    %6009 = vst.msk [vmem:[#allocation30] sm:$0x3] %vm5903, %v6008
    %v6010 = vld [vmem:[%s47] sm:$0xff]
    %v6011 = vld [vmem:[%s47 + $0x8] sm:$0xff]
    %v6012 = vld [vmem:[#allocation26] sm:$0x1]
    %v6014 = vlaneseq
    %v6015 = vshrl.u32 %v6014, 7
    %v6016 = vsub.s32 0, %v6015
    %v6017 = vrot.slane %v6012, %v6016
    %v6020 = vsel %vm5829, %v5724, 0
    %6022 = vmatprep.subr.mxu0 0.0
    %6023 = vmatpush1.msra.mxu0 0.0
    %6024 = vmatprep.subr.mxu0 0.0
    %6025 = vmatpush1.msra.mxu0 0.0
    %6026 = vmatprep.subr.mxu0 0.0
    %6027 = vmatpush1.msra.mxu0 0.0
    %6028 = vmatprep.subr.mxu0 0.0
    %6029 = vmatpush1.msra.mxu0 0.0
    %6030 = vmatprep.subr.mxu0 0.0
    %6031 = vmatpush1.msra.mxu0 0.0
    %6032 = vmatprep.subr.mxu0 0.0
    %6033 = vmatpush1.msra.mxu0 0.0
    %6034 = vmatprep.subr.mxu0 0.0
    %6035 = vmatpush1.msra.mxu0 0.0
    %6036 = vmatprep.subr.mxu0 0.0
    %6037 = vmatpush1.msra.mxu0 0.0
    %6038 = vmatprep.subr.mxu0 0.0
    %6039 = vmatpush1.msra.mxu0 0.0
    %6040 = vmatprep.subr.mxu0 0.0
    %6041 = vmatpush1.msra.mxu0 0.0
    %6042 = vmatprep.subr.mxu0 0.0
    %6043 = vmatpush1.msra.mxu0 0.0
    %6044 = vmatprep.subr.mxu0 0.0
    %6045 = vmatpush1.msra.mxu0 0.0
    %6046 = vmatprep.subr.mxu0 0.0
    %6047 = vmatpush1.msra.mxu0 0.0
    %6048 = vmatprep.subr.mxu0 0.0
    %6049 = vmatpush1.msra.mxu0 0.0
    %6050 = vmatprep.subr.mxu0 0.0
    %6051 = vmatpush1.msra.mxu0 %v6011
    %6052 = vmatprep.subr.mxu0 0.0
    %6053 = vmatpush1.msra.mxu0 %v6010
    %6054 = vmatprep.subr.mxu0 0.0
    %6055 = vmatpush2.msra.mxu0 0.0
    %6056 = vmatprep.subr.mxu0 0.0
    %6057 = vmatpush2.msra.mxu0 0.0
    %6058 = vmatprep.subr.mxu0 0.0
    %6059 = vmatpush2.msra.mxu0 0.0
    %6060 = vmatprep.subr.mxu0 0.0
    %6061 = vmatpush2.msra.mxu0 0.0
    %6062 = vmatprep.subr.mxu0 0.0
    %6063 = vmatpush2.msra.mxu0 0.0
    %6064 = vmatprep.subr.mxu0 0.0
    %6065 = vmatpush2.msra.mxu0 0.0
    %6066 = vmatprep.subr.mxu0 0.0
    %6067 = vmatpush2.msra.mxu0 0.0
    %6068 = vmatprep.subr.mxu0 0.0
    %6069 = vmatpush2.msra.mxu0 0.0
    %6070 = vmatprep.subr.mxu0 0.0
    %6071 = vmatpush2.msra.mxu0 0.0
    %6072 = vmatprep.subr.mxu0 0.0
    %6073 = vmatpush2.msra.mxu0 0.0
    %6074 = vmatprep.subr.mxu0 0.0
    %6075 = vmatpush2.msra.mxu0 0.0
    %6076 = vmatprep.subr.mxu0 0.0
    %6077 = vmatpush2.msra.mxu0 0.0
    %6078 = vmatprep.subr.mxu0 0.0
    %6079 = vmatpush2.msra.mxu0 0.0
    %6080 = vmatprep.subr.mxu0 0.0
    %6081 = vmatpush2.msra.mxu0 0.0
    %6082 = vmatprep.subr.mxu0 0.0
    %6083 = vmatpush2.msra.mxu0 0.0
    %6084 = vmatprep.subr.mxu0 0.0
    %6085 = vmatpush2.msra.mxu0 0.0
    %6086 = vmatprep.mubr.f32.mxu0 0.0
    %6087 = vmatmul.mubr.f32.gmra.mxu0 %v6020
    %v6088 = vpop.f32.mrf.mxu0
    %v6089 = vadd.f32 %v6017, %v6088
    %v6090 = vpop.f32.mrf.mxu0
    %6091 = vdwg.mxu0
    %vm6092 = vcmask 41984
    %v6093 = vsel %vm6092, %v6089, -inf
    %6094 = vmax.xlane.f32.xlu0 %v6093
    %v6095 = vpop.xlane.xlu0 %6094
    %v6096 = vsub.f32 %v6089, %v6095
    %v6097 = vmul.f32 %v6096, 1.442695
    %v6098 = vpow.pop %v6097
    %v6099 = vsel %vm6092, %v6098, 0.0
    %6100 = vadd.xlane.f32.xlu0 %v6099
    %v6101 = vpop.xlane.xlu0 %6100
    %v6102 = vrcp.pop %v6101
    %v6103 = vmul.f32 %v6098, %v6102
    %6104 = vst.msk [vmem:[#allocation32] sm:$0x3] %vm6092, %v6103
    %v6105 = vld [vmem:[%s51] sm:$0xff]
    %v6106 = vld [vmem:[%s51 + $0x8] sm:$0xff]
    %v6107 = vld [vmem:[#allocation28] sm:$0x1]
    %v6109 = vlaneseq
    %v6110 = vshrl.u32 %v6109, 7
    %v6111 = vsub.s32 0, %v6110
    %v6112 = vrot.slane %v6107, %v6111
    %v6115 = vsel %vm5829, %v5819, 0
    %6117 = vmatprep.subr.mxu0 0.0
    %6118 = vmatpush1.msra.mxu0 0.0
    %6119 = vmatprep.subr.mxu0 0.0
    %6120 = vmatpush1.msra.mxu0 0.0
    %6121 = vmatprep.subr.mxu0 0.0
    %6122 = vmatpush1.msra.mxu0 0.0
    %6123 = vmatprep.subr.mxu0 0.0
    %6124 = vmatpush1.msra.mxu0 0.0
    %6125 = vmatprep.subr.mxu0 0.0
    %6126 = vmatpush1.msra.mxu0 0.0
    %6127 = vmatprep.subr.mxu0 0.0
    %6128 = vmatpush1.msra.mxu0 0.0
    %6129 = vmatprep.subr.mxu0 0.0
    %6130 = vmatpush1.msra.mxu0 0.0
    %6131 = vmatprep.subr.mxu0 0.0
    %6132 = vmatpush1.msra.mxu0 0.0
    %6133 = vmatprep.subr.mxu0 0.0
    %6134 = vmatpush1.msra.mxu0 0.0
    %6135 = vmatprep.subr.mxu0 0.0
    %6136 = vmatpush1.msra.mxu0 0.0
    %6137 = vmatprep.subr.mxu0 0.0
    %6138 = vmatpush1.msra.mxu0 0.0
    %6139 = vmatprep.subr.mxu0 0.0
    %6140 = vmatpush1.msra.mxu0 0.0
    %6141 = vmatprep.subr.mxu0 0.0
    %6142 = vmatpush1.msra.mxu0 0.0
    %6143 = vmatprep.subr.mxu0 0.0
    %6144 = vmatpush1.msra.mxu0 0.0
    %6145 = vmatprep.subr.mxu0 0.0
    %6146 = vmatpush1.msra.mxu0 %v6106
    %6147 = vmatprep.subr.mxu0 0.0
    %6148 = vmatpush1.msra.mxu0 %v6105
    %6149 = vmatprep.subr.mxu0 0.0
    %6150 = vmatpush2.msra.mxu0 0.0
    %6151 = vmatprep.subr.mxu0 0.0
    %6152 = vmatpush2.msra.mxu0 0.0
    %6153 = vmatprep.subr.mxu0 0.0
    %6154 = vmatpush2.msra.mxu0 0.0
    %6155 = vmatprep.subr.mxu0 0.0
    %6156 = vmatpush2.msra.mxu0 0.0
    %6157 = vmatprep.subr.mxu0 0.0
    %6158 = vmatpush2.msra.mxu0 0.0
    %6159 = vmatprep.subr.mxu0 0.0
    %6160 = vmatpush2.msra.mxu0 0.0
    %6161 = vmatprep.subr.mxu0 0.0
    %6162 = vmatpush2.msra.mxu0 0.0
    %6163 = vmatprep.subr.mxu0 0.0
    %6164 = vmatpush2.msra.mxu0 0.0
    %6165 = vmatprep.subr.mxu0 0.0
    %6166 = vmatpush2.msra.mxu0 0.0
    %6167 = vmatprep.subr.mxu0 0.0
    %6168 = vmatpush2.msra.mxu0 0.0
    %6169 = vmatprep.subr.mxu0 0.0
    %6170 = vmatpush2.msra.mxu0 0.0
    %6171 = vmatprep.subr.mxu0 0.0
    %6172 = vmatpush2.msra.mxu0 0.0
    %6173 = vmatprep.subr.mxu0 0.0
    %6174 = vmatpush2.msra.mxu0 0.0
    %6175 = vmatprep.subr.mxu0 0.0
    %6176 = vmatpush2.msra.mxu0 0.0
    %6177 = vmatprep.subr.mxu0 0.0
    %6178 = vmatpush2.msra.mxu0 0.0
    %6179 = vmatprep.subr.mxu0 0.0
    %6180 = vmatpush2.msra.mxu0 0.0
    %6181 = vmatprep.mubr.f32.mxu0 0.0
    %6182 = vmatmul.mubr.f32.gmra.mxu0 %v6115
    %v6183 = vpop.f32.mrf.mxu0
    %v6184 = vadd.f32 %v6112, %v6183
    %v6185 = vpop.f32.mrf.mxu0
    %6186 = vdwg.mxu0
    %vm6187 = vcmask 25600
    %v6188 = vsel %vm6187, %v6184, -inf
    %6189 = vmax.xlane.f32.xlu0 %v6188
    %v6190 = vpop.xlane.xlu0 %6189
    %v6191 = vsub.f32 %v6184, %v6190
    %v6192 = vmul.f32 %v6191, 1.442695
    %v6193 = vpow.pop %v6192
    %v6194 = vsel %vm6187, %v6193, 0.0
    %6195 = vadd.xlane.f32.xlu0 %v6194
    %v6196 = vpop.xlane.xlu0 %6195
    %v6197 = vrcp.pop %v6196
    %v6198 = vmul.f32 %v6193, %v6197
    %6199 = vst.msk [vmem:[#allocation33] sm:$0x3] %vm6187, %v6198
    // Predicated region
    $region178: #{forward.1} parent=1 // pred_check
      _
    $region179: #{forward.1} parent=1 // pred_check_branch
      %6201 = sbr.rel (0) target = $region181
    $region180: #{forward.1} parent=1 // pred_region
      %s6203 = ssub.s32 32, 32
      %6204 = vsyncadd [#allocation4], %s6203
      %s6206 = sshll.u32 [#allocation29], 4
      %s6207 = int_to_ptr.vmem [resolvable:$true] %s6206
      %6209 = dma.vmem_to_hbm [thread:$0]  %s6207, 32, %s55, [#allocation4]
    $region181: #{forward.1} parent=1 // pred_fallthru
      _
    // Predicated region
    $region182: #{forward.1} parent=1 // pred_check
      _
    $region183: #{forward.1} parent=1 // pred_check_branch
      %6211 = sbr.rel (0) target = $region185
    $region184: #{forward.1} parent=1 // pred_region
      %s6213 = ssub.s32 32, 32
      %6214 = vsyncadd [#allocation31], %s6213
      %s6216 = sshll.u32 [#allocation30], 4
      %s6217 = int_to_ptr.vmem [resolvable:$true] %s6216
      %6219 = dma.vmem_to_hbm [thread:$0]  %s6217, 32, %s57, [#allocation31]
    $region185: #{forward.1} parent=1 // pred_fallthru
      _
    // Predicated region
    $region186: #{forward.1} parent=1 // pred_check
      _
    $region187: #{forward.1} parent=1 // pred_check_branch
      %6221 = sbr.rel (0) target = $region189
    $region188: #{forward.1} parent=1 // pred_region
      %s6223 = ssub.s32 32, 32
      %6224 = vsyncadd [#allocation31], %s6223
      %s6226 = sshll.u32 [#allocation32], 4
      %s6227 = int_to_ptr.vmem [resolvable:$true] %s6226
      %6229 = dma.vmem_to_hbm [thread:$0]  %s6227, 32, %s59, [#allocation31]
    $region189: #{forward.1} parent=1 // pred_fallthru
      _
    // Predicated region
    $region190: #{forward.1} parent=1 // pred_check
      _
    $region191: #{forward.1} parent=1 // pred_check_branch
      %6231 = sbr.rel (0) target = $region193
    $region192: #{forward.1} parent=1 // pred_region
      %s6233 = ssub.s32 32, 32
      %6234 = vsyncadd [#allocation34], %s6233
      %s6236 = sshll.u32 [#allocation33], 4
      %s6237 = int_to_ptr.vmem [resolvable:$true] %s6236
      %6239 = dma.vmem_to_hbm [thread:$0]  %s6237, 32, %s61, [#allocation34]
    $region193: #{forward.1} parent=1 // pred_fallthru
      _
    // Predicated region
    $region194: #{forward.1} parent=1 // pred_check
      _
    $region195: #{forward.1} parent=1 // pred_check_branch
      %6241 = sbr.rel (0) target = $region197
    $region196: #{forward.1} parent=1 // pred_region
      %6242 = dma.done [#allocation4], 32
    $region197: #{forward.1} parent=1 // pred_fallthru
      _
    // Predicated region
    $region198: #{forward.1} parent=1 // pred_check
      _
    $region199: #{forward.1} parent=1 // pred_check_branch
      %6244 = sbr.rel (0) target = $region201
    $region200: #{forward.1} parent=1 // pred_region
      %6245 = dma.done [#allocation31], 32
    $region201: #{forward.1} parent=1 // pred_fallthru
      _
    // Predicated region
    $region202: #{forward.1} parent=1 // pred_check
      _
    $region203: #{forward.1} parent=1 // pred_check_branch
      %6247 = sbr.rel (0) target = $region205
    $region204: #{forward.1} parent=1 // pred_region
      %6248 = dma.done [#allocation31], 32
    $region205: #{forward.1} parent=1 // pred_fallthru
      _
    // Predicated region
    $region206: #{forward.1} parent=1 // pred_check
      _
    $region207: #{forward.1} parent=1 // pred_check_branch
      %6250 = sbr.rel (0) target = $region209
    $region208: #{forward.1} parent=1 // pred_region
      %6251 = dma.done [#allocation34], 32
    $region209: #{forward.1} parent=1 // pred_fallthru
      _
    %6252 = vsyncpa [#allocation3], 1
    %6253 = vsyncpa [#allocation6], 1
    %6254 = vsyncpa [#allocation9], 1
    %6255 = vsyncpa [#allocation12], 1
    %6256 = vsyncpa [#allocation15], 1
    %6257 = vsyncpa [#allocation18], 1
    %6258 = vsyncpa [#allocation21], 1
    %6259 = vsyncpa [#allocation24], 1
    %6260 = vsyncpa [#allocation27], 1
    %6261 = vsyncpa [#allocation4], 1
    %6262 = vsyncpa [#allocation31], 1
    %6263 = vsyncpa [#allocation34], 1

</llo_original>
